<compile_context>
chip_gen: v5e
topology: v5e:2x2
jax: 0.10.0
libtpu: 0.0.40
codegen_flags: <defaults>
</compile_context>

<pallas_src>
import functools

import jax
import jax.numpy as jnp
from jax.experimental import pallas as pl
from jax.experimental.pallas import tpu as pltpu


# ---------------------------------------------------------------------------
# Tile selection helpers
# ---------------------------------------------------------------------------

def _round_up(x, m):
    return (x + m - 1) // m * m


def _detect_big_tile():
    # v6e / v7x have a 2x256^2 MXU -> prefer 256-wide N/K tiles when they do
    # not add excessive zero padding; v5e (4x128^2 MXU, 16 MiB scoped VMEM
    # default) and unknown chips stay at 128.
    try:
        kind = jax.devices()[0].device_kind.lower()
    except Exception:
        return 128
    if "v6" in kind or "v7" in kind:
        return 256
    return 128


_BIG_TILE = _detect_big_tile()


def _pick_tile(dim, big):
    """Pick 128 or `big` (a multiple of 128) for a lane/K tile, minimizing padding."""
    if big == 128 or dim < big:
        return 128
    if _round_up(dim, big) - dim <= _round_up(dim, 128) - dim:
        return big
    return 128


# ---------------------------------------------------------------------------
# Fused matmul + bias (+ residual) + ReLU Pallas kernels
# ---------------------------------------------------------------------------

def _matmul_bias_kernel(a_ref, b_ref, bias_ref, o_ref, acc_ref, *, apply_relu):
    """o = maybe_relu(a @ b + bias)."""
    @pl.when(pl.program_id(2) == 0)
    def _init():
        acc_ref[...] = jnp.zeros_like(acc_ref)

    acc_ref[...] += jnp.dot(a_ref[...], b_ref[...],
                            preferred_element_type=jnp.float32)

    @pl.when(pl.program_id(2) == pl.num_programs(2) - 1)
    def _finalize():
        y = acc_ref[...] + bias_ref[...]
        if apply_relu:
            y = jnp.maximum(y, 0.0)
        o_ref[...] = y.astype(o_ref.dtype)


def _matmul_bias_res_kernel(a_ref, b_ref, bias_ref, r_ref, o_ref, acc_ref, *,
                            apply_relu):
    """o = maybe_relu(a @ b + bias + residual)."""
    @pl.when(pl.program_id(2) == 0)
    def _init():
        acc_ref[...] = jnp.zeros_like(acc_ref)

    acc_ref[...] += jnp.dot(a_ref[...], b_ref[...],
                            preferred_element_type=jnp.float32)

    @pl.when(pl.program_id(2) == pl.num_programs(2) - 1)
    def _finalize():
        y = acc_ref[...] + bias_ref[...] + r_ref[...]
        if apply_relu:
            y = jnp.maximum(y, 0.0)
        o_ref[...] = y.astype(o_ref.dtype)


def fused_matmul(a, b, bias, residual=None, relu=False):
    """y = maybe_relu(a @ b + bias[None, :] (+ residual)).

    a: [M, K] (cast to bf16), b: [K, N] bf16 weights (BN scale already folded),
    bias: [N] f32, residual: [M, N] f32 or None. f32 accumulation in VMEM.
    """
    M, K = a.shape
    K2, N = b.shape
    assert K == K2

    tm = min(128, _round_up(M, 8))
    tn = _pick_tile(N, _BIG_TILE)
    tk = _pick_tile(K, _BIG_TILE)
    Mp, Np, Kp = _round_up(M, tm), _round_up(N, tn), _round_up(K, tk)

    a_p = jnp.pad(a.astype(jnp.bfloat16), ((0, Mp - M), (0, Kp - K)))
    b_p = jnp.pad(b.astype(jnp.bfloat16), ((0, Kp - K), (0, Np - N)))
    bias_p = jnp.pad(bias.reshape(1, N).astype(jnp.float32),
                     ((0, 0), (0, Np - N)))

    grid = (Mp // tm, Np // tn, Kp // tk)

    in_specs = [
        pl.BlockSpec((tm, tk), lambda i, j, k: (i, k)),
        pl.BlockSpec((tk, tn), lambda i, j, k: (k, j)),
        pl.BlockSpec((1, tn), lambda i, j, k: (0, j)),
    ]
    operands = [a_p, b_p, bias_p]
    bytes_accessed = Mp * Kp * 2 + Kp * Np * 2 + Np * 4 + Mp * Np * 4

    if residual is None:
        kernel = functools.partial(_matmul_bias_kernel, apply_relu=relu)
    else:
        r_p = jnp.pad(residual.astype(jnp.float32), ((0, Mp - M), (0, Np - N)))
        in_specs.append(pl.BlockSpec((tm, tn), lambda i, j, k: (i, j)))
        operands.append(r_p)
        bytes_accessed += Mp * Np * 4
        kernel = functools.partial(_matmul_bias_res_kernel, apply_relu=relu)

    out = pl.pallas_call(
        kernel,
        out_shape=jax.ShapeDtypeStruct((Mp, Np), jnp.float32),
        grid_spec=pltpu.PrefetchScalarGridSpec(
            num_scalar_prefetch=0,
            grid=grid,
            in_specs=in_specs,
            out_specs=pl.BlockSpec((tm, tn), lambda i, j, k: (i, j)),
            scratch_shapes=[pltpu.VMEM((tm, tn), jnp.float32)],
        ),
        compiler_params=pltpu.CompilerParams(
            dimension_semantics=("parallel", "parallel", "arbitrary")),
        cost_estimate=pl.CostEstimate(
            flops=2 * Mp * Np * Kp,
            transcendentals=0,
            bytes_accessed=bytes_accessed),
    )(*operands)

    return out[:M, :N]


# ---------------------------------------------------------------------------
# Conv / pooling glue (patch extraction in XLA; matmul in Pallas)
# ---------------------------------------------------------------------------

def conv2d_bn(x, cp, stride, padding, residual=None, relu=False):
    """x: [N,H,W,Cin] f32 -> [N,OH,OW,Cout] f32 via the fused Pallas matmul."""
    N, H, W, C = x.shape
    kh, kw, cout = cp["kh"], cp["kw"], cp["cout"]
    if kh == 1 and kw == 1 and padding == 0:
        xs = x[:, ::stride, ::stride, :]
        Nb, OH, OW, _ = xs.shape
        cols = xs.reshape(Nb * OH * OW, C)
    else:
        # Patch extraction; output channel ordering is (Cin, kh, kw) which
        # matches the (Cin, KH, KW, Cout) weight reshape done in _prep_conv.
        patches = jax.lax.conv_general_dilated_patches(
            x, filter_shape=(kh, kw), window_strides=(stride, stride),
            padding=((padding, padding), (padding, padding)),
            dimension_numbers=("NHWC", "HWIO", "NHWC"))
        Nb, OH, OW, _ = patches.shape
        cols = patches.reshape(Nb * OH * OW, C * kh * kw)

    res_flat = None
    if residual is not None:
        res_flat = residual.reshape(Nb * OH * OW, cout)
    y = fused_matmul(cols, cp["wm"], cp["bias"], residual=res_flat, relu=relu)
    return y.reshape(Nb, OH, OW, cout)


def maxpool2d(x, k=3, stride=2, padding=1):
    N, H, W, C = x.shape
    neg = jnp.finfo(x.dtype).min
    xp = jnp.pad(x, ((0, 0), (padding, padding), (padding, padding), (0, 0)),
                 constant_values=neg)
    OH = (H + 2 * padding - k) // stride + 1
    OW = (W + 2 * padding - k) // stride + 1
    out = jnp.full((N, OH, OW, C), neg, x.dtype)
    for i in range(k):
        for j in range(k):
            out = jnp.maximum(
                out, xp[:, i:i + stride * OH:stride, j:j + stride * OW:stride, :])
    return out


# ---------------------------------------------------------------------------
# Parameter initialization (matches module __init__ shapes; weights prepared
# once in matmul layout with BN folded in)
# ---------------------------------------------------------------------------

def _kaiming_conv(key, cout, cin, kh, kw):
    fan_out = cout * kh * kw
    std = (2.0 / fan_out) ** 0.5
    return jax.random.normal(key, (cout, cin, kh, kw), jnp.float32) * std


def _bn_fold(gamma, beta, running_mean, running_var, eps=1e-5):
    scale = gamma / jnp.sqrt(running_var + eps)
    bias = beta - running_mean * scale
    return scale, bias


def _bn_params(c):
    # Fresh init, eval mode: weight=1, bias=0, running_mean=0, running_var=1.
    # TODO(synk): SyncBatchNorm training-mode cross-device batch statistics are
    # not reproduced in this single-device synthetic kernel.
    return _bn_fold(jnp.ones((c,)), jnp.zeros((c,)),
                    jnp.zeros((c,)), jnp.ones((c,)))


def _prep_conv(w_oihw, bn_scale, bn_bias):
    """Fold BN scale into the weights; pre-reshape to (Cin*KH*KW, Cout) bf16."""
    cout, cin, kh, kw = w_oihw.shape
    wm = jnp.transpose(w_oihw, (1, 2, 3, 0)).reshape(cin * kh * kw, cout)
    wm = wm * bn_scale[None, :]
    return {
        "wm": wm.astype(jnp.bfloat16),
        "bias": bn_bias.astype(jnp.float32),
        "kh": kh, "kw": kw, "cout": cout,
    }


def _linear(key, d_in, d_out):
    w = jax.random.normal(key, (d_in, d_out), jnp.float32) * 0.01
    b = jnp.zeros((d_out,), jnp.float32)
    return w, b


def _basic_block_params(key, inplanes, planes, stride):
    k1, k2, k3 = jax.random.split(key, 3)
    s1, b1 = _bn_params(planes)
    s2, b2 = _bn_params(planes)
    blk = {
        "conv1": _prep_conv(_kaiming_conv(k1, planes, inplanes, 3, 3), s1, b1),
        "conv2": _prep_conv(_kaiming_conv(k2, planes, planes, 3, 3), s2, b2),
        "stride": stride,
        "down": None,
    }
    if stride != 1 or inplanes != planes:
        ds, db = _bn_params(planes)
        blk["down"] = _prep_conv(_kaiming_conv(k3, planes, inplanes, 1, 1), ds, db)
    return blk


def init_resnet_params(key, layers=(1, 1, 1, 1), num_classes=10):
    expansion = 1                      # BasicBlock
    feat_dim = 512 * expansion
    keys = iter(jax.random.split(key, 64))
    params = {}

    s, b = _bn_params(64)
    params["stem"] = _prep_conv(_kaiming_conv(next(keys), 64, 3, 7, 7), s, b)

    inplanes = 64
    for li, (planes, nblocks, stride) in enumerate(
            zip((64, 128, 256, 512), layers, (1, 2, 2, 2)), start=1):
        blocks = []
        for bidx in range(nblocks):
            st = stride if bidx == 0 else 1
            blocks.append(_basic_block_params(next(keys), inplanes, planes, st))
            inplanes = planes * expansion
        params[f"layer{li}"] = blocks

    params["fc_w"], params["fc_b"] = _linear(next(keys), feat_dim, num_classes)

    # Aux heads (approximation of Aux_Layer1 / Aux_Layer2, see module note).
    params["aux2_w1"], params["aux2_b1"] = _linear(next(keys),
                                                   expansion * 128, feat_dim)
    params["aux2_w2"], params["aux2_b2"] = _linear(next(keys),
                                                   feat_dim, num_classes)
    params["aux3_w1"], params["aux3_b1"] = _linear(next(keys),
                                                   expansion * 256, feat_dim)
    params["aux3_w2"], params["aux3_b2"] = _linear(next(keys),
                                                   feat_dim, num_classes)
    return params


# ---------------------------------------------------------------------------
# Forward pass
# ---------------------------------------------------------------------------

def basic_block_forward(x, blk):
    stride = blk["stride"]
    if blk["down"] is not None:
        identity = conv2d_bn(x, blk["down"], stride, 0, relu=False)
    else:
        identity = x
    out = conv2d_bn(x, blk["conv1"], stride, 1, relu=True)
    out = conv2d_bn(out, blk["conv2"], 1, 1, residual=identity, relu=True)
    return out


def aux_head(x, w1, b1, w2, b2):
    # GlobalAvgPool -> Linear + ReLU (features) -> Linear (logits).
    # M = batch = 2: plain XLA dot is strictly faster than a padded Pallas call.
    f = jnp.mean(x, axis=(1, 2))                                  # [N, C]
    feat = jax.nn.relu(f @ w1 + b1)                               # [N, feat_dim]
    logits = feat @ w2 + b2                                       # [N, classes]
    return logits, feat


def resnet_forward(params, x_nchw):
    # PyTorch input is NCHW; kernels use NHWC.
    x = jnp.transpose(x_nchw, (0, 2, 3, 1)).astype(jnp.float32)

    x = conv2d_bn(x, params["stem"], 2, 3, relu=True)
    x = maxpool2d(x, k=3, stride=2, padding=1)

    for blk in params["layer1"]:
        x = basic_block_forward(x, blk)
    for blk in params["layer2"]:
        x = basic_block_forward(x, blk)
    logits2, features2 = aux_head(x, params["aux2_w1"], params["aux2_b1"],
                                  params["aux2_w2"], params["aux2_b2"])
    for blk in params["layer3"]:
        x = basic_block_forward(x, blk)
    logits3, features3 = aux_head(x, params["aux3_w1"], params["aux3_b1"],
                                  params["aux3_w2"], params["aux3_b2"])
    for blk in params["layer4"]:
        x = basic_block_forward(x, blk)

    feature = jnp.mean(x, axis=(1, 2))                            # avgpool+flatten
    logit = feature @ params["fc_w"] + params["fc_b"]             # tiny fc: XLA dot

    logits = [logits2, logits3, logit]
    features = [features2, features3, feature]
    return logits, features


# ---------------------------------------------------------------------------

if __name__ == "__main__":
    key = jax.random.PRNGKey(0)
    k_x, k_p = jax.random.split(key)
    # Small input consistent with the module: NCHW, 3 input channels.
    x = jax.random.normal(k_x, (2, 3, 32, 32), jnp.float32)
    params = init_resnet_params(k_p, layers=(1, 1, 1, 1), num_classes=10)

    forward = jax.jit(functools.partial(resnet_forward, params))
    logits, features = forward(x)
    jax.block_until_ready((logits, features))

    assert logits[0].shape == (2, 10) and logits[1].shape == (2, 10)
    assert logits[2].shape == (2, 10)
    assert features[0].shape == (2, 512) and features[1].shape == (2, 512)
    assert features[2].shape == (2, 512)
    print("KERNEL_OK")
</pallas_src>

<mosaic_0001>
module attributes {stable_mosaic.version = 11 : i64} {
  func.func @_matmul_bias_kernel(%arg0: i32, %arg1: i32, %arg2: i32, %arg3: memref<128x128xbf16, #tpu.memory_space<vmem>>, %arg4: memref<128x128xbf16, #tpu.memory_space<vmem>>, %arg5: memref<1x128xf32, #tpu.memory_space<vmem>>, %arg6: memref<128x128xf32, #tpu.memory_space<vmem>>, %arg7: memref<128x128xf32, #tpu.memory_space<vmem>>) attributes {dimension_semantics = [#tpu.dimension_semantics<parallel>, #tpu.dimension_semantics<parallel>, #tpu.dimension_semantics<arbitrary>], iteration_bounds = array<i64: 4, 1, 2>, scalar_prefetch = 0 : i64, scratch_operands = 1 : i64, tpu.core_type = #tpu.core_type<tc>, window_params = [{transform_indices = @transform_0, window_bounds = array<i64: 128, 128>}, {transform_indices = @transform_1, window_bounds = array<i64: 128, 128>}, {transform_indices = @transform_2, window_bounds = array<i64: 1, 128>}, {transform_indices = @transform_3, window_bounds = array<i64: 128, 128>}]} {
    %c0_i32 = arith.constant 0 : i32
    %0 = arith.cmpi eq, %arg2, %c0_i32 : i32
    %1 = arith.extui %0 : i1 to i32
    %c0_i32_0 = arith.constant 0 : i32
    %2 = arith.cmpi ne, %1, %c0_i32_0 : i32
    scf.if %2 {
      %cst_9 = arith.constant 0.000000e+00 : f32
      %12 = vector.broadcast %cst_9 : f32 to vector<128x128xf32>
      %c0_10 = arith.constant 0 : index
      %c0_11 = arith.constant 0 : index
      %13 = vector.load %arg7[%c0_10, %c0_11] : memref<128x128xf32, #tpu.memory_space<vmem>>, vector<128x128xf32>
      tpu.vector_store %arg7[%c0_10, %c0_11], %12 {strides = array<i32>} : memref<128x128xf32, #tpu.memory_space<vmem>>, vector<128x128xf32>,
    } else {
    }
    %c0 = arith.constant 0 : index
    %c0_1 = arith.constant 0 : index
    %3 = vector.load %arg7[%c0, %c0_1] : memref<128x128xf32, #tpu.memory_space<vmem>>, vector<128x128xf32>
    %c0_2 = arith.constant 0 : index
    %c0_3 = arith.constant 0 : index
    %4 = vector.load %arg3[%c0_2, %c0_3] : memref<128x128xbf16, #tpu.memory_space<vmem>>, vector<128x128xbf16>
    %c0_4 = arith.constant 0 : index
    %c0_5 = arith.constant 0 : index
    %5 = vector.load %arg4[%c0_4, %c0_5] : memref<128x128xbf16, #tpu.memory_space<vmem>>, vector<128x128xbf16>
    %cst = arith.constant dense<0.000000e+00> : vector<128x128xf32>
    %6 = tpu.matmul %4, %5, %cst {dimension_numbers = #tpu.dot_dimension_numbers<[1], [0], [0], [1], [0, 0, 1, 1], [], []>} : vector<128x128xbf16>, vector<128x128xbf16>, vector<128x128xf32> -> vector<128x128xf32>
    %7 = arith.addf %3, %6 : vector<128x128xf32>
    %c0_6 = arith.constant 0 : index
    %c0_7 = arith.constant 0 : index
    %8 = vector.load %arg7[%c0_6, %c0_7] : memref<128x128xf32, #tpu.memory_space<vmem>>, vector<128x128xf32>
    tpu.vector_store %arg7[%c0_6, %c0_7], %7 {strides = array<i32>} : memref<128x128xf32, #tpu.memory_space<vmem>>, vector<128x128xf32>,
    %c1_i32 = arith.constant 1 : i32
    %9 = arith.cmpi eq, %arg2, %c1_i32 : i32
    %10 = arith.extui %9 : i1 to i32
    %c0_i32_8 = arith.constant 0 : i32
    %11 = arith.cmpi ne, %10, %c0_i32_8 : i32
    scf.if %11 {
      %c0_9 = arith.constant 0 : index
      %c0_10 = arith.constant 0 : index
      %12 = vector.load %arg7[%c0_9, %c0_10] : memref<128x128xf32, #tpu.memory_space<vmem>>, vector<128x128xf32>
      %c0_11 = arith.constant 0 : index
      %c0_12 = arith.constant 0 : index
      %13 = vector.load %arg5[%c0_11, %c0_12] : memref<1x128xf32, #tpu.memory_space<vmem>>, vector<1x128xf32>
      %14 = vector.broadcast %13 : vector<1x128xf32> to vector<128x128xf32>
      %15 = arith.addf %12, %14 : vector<128x128xf32>
      %cst_13 = arith.constant 0.000000e+00 : f32
      %16 = vector.broadcast %cst_13 : f32 to vector<128x128xf32>
      %17 = arith.maximumf %15, %16 : vector<128x128xf32>
      %c0_14 = arith.constant 0 : index
      %c0_15 = arith.constant 0 : index
      %18 = vector.load %arg6[%c0_14, %c0_15] : memref<128x128xf32, #tpu.memory_space<vmem>>, vector<128x128xf32>
      tpu.vector_store %arg6[%c0_14, %c0_15], %17 {strides = array<i32>} : memref<128x128xf32, #tpu.memory_space<vmem>>, vector<128x128xf32>,
    } else {
    }
    return
  }
  func.func @transform_0(%arg0: i32, %arg1: i32, %arg2: i32) -> (i32, i32) {
    %c0_i32 = arith.constant 0 : i32
    return %arg0, %arg2 : i32, i32
  }
  func.func @transform_1(%arg0: i32, %arg1: i32, %arg2: i32) -> (i32, i32) {
    %c0_i32 = arith.constant 0 : i32
    return %arg2, %arg1 : i32, i32
  }
  func.func @transform_2(%arg0: i32, %arg1: i32, %arg2: i32) -> (i32, i32) {
    %c0_i32 = arith.constant 0 : i32
    %c0_i32_0 = arith.constant 0 : i32
    return %c0_i32, %arg1 : i32, i32
  }
  func.func @transform_3(%arg0: i32, %arg1: i32, %arg2: i32) -> (i32, i32) {
    %c0_i32 = arith.constant 0 : i32
    return %arg0, %arg1 : i32, i32
  }
}

module attributes {stable_mosaic.version = 11 : i64} {
  func.func @_matmul_bias_kernel(%arg0: i32, %arg1: i32, %arg2: i32, %arg3: memref<128x128xbf16, #tpu.memory_space<vmem>>, %arg4: memref<128x128xbf16, #tpu.memory_space<vmem>>, %arg5: memref<1x128xf32, #tpu.memory_space<vmem>>, %arg6: memref<128x128xf32, #tpu.memory_space<vmem>>, %arg7: memref<128x128xf32, #tpu.memory_space<vmem>>) attributes {dimension_semantics = [#tpu.dimension_semantics<parallel>, #tpu.dimension_semantics<parallel>, #tpu.dimension_semantics<arbitrary>], iteration_bounds = array<i64: 1, 1, 5>, scalar_prefetch = 0 : i64, scratch_operands = 1 : i64, tpu.core_type = #tpu.core_type<tc>, window_params = [{transform_indices = @transform_0, window_bounds = array<i64: 128, 128>}, {transform_indices = @transform_1, window_bounds = array<i64: 128, 128>}, {transform_indices = @transform_2, window_bounds = array<i64: 1, 128>}, {transform_indices = @transform_3, window_bounds = array<i64: 128, 128>}]} {
    %c0_i32 = arith.constant 0 : i32
    %0 = arith.cmpi eq, %arg2, %c0_i32 : i32
    %1 = arith.extui %0 : i1 to i32
    %c0_i32_0 = arith.constant 0 : i32
    %2 = arith.cmpi ne, %1, %c0_i32_0 : i32
    scf.if %2 {
      %cst_9 = arith.constant 0.000000e+00 : f32
      %12 = vector.broadcast %cst_9 : f32 to vector<128x128xf32>
      %c0_10 = arith.constant 0 : index
      %c0_11 = arith.constant 0 : index
      %13 = vector.load %arg7[%c0_10, %c0_11] : memref<128x128xf32, #tpu.memory_space<vmem>>, vector<128x128xf32>
      tpu.vector_store %arg7[%c0_10, %c0_11], %12 {strides = array<i32>} : memref<128x128xf32, #tpu.memory_space<vmem>>, vector<128x128xf32>,
    } else {
    }
    %c0 = arith.constant 0 : index
    %c0_1 = arith.constant 0 : index
    %3 = vector.load %arg7[%c0, %c0_1] : memref<128x128xf32, #tpu.memory_space<vmem>>, vector<128x128xf32>
    %c0_2 = arith.constant 0 : index
    %c0_3 = arith.constant 0 : index
    %4 = vector.load %arg3[%c0_2, %c0_3] : memref<128x128xbf16, #tpu.memory_space<vmem>>, vector<128x128xbf16>
    %c0_4 = arith.constant 0 : index
    %c0_5 = arith.constant 0 : index
    %5 = vector.load %arg4[%c0_4, %c0_5] : memref<128x128xbf16, #tpu.memory_space<vmem>>, vector<128x128xbf16>
    %cst = arith.constant dense<0.000000e+00> : vector<128x128xf32>
    %6 = tpu.matmul %4, %5, %cst {dimension_numbers = #tpu.dot_dimension_numbers<[1], [0], [0], [1], [0, 0, 1, 1], [], []>} : vector<128x128xbf16>, vector<128x128xbf16>, vector<128x128xf32> -> vector<128x128xf32>
    %7 = arith.addf %3, %6 : vector<128x128xf32>
    %c0_6 = arith.constant 0 : index
    %c0_7 = arith.constant 0 : index
    %8 = vector.load %arg7[%c0_6, %c0_7] : memref<128x128xf32, #tpu.memory_space<vmem>>, vector<128x128xf32>
    tpu.vector_store %arg7[%c0_6, %c0_7], %7 {strides = array<i32>} : memref<128x128xf32, #tpu.memory_space<vmem>>, vector<128x128xf32>,
    %c4_i32 = arith.constant 4 : i32
    %9 = arith.cmpi eq, %arg2, %c4_i32 : i32
    %10 = arith.extui %9 : i1 to i32
    %c0_i32_8 = arith.constant 0 : i32
    %11 = arith.cmpi ne, %10, %c0_i32_8 : i32
    scf.if %11 {
      %c0_9 = arith.constant 0 : index
      %c0_10 = arith.constant 0 : index
      %12 = vector.load %arg7[%c0_9, %c0_10] : memref<128x128xf32, #tpu.memory_space<vmem>>, vector<128x128xf32>
      %c0_11 = arith.constant 0 : index
      %c0_12 = arith.constant 0 : index
      %13 = vector.load %arg5[%c0_11, %c0_12] : memref<1x128xf32, #tpu.memory_space<vmem>>, vector<1x128xf32>
      %14 = vector.broadcast %13 : vector<1x128xf32> to vector<128x128xf32>
      %15 = arith.addf %12, %14 : vector<128x128xf32>
      %cst_13 = arith.constant 0.000000e+00 : f32
      %16 = vector.broadcast %cst_13 : f32 to vector<128x128xf32>
      %17 = arith.maximumf %15, %16 : vector<128x128xf32>
      %c0_14 = arith.constant 0 : index
      %c0_15 = arith.constant 0 : index
      %18 = vector.load %arg6[%c0_14, %c0_15] : memref<128x128xf32, #tpu.memory_space<vmem>>, vector<128x128xf32>
      tpu.vector_store %arg6[%c0_14, %c0_15], %17 {strides = array<i32>} : memref<128x128xf32, #tpu.memory_space<vmem>>, vector<128x128xf32>,
    } else {
    }
    return
  }
  func.func @transform_0(%arg0: i32, %arg1: i32, %arg2: i32) -> (i32, i32) {
    %c0_i32 = arith.constant 0 : i32
    return %arg0, %arg2 : i32, i32
  }
  func.func @transform_1(%arg0: i32, %arg1: i32, %arg2: i32) -> (i32, i32) {
    %c0_i32 = arith.constant 0 : i32
    return %arg2, %arg1 : i32, i32
  }
  func.func @transform_2(%arg0: i32, %arg1: i32, %arg2: i32) -> (i32, i32) {
    %c0_i32 = arith.constant 0 : i32
    %c0_i32_0 = arith.constant 0 : i32
    return %c0_i32, %arg1 : i32, i32
  }
  func.func @transform_3(%arg0: i32, %arg1: i32, %arg2: i32) -> (i32, i32) {
    %c0_i32 = arith.constant 0 : i32
    return %arg0, %arg1 : i32, i32
  }
}

module attributes {stable_mosaic.version = 11 : i64} {
  func.func @_matmul_bias_res_kernel(%arg0: i32, %arg1: i32, %arg2: i32, %arg3: memref<128x128xbf16, #tpu.memory_space<vmem>>, %arg4: memref<128x128xbf16, #tpu.memory_space<vmem>>, %arg5: memref<1x128xf32, #tpu.memory_space<vmem>>, %arg6: memref<128x128xf32, #tpu.memory_space<vmem>>, %arg7: memref<128x128xf32, #tpu.memory_space<vmem>>, %arg8: memref<128x128xf32, #tpu.memory_space<vmem>>) attributes {dimension_semantics = [#tpu.dimension_semantics<parallel>, #tpu.dimension_semantics<parallel>, #tpu.dimension_semantics<arbitrary>], iteration_bounds = array<i64: 1, 1, 5>, scalar_prefetch = 0 : i64, scratch_operands = 1 : i64, tpu.core_type = #tpu.core_type<tc>, window_params = [{transform_indices = @transform_0, window_bounds = array<i64: 128, 128>}, {transform_indices = @transform_1, window_bounds = array<i64: 128, 128>}, {transform_indices = @transform_2, window_bounds = array<i64: 1, 128>}, {transform_indices = @transform_3, window_bounds = array<i64: 128, 128>}, {transform_indices = @transform_4, window_bounds = array<i64: 128, 128>}]} {
    %c0_i32 = arith.constant 0 : i32
    %0 = arith.cmpi eq, %arg2, %c0_i32 : i32
    %1 = arith.extui %0 : i1 to i32
    %c0_i32_0 = arith.constant 0 : i32
    %2 = arith.cmpi ne, %1, %c0_i32_0 : i32
    scf.if %2 {
      %cst_9 = arith.constant 0.000000e+00 : f32
      %12 = vector.broadcast %cst_9 : f32 to vector<128x128xf32>
      %c0_10 = arith.constant 0 : index
      %c0_11 = arith.constant 0 : index
      %13 = vector.load %arg8[%c0_10, %c0_11] : memref<128x128xf32, #tpu.memory_space<vmem>>, vector<128x128xf32>
      tpu.vector_store %arg8[%c0_10, %c0_11], %12 {strides = array<i32>} : memref<128x128xf32, #tpu.memory_space<vmem>>, vector<128x128xf32>,
    } else {
    }
    %c0 = arith.constant 0 : index
    %c0_1 = arith.constant 0 : index
    %3 = vector.load %arg8[%c0, %c0_1] : memref<128x128xf32, #tpu.memory_space<vmem>>, vector<128x128xf32>
    %c0_2 = arith.constant 0 : index
    %c0_3 = arith.constant 0 : index
    %4 = vector.load %arg3[%c0_2, %c0_3] : memref<128x128xbf16, #tpu.memory_space<vmem>>, vector<128x128xbf16>
    %c0_4 = arith.constant 0 : index
    %c0_5 = arith.constant 0 : index
    %5 = vector.load %arg4[%c0_4, %c0_5] : memref<128x128xbf16, #tpu.memory_space<vmem>>, vector<128x128xbf16>
    %cst = arith.constant dense<0.000000e+00> : vector<128x128xf32>
    %6 = tpu.matmul %4, %5, %cst {dimension_numbers = #tpu.dot_dimension_numbers<[1], [0], [0], [1], [0, 0, 1, 1], [], []>} : vector<128x128xbf16>, vector<128x128xbf16>, vector<128x128xf32> -> vector<128x128xf32>
    %7 = arith.addf %3, %6 : vector<128x128xf32>
    %c0_6 = arith.constant 0 : index
    %c0_7 = arith.constant 0 : index
    %8 = vector.load %arg8[%c0_6, %c0_7] : memref<128x128xf32, #tpu.memory_space<vmem>>, vector<128x128xf32>
    tpu.vector_store %arg8[%c0_6, %c0_7], %7 {strides = array<i32>} : memref<128x128xf32, #tpu.memory_space<vmem>>, vector<128x128xf32>,
    %c4_i32 = arith.constant 4 : i32
    %9 = arith.cmpi eq, %arg2, %c4_i32 : i32
    %10 = arith.extui %9 : i1 to i32
    %c0_i32_8 = arith.constant 0 : i32
    %11 = arith.cmpi ne, %10, %c0_i32_8 : i32
    scf.if %11 {
      %c0_9 = arith.constant 0 : index
      %c0_10 = arith.constant 0 : index
      %12 = vector.load %arg8[%c0_9, %c0_10] : memref<128x128xf32, #tpu.memory_space<vmem>>, vector<128x128xf32>
      %c0_11 = arith.constant 0 : index
      %c0_12 = arith.constant 0 : index
      %13 = vector.load %arg5[%c0_11, %c0_12] : memref<1x128xf32, #tpu.memory_space<vmem>>, vector<1x128xf32>
      %14 = vector.broadcast %13 : vector<1x128xf32> to vector<128x128xf32>
      %15 = arith.addf %12, %14 : vector<128x128xf32>
      %c0_13 = arith.constant 0 : index
      %c0_14 = arith.constant 0 : index
      %16 = vector.load %arg6[%c0_13, %c0_14] : memref<128x128xf32, #tpu.memory_space<vmem>>, vector<128x128xf32>
      %17 = arith.addf %15, %16 : vector<128x128xf32>
      %cst_15 = arith.constant 0.000000e+00 : f32
      %18 = vector.broadcast %cst_15 : f32 to vector<128x128xf32>
      %19 = arith.maximumf %17, %18 : vector<128x128xf32>
      %c0_16 = arith.constant 0 : index
      %c0_17 = arith.constant 0 : index
      %20 = vector.load %arg7[%c0_16, %c0_17] : memref<128x128xf32, #tpu.memory_space<vmem>>, vector<128x128xf32>
      tpu.vector_store %arg7[%c0_16, %c0_17], %19 {strides = array<i32>} : memref<128x128xf32, #tpu.memory_space<vmem>>, vector<128x128xf32>,
    } else {
    }
    return
  }
  func.func @transform_0(%arg0: i32, %arg1: i32, %arg2: i32) -> (i32, i32) {
    %c0_i32 = arith.constant 0 : i32
    return %arg0, %arg2 : i32, i32
  }
  func.func @transform_1(%arg0: i32, %arg1: i32, %arg2: i32) -> (i32, i32) {
    %c0_i32 = arith.constant 0 : i32
    return %arg2, %arg1 : i32, i32
  }
  func.func @transform_2(%arg0: i32, %arg1: i32, %arg2: i32) -> (i32, i32) {
    %c0_i32 = arith.constant 0 : i32
    %c0_i32_0 = arith.constant 0 : i32
    return %c0_i32, %arg1 : i32, i32
  }
  func.func @transform_3(%arg0: i32, %arg1: i32, %arg2: i32) -> (i32, i32) {
    %c0_i32 = arith.constant 0 : i32
    return %arg0, %arg1 : i32, i32
  }
  func.func @transform_4(%arg0: i32, %arg1: i32, %arg2: i32) -> (i32, i32) {
    %c0_i32 = arith.constant 0 : i32
    return %arg0, %arg1 : i32, i32
  }
}

module attributes {stable_mosaic.version = 11 : i64} {
  func.func @_matmul_bias_kernel(%arg0: i32, %arg1: i32, %arg2: i32, %arg3: memref<32x128xbf16, #tpu.memory_space<vmem>>, %arg4: memref<128x128xbf16, #tpu.memory_space<vmem>>, %arg5: memref<1x128xf32, #tpu.memory_space<vmem>>, %arg6: memref<32x128xf32, #tpu.memory_space<vmem>>, %arg7: memref<32x128xf32, #tpu.memory_space<vmem>>) attributes {dimension_semantics = [#tpu.dimension_semantics<parallel>, #tpu.dimension_semantics<parallel>, #tpu.dimension_semantics<arbitrary>], iteration_bounds = array<i64: 1, 1, 5>, scalar_prefetch = 0 : i64, scratch_operands = 1 : i64, tpu.core_type = #tpu.core_type<tc>, window_params = [{transform_indices = @transform_0, window_bounds = array<i64: 32, 128>}, {transform_indices = @transform_1, window_bounds = array<i64: 128, 128>}, {transform_indices = @transform_2, window_bounds = array<i64: 1, 128>}, {transform_indices = @transform_3, window_bounds = array<i64: 32, 128>}]} {
    %c0_i32 = arith.constant 0 : i32
    %0 = arith.cmpi eq, %arg2, %c0_i32 : i32
    %1 = arith.extui %0 : i1 to i32
    %c0_i32_0 = arith.constant 0 : i32
    %2 = arith.cmpi ne, %1, %c0_i32_0 : i32
    scf.if %2 {
      %cst_9 = arith.constant 0.000000e+00 : f32
      %12 = vector.broadcast %cst_9 : f32 to vector<32x128xf32>
      %c0_10 = arith.constant 0 : index
      %c0_11 = arith.constant 0 : index
      %13 = vector.load %arg7[%c0_10, %c0_11] : memref<32x128xf32, #tpu.memory_space<vmem>>, vector<32x128xf32>
      tpu.vector_store %arg7[%c0_10, %c0_11], %12 {strides = array<i32>} : memref<32x128xf32, #tpu.memory_space<vmem>>, vector<32x128xf32>,
    } else {
    }
    %c0 = arith.constant 0 : index
    %c0_1 = arith.constant 0 : index
    %3 = vector.load %arg7[%c0, %c0_1] : memref<32x128xf32, #tpu.memory_space<vmem>>, vector<32x128xf32>
    %c0_2 = arith.constant 0 : index
    %c0_3 = arith.constant 0 : index
    %4 = vector.load %arg3[%c0_2, %c0_3] : memref<32x128xbf16, #tpu.memory_space<vmem>>, vector<32x128xbf16>
    %c0_4 = arith.constant 0 : index
    %c0_5 = arith.constant 0 : index
    %5 = vector.load %arg4[%c0_4, %c0_5] : memref<128x128xbf16, #tpu.memory_space<vmem>>, vector<128x128xbf16>
    %cst = arith.constant dense<0.000000e+00> : vector<32x128xf32>
    %6 = tpu.matmul %4, %5, %cst {dimension_numbers = #tpu.dot_dimension_numbers<[1], [0], [0], [1], [0, 0, 1, 1], [], []>} : vector<32x128xbf16>, vector<128x128xbf16>, vector<32x128xf32> -> vector<32x128xf32>
    %7 = arith.addf %3, %6 : vector<32x128xf32>
    %c0_6 = arith.constant 0 : index
    %c0_7 = arith.constant 0 : index
    %8 = vector.load %arg7[%c0_6, %c0_7] : memref<32x128xf32, #tpu.memory_space<vmem>>, vector<32x128xf32>
    tpu.vector_store %arg7[%c0_6, %c0_7], %7 {strides = array<i32>} : memref<32x128xf32, #tpu.memory_space<vmem>>, vector<32x128xf32>,
    %c4_i32 = arith.constant 4 : i32
    %9 = arith.cmpi eq, %arg2, %c4_i32 : i32
    %10 = arith.extui %9 : i1 to i32
    %c0_i32_8 = arith.constant 0 : i32
    %11 = arith.cmpi ne, %10, %c0_i32_8 : i32
    scf.if %11 {
      %c0_9 = arith.constant 0 : index
      %c0_10 = arith.constant 0 : index
      %12 = vector.load %arg7[%c0_9, %c0_10] : memref<32x128xf32, #tpu.memory_space<vmem>>, vector<32x128xf32>
      %c0_11 = arith.constant 0 : index
      %c0_12 = arith.constant 0 : index
      %13 = vector.load %arg5[%c0_11, %c0_12] : memref<1x128xf32, #tpu.memory_space<vmem>>, vector<1x128xf32>
      %14 = vector.broadcast %13 : vector<1x128xf32> to vector<32x128xf32>
      %15 = arith.addf %12, %14 : vector<32x128xf32>
      %cst_13 = arith.constant 0.000000e+00 : f32
      %16 = vector.broadcast %cst_13 : f32 to vector<32x128xf32>
      %17 = arith.maximumf %15, %16 : vector<32x128xf32>
      %c0_14 = arith.constant 0 : index
      %c0_15 = arith.constant 0 : index
      %18 = vector.load %arg6[%c0_14, %c0_15] : memref<32x128xf32, #tpu.memory_space<vmem>>, vector<32x128xf32>
      tpu.vector_store %arg6[%c0_14, %c0_15], %17 {strides = array<i32>} : memref<32x128xf32, #tpu.memory_space<vmem>>, vector<32x128xf32>,
    } else {
    }
    return
  }
  func.func @transform_0(%arg0: i32, %arg1: i32, %arg2: i32) -> (i32, i32) {
    %c0_i32 = arith.constant 0 : i32
    return %arg0, %arg2 : i32, i32
  }
  func.func @transform_1(%arg0: i32, %arg1: i32, %arg2: i32) -> (i32, i32) {
    %c0_i32 = arith.constant 0 : i32
    return %arg2, %arg1 : i32, i32
  }
  func.func @transform_2(%arg0: i32, %arg1: i32, %arg2: i32) -> (i32, i32) {
    %c0_i32 = arith.constant 0 : i32
    %c0_i32_0 = arith.constant 0 : i32
    return %c0_i32, %arg1 : i32, i32
  }
  func.func @transform_3(%arg0: i32, %arg1: i32, %arg2: i32) -> (i32, i32) {
    %c0_i32 = arith.constant 0 : i32
    return %arg0, %arg1 : i32, i32
  }
}

module attributes {stable_mosaic.version = 11 : i64} {
  func.func @_matmul_bias_res_kernel(%arg0: i32, %arg1: i32, %arg2: i32, %arg3: memref<32x128xbf16, #tpu.memory_space<vmem>>, %arg4: memref<128x128xbf16, #tpu.memory_space<vmem>>, %arg5: memref<1x128xf32, #tpu.memory_space<vmem>>, %arg6: memref<32x128xf32, #tpu.memory_space<vmem>>, %arg7: memref<32x128xf32, #tpu.memory_space<vmem>>, %arg8: memref<32x128xf32, #tpu.memory_space<vmem>>) attributes {dimension_semantics = [#tpu.dimension_semantics<parallel>, #tpu.dimension_semantics<parallel>, #tpu.dimension_semantics<arbitrary>], iteration_bounds = array<i64: 1, 1, 9>, scalar_prefetch = 0 : i64, scratch_operands = 1 : i64, tpu.core_type = #tpu.core_type<tc>, window_params = [{transform_indices = @transform_0, window_bounds = array<i64: 32, 128>}, {transform_indices = @transform_1, window_bounds = array<i64: 128, 128>}, {transform_indices = @transform_2, window_bounds = array<i64: 1, 128>}, {transform_indices = @transform_3, window_bounds = array<i64: 32, 128>}, {transform_indices = @transform_4, window_bounds = array<i64: 32, 128>}]} {
    %c0_i32 = arith.constant 0 : i32
    %0 = arith.cmpi eq, %arg2, %c0_i32 : i32
    %1 = arith.extui %0 : i1 to i32
    %c0_i32_0 = arith.constant 0 : i32
    %2 = arith.cmpi ne, %1, %c0_i32_0 : i32
    scf.if %2 {
      %cst_9 = arith.constant 0.000000e+00 : f32
      %12 = vector.broadcast %cst_9 : f32 to vector<32x128xf32>
      %c0_10 = arith.constant 0 : index
      %c0_11 = arith.constant 0 : index
      %13 = vector.load %arg8[%c0_10, %c0_11] : memref<32x128xf32, #tpu.memory_space<vmem>>, vector<32x128xf32>
      tpu.vector_store %arg8[%c0_10, %c0_11], %12 {strides = array<i32>} : memref<32x128xf32, #tpu.memory_space<vmem>>, vector<32x128xf32>,
    } else {
    }
    %c0 = arith.constant 0 : index
    %c0_1 = arith.constant 0 : index
    %3 = vector.load %arg8[%c0, %c0_1] : memref<32x128xf32, #tpu.memory_space<vmem>>, vector<32x128xf32>
    %c0_2 = arith.constant 0 : index
    %c0_3 = arith.constant 0 : index
    %4 = vector.load %arg3[%c0_2, %c0_3] : memref<32x128xbf16, #tpu.memory_space<vmem>>, vector<32x128xbf16>
    %c0_4 = arith.constant 0 : index
    %c0_5 = arith.constant 0 : index
    %5 = vector.load %arg4[%c0_4, %c0_5] : memref<128x128xbf16, #tpu.memory_space<vmem>>, vector<128x128xbf16>
    %cst = arith.constant dense<0.000000e+00> : vector<32x128xf32>
    %6 = tpu.matmul %4, %5, %cst {dimension_numbers = #tpu.dot_dimension_numbers<[1], [0], [0], [1], [0, 0, 1, 1], [], []>} : vector<32x128xbf16>, vector<128x128xbf16>, vector<32x128xf32> -> vector<32x128xf32>
    %7 = arith.addf %3, %6 : vector<32x128xf32>
    %c0_6 = arith.constant 0 : index
    %c0_7 = arith.constant 0 : index
    %8 = vector.load %arg8[%c0_6, %c0_7] : memref<32x128xf32, #tpu.memory_space<vmem>>, vector<32x128xf32>
    tpu.vector_store %arg8[%c0_6, %c0_7], %7 {strides = array<i32>} : memref<32x128xf32, #tpu.memory_space<vmem>>, vector<32x128xf32>,
    %c8_i32 = arith.constant 8 : i32
    %9 = arith.cmpi eq, %arg2, %c8_i32 : i32
    %10 = arith.extui %9 : i1 to i32
    %c0_i32_8 = arith.constant 0 : i32
    %11 = arith.cmpi ne, %10, %c0_i32_8 : i32
    scf.if %11 {
      %c0_9 = arith.constant 0 : index
      %c0_10 = arith.constant 0 : index
      %12 = vector.load %arg8[%c0_9, %c0_10] : memref<32x128xf32, #tpu.memory_space<vmem>>, vector<32x128xf32>
      %c0_11 = arith.constant 0 : index
      %c0_12 = arith.constant 0 : index
      %13 = vector.load %arg5[%c0_11, %c0_12] : memref<1x128xf32, #tpu.memory_space<vmem>>, vector<1x128xf32>
      %14 = vector.broadcast %13 : vector<1x128xf32> to vector<32x128xf32>
      %15 = arith.addf %12, %14 : vector<32x128xf32>
      %c0_13 = arith.constant 0 : index
      %c0_14 = arith.constant 0 : index
      %16 = vector.load %arg6[%c0_13, %c0_14] : memref<32x128xf32, #tpu.memory_space<vmem>>, vector<32x128xf32>
      %17 = arith.addf %15, %16 : vector<32x128xf32>
      %cst_15 = arith.constant 0.000000e+00 : f32
      %18 = vector.broadcast %cst_15 : f32 to vector<32x128xf32>
      %19 = arith.maximumf %17, %18 : vector<32x128xf32>
      %c0_16 = arith.constant 0 : index
      %c0_17 = arith.constant 0 : index
      %20 = vector.load %arg7[%c0_16, %c0_17] : memref<32x128xf32, #tpu.memory_space<vmem>>, vector<32x128xf32>
      tpu.vector_store %arg7[%c0_16, %c0_17], %19 {strides = array<i32>} : memref<32x128xf32, #tpu.memory_space<vmem>>, vector<32x128xf32>,
    } else {
    }
    return
  }
  func.func @transform_0(%arg0: i32, %arg1: i32, %arg2: i32) -> (i32, i32) {
    %c0_i32 = arith.constant 0 : i32
    return %arg0, %arg2 : i32, i32
  }
  func.func @transform_1(%arg0: i32, %arg1: i32, %arg2: i32) -> (i32, i32) {
    %c0_i32 = arith.constant 0 : i32
    return %arg2, %arg1 : i32, i32
  }
  func.func @transform_2(%arg0: i32, %arg1: i32, %arg2: i32) -> (i32, i32) {
    %c0_i32 = arith.constant 0 : i32
    %c0_i32_0 = arith.constant 0 : i32
    return %c0_i32, %arg1 : i32, i32
  }
  func.func @transform_3(%arg0: i32, %arg1: i32, %arg2: i32) -> (i32, i32) {
    %c0_i32 = arith.constant 0 : i32
    return %arg0, %arg1 : i32, i32
  }
  func.func @transform_4(%arg0: i32, %arg1: i32, %arg2: i32) -> (i32, i32) {
    %c0_i32 = arith.constant 0 : i32
    return %arg0, %arg1 : i32, i32
  }
}

module attributes {stable_mosaic.version = 11 : i64} {
  func.func @_matmul_bias_kernel(%arg0: i32, %arg1: i32, %arg2: i32, %arg3: memref<32x128xbf16, #tpu.memory_space<vmem>>, %arg4: memref<128x128xbf16, #tpu.memory_space<vmem>>, %arg5: memref<1x128xf32, #tpu.memory_space<vmem>>, %arg6: memref<32x128xf32, #tpu.memory_space<vmem>>, %arg7: memref<32x128xf32, #tpu.memory_space<vmem>>) attributes {dimension_semantics = [#tpu.dimension_semantics<parallel>, #tpu.dimension_semantics<parallel>, #tpu.dimension_semantics<arbitrary>], iteration_bounds = array<i64: 1, 1, 1>, scalar_prefetch = 0 : i64, scratch_operands = 1 : i64, tpu.core_type = #tpu.core_type<tc>, window_params = [{transform_indices = @transform_0, window_bounds = array<i64: 32, 128>}, {transform_indices = @transform_1, window_bounds = array<i64: 128, 128>}, {transform_indices = @transform_2, window_bounds = array<i64: 1, 128>}, {transform_indices = @transform_3, window_bounds = array<i64: 32, 128>}]} {
    %c0_i32 = arith.constant 0 : i32
    %0 = arith.cmpi eq, %arg2, %c0_i32 : i32
    %1 = arith.extui %0 : i1 to i32
    %c0_i32_0 = arith.constant 0 : i32
    %2 = arith.cmpi ne, %1, %c0_i32_0 : i32
    scf.if %2 {
      %cst_10 = arith.constant 0.000000e+00 : f32
      %12 = vector.broadcast %cst_10 : f32 to vector<32x128xf32>
      %c0_11 = arith.constant 0 : index
      %c0_12 = arith.constant 0 : index
      %13 = vector.load %arg7[%c0_11, %c0_12] : memref<32x128xf32, #tpu.memory_space<vmem>>, vector<32x128xf32>
      tpu.vector_store %arg7[%c0_11, %c0_12], %12 {strides = array<i32>} : memref<32x128xf32, #tpu.memory_space<vmem>>, vector<32x128xf32>,
    } else {
    }
    %c0 = arith.constant 0 : index
    %c0_1 = arith.constant 0 : index
    %3 = vector.load %arg7[%c0, %c0_1] : memref<32x128xf32, #tpu.memory_space<vmem>>, vector<32x128xf32>
    %c0_2 = arith.constant 0 : index
    %c0_3 = arith.constant 0 : index
    %4 = vector.load %arg3[%c0_2, %c0_3] : memref<32x128xbf16, #tpu.memory_space<vmem>>, vector<32x128xbf16>
    %c0_4 = arith.constant 0 : index
    %c0_5 = arith.constant 0 : index
    %5 = vector.load %arg4[%c0_4, %c0_5] : memref<128x128xbf16, #tpu.memory_space<vmem>>, vector<128x128xbf16>
    %cst = arith.constant dense<0.000000e+00> : vector<32x128xf32>
    %6 = tpu.matmul %4, %5, %cst {dimension_numbers = #tpu.dot_dimension_numbers<[1], [0], [0], [1], [0, 0, 1, 1], [], []>} : vector<32x128xbf16>, vector<128x128xbf16>, vector<32x128xf32> -> vector<32x128xf32>
    %7 = arith.addf %3, %6 : vector<32x128xf32>
    %c0_6 = arith.constant 0 : index
    %c0_7 = arith.constant 0 : index
    %8 = vector.load %arg7[%c0_6, %c0_7] : memref<32x128xf32, #tpu.memory_space<vmem>>, vector<32x128xf32>
    tpu.vector_store %arg7[%c0_6, %c0_7], %7 {strides = array<i32>} : memref<32x128xf32, #tpu.memory_space<vmem>>, vector<32x128xf32>,
    %c0_i32_8 = arith.constant 0 : i32
    %9 = arith.cmpi eq, %arg2, %c0_i32_8 : i32
    %10 = arith.extui %9 : i1 to i32
    %c0_i32_9 = arith.constant 0 : i32
    %11 = arith.cmpi ne, %10, %c0_i32_9 : i32
    scf.if %11 {
      %c0_10 = arith.constant 0 : index
      %c0_11 = arith.constant 0 : index
      %12 = vector.load %arg7[%c0_10, %c0_11] : memref<32x128xf32, #tpu.memory_space<vmem>>, vector<32x128xf32>
      %c0_12 = arith.constant 0 : index
      %c0_13 = arith.constant 0 : index
      %13 = vector.load %arg5[%c0_12, %c0_13] : memref<1x128xf32, #tpu.memory_space<vmem>>, vector<1x128xf32>
      %14 = vector.broadcast %13 : vector<1x128xf32> to vector<32x128xf32>
      %15 = arith.addf %12, %14 : vector<32x128xf32>
      %c0_14 = arith.constant 0 : index
      %c0_15 = arith.constant 0 : index
      %16 = vector.load %arg6[%c0_14, %c0_15] : memref<32x128xf32, #tpu.memory_space<vmem>>, vector<32x128xf32>
      tpu.vector_store %arg6[%c0_14, %c0_15], %15 {strides = array<i32>} : memref<32x128xf32, #tpu.memory_space<vmem>>, vector<32x128xf32>,
    } else {
    }
    return
  }
  func.func @transform_0(%arg0: i32, %arg1: i32, %arg2: i32) -> (i32, i32) {
    %c0_i32 = arith.constant 0 : i32
    return %arg0, %arg2 : i32, i32
  }
  func.func @transform_1(%arg0: i32, %arg1: i32, %arg2: i32) -> (i32, i32) {
    %c0_i32 = arith.constant 0 : i32
    return %arg2, %arg1 : i32, i32
  }
  func.func @transform_2(%arg0: i32, %arg1: i32, %arg2: i32) -> (i32, i32) {
    %c0_i32 = arith.constant 0 : i32
    %c0_i32_0 = arith.constant 0 : i32
    return %c0_i32, %arg1 : i32, i32
  }
  func.func @transform_3(%arg0: i32, %arg1: i32, %arg2: i32) -> (i32, i32) {
    %c0_i32 = arith.constant 0 : i32
    return %arg0, %arg1 : i32, i32
  }
}

module attributes {stable_mosaic.version = 11 : i64} {
  func.func @_matmul_bias_kernel(%arg0: i32, %arg1: i32, %arg2: i32, %arg3: memref<8x128xbf16, #tpu.memory_space<vmem>>, %arg4: memref<128x128xbf16, #tpu.memory_space<vmem>>, %arg5: memref<1x128xf32, #tpu.memory_space<vmem>>, %arg6: memref<8x128xf32, #tpu.memory_space<vmem>>, %arg7: memref<8x128xf32, #tpu.memory_space<vmem>>) attributes {dimension_semantics = [#tpu.dimension_semantics<parallel>, #tpu.dimension_semantics<parallel>, #tpu.dimension_semantics<arbitrary>], iteration_bounds = array<i64: 1, 2, 9>, scalar_prefetch = 0 : i64, scratch_operands = 1 : i64, tpu.core_type = #tpu.core_type<tc>, window_params = [{transform_indices = @transform_0, window_bounds = array<i64: 8, 128>}, {transform_indices = @transform_1, window_bounds = array<i64: 128, 128>}, {transform_indices = @transform_2, window_bounds = array<i64: 1, 128>}, {transform_indices = @transform_3, window_bounds = array<i64: 8, 128>}]} {
    %c0_i32 = arith.constant 0 : i32
    %0 = arith.cmpi eq, %arg2, %c0_i32 : i32
    %1 = arith.extui %0 : i1 to i32
    %c0_i32_0 = arith.constant 0 : i32
    %2 = arith.cmpi ne, %1, %c0_i32_0 : i32
    scf.if %2 {
      %cst_9 = arith.constant 0.000000e+00 : f32
      %12 = vector.broadcast %cst_9 : f32 to vector<8x128xf32>
      %c0_10 = arith.constant 0 : index
      %c0_11 = arith.constant 0 : index
      %13 = vector.load %arg7[%c0_10, %c0_11] : memref<8x128xf32, #tpu.memory_space<vmem>>, vector<8x128xf32>
      tpu.vector_store %arg7[%c0_10, %c0_11], %12 {strides = array<i32>} : memref<8x128xf32, #tpu.memory_space<vmem>>, vector<8x128xf32>,
    } else {
    }
    %c0 = arith.constant 0 : index
    %c0_1 = arith.constant 0 : index
    %3 = vector.load %arg7[%c0, %c0_1] : memref<8x128xf32, #tpu.memory_space<vmem>>, vector<8x128xf32>
    %c0_2 = arith.constant 0 : index
    %c0_3 = arith.constant 0 : index
    %4 = vector.load %arg3[%c0_2, %c0_3] : memref<8x128xbf16, #tpu.memory_space<vmem>>, vector<8x128xbf16>
    %c0_4 = arith.constant 0 : index
    %c0_5 = arith.constant 0 : index
    %5 = vector.load %arg4[%c0_4, %c0_5] : memref<128x128xbf16, #tpu.memory_space<vmem>>, vector<128x128xbf16>
    %cst = arith.constant dense<0.000000e+00> : vector<8x128xf32>
    %6 = tpu.matmul %4, %5, %cst {dimension_numbers = #tpu.dot_dimension_numbers<[1], [0], [0], [1], [0, 0, 1, 1], [], []>} : vector<8x128xbf16>, vector<128x128xbf16>, vector<8x128xf32> -> vector<8x128xf32>
    %7 = arith.addf %3, %6 : vector<8x128xf32>
    %c0_6 = arith.constant 0 : index
    %c0_7 = arith.constant 0 : index
    %8 = vector.load %arg7[%c0_6, %c0_7] : memref<8x128xf32, #tpu.memory_space<vmem>>, vector<8x128xf32>
    tpu.vector_store %arg7[%c0_6, %c0_7], %7 {strides = array<i32>} : memref<8x128xf32, #tpu.memory_space<vmem>>, vector<8x128xf32>,
    %c8_i32 = arith.constant 8 : i32
    %9 = arith.cmpi eq, %arg2, %c8_i32 : i32
    %10 = arith.extui %9 : i1 to i32
    %c0_i32_8 = arith.constant 0 : i32
    %11 = arith.cmpi ne, %10, %c0_i32_8 : i32
    scf.if %11 {
      %c0_9 = arith.constant 0 : index
      %c0_10 = arith.constant 0 : index
      %12 = vector.load %arg7[%c0_9, %c0_10] : memref<8x128xf32, #tpu.memory_space<vmem>>, vector<8x128xf32>
      %c0_11 = arith.constant 0 : index
      %c0_12 = arith.constant 0 : index
      %13 = vector.load %arg5[%c0_11, %c0_12] : memref<1x128xf32, #tpu.memory_space<vmem>>, vector<1x128xf32>
      %14 = vector.broadcast %13 : vector<1x128xf32> to vector<8x128xf32>
      %15 = arith.addf %12, %14 : vector<8x128xf32>
      %cst_13 = arith.constant 0.000000e+00 : f32
      %16 = vector.broadcast %cst_13 : f32 to vector<8x128xf32>
      %17 = arith.maximumf %15, %16 : vector<8x128xf32>
      %c0_14 = arith.constant 0 : index
      %c0_15 = arith.constant 0 : index
      %18 = vector.load %arg6[%c0_14, %c0_15] : memref<8x128xf32, #tpu.memory_space<vmem>>, vector<8x128xf32>
      tpu.vector_store %arg6[%c0_14, %c0_15], %17 {strides = array<i32>} : memref<8x128xf32, #tpu.memory_space<vmem>>, vector<8x128xf32>,
    } else {
    }
    return
  }
  func.func @transform_0(%arg0: i32, %arg1: i32, %arg2: i32) -> (i32, i32) {
    %c0_i32 = arith.constant 0 : i32
    return %arg0, %arg2 : i32, i32
  }
  func.func @transform_1(%arg0: i32, %arg1: i32, %arg2: i32) -> (i32, i32) {
    %c0_i32 = arith.constant 0 : i32
    return %arg2, %arg1 : i32, i32
  }
  func.func @transform_2(%arg0: i32, %arg1: i32, %arg2: i32) -> (i32, i32) {
    %c0_i32 = arith.constant 0 : i32
    %c0_i32_0 = arith.constant 0 : i32
    return %c0_i32, %arg1 : i32, i32
  }
  func.func @transform_3(%arg0: i32, %arg1: i32, %arg2: i32) -> (i32, i32) {
    %c0_i32 = arith.constant 0 : i32
    return %arg0, %arg1 : i32, i32
  }
}

module attributes {stable_mosaic.version = 11 : i64} {
  func.func @_matmul_bias_kernel(%arg0: i32, %arg1: i32, %arg2: i32, %arg3: memref<8x128xbf16, #tpu.memory_space<vmem>>, %arg4: memref<128x128xbf16, #tpu.memory_space<vmem>>, %arg5: memref<1x128xf32, #tpu.memory_space<vmem>>, %arg6: memref<8x128xf32, #tpu.memory_space<vmem>>, %arg7: memref<8x128xf32, #tpu.memory_space<vmem>>) attributes {dimension_semantics = [#tpu.dimension_semantics<parallel>, #tpu.dimension_semantics<parallel>, #tpu.dimension_semantics<arbitrary>], iteration_bounds = array<i64: 1, 2, 1>, scalar_prefetch = 0 : i64, scratch_operands = 1 : i64, tpu.core_type = #tpu.core_type<tc>, window_params = [{transform_indices = @transform_0, window_bounds = array<i64: 8, 128>}, {transform_indices = @transform_1, window_bounds = array<i64: 128, 128>}, {transform_indices = @transform_2, window_bounds = array<i64: 1, 128>}, {transform_indices = @transform_3, window_bounds = array<i64: 8, 128>}]} {
    %c0_i32 = arith.constant 0 : i32
    %0 = arith.cmpi eq, %arg2, %c0_i32 : i32
    %1 = arith.extui %0 : i1 to i32
    %c0_i32_0 = arith.constant 0 : i32
    %2 = arith.cmpi ne, %1, %c0_i32_0 : i32
    scf.if %2 {
      %cst_10 = arith.constant 0.000000e+00 : f32
      %12 = vector.broadcast %cst_10 : f32 to vector<8x128xf32>
      %c0_11 = arith.constant 0 : index
      %c0_12 = arith.constant 0 : index
      %13 = vector.load %arg7[%c0_11, %c0_12] : memref<8x128xf32, #tpu.memory_space<vmem>>, vector<8x128xf32>
      tpu.vector_store %arg7[%c0_11, %c0_12], %12 {strides = array<i32>} : memref<8x128xf32, #tpu.memory_space<vmem>>, vector<8x128xf32>,
    } else {
    }
    %c0 = arith.constant 0 : index
    %c0_1 = arith.constant 0 : index
    %3 = vector.load %arg7[%c0, %c0_1] : memref<8x128xf32, #tpu.memory_space<vmem>>, vector<8x128xf32>
    %c0_2 = arith.constant 0 : index
    %c0_3 = arith.constant 0 : index
    %4 = vector.load %arg3[%c0_2, %c0_3] : memref<8x128xbf16, #tpu.memory_space<vmem>>, vector<8x128xbf16>
    %c0_4 = arith.constant 0 : index
    %c0_5 = arith.constant 0 : index
    %5 = vector.load %arg4[%c0_4, %c0_5] : memref<128x128xbf16, #tpu.memory_space<vmem>>, vector<128x128xbf16>
    %cst = arith.constant dense<0.000000e+00> : vector<8x128xf32>
    %6 = tpu.matmul %4, %5, %cst {dimension_numbers = #tpu.dot_dimension_numbers<[1], [0], [0], [1], [0, 0, 1, 1], [], []>} : vector<8x128xbf16>, vector<128x128xbf16>, vector<8x128xf32> -> vector<8x128xf32>
    %7 = arith.addf %3, %6 : vector<8x128xf32>
    %c0_6 = arith.constant 0 : index
    %c0_7 = arith.constant 0 : index
    %8 = vector.load %arg7[%c0_6, %c0_7] : memref<8x128xf32, #tpu.memory_space<vmem>>, vector<8x128xf32>
    tpu.vector_store %arg7[%c0_6, %c0_7], %7 {strides = array<i32>} : memref<8x128xf32, #tpu.memory_space<vmem>>, vector<8x128xf32>,
    %c0_i32_8 = arith.constant 0 : i32
    %9 = arith.cmpi eq, %arg2, %c0_i32_8 : i32
    %10 = arith.extui %9 : i1 to i32
    %c0_i32_9 = arith.constant 0 : i32
    %11 = arith.cmpi ne, %10, %c0_i32_9 : i32
    scf.if %11 {
      %c0_10 = arith.constant 0 : index
      %c0_11 = arith.constant 0 : index
      %12 = vector.load %arg7[%c0_10, %c0_11] : memref<8x128xf32, #tpu.memory_space<vmem>>, vector<8x128xf32>
      %c0_12 = arith.constant 0 : index
      %c0_13 = arith.constant 0 : index
      %13 = vector.load %arg5[%c0_12, %c0_13] : memref<1x128xf32, #tpu.memory_space<vmem>>, vector<1x128xf32>
      %14 = vector.broadcast %13 : vector<1x128xf32> to vector<8x128xf32>
      %15 = arith.addf %12, %14 : vector<8x128xf32>
      %c0_14 = arith.constant 0 : index
      %c0_15 = arith.constant 0 : index
      %16 = vector.load %arg6[%c0_14, %c0_15] : memref<8x128xf32, #tpu.memory_space<vmem>>, vector<8x128xf32>
      tpu.vector_store %arg6[%c0_14, %c0_15], %15 {strides = array<i32>} : memref<8x128xf32, #tpu.memory_space<vmem>>, vector<8x128xf32>,
    } else {
    }
    return
  }
  func.func @transform_0(%arg0: i32, %arg1: i32, %arg2: i32) -> (i32, i32) {
    %c0_i32 = arith.constant 0 : i32
    return %arg0, %arg2 : i32, i32
  }
  func.func @transform_1(%arg0: i32, %arg1: i32, %arg2: i32) -> (i32, i32) {
    %c0_i32 = arith.constant 0 : i32
    return %arg2, %arg1 : i32, i32
  }
  func.func @transform_2(%arg0: i32, %arg1: i32, %arg2: i32) -> (i32, i32) {
    %c0_i32 = arith.constant 0 : i32
    %c0_i32_0 = arith.constant 0 : i32
    return %c0_i32, %arg1 : i32, i32
  }
  func.func @transform_3(%arg0: i32, %arg1: i32, %arg2: i32) -> (i32, i32) {
    %c0_i32 = arith.constant 0 : i32
    return %arg0, %arg1 : i32, i32
  }
}

module attributes {stable_mosaic.version = 11 : i64} {
  func.func @_matmul_bias_res_kernel(%arg0: i32, %arg1: i32, %arg2: i32, %arg3: memref<8x128xbf16, #tpu.memory_space<vmem>>, %arg4: memref<128x128xbf16, #tpu.memory_space<vmem>>, %arg5: memref<1x128xf32, #tpu.memory_space<vmem>>, %arg6: memref<8x128xf32, #tpu.memory_space<vmem>>, %arg7: memref<8x128xf32, #tpu.memory_space<vmem>>, %arg8: memref<8x128xf32, #tpu.memory_space<vmem>>) attributes {dimension_semantics = [#tpu.dimension_semantics<parallel>, #tpu.dimension_semantics<parallel>, #tpu.dimension_semantics<arbitrary>], iteration_bounds = array<i64: 1, 2, 18>, scalar_prefetch = 0 : i64, scratch_operands = 1 : i64, tpu.core_type = #tpu.core_type<tc>, window_params = [{transform_indices = @transform_0, window_bounds = array<i64: 8, 128>}, {transform_indices = @transform_1, window_bounds = array<i64: 128, 128>}, {transform_indices = @transform_2, window_bounds = array<i64: 1, 128>}, {transform_indices = @transform_3, window_bounds = array<i64: 8, 128>}, {transform_indices = @transform_4, window_bounds = array<i64: 8, 128>}]} {
    %c0_i32 = arith.constant 0 : i32
    %0 = arith.cmpi eq, %arg2, %c0_i32 : i32
    %1 = arith.extui %0 : i1 to i32
    %c0_i32_0 = arith.constant 0 : i32
    %2 = arith.cmpi ne, %1, %c0_i32_0 : i32
    scf.if %2 {
      %cst_9 = arith.constant 0.000000e+00 : f32
      %12 = vector.broadcast %cst_9 : f32 to vector<8x128xf32>
      %c0_10 = arith.constant 0 : index
      %c0_11 = arith.constant 0 : index
      %13 = vector.load %arg8[%c0_10, %c0_11] : memref<8x128xf32, #tpu.memory_space<vmem>>, vector<8x128xf32>
      tpu.vector_store %arg8[%c0_10, %c0_11], %12 {strides = array<i32>} : memref<8x128xf32, #tpu.memory_space<vmem>>, vector<8x128xf32>,
    } else {
    }
    %c0 = arith.constant 0 : index
    %c0_1 = arith.constant 0 : index
    %3 = vector.load %arg8[%c0, %c0_1] : memref<8x128xf32, #tpu.memory_space<vmem>>, vector<8x128xf32>
    %c0_2 = arith.constant 0 : index
    %c0_3 = arith.constant 0 : index
    %4 = vector.load %arg3[%c0_2, %c0_3] : memref<8x128xbf16, #tpu.memory_space<vmem>>, vector<8x128xbf16>
    %c0_4 = arith.constant 0 : index
    %c0_5 = arith.constant 0 : index
    %5 = vector.load %arg4[%c0_4, %c0_5] : memref<128x128xbf16, #tpu.memory_space<vmem>>, vector<128x128xbf16>
    %cst = arith.constant dense<0.000000e+00> : vector<8x128xf32>
    %6 = tpu.matmul %4, %5, %cst {dimension_numbers = #tpu.dot_dimension_numbers<[1], [0], [0], [1], [0, 0, 1, 1], [], []>} : vector<8x128xbf16>, vector<128x128xbf16>, vector<8x128xf32> -> vector<8x128xf32>
    %7 = arith.addf %3, %6 : vector<8x128xf32>
    %c0_6 = arith.constant 0 : index
    %c0_7 = arith.constant 0 : index
    %8 = vector.load %arg8[%c0_6, %c0_7] : memref<8x128xf32, #tpu.memory_space<vmem>>, vector<8x128xf32>
    tpu.vector_store %arg8[%c0_6, %c0_7], %7 {strides = array<i32>} : memref<8x128xf32, #tpu.memory_space<vmem>>, vector<8x128xf32>,
    %c17_i32 = arith.constant 17 : i32
    %9 = arith.cmpi eq, %arg2, %c17_i32 : i32
    %10 = arith.extui %9 : i1 to i32
    %c0_i32_8 = arith.constant 0 : i32
    %11 = arith.cmpi ne, %10, %c0_i32_8 : i32
    scf.if %11 {
      %c0_9 = arith.constant 0 : index
      %c0_10 = arith.constant 0 : index
      %12 = vector.load %arg8[%c0_9, %c0_10] : memref<8x128xf32, #tpu.memory_space<vmem>>, vector<8x128xf32>
      %c0_11 = arith.constant 0 : index
      %c0_12 = arith.constant 0 : index
      %13 = vector.load %arg5[%c0_11, %c0_12] : memref<1x128xf32, #tpu.memory_space<vmem>>, vector<1x128xf32>
      %14 = vector.broadcast %13 : vector<1x128xf32> to vector<8x128xf32>
      %15 = arith.addf %12, %14 : vector<8x128xf32>
      %c0_13 = arith.constant 0 : index
      %c0_14 = arith.constant 0 : index
      %16 = vector.load %arg6[%c0_13, %c0_14] : memref<8x128xf32, #tpu.memory_space<vmem>>, vector<8x128xf32>
      %17 = arith.addf %15, %16 : vector<8x128xf32>
      %cst_15 = arith.constant 0.000000e+00 : f32
      %18 = vector.broadcast %cst_15 : f32 to vector<8x128xf32>
      %19 = arith.maximumf %17, %18 : vector<8x128xf32>
      %c0_16 = arith.constant 0 : index
      %c0_17 = arith.constant 0 : index
      %20 = vector.load %arg7[%c0_16, %c0_17] : memref<8x128xf32, #tpu.memory_space<vmem>>, vector<8x128xf32>
      tpu.vector_store %arg7[%c0_16, %c0_17], %19 {strides = array<i32>} : memref<8x128xf32, #tpu.memory_space<vmem>>, vector<8x128xf32>,
    } else {
    }
    return
  }
  func.func @transform_0(%arg0: i32, %arg1: i32, %arg2: i32) -> (i32, i32) {
    %c0_i32 = arith.constant 0 : i32
    return %arg0, %arg2 : i32, i32
  }
  func.func @transform_1(%arg0: i32, %arg1: i32, %arg2: i32) -> (i32, i32) {
    %c0_i32 = arith.constant 0 : i32
    return %arg2, %arg1 : i32, i32
  }
  func.func @transform_2(%arg0: i32, %arg1: i32, %arg2: i32) -> (i32, i32) {
    %c0_i32 = arith.constant 0 : i32
    %c0_i32_0 = arith.constant 0 : i32
    return %c0_i32, %arg1 : i32, i32
  }
  func.func @transform_3(%arg0: i32, %arg1: i32, %arg2: i32) -> (i32, i32) {
    %c0_i32 = arith.constant 0 : i32
    return %arg0, %arg1 : i32, i32
  }
  func.func @transform_4(%arg0: i32, %arg1: i32, %arg2: i32) -> (i32, i32) {
    %c0_i32 = arith.constant 0 : i32
    return %arg0, %arg1 : i32, i32
  }
}

module attributes {stable_mosaic.version = 11 : i64} {
  func.func @_matmul_bias_kernel(%arg0: i32, %arg1: i32, %arg2: i32, %arg3: memref<8x128xbf16, #tpu.memory_space<vmem>>, %arg4: memref<128x128xbf16, #tpu.memory_space<vmem>>, %arg5: memref<1x128xf32, #tpu.memory_space<vmem>>, %arg6: memref<8x128xf32, #tpu.memory_space<vmem>>, %arg7: memref<8x128xf32, #tpu.memory_space<vmem>>) attributes {dimension_semantics = [#tpu.dimension_semantics<parallel>, #tpu.dimension_semantics<parallel>, #tpu.dimension_semantics<arbitrary>], iteration_bounds = array<i64: 1, 4, 18>, scalar_prefetch = 0 : i64, scratch_operands = 1 : i64, tpu.core_type = #tpu.core_type<tc>, window_params = [{transform_indices = @transform_0, window_bounds = array<i64: 8, 128>}, {transform_indices = @transform_1, window_bounds = array<i64: 128, 128>}, {transform_indices = @transform_2, window_bounds = array<i64: 1, 128>}, {transform_indices = @transform_3, window_bounds = array<i64: 8, 128>}]} {
    %c0_i32 = arith.constant 0 : i32
    %0 = arith.cmpi eq, %arg2, %c0_i32 : i32
    %1 = arith.extui %0 : i1 to i32
    %c0_i32_0 = arith.constant 0 : i32
    %2 = arith.cmpi ne, %1, %c0_i32_0 : i32
    scf.if %2 {
      %cst_9 = arith.constant 0.000000e+00 : f32
      %12 = vector.broadcast %cst_9 : f32 to vector<8x128xf32>
      %c0_10 = arith.constant 0 : index
      %c0_11 = arith.constant 0 : index
      %13 = vector.load %arg7[%c0_10, %c0_11] : memref<8x128xf32, #tpu.memory_space<vmem>>, vector<8x128xf32>
      tpu.vector_store %arg7[%c0_10, %c0_11], %12 {strides = array<i32>} : memref<8x128xf32, #tpu.memory_space<vmem>>, vector<8x128xf32>,
    } else {
    }
    %c0 = arith.constant 0 : index
    %c0_1 = arith.constant 0 : index
    %3 = vector.load %arg7[%c0, %c0_1] : memref<8x128xf32, #tpu.memory_space<vmem>>, vector<8x128xf32>
    %c0_2 = arith.constant 0 : index
    %c0_3 = arith.constant 0 : index
    %4 = vector.load %arg3[%c0_2, %c0_3] : memref<8x128xbf16, #tpu.memory_space<vmem>>, vector<8x128xbf16>
    %c0_4 = arith.constant 0 : index
    %c0_5 = arith.constant 0 : index
    %5 = vector.load %arg4[%c0_4, %c0_5] : memref<128x128xbf16, #tpu.memory_space<vmem>>, vector<128x128xbf16>
    %cst = arith.constant dense<0.000000e+00> : vector<8x128xf32>
    %6 = tpu.matmul %4, %5, %cst {dimension_numbers = #tpu.dot_dimension_numbers<[1], [0], [0], [1], [0, 0, 1, 1], [], []>} : vector<8x128xbf16>, vector<128x128xbf16>, vector<8x128xf32> -> vector<8x128xf32>
    %7 = arith.addf %3, %6 : vector<8x128xf32>
    %c0_6 = arith.constant 0 : index
    %c0_7 = arith.constant 0 : index
    %8 = vector.load %arg7[%c0_6, %c0_7] : memref<8x128xf32, #tpu.memory_space<vmem>>, vector<8x128xf32>
    tpu.vector_store %arg7[%c0_6, %c0_7], %7 {strides = array<i32>} : memref<8x128xf32, #tpu.memory_space<vmem>>, vector<8x128xf32>,
    %c17_i32 = arith.constant 17 : i32
    %9 = arith.cmpi eq, %arg2, %c17_i32 : i32
    %10 = arith.extui %9 : i1 to i32
    %c0_i32_8 = arith.constant 0 : i32
    %11 = arith.cmpi ne, %10, %c0_i32_8 : i32
    scf.if %11 {
      %c0_9 = arith.constant 0 : index
      %c0_10 = arith.constant 0 : index
      %12 = vector.load %arg7[%c0_9, %c0_10] : memref<8x128xf32, #tpu.memory_space<vmem>>, vector<8x128xf32>
      %c0_11 = arith.constant 0 : index
      %c0_12 = arith.constant 0 : index
      %13 = vector.load %arg5[%c0_11, %c0_12] : memref<1x128xf32, #tpu.memory_space<vmem>>, vector<1x128xf32>
      %14 = vector.broadcast %13 : vector<1x128xf32> to vector<8x128xf32>
      %15 = arith.addf %12, %14 : vector<8x128xf32>
      %cst_13 = arith.constant 0.000000e+00 : f32
      %16 = vector.broadcast %cst_13 : f32 to vector<8x128xf32>
      %17 = arith.maximumf %15, %16 : vector<8x128xf32>
      %c0_14 = arith.constant 0 : index
      %c0_15 = arith.constant 0 : index
      %18 = vector.load %arg6[%c0_14, %c0_15] : memref<8x128xf32, #tpu.memory_space<vmem>>, vector<8x128xf32>
      tpu.vector_store %arg6[%c0_14, %c0_15], %17 {strides = array<i32>} : memref<8x128xf32, #tpu.memory_space<vmem>>, vector<8x128xf32>,
    } else {
    }
    return
  }
  func.func @transform_0(%arg0: i32, %arg1: i32, %arg2: i32) -> (i32, i32) {
    %c0_i32 = arith.constant 0 : i32
    return %arg0, %arg2 : i32, i32
  }
  func.func @transform_1(%arg0: i32, %arg1: i32, %arg2: i32) -> (i32, i32) {
    %c0_i32 = arith.constant 0 : i32
    return %arg2, %arg1 : i32, i32
  }
  func.func @transform_2(%arg0: i32, %arg1: i32, %arg2: i32) -> (i32, i32) {
    %c0_i32 = arith.constant 0 : i32
    %c0_i32_0 = arith.constant 0 : i32
    return %c0_i32, %arg1 : i32, i32
  }
  func.func @transform_3(%arg0: i32, %arg1: i32, %arg2: i32) -> (i32, i32) {
    %c0_i32 = arith.constant 0 : i32
    return %arg0, %arg1 : i32, i32
  }
}

module attributes {stable_mosaic.version = 11 : i64} {
  func.func @_matmul_bias_kernel(%arg0: i32, %arg1: i32, %arg2: i32, %arg3: memref<8x128xbf16, #tpu.memory_space<vmem>>, %arg4: memref<128x128xbf16, #tpu.memory_space<vmem>>, %arg5: memref<1x128xf32, #tpu.memory_space<vmem>>, %arg6: memref<8x128xf32, #tpu.memory_space<vmem>>, %arg7: memref<8x128xf32, #tpu.memory_space<vmem>>) attributes {dimension_semantics = [#tpu.dimension_semantics<parallel>, #tpu.dimension_semantics<parallel>, #tpu.dimension_semantics<arbitrary>], iteration_bounds = array<i64: 1, 4, 2>, scalar_prefetch = 0 : i64, scratch_operands = 1 : i64, tpu.core_type = #tpu.core_type<tc>, window_params = [{transform_indices = @transform_0, window_bounds = array<i64: 8, 128>}, {transform_indices = @transform_1, window_bounds = array<i64: 128, 128>}, {transform_indices = @transform_2, window_bounds = array<i64: 1, 128>}, {transform_indices = @transform_3, window_bounds = array<i64: 8, 128>}]} {
    %c0_i32 = arith.constant 0 : i32
    %0 = arith.cmpi eq, %arg2, %c0_i32 : i32
    %1 = arith.extui %0 : i1 to i32
    %c0_i32_0 = arith.constant 0 : i32
    %2 = arith.cmpi ne, %1, %c0_i32_0 : i32
    scf.if %2 {
      %cst_9 = arith.constant 0.000000e+00 : f32
      %12 = vector.broadcast %cst_9 : f32 to vector<8x128xf32>
      %c0_10 = arith.constant 0 : index
      %c0_11 = arith.constant 0 : index
      %13 = vector.load %arg7[%c0_10, %c0_11] : memref<8x128xf32, #tpu.memory_space<vmem>>, vector<8x128xf32>
      tpu.vector_store %arg7[%c0_10, %c0_11], %12 {strides = array<i32>} : memref<8x128xf32, #tpu.memory_space<vmem>>, vector<8x128xf32>,
    } else {
    }
    %c0 = arith.constant 0 : index
    %c0_1 = arith.constant 0 : index
    %3 = vector.load %arg7[%c0, %c0_1] : memref<8x128xf32, #tpu.memory_space<vmem>>, vector<8x128xf32>
    %c0_2 = arith.constant 0 : index
    %c0_3 = arith.constant 0 : index
    %4 = vector.load %arg3[%c0_2, %c0_3] : memref<8x128xbf16, #tpu.memory_space<vmem>>, vector<8x128xbf16>
    %c0_4 = arith.constant 0 : index
    %c0_5 = arith.constant 0 : index
    %5 = vector.load %arg4[%c0_4, %c0_5] : memref<128x128xbf16, #tpu.memory_space<vmem>>, vector<128x128xbf16>
    %cst = arith.constant dense<0.000000e+00> : vector<8x128xf32>
    %6 = tpu.matmul %4, %5, %cst {dimension_numbers = #tpu.dot_dimension_numbers<[1], [0], [0], [1], [0, 0, 1, 1], [], []>} : vector<8x128xbf16>, vector<128x128xbf16>, vector<8x128xf32> -> vector<8x128xf32>
    %7 = arith.addf %3, %6 : vector<8x128xf32>
    %c0_6 = arith.constant 0 : index
    %c0_7 = arith.constant 0 : index
    %8 = vector.load %arg7[%c0_6, %c0_7] : memref<8x128xf32, #tpu.memory_space<vmem>>, vector<8x128xf32>
    tpu.vector_store %arg7[%c0_6, %c0_7], %7 {strides = array<i32>} : memref<8x128xf32, #tpu.memory_space<vmem>>, vector<8x128xf32>,
    %c1_i32 = arith.constant 1 : i32
    %9 = arith.cmpi eq, %arg2, %c1_i32 : i32
    %10 = arith.extui %9 : i1 to i32
    %c0_i32_8 = arith.constant 0 : i32
    %11 = arith.cmpi ne, %10, %c0_i32_8 : i32
    scf.if %11 {
      %c0_9 = arith.constant 0 : index
      %c0_10 = arith.constant 0 : index
      %12 = vector.load %arg7[%c0_9, %c0_10] : memref<8x128xf32, #tpu.memory_space<vmem>>, vector<8x128xf32>
      %c0_11 = arith.constant 0 : index
      %c0_12 = arith.constant 0 : index
      %13 = vector.load %arg5[%c0_11, %c0_12] : memref<1x128xf32, #tpu.memory_space<vmem>>, vector<1x128xf32>
      %14 = vector.broadcast %13 : vector<1x128xf32> to vector<8x128xf32>
      %15 = arith.addf %12, %14 : vector<8x128xf32>
      %c0_13 = arith.constant 0 : index
      %c0_14 = arith.constant 0 : index
      %16 = vector.load %arg6[%c0_13, %c0_14] : memref<8x128xf32, #tpu.memory_space<vmem>>, vector<8x128xf32>
      tpu.vector_store %arg6[%c0_13, %c0_14], %15 {strides = array<i32>} : memref<8x128xf32, #tpu.memory_space<vmem>>, vector<8x128xf32>,
    } else {
    }
    return
  }
  func.func @transform_0(%arg0: i32, %arg1: i32, %arg2: i32) -> (i32, i32) {
    %c0_i32 = arith.constant 0 : i32
    return %arg0, %arg2 : i32, i32
  }
  func.func @transform_1(%arg0: i32, %arg1: i32, %arg2: i32) -> (i32, i32) {
    %c0_i32 = arith.constant 0 : i32
    return %arg2, %arg1 : i32, i32
  }
  func.func @transform_2(%arg0: i32, %arg1: i32, %arg2: i32) -> (i32, i32) {
    %c0_i32 = arith.constant 0 : i32
    %c0_i32_0 = arith.constant 0 : i32
    return %c0_i32, %arg1 : i32, i32
  }
  func.func @transform_3(%arg0: i32, %arg1: i32, %arg2: i32) -> (i32, i32) {
    %c0_i32 = arith.constant 0 : i32
    return %arg0, %arg1 : i32, i32
  }
}

module attributes {stable_mosaic.version = 11 : i64} {
  func.func @_matmul_bias_res_kernel(%arg0: i32, %arg1: i32, %arg2: i32, %arg3: memref<8x128xbf16, #tpu.memory_space<vmem>>, %arg4: memref<128x128xbf16, #tpu.memory_space<vmem>>, %arg5: memref<1x128xf32, #tpu.memory_space<vmem>>, %arg6: memref<8x128xf32, #tpu.memory_space<vmem>>, %arg7: memref<8x128xf32, #tpu.memory_space<vmem>>, %arg8: memref<8x128xf32, #tpu.memory_space<vmem>>) attributes {dimension_semantics = [#tpu.dimension_semantics<parallel>, #tpu.dimension_semantics<parallel>, #tpu.dimension_semantics<arbitrary>], iteration_bounds = array<i64: 1, 4, 36>, scalar_prefetch = 0 : i64, scratch_operands = 1 : i64, tpu.core_type = #tpu.core_type<tc>, window_params = [{transform_indices = @transform_0, window_bounds = array<i64: 8, 128>}, {transform_indices = @transform_1, window_bounds = array<i64: 128, 128>}, {transform_indices = @transform_2, window_bounds = array<i64: 1, 128>}, {transform_indices = @transform_3, window_bounds = array<i64: 8, 128>}, {transform_indices = @transform_4, window_bounds = array<i64: 8, 128>}]} {
    %c0_i32 = arith.constant 0 : i32
    %0 = arith.cmpi eq, %arg2, %c0_i32 : i32
    %1 = arith.extui %0 : i1 to i32
    %c0_i32_0 = arith.constant 0 : i32
    %2 = arith.cmpi ne, %1, %c0_i32_0 : i32
    scf.if %2 {
      %cst_9 = arith.constant 0.000000e+00 : f32
      %12 = vector.broadcast %cst_9 : f32 to vector<8x128xf32>
      %c0_10 = arith.constant 0 : index
      %c0_11 = arith.constant 0 : index
      %13 = vector.load %arg8[%c0_10, %c0_11] : memref<8x128xf32, #tpu.memory_space<vmem>>, vector<8x128xf32>
      tpu.vector_store %arg8[%c0_10, %c0_11], %12 {strides = array<i32>} : memref<8x128xf32, #tpu.memory_space<vmem>>, vector<8x128xf32>,
    } else {
    }
    %c0 = arith.constant 0 : index
    %c0_1 = arith.constant 0 : index
    %3 = vector.load %arg8[%c0, %c0_1] : memref<8x128xf32, #tpu.memory_space<vmem>>, vector<8x128xf32>
    %c0_2 = arith.constant 0 : index
    %c0_3 = arith.constant 0 : index
    %4 = vector.load %arg3[%c0_2, %c0_3] : memref<8x128xbf16, #tpu.memory_space<vmem>>, vector<8x128xbf16>
    %c0_4 = arith.constant 0 : index
    %c0_5 = arith.constant 0 : index
    %5 = vector.load %arg4[%c0_4, %c0_5] : memref<128x128xbf16, #tpu.memory_space<vmem>>, vector<128x128xbf16>
    %cst = arith.constant dense<0.000000e+00> : vector<8x128xf32>
    %6 = tpu.matmul %4, %5, %cst {dimension_numbers = #tpu.dot_dimension_numbers<[1], [0], [0], [1], [0, 0, 1, 1], [], []>} : vector<8x128xbf16>, vector<128x128xbf16>, vector<8x128xf32> -> vector<8x128xf32>
    %7 = arith.addf %3, %6 : vector<8x128xf32>
    %c0_6 = arith.constant 0 : index
    %c0_7 = arith.constant 0 : index
    %8 = vector.load %arg8[%c0_6, %c0_7] : memref<8x128xf32, #tpu.memory_space<vmem>>, vector<8x128xf32>
    tpu.vector_store %arg8[%c0_6, %c0_7], %7 {strides = array<i32>} : memref<8x128xf32, #tpu.memory_space<vmem>>, vector<8x128xf32>,
    %c35_i32 = arith.constant 35 : i32
    %9 = arith.cmpi eq, %arg2, %c35_i32 : i32
    %10 = arith.extui %9 : i1 to i32
    %c0_i32_8 = arith.constant 0 : i32
    %11 = arith.cmpi ne, %10, %c0_i32_8 : i32
    scf.if %11 {
      %c0_9 = arith.constant 0 : index
      %c0_10 = arith.constant 0 : index
      %12 = vector.load %arg8[%c0_9, %c0_10] : memref<8x128xf32, #tpu.memory_space<vmem>>, vector<8x128xf32>
      %c0_11 = arith.constant 0 : index
      %c0_12 = arith.constant 0 : index
      %13 = vector.load %arg5[%c0_11, %c0_12] : memref<1x128xf32, #tpu.memory_space<vmem>>, vector<1x128xf32>
      %14 = vector.broadcast %13 : vector<1x128xf32> to vector<8x128xf32>
      %15 = arith.addf %12, %14 : vector<8x128xf32>
      %c0_13 = arith.constant 0 : index
      %c0_14 = arith.constant 0 : index
      %16 = vector.load %arg6[%c0_13, %c0_14] : memref<8x128xf32, #tpu.memory_space<vmem>>, vector<8x128xf32>
      %17 = arith.addf %15, %16 : vector<8x128xf32>
      %cst_15 = arith.constant 0.000000e+00 : f32
      %18 = vector.broadcast %cst_15 : f32 to vector<8x128xf32>
      %19 = arith.maximumf %17, %18 : vector<8x128xf32>
      %c0_16 = arith.constant 0 : index
      %c0_17 = arith.constant 0 : index
      %20 = vector.load %arg7[%c0_16, %c0_17] : memref<8x128xf32, #tpu.memory_space<vmem>>, vector<8x128xf32>
      tpu.vector_store %arg7[%c0_16, %c0_17], %19 {strides = array<i32>} : memref<8x128xf32, #tpu.memory_space<vmem>>, vector<8x128xf32>,
    } else {
    }
    return
  }
  func.func @transform_0(%arg0: i32, %arg1: i32, %arg2: i32) -> (i32, i32) {
    %c0_i32 = arith.constant 0 : i32
    return %arg0, %arg2 : i32, i32
  }
  func.func @transform_1(%arg0: i32, %arg1: i32, %arg2: i32) -> (i32, i32) {
    %c0_i32 = arith.constant 0 : i32
    return %arg2, %arg1 : i32, i32
  }
  func.func @transform_2(%arg0: i32, %arg1: i32, %arg2: i32) -> (i32, i32) {
    %c0_i32 = arith.constant 0 : i32
    %c0_i32_0 = arith.constant 0 : i32
    return %c0_i32, %arg1 : i32, i32
  }
  func.func @transform_3(%arg0: i32, %arg1: i32, %arg2: i32) -> (i32, i32) {
    %c0_i32 = arith.constant 0 : i32
    return %arg0, %arg1 : i32, i32
  }
  func.func @transform_4(%arg0: i32, %arg1: i32, %arg2: i32) -> (i32, i32) {
    %c0_i32 = arith.constant 0 : i32
    return %arg0, %arg1 : i32, i32
  }
}

</mosaic_0001>

<llo_original>
// kernel: resnet_forward.12
$region0: #{resnet_forward.12}
  #allocation0 [shape = 'u32[]', space=smem, size = 0x4, offset = 0x4, fixed_abs, tag = 'smem constant byte address 0x4 - core index']
  #allocation1 [shape = 'u32[72,128]{1,0:T(1,128)}', space=vmem, size = 0x9000, scoped, tag = 'internal scratch']
  #allocation2 [shape = 'f32[128,128]{1,0:T(8,128)}', space=vmem, size = 0x10000, scoped, tag = 'scratch operand']
  %s0 = inlined_call_operand.vmem [shape: bf16[512,256], index: 0, kind: input, shape index: {}]
  %s1 = inlined_call_operand.vmem [shape: bf16[256,128], index: 1, kind: input, shape index: {}]
  %s2 = inlined_call_operand.vmem [shape: f32[1,128], index: 2, kind: input, shape index: {}]
  %s3 = inlined_call_operand.vmem [shape: f32[512,128], index: 3, kind: output, shape index: {}]
  %s4 = sld [smem:[#allocation0]]
  $region94: #{resnet_forward.12} parent=0
    _
  %s6 = ssub.s32 1, %s4
  %s7 = scalar_select 0, %s6, %s4
  $region1: #{resnet_forward.12} parent=0
    #allocation3 [shape = 'u8[65536]{0}', space=vmem, size = 0x10000, scoped, tag = 'input window, operand 0']
    loop: start=0, step=1, limit=10
    $region2: #{resnet_forward.12} parent=1 // loop_pre_header
      _
    $region3: #{resnet_forward.12} parent=1 // loop_header
      %s9 = sphi 0, %s13
      %p10 = scmp.ge.s32.totalorder %s9, 10
      %s16 = sphi 0, %s35
      %s17 = sphi 0, %s31
      %s18 = sphi 0, %s27
      %s19 = sphi 0, %s16
      %s20 = sphi 0, %s17
      %s21 = sphi 0, %s18
      %s22 = sphi 0, %s19
      %s23 = sphi 0, %s20
      %s24 = sphi 0, %s21
      %s40 = sphi 0, %s42
      %s43 = sphi 0, %s40
      %s44 = sphi 0, %s43
      %s60 = sphi 0, %s44
      %s68 = sphi 0, %s70
      %s71 = sphi 0, %s68
      %s72 = sphi 0, %s71
      %s88 = sphi 0, %s72
      %s94 = sphi 0, %s96
      %s97 = sphi 0, %s94
      %s98 = sphi 0, %s97
      %s114 = sphi 0, %s98
      %s122 = sphi 0, %s124
      %s125 = sphi 0, %s122
      %s126 = sphi 0, %s125
      %s142 = sphi 0, %s126
    $region4: #{resnet_forward.12} parent=1 // loop_header_branch
      %12 = sbr.rel (%p10) target = $region8
    $region5: #{resnet_forward.12} parent=1 // loop_body
      %s14 = ssub.s32 %s9, 1
      %s15 = ssub.s32 %s9, 2
      %s25 = sadd.s32 1, %s18
      %p26 = scmp.ge.s32.totalorder %s25, 2
      %s27 = scalar_select %p26, 0, %s25
      %s28 = sadd.s32 1, %s17
      %s29 = scalar_select %p26, %s28, %s17
      %p30 = scmp.ge.s32.totalorder %s29, 1
      %s31 = scalar_select %p30, 0, %s29
      %s32 = sadd.s32 1, %s16
      %s33 = scalar_select %p30, %s32, %s16
      %p34 = scmp.ge.s32.totalorder %s33, 4
      %s35 = scalar_select %p34, 0, %s33
      %s36 = ssub.s32 %s16, %s35
      %s37 = ssub.s32 %s18, %s27
      %s38 = sor.u32 %s36, %s37
      %p39 = scmp.eq.s32.totalorder %s38, 0
      %s41 = sadd.s32 %s40, 1
      %s42 = scalar_select %p39, %s40, %s41
      %p45 = pneg %p39
      %p46 = scmp.eq.s32.totalorder %s9, 7
      %p47 = por %p45, %p46
      %p48 = scmp.ne.s32.totalorder %s40, %s43
      %p49 = scmp.eq.s32.totalorder %s9, 0
      %p50 = por %p48, %p49
      %p51 = scmp.ne.s32.totalorder %s40, %s43
      %p52 = scmp.eq.s32.totalorder %s14, 7
      %p53 = por %p51, %p52
      %p54 = scmp.ne.s32.totalorder %s43, %s44
      %p55 = scmp.eq.s32.totalorder %s14, 0
      %p56 = por %p54, %p55
      %p57 = scmp.ne.s32.totalorder %s43, %s44
      %p58 = scmp.eq.s32.totalorder %s15, 7
      %p59 = por %p57, %p58
      %p61 = scmp.ne.s32.totalorder %s44, %s60
      %p62 = scmp.eq.s32.totalorder %s15, 0
      %p63 = por %p61, %p62
      %s64 = ssub.s32 %s18, %s27
      %s65 = ssub.s32 %s17, %s31
      %s66 = sor.u32 %s64, %s65
      %p67 = scmp.eq.s32.totalorder %s66, 0
      %s69 = sadd.s32 %s68, 1
      %s70 = scalar_select %p67, %s68, %s69
      %p73 = pneg %p67
      %p74 = scmp.eq.s32.totalorder %s9, 7
      %p75 = por %p73, %p74
      %p76 = scmp.ne.s32.totalorder %s68, %s71
      %p77 = scmp.eq.s32.totalorder %s9, 0
      %p78 = por %p76, %p77
      %p79 = scmp.ne.s32.totalorder %s68, %s71
      %p80 = scmp.eq.s32.totalorder %s14, 7
      %p81 = por %p79, %p80
      %p82 = scmp.ne.s32.totalorder %s71, %s72
      %p83 = scmp.eq.s32.totalorder %s14, 0
      %p84 = por %p82, %p83
      %p85 = scmp.ne.s32.totalorder %s71, %s72
      %p86 = scmp.eq.s32.totalorder %s15, 7
      %p87 = por %p85, %p86
      %p89 = scmp.ne.s32.totalorder %s72, %s88
      %p90 = scmp.eq.s32.totalorder %s15, 0
      %p91 = por %p89, %p90
      %s92 = ssub.s32 %s17, %s31
      %p93 = scmp.eq.s32.totalorder %s92, 0
      %s95 = sadd.s32 %s94, 1
      %s96 = scalar_select %p93, %s94, %s95
      %p99 = pneg %p93
      %p100 = scmp.eq.s32.totalorder %s9, 7
      %p101 = por %p99, %p100
      %p102 = scmp.ne.s32.totalorder %s94, %s97
      %p103 = scmp.eq.s32.totalorder %s9, 0
      %p104 = por %p102, %p103
      %p105 = scmp.ne.s32.totalorder %s94, %s97
      %p106 = scmp.eq.s32.totalorder %s14, 7
      %p107 = por %p105, %p106
      %p108 = scmp.ne.s32.totalorder %s97, %s98
      %p109 = scmp.eq.s32.totalorder %s14, 0
      %p110 = por %p108, %p109
      %p111 = scmp.ne.s32.totalorder %s97, %s98
      %p112 = scmp.eq.s32.totalorder %s15, 7
      %p113 = por %p111, %p112
      %p115 = scmp.ne.s32.totalorder %s98, %s114
      %p116 = scmp.eq.s32.totalorder %s15, 0
      %p117 = por %p115, %p116
      %s118 = ssub.s32 %s16, %s35
      %s119 = ssub.s32 %s17, %s31
      %s120 = sor.u32 %s118, %s119
      %p121 = scmp.eq.s32.totalorder %s120, 0
      %s123 = sadd.s32 %s122, 1
      %s124 = scalar_select %p121, %s122, %s123
      %p127 = pneg %p121
      %p128 = scmp.eq.s32.totalorder %s9, 7
      %p129 = por %p127, %p128
      %p130 = scmp.ne.s32.totalorder %s122, %s125
      %p131 = scmp.eq.s32.totalorder %s9, 0
      %p132 = por %p130, %p131
      %p133 = scmp.ne.s32.totalorder %s122, %s125
      %p134 = scmp.eq.s32.totalorder %s14, 7
      %p135 = por %p133, %p134
      %p136 = scmp.ne.s32.totalorder %s125, %s126
      %p137 = scmp.eq.s32.totalorder %s14, 0
      %p138 = por %p136, %p137
      %p139 = scmp.ne.s32.totalorder %s125, %s126
      %p140 = scmp.eq.s32.totalorder %s15, 7
      %p141 = por %p139, %p140
      %p143 = scmp.ne.s32.totalorder %s126, %s142
      %p144 = scmp.eq.s32.totalorder %s15, 0
      %p145 = por %p143, %p144
      %p146 = scmp.le.s32.totalorder 1, %s9
      %p147 = scmp.lt.s32.totalorder %s9, 9
      %p148 = pnand %p146, %p147
      %p149 = pneg %p148
      // Predicated region
      $region9: #{resnet_forward.12} parent=5 // pred_check
        _
      $region10: #{resnet_forward.12} parent=5 // pred_check_branch
        %151 = sbr.rel (%p148) target = $region12
      $region11: #{resnet_forward.12} parent=5 // pred_region
        %s152 = ssub.s32 %s9, 1
        // Predicated region
        $region13: #{resnet_forward.12} parent=11 // pred_check
          %p153 = pneg %p110
        $region14: #{resnet_forward.12} parent=11 // pred_check_branch
          %155 = sbr.rel (%p153) target = $region16
        $region15: #{resnet_forward.12} parent=11 // pred_region
          %p156 = scmp.lt.s32.totalorder %s20, 0
          %s157 = scalar_select %p156, %s20, 0
          %s158 = scalar_lea.vmem %s2, %s157
        $region16: #{resnet_forward.12} parent=11 // pred_fallthru
          _
      $region12: #{resnet_forward.12} parent=5 // pred_fallthru
        _
      %p159 = scmp.lt.s32.totalorder %s9, 8
      // Predicated region
      $region17: #{resnet_forward.12} parent=5 // pred_check
        %p160 = pneg %p159
      $region18: #{resnet_forward.12} parent=5 // pred_check_branch
        %162 = sbr.rel (%p160) target = $region20
      $region19: #{resnet_forward.12} parent=5 // pred_region
        // Predicated region
        $region21: #{resnet_forward.12} parent=19 // pred_check
          %p163 = pneg %p50
        $region22: #{resnet_forward.12} parent=19 // pred_check_branch
          %165 = sbr.rel (%p163) target = $region24
        $region23: #{resnet_forward.12} parent=19 // pred_region
          %s166 = sand.u32 %s40, 1
          %s167 = sand.u32 %s40, 1
          %s168 = smul.addr %s167, 64
          %s169 = scalar_lea.vmem [#allocation3], %s168
          %s170 = smul.u32 16, %s16
          %s171 = smul.addr %s170, 2
          %s172 = sadd.s32 %s18, %s171
          %s173 = smul.addr %s172, 4
          %s174 = scalar_lea.vmem %s0, %s173
          // Predicated region
          $region25: #{resnet_forward.12} parent=23 // pred_check
            _
          $region26: #{resnet_forward.12} parent=23 // pred_check_branch
            %176 = sbr.rel (0) target = $region28
          $region27: #{resnet_forward.12} parent=23 // pred_region
            // Predicated region
            $region29: #{resnet_forward.12} parent=27 // pred_check
              _
            $region30: #{resnet_forward.12} parent=27 // pred_check_branch
              %178 = sbr.rel target = $region32
            $region31: #{resnet_forward.12} parent=27 // pred_region
              // Predicated region
              $region44: #{resnet_forward.12} parent=31 // pred_check
                _
              $region45: #{resnet_forward.12} parent=31 // pred_check_branch
                %224 = sbr.rel (0) target = $region47
              $region46: #{resnet_forward.12} parent=31 // pred_region
                loop: start=0, step=1, limit=1
                $region48: #{resnet_forward.12} parent=46 // loop_pre_header
                  _
                $region49: #{resnet_forward.12} parent=46 // loop_header
                  %s226 = sphi 0, %s230
                  %p227 = scmp.ge.s32.totalorder %s226, 1
                  %s231 = sphi %s174, %s174
                  %s232 = sphi %s169, %s169
                $region50: #{resnet_forward.12} parent=46 // loop_header_branch
                  %229 = sbr.rel (%p227) target = $region54
                $region51: #{resnet_forward.12} parent=46 // loop_body
                  _
                $region52: #{resnet_forward.12} parent=46 // loop_footer
                  %s230 = sadd.s32 1, %s226
                $region53: #{resnet_forward.12} parent=46 // loop_footer_branch
                  %225 = sbr.rel target = $region49
                $region54: #{resnet_forward.12} parent=46 // loop_exit
                  _
                %s234 = ssub.s32 16, 1
                loop: start=0, step=1, limit=1
                $region55: #{resnet_forward.12} parent=46 // loop_pre_header
                  _
                $region56: #{resnet_forward.12} parent=46 // loop_header
                  %s236 = sphi 0, %s240
                  %p237 = scmp.ge.s32.totalorder %s236, 1
                  %s241 = sphi %s174, %s174
                  %s242 = sphi %s169, %s169
                $region57: #{resnet_forward.12} parent=46 // loop_header_branch
                  %239 = sbr.rel (%p237) target = $region61
                $region58: #{resnet_forward.12} parent=46 // loop_body
                  %v243 = vld [vmem:[%s241] sm:%s234]
                  %244 = vst [vmem:[%s242] sm:%s234] %v243
                  %v245 = vld [vmem:[%s241 + $0x8] sm:%s234]
                  %246 = vst [vmem:[%s242 + $0x4] sm:%s234] %v245
                  %v247 = vld [vmem:[%s241 + $0x10] sm:%s234]
                  %248 = vst [vmem:[%s242 + $0x8] sm:%s234] %v247
                  %v249 = vld [vmem:[%s241 + $0x18] sm:%s234]
                  %250 = vst [vmem:[%s242 + $0xc] sm:%s234] %v249
                  %v251 = vld [vmem:[%s241 + $0x20] sm:%s234]
                  %252 = vst [vmem:[%s242 + $0x10] sm:%s234] %v251
                  %v253 = vld [vmem:[%s241 + $0x28] sm:%s234]
                  %254 = vst [vmem:[%s242 + $0x14] sm:%s234] %v253
                  %v255 = vld [vmem:[%s241 + $0x30] sm:%s234]
                  %256 = vst [vmem:[%s242 + $0x18] sm:%s234] %v255
                  %v257 = vld [vmem:[%s241 + $0x38] sm:%s234]
                  %258 = vst [vmem:[%s242 + $0x1c] sm:%s234] %v257
                  %v259 = vld [vmem:[%s241 + $0x40] sm:%s234]
                  %260 = vst [vmem:[%s242 + $0x20] sm:%s234] %v259
                  %v261 = vld [vmem:[%s241 + $0x48] sm:%s234]
                  %262 = vst [vmem:[%s242 + $0x24] sm:%s234] %v261
                  %v263 = vld [vmem:[%s241 + $0x50] sm:%s234]
                  %264 = vst [vmem:[%s242 + $0x28] sm:%s234] %v263
                  %v265 = vld [vmem:[%s241 + $0x58] sm:%s234]
                  %266 = vst [vmem:[%s242 + $0x2c] sm:%s234] %v265
                  %v267 = vld [vmem:[%s241 + $0x60] sm:%s234]
                  %268 = vst [vmem:[%s242 + $0x30] sm:%s234] %v267
                  %v269 = vld [vmem:[%s241 + $0x68] sm:%s234]
                  %270 = vst [vmem:[%s242 + $0x34] sm:%s234] %v269
                  %v271 = vld [vmem:[%s241 + $0x70] sm:%s234]
                  %272 = vst [vmem:[%s242 + $0x38] sm:%s234] %v271
                  %v273 = vld [vmem:[%s241 + $0x78] sm:%s234]
                  %274 = vst [vmem:[%s242 + $0x3c] sm:%s234] %v273
                $region59: #{resnet_forward.12} parent=46 // loop_footer
                  %s240 = sadd.s32 1, %s236
                $region60: #{resnet_forward.12} parent=46 // loop_footer_branch
                  %235 = sbr.rel target = $region56
                $region61: #{resnet_forward.12} parent=46 // loop_exit
                  _
              $region47: #{resnet_forward.12} parent=31 // pred_fallthru
                _
            $region32: #{resnet_forward.12} parent=27 // pred_fallthru
              _
            // Predicated region
            $region33: #{resnet_forward.12} parent=27 // pred_check
              _
            $region34: #{resnet_forward.12} parent=27 // pred_check_branch
              %180 = sbr.rel (0) target = $region36
            $region35: #{resnet_forward.12} parent=27 // pred_region
              %s182 = ssub.s32 16, 1
              loop: start=0, step=1, limit=1
              $region37: #{resnet_forward.12} parent=35 // loop_pre_header
                _
              $region38: #{resnet_forward.12} parent=35 // loop_header
                %s184 = sphi 0, %s188
                %p185 = scmp.ge.s32.totalorder %s184, 1
                %s189 = sphi %s174, %s174
                %s190 = sphi %s169, %s169
              $region39: #{resnet_forward.12} parent=35 // loop_header_branch
                %187 = sbr.rel (%p185) target = $region43
              $region40: #{resnet_forward.12} parent=35 // loop_body
                %v191 = vld [vmem:[%s189] sm:%s182]
                %192 = vst [vmem:[%s190] sm:%s182] %v191
                %v193 = vld [vmem:[%s189 + $0x8] sm:%s182]
                %194 = vst [vmem:[%s190 + $0x4] sm:%s182] %v193
                %v195 = vld [vmem:[%s189 + $0x10] sm:%s182]
                %196 = vst [vmem:[%s190 + $0x8] sm:%s182] %v195
                %v197 = vld [vmem:[%s189 + $0x18] sm:%s182]
                %198 = vst [vmem:[%s190 + $0xc] sm:%s182] %v197
                %v199 = vld [vmem:[%s189 + $0x20] sm:%s182]
                %200 = vst [vmem:[%s190 + $0x10] sm:%s182] %v199
                %v201 = vld [vmem:[%s189 + $0x28] sm:%s182]
                %202 = vst [vmem:[%s190 + $0x14] sm:%s182] %v201
                %v203 = vld [vmem:[%s189 + $0x30] sm:%s182]
                %204 = vst [vmem:[%s190 + $0x18] sm:%s182] %v203
                %v205 = vld [vmem:[%s189 + $0x38] sm:%s182]
                %206 = vst [vmem:[%s190 + $0x1c] sm:%s182] %v205
                %v207 = vld [vmem:[%s189 + $0x40] sm:%s182]
                %208 = vst [vmem:[%s190 + $0x20] sm:%s182] %v207
                %v209 = vld [vmem:[%s189 + $0x48] sm:%s182]
                %210 = vst [vmem:[%s190 + $0x24] sm:%s182] %v209
                %v211 = vld [vmem:[%s189 + $0x50] sm:%s182]
                %212 = vst [vmem:[%s190 + $0x28] sm:%s182] %v211
                %v213 = vld [vmem:[%s189 + $0x58] sm:%s182]
                %214 = vst [vmem:[%s190 + $0x2c] sm:%s182] %v213
                %v215 = vld [vmem:[%s189 + $0x60] sm:%s182]
                %216 = vst [vmem:[%s190 + $0x30] sm:%s182] %v215
                %v217 = vld [vmem:[%s189 + $0x68] sm:%s182]
                %218 = vst [vmem:[%s190 + $0x34] sm:%s182] %v217
                %v219 = vld [vmem:[%s189 + $0x70] sm:%s182]
                %220 = vst [vmem:[%s190 + $0x38] sm:%s182] %v219
                %v221 = vld [vmem:[%s189 + $0x78] sm:%s182]
                %222 = vst [vmem:[%s190 + $0x3c] sm:%s182] %v221
              $region41: #{resnet_forward.12} parent=35 // loop_footer
                %s188 = sadd.s32 1, %s184
              $region42: #{resnet_forward.12} parent=35 // loop_footer_branch
                %183 = sbr.rel target = $region38
              $region43: #{resnet_forward.12} parent=35 // loop_exit
                _
            $region36: #{resnet_forward.12} parent=27 // pred_fallthru
              _
          $region28: #{resnet_forward.12} parent=23 // pred_fallthru
            _
          %275 = vnop
        $region24: #{resnet_forward.12} parent=19 // pred_fallthru
          _
        // Predicated region
        $region62: #{resnet_forward.12} parent=19 // pred_check
          %p276 = pneg %p78
        $region63: #{resnet_forward.12} parent=19 // pred_check_branch
          %278 = sbr.rel (%p276) target = $region65
        $region64: #{resnet_forward.12} parent=19 // pred_region
          %s279 = smul.u32 16, %s18
          %p280 = scmp.lt.s32.totalorder %s279, 31
          %s281 = scalar_select %p280, %s279, 31
          %p282 = scmp.lt.s32.totalorder %s17, 0
          %s283 = scalar_select %p282, %s17, 0
          %s284 = sadd.s32 %s283, %s281
          %s285 = smul.addr %s284, 4
          %s286 = scalar_lea.vmem %s1, %s285
          %s287 = smul.u32 16, %s18
        $region65: #{resnet_forward.12} parent=19 // pred_fallthru
          _
      $region20: #{resnet_forward.12} parent=5 // pred_fallthru
        _
      %p288 = scmp.le.s32.totalorder 1, %s9
      %p289 = scmp.lt.s32.totalorder %s9, 9
      %p290 = pnand %p288, %p289
      %p291 = pneg %p290
      // Predicated region
      $region66: #{resnet_forward.12} parent=5 // pred_check
        _
      $region67: #{resnet_forward.12} parent=5 // pred_check_branch
        %293 = sbr.rel (%p290) target = $region69
      $region68: #{resnet_forward.12} parent=5 // pred_region
        %s294 = ssub.s32 %s9, 1
        %s295 = sand.u32 %s43, 1
        %s296 = sand.u32 %s43, 1
        %s297 = smul.addr %s296, 64
        %s298 = scalar_lea.vmem [#allocation3], %s297
        // Predicated region
        $region70: #{resnet_forward.12} parent=68 // pred_check
          %p299 = pneg %p56
        $region71: #{resnet_forward.12} parent=68 // pred_check_branch
          %301 = sbr.rel (%p299) target = $region73
        $region72: #{resnet_forward.12} parent=68 // pred_region
          _
        $region73: #{resnet_forward.12} parent=68 // pred_fallthru
          _
        %s302 = sand.u32 %s43, 1
        %s303 = sand.u32 %s43, 1
        %s304 = smul.addr %s303, 64
        %s305 = scalar_lea.vmem [#allocation3], %s304
        %p306 = pneg %p56
        %p307 = pneg %p53
        %s308 = smul.u32 16, %s21
        %p309 = scmp.lt.s32.totalorder %s308, 31
        %s310 = scalar_select %p309, %s308, 31
        %p311 = scmp.lt.s32.totalorder %s20, 0
        %s312 = scalar_select %p311, %s20, 0
        %s313 = sadd.s32 %s312, %s310
        %s314 = smul.addr %s313, 4
        %s315 = scalar_lea.vmem %s1, %s314
        %p316 = pneg %p84
        %p317 = pneg %p81
        %p318 = scmp.lt.s32.totalorder %s20, 0
        %s319 = scalar_select %p318, %s20, 0
        %s320 = scalar_lea.vmem %s2, %s319
        %p321 = pneg %p110
        %p322 = pneg %p107
        %p323 = pneg %p138
        %p324 = pneg %p135
        %s325 = smul.u32 16, %s19
        %p326 = scmp.lt.s32.totalorder %s325, 63
        %s327 = scalar_select %p326, %s325, 63
        %p328 = scmp.lt.s32.totalorder %s20, 0
        %s329 = scalar_select %p328, %s20, 0
        %s330 = sadd.s32 %s329, %s327
        %s331 = smul.addr %s330, 8
        %s332 = scalar_lea.vmem %s3, %s331
        %s333 = smul.u32 16, %s19
        %s334 = smul.u32 16, %s21
        %p335 = scmp.lt.s32.totalorder %s334, 31
        %s336 = scalar_select %p335, %s334, 31
        %p337 = scmp.lt.s32.totalorder %s20, 0
        %s338 = scalar_select %p337, %s20, 0
        %s339 = sadd.s32 %s338, %s336
        %s340 = smul.addr %s339, 4
        %s341 = scalar_lea.vmem %s1, %s340
        %s342 = smul.u32 16, %s21
        %p343 = scmp.lt.s32.totalorder %s20, 0
        %s344 = scalar_select %p343, %s20, 0
        %s345 = scalar_lea.vmem %s2, %s344
        %s346 = smul.u32 16, %s19
        %p347 = scmp.lt.s32.totalorder %s346, 63
        %s348 = scalar_select %p347, %s346, 63
        %p349 = scmp.lt.s32.totalorder %s20, 0
        %s350 = scalar_select %p349, %s20, 0
        %s351 = sadd.s32 %s350, %s348
        %s352 = smul.addr %s351, 8
        %s353 = scalar_lea.vmem %s3, %s352
        %s354 = smul.u32 16, %s19
        %p355 = scmp.eq.s32.totalorder %s21, 0
        // Predicated region
        $region74: #{resnet_forward.12} parent=68 // pred_check
          %p356 = pneg %p355
        $region75: #{resnet_forward.12} parent=68 // pred_check_branch
          %358 = sbr.rel (%p356) target = $region77
        $region76: #{resnet_forward.12} parent=68 // pred_region
          %359 = vst [vmem:[#allocation2] sm:$0xff] 0.0
          %360 = vst [vmem:[#allocation2 + $0x8] sm:$0xff] 0.0
          %361 = vst [vmem:[#allocation2 + $0x10] sm:$0xff] 0.0
          %362 = vst [vmem:[#allocation2 + $0x18] sm:$0xff] 0.0
          %363 = vst [vmem:[#allocation2 + $0x20] sm:$0xff] 0.0
          %364 = vst [vmem:[#allocation2 + $0x28] sm:$0xff] 0.0
          %365 = vst [vmem:[#allocation2 + $0x30] sm:$0xff] 0.0
          %366 = vst [vmem:[#allocation2 + $0x38] sm:$0xff] 0.0
          %367 = vst [vmem:[#allocation2 + $0x40] sm:$0xff] 0.0
          %368 = vst [vmem:[#allocation2 + $0x48] sm:$0xff] 0.0
          %369 = vst [vmem:[#allocation2 + $0x50] sm:$0xff] 0.0
          %370 = vst [vmem:[#allocation2 + $0x58] sm:$0xff] 0.0
          %371 = vst [vmem:[#allocation2 + $0x60] sm:$0xff] 0.0
          %372 = vst [vmem:[#allocation2 + $0x68] sm:$0xff] 0.0
          %373 = vst [vmem:[#allocation2 + $0x70] sm:$0xff] 0.0
          %374 = vst [vmem:[#allocation2 + $0x78] sm:$0xff] 0.0
        $region77: #{resnet_forward.12} parent=68 // pred_fallthru
          _
        %v375 = vld [vmem:[#allocation2] sm:$0xff]
        %v376 = vld [vmem:[#allocation2 + $0x8] sm:$0xff]
        %v377 = vld [vmem:[#allocation2 + $0x10] sm:$0xff]
        %v378 = vld [vmem:[#allocation2 + $0x18] sm:$0xff]
        %v379 = vld [vmem:[#allocation2 + $0x20] sm:$0xff]
        %v380 = vld [vmem:[#allocation2 + $0x28] sm:$0xff]
        %v381 = vld [vmem:[#allocation2 + $0x30] sm:$0xff]
        %v382 = vld [vmem:[#allocation2 + $0x38] sm:$0xff]
        %v383 = vld [vmem:[#allocation2 + $0x40] sm:$0xff]
        %v384 = vld [vmem:[#allocation2 + $0x48] sm:$0xff]
        %v385 = vld [vmem:[#allocation2 + $0x50] sm:$0xff]
        %v386 = vld [vmem:[#allocation2 + $0x58] sm:$0xff]
        %v387 = vld [vmem:[#allocation2 + $0x60] sm:$0xff]
        %v388 = vld [vmem:[#allocation2 + $0x68] sm:$0xff]
        %v389 = vld [vmem:[#allocation2 + $0x70] sm:$0xff]
        %v390 = vld [vmem:[#allocation2 + $0x78] sm:$0xff]
        %v391 = vld [vmem:[%s298] sm:$0xf]
        %v392 = vld [vmem:[%s298 + $0x4] sm:$0xf]
        %v393 = vld [vmem:[%s298 + $0x8] sm:$0xf]
        %v394 = vld [vmem:[%s298 + $0xc] sm:$0xf]
        %v395 = vld [vmem:[%s298 + $0x10] sm:$0xf]
        %v396 = vld [vmem:[%s298 + $0x14] sm:$0xf]
        %v397 = vld [vmem:[%s298 + $0x18] sm:$0xf]
        %v398 = vld [vmem:[%s298 + $0x1c] sm:$0xf]
        %v399 = vld [vmem:[%s298 + $0x20] sm:$0xf]
        %v400 = vld [vmem:[%s298 + $0x24] sm:$0xf]
        %v401 = vld [vmem:[%s298 + $0x28] sm:$0xf]
        %v402 = vld [vmem:[%s298 + $0x2c] sm:$0xf]
        %v403 = vld [vmem:[%s298 + $0x30] sm:$0xf]
        %v404 = vld [vmem:[%s298 + $0x34] sm:$0xf]
        %v405 = vld [vmem:[%s298 + $0x38] sm:$0xf]
        %v406 = vld [vmem:[%s298 + $0x3c] sm:$0xf]
        %v407 = vld [vmem:[%s341] sm:$0xf]
        %v408 = vld [vmem:[%s341 + $0x4] sm:$0xf]
        %v409 = vld [vmem:[%s341 + $0x8] sm:$0xf]
        %v410 = vld [vmem:[%s341 + $0xc] sm:$0xf]
        %v411 = vld [vmem:[%s341 + $0x10] sm:$0xf]
        %v412 = vld [vmem:[%s341 + $0x14] sm:$0xf]
        %v413 = vld [vmem:[%s341 + $0x18] sm:$0xf]
        %v414 = vld [vmem:[%s341 + $0x1c] sm:$0xf]
        %v415 = vld [vmem:[%s341 + $0x20] sm:$0xf]
        %v416 = vld [vmem:[%s341 + $0x24] sm:$0xf]
        %v417 = vld [vmem:[%s341 + $0x28] sm:$0xf]
        %v418 = vld [vmem:[%s341 + $0x2c] sm:$0xf]
        %v419 = vld [vmem:[%s341 + $0x30] sm:$0xf]
        %v420 = vld [vmem:[%s341 + $0x34] sm:$0xf]
        %v421 = vld [vmem:[%s341 + $0x38] sm:$0xf]
        %v422 = vld [vmem:[%s341 + $0x3c] sm:$0xf]
        %v439 = vunpack.c.l.b16 %v391
        %v440 = vunpack.c.l.b16 %v392
        %v441 = vunpack.c.l.b16 %v393
        %v442 = vunpack.c.l.b16 %v394
        %v443 = vunpack.c.l.b16 %v395
        %v444 = vunpack.c.l.b16 %v396
        %v445 = vunpack.c.l.b16 %v397
        %v446 = vunpack.c.l.b16 %v398
        %v447 = vunpack.c.l.b16 %v399
        %v448 = vunpack.c.l.b16 %v400
        %v449 = vunpack.c.l.b16 %v401
        %v450 = vunpack.c.l.b16 %v402
        %v451 = vunpack.c.l.b16 %v403
        %v452 = vunpack.c.l.b16 %v404
        %v453 = vunpack.c.l.b16 %v405
        %v454 = vunpack.c.l.b16 %v406
        %v455 = vpack.c.b16 %v440, %v439
        %v456 = vpack.c.b16 %v442, %v441
        %v457 = vpack.c.b16 %v444, %v443
        %v458 = vpack.c.b16 %v446, %v445
        %v459 = vpack.c.b16 %v448, %v447
        %v460 = vpack.c.b16 %v450, %v449
        %v461 = vpack.c.b16 %v452, %v451
        %v462 = vpack.c.b16 %v454, %v453
        %v487 = vunpack.c.l.b16 %v407
        %v488 = vunpack.c.l.b16 %v408
        %v489 = vunpack.c.l.b16 %v409
        %v490 = vunpack.c.l.b16 %v410
        %v491 = vunpack.c.l.b16 %v411
        %v492 = vunpack.c.l.b16 %v412
        %v493 = vunpack.c.l.b16 %v413
        %v494 = vunpack.c.l.b16 %v414
        %v495 = vunpack.c.l.b16 %v415
        %v496 = vunpack.c.l.b16 %v416
        %v497 = vunpack.c.l.b16 %v417
        %v498 = vunpack.c.l.b16 %v418
        %v499 = vunpack.c.l.b16 %v419
        %v500 = vunpack.c.l.b16 %v420
        %v501 = vunpack.c.l.b16 %v421
        %v502 = vunpack.c.l.b16 %v422
        %v503 = vpack.c.b16 %v488, %v487
        %v504 = vpack.c.b16 %v490, %v489
        %v505 = vpack.c.b16 %v492, %v491
        %v506 = vpack.c.b16 %v494, %v493
        %v507 = vpack.c.b16 %v496, %v495
        %v508 = vpack.c.b16 %v498, %v497
        %v509 = vpack.c.b16 %v500, %v499
        %v510 = vpack.c.b16 %v502, %v501
        %519 = vmatpush.bf16.msra.mxu0 %v510
        %520 = vmatpush.bf16.msra.mxu0 %v509
        %521 = vmatpush.bf16.msra.mxu0 %v508
        %522 = vmatpush.bf16.msra.mxu0 %v507
        %523 = vmatpush.bf16.msra.mxu0 %v506
        %524 = vmatpush.bf16.msra.mxu0 %v505
        %525 = vmatpush.bf16.msra.mxu0 %v504
        %526 = vmatpush.bf16.msra.mxu0 %v503
        %527 = vmatmul.bf16.gmra.mxu0 %v455
        %v528 = vpop.f32.mrf.mxu0
        %v529 = vadd.f32 0.0, %v528
        %v530 = vpop.f32.mrf.mxu0
        %v531 = vadd.f32 0.0, %v530
        %532 = vmatmul.bf16.gmra.mxu0 %v456
        %v533 = vpop.f32.mrf.mxu0
        %v534 = vadd.f32 0.0, %v533
        %v535 = vpop.f32.mrf.mxu0
        %v536 = vadd.f32 0.0, %v535
        %537 = vmatmul.bf16.gmra.mxu0 %v457
        %v538 = vpop.f32.mrf.mxu0
        %v539 = vadd.f32 0.0, %v538
        %v540 = vpop.f32.mrf.mxu0
        %v541 = vadd.f32 0.0, %v540
        %542 = vmatmul.bf16.gmra.mxu0 %v458
        %v543 = vpop.f32.mrf.mxu0
        %v544 = vadd.f32 0.0, %v543
        %v545 = vpop.f32.mrf.mxu0
        %v546 = vadd.f32 0.0, %v545
        %547 = vmatmul.bf16.gmra.mxu0 %v459
        %v548 = vpop.f32.mrf.mxu0
        %v549 = vadd.f32 0.0, %v548
        %v550 = vpop.f32.mrf.mxu0
        %v551 = vadd.f32 0.0, %v550
        %552 = vmatmul.bf16.gmra.mxu0 %v460
        %v553 = vpop.f32.mrf.mxu0
        %v554 = vadd.f32 0.0, %v553
        %v555 = vpop.f32.mrf.mxu0
        %v556 = vadd.f32 0.0, %v555
        %557 = vmatmul.bf16.gmra.mxu0 %v461
        %v558 = vpop.f32.mrf.mxu0
        %v559 = vadd.f32 0.0, %v558
        %v560 = vpop.f32.mrf.mxu0
        %v561 = vadd.f32 0.0, %v560
        %562 = vmatmul.bf16.gmra.mxu0 %v462
        %v563 = vpop.f32.mrf.mxu0
        %v564 = vadd.f32 0.0, %v563
        %v565 = vpop.f32.mrf.mxu0
        %v566 = vadd.f32 0.0, %v565
        %567 = vdwg.mxu0
        %v568 = vadd.f32 %v375, %v529
        %v569 = vadd.f32 %v376, %v531
        %v570 = vadd.f32 %v377, %v534
        %v571 = vadd.f32 %v378, %v536
        %v572 = vadd.f32 %v379, %v539
        %v573 = vadd.f32 %v380, %v541
        %v574 = vadd.f32 %v381, %v544
        %v575 = vadd.f32 %v382, %v546
        %v576 = vadd.f32 %v383, %v549
        %v577 = vadd.f32 %v384, %v551
        %v578 = vadd.f32 %v385, %v554
        %v579 = vadd.f32 %v386, %v556
        %v580 = vadd.f32 %v387, %v559
        %v581 = vadd.f32 %v388, %v561
        %v582 = vadd.f32 %v389, %v564
        %v583 = vadd.f32 %v390, %v566
        %584 = vst [vmem:[#allocation2] sm:$0xff] %v568
        %585 = vst [vmem:[#allocation2 + $0x8] sm:$0xff] %v569
        %586 = vst [vmem:[#allocation2 + $0x10] sm:$0xff] %v570
        %587 = vst [vmem:[#allocation2 + $0x18] sm:$0xff] %v571
        %588 = vst [vmem:[#allocation2 + $0x20] sm:$0xff] %v572
        %589 = vst [vmem:[#allocation2 + $0x28] sm:$0xff] %v573
        %590 = vst [vmem:[#allocation2 + $0x30] sm:$0xff] %v574
        %591 = vst [vmem:[#allocation2 + $0x38] sm:$0xff] %v575
        %592 = vst [vmem:[#allocation2 + $0x40] sm:$0xff] %v576
        %593 = vst [vmem:[#allocation2 + $0x48] sm:$0xff] %v577
        %594 = vst [vmem:[#allocation2 + $0x50] sm:$0xff] %v578
        %595 = vst [vmem:[#allocation2 + $0x58] sm:$0xff] %v579
        %596 = vst [vmem:[#allocation2 + $0x60] sm:$0xff] %v580
        %597 = vst [vmem:[#allocation2 + $0x68] sm:$0xff] %v581
        %598 = vst [vmem:[#allocation2 + $0x70] sm:$0xff] %v582
        %599 = vst [vmem:[#allocation2 + $0x78] sm:$0xff] %v583
        %p600 = scmp.eq.s32.totalorder %s21, 1
        // Predicated region
        $region78: #{resnet_forward.12} parent=68 // pred_check
          %p601 = pneg %p600
        $region79: #{resnet_forward.12} parent=68 // pred_check_branch
          %603 = sbr.rel (%p601) target = $region81
        $region80: #{resnet_forward.12} parent=68 // pred_region
          %v604 = vld [vmem:[#allocation2] sm:$0xff]
          %v605 = vld [vmem:[#allocation2 + $0x8] sm:$0xff]
          %v606 = vld [vmem:[#allocation2 + $0x10] sm:$0xff]
          %v607 = vld [vmem:[#allocation2 + $0x18] sm:$0xff]
          %v608 = vld [vmem:[#allocation2 + $0x20] sm:$0xff]
          %v609 = vld [vmem:[#allocation2 + $0x28] sm:$0xff]
          %v610 = vld [vmem:[#allocation2 + $0x30] sm:$0xff]
          %v611 = vld [vmem:[#allocation2 + $0x38] sm:$0xff]
          %v612 = vld [vmem:[#allocation2 + $0x40] sm:$0xff]
          %v613 = vld [vmem:[#allocation2 + $0x48] sm:$0xff]
          %v614 = vld [vmem:[#allocation2 + $0x50] sm:$0xff]
          %v615 = vld [vmem:[#allocation2 + $0x58] sm:$0xff]
          %v616 = vld [vmem:[#allocation2 + $0x60] sm:$0xff]
          %v617 = vld [vmem:[#allocation2 + $0x68] sm:$0xff]
          %v618 = vld [vmem:[#allocation2 + $0x70] sm:$0xff]
          %v619 = vld [vmem:[#allocation2 + $0x78] sm:$0xff]
          %v620 = vld [vmem:[%s345] sm:$0x1]
          %v622 = vperm.slane %v620, 0
          %v624 = vadd.f32 %v604, %v622
          %v625 = vadd.f32 %v605, %v622
          %v626 = vadd.f32 %v606, %v622
          %v627 = vadd.f32 %v607, %v622
          %v628 = vadd.f32 %v608, %v622
          %v629 = vadd.f32 %v609, %v622
          %v630 = vadd.f32 %v610, %v622
          %v631 = vadd.f32 %v611, %v622
          %v632 = vadd.f32 %v612, %v622
          %v633 = vadd.f32 %v613, %v622
          %v634 = vadd.f32 %v614, %v622
          %v635 = vadd.f32 %v615, %v622
          %v636 = vadd.f32 %v616, %v622
          %v637 = vadd.f32 %v617, %v622
          %v638 = vadd.f32 %v618, %v622
          %v639 = vadd.f32 %v619, %v622
          %v640 = vmax.f32 %v624, 0.0
          %v641 = vmax.f32 %v625, 0.0
          %v642 = vmax.f32 %v626, 0.0
          %v643 = vmax.f32 %v627, 0.0
          %v644 = vmax.f32 %v628, 0.0
          %v645 = vmax.f32 %v629, 0.0
          %v646 = vmax.f32 %v630, 0.0
          %v647 = vmax.f32 %v631, 0.0
          %v648 = vmax.f32 %v632, 0.0
          %v649 = vmax.f32 %v633, 0.0
          %v650 = vmax.f32 %v634, 0.0
          %v651 = vmax.f32 %v635, 0.0
          %v652 = vmax.f32 %v636, 0.0
          %v653 = vmax.f32 %v637, 0.0
          %v654 = vmax.f32 %v638, 0.0
          %v655 = vmax.f32 %v639, 0.0
          %656 = vst [vmem:[%s353] sm:$0xff] %v640
          %657 = vst [vmem:[%s353 + $0x8] sm:$0xff] %v641
          %658 = vst [vmem:[%s353 + $0x10] sm:$0xff] %v642
          %659 = vst [vmem:[%s353 + $0x18] sm:$0xff] %v643
          %660 = vst [vmem:[%s353 + $0x20] sm:$0xff] %v644
          %661 = vst [vmem:[%s353 + $0x28] sm:$0xff] %v645
          %662 = vst [vmem:[%s353 + $0x30] sm:$0xff] %v646
          %663 = vst [vmem:[%s353 + $0x38] sm:$0xff] %v647
          %664 = vst [vmem:[%s353 + $0x40] sm:$0xff] %v648
          %665 = vst [vmem:[%s353 + $0x48] sm:$0xff] %v649
          %666 = vst [vmem:[%s353 + $0x50] sm:$0xff] %v650
          %667 = vst [vmem:[%s353 + $0x58] sm:$0xff] %v651
          %668 = vst [vmem:[%s353 + $0x60] sm:$0xff] %v652
          %669 = vst [vmem:[%s353 + $0x68] sm:$0xff] %v653
          %670 = vst [vmem:[%s353 + $0x70] sm:$0xff] %v654
          %671 = vst [vmem:[%s353 + $0x78] sm:$0xff] %v655
        $region81: #{resnet_forward.12} parent=68 // pred_fallthru
          _
        %s672 = smul.u32 16, %s19
        %p673 = scmp.lt.s32.totalorder %s672, 63
        %s674 = scalar_select %p673, %s672, 63
        %p675 = scmp.lt.s32.totalorder %s20, 0
        %s676 = scalar_select %p675, %s20, 0
        %s677 = sadd.s32 %s676, %s674
        %s678 = smul.addr %s677, 8
        %s679 = scalar_lea.vmem %s3, %s678
        // Predicated region
        $region82: #{resnet_forward.12} parent=68 // pred_check
          %p680 = pneg %p135
        $region83: #{resnet_forward.12} parent=68 // pred_check_branch
          %682 = sbr.rel (%p680) target = $region85
        $region84: #{resnet_forward.12} parent=68 // pred_region
          %s683 = smul.u32 16, %s19
        $region85: #{resnet_forward.12} parent=68 // pred_fallthru
          _
      $region69: #{resnet_forward.12} parent=5 // pred_fallthru
        _
      %p684 = scmp.le.s32.totalorder 2, %s9
      // Predicated region
      $region86: #{resnet_forward.12} parent=5 // pred_check
        %p685 = pneg %p684
      $region87: #{resnet_forward.12} parent=5 // pred_check_branch
        %687 = sbr.rel (%p685) target = $region89
      $region88: #{resnet_forward.12} parent=5 // pred_region
        %s688 = ssub.s32 %s9, 2
        // Predicated region
        $region90: #{resnet_forward.12} parent=88 // pred_check
          %p689 = pneg %p141
        $region91: #{resnet_forward.12} parent=88 // pred_check_branch
          %691 = sbr.rel (%p689) target = $region93
        $region92: #{resnet_forward.12} parent=88 // pred_region
          %s692 = smul.u32 16, %s22
          %p693 = scmp.lt.s32.totalorder %s692, 63
          %s694 = scalar_select %p693, %s692, 63
          %p695 = scmp.lt.s32.totalorder %s23, 0
          %s696 = scalar_select %p695, %s23, 0
          %s697 = sadd.s32 %s696, %s694
          %s698 = smul.addr %s697, 8
          %s699 = scalar_lea.vmem %s3, %s698
        $region93: #{resnet_forward.12} parent=88 // pred_fallthru
          _
      $region89: #{resnet_forward.12} parent=5 // pred_fallthru
        _
    $region6: #{resnet_forward.12} parent=1 // loop_footer
      %s13 = sadd.s32 1, %s9
    $region7: #{resnet_forward.12} parent=1 // loop_footer_branch
      %8 = sbr.rel target = $region3
    $region8: #{resnet_forward.12} parent=1 // loop_exit
      _

// kernel: resnet_forward.13
$region0: #{resnet_forward.13}
  #allocation0 [shape = 'u32[]', space=smem, size = 0x4, offset = 0x4, fixed_abs, tag = 'smem constant byte address 0x4 - core index']
  #allocation1 [shape = 'u32[72,128]{1,0:T(1,128)}', space=vmem, size = 0x9000, scoped, tag = 'internal scratch']
  #allocation2 [shape = 'f32[128,128]{1,0:T(8,128)}', space=vmem, size = 0x10000, scoped, tag = 'scratch operand']
  %s0 = inlined_call_operand.vmem [shape: bf16[128,640], index: 0, kind: input, shape index: {}]
  %s1 = inlined_call_operand.vmem [shape: bf16[640,128], index: 1, kind: input, shape index: {}]
  %s2 = inlined_call_operand.vmem [shape: f32[1,128], index: 2, kind: input, shape index: {}]
  %s3 = inlined_call_operand.vmem [shape: f32[128,128], index: 3, kind: output, shape index: {}]
  %s4 = sld [smem:[#allocation0]]
  $region94: #{resnet_forward.13} parent=0
    _
  %s6 = ssub.s32 1, %s4
  %s7 = scalar_select 0, %s6, %s4
  $region1: #{resnet_forward.13} parent=0
    #allocation3 [shape = 'u8[65536]{0}', space=vmem, size = 0x10000, scoped, tag = 'input window, operand 0']
    loop: start=0, step=1, limit=7
    $region2: #{resnet_forward.13} parent=1 // loop_pre_header
      _
    $region3: #{resnet_forward.13} parent=1 // loop_header
      %s9 = sphi 0, %s13
      %p10 = scmp.ge.s32.totalorder %s9, 7
      %s16 = sphi 0, %s35
      %s17 = sphi 0, %s31
      %s18 = sphi 0, %s27
      %s19 = sphi 0, %s16
      %s20 = sphi 0, %s17
      %s21 = sphi 0, %s18
      %s22 = sphi 0, %s19
      %s23 = sphi 0, %s20
      %s24 = sphi 0, %s21
      %s40 = sphi 0, %s42
      %s43 = sphi 0, %s40
      %s44 = sphi 0, %s43
      %s60 = sphi 0, %s44
      %s68 = sphi 0, %s70
      %s71 = sphi 0, %s68
      %s72 = sphi 0, %s71
      %s88 = sphi 0, %s72
      %s94 = sphi 0, %s96
      %s97 = sphi 0, %s94
      %s98 = sphi 0, %s97
      %s114 = sphi 0, %s98
      %s122 = sphi 0, %s124
      %s125 = sphi 0, %s122
      %s126 = sphi 0, %s125
      %s142 = sphi 0, %s126
    $region4: #{resnet_forward.13} parent=1 // loop_header_branch
      %12 = sbr.rel (%p10) target = $region8
    $region5: #{resnet_forward.13} parent=1 // loop_body
      %s14 = ssub.s32 %s9, 1
      %s15 = ssub.s32 %s9, 2
      %s25 = sadd.s32 1, %s18
      %p26 = scmp.ge.s32.totalorder %s25, 5
      %s27 = scalar_select %p26, 0, %s25
      %s28 = sadd.s32 1, %s17
      %s29 = scalar_select %p26, %s28, %s17
      %p30 = scmp.ge.s32.totalorder %s29, 1
      %s31 = scalar_select %p30, 0, %s29
      %s32 = sadd.s32 1, %s16
      %s33 = scalar_select %p30, %s32, %s16
      %p34 = scmp.ge.s32.totalorder %s33, 1
      %s35 = scalar_select %p34, 0, %s33
      %s36 = ssub.s32 %s16, %s35
      %s37 = ssub.s32 %s18, %s27
      %s38 = sor.u32 %s36, %s37
      %p39 = scmp.eq.s32.totalorder %s38, 0
      %s41 = sadd.s32 %s40, 1
      %s42 = scalar_select %p39, %s40, %s41
      %p45 = pneg %p39
      %p46 = scmp.eq.s32.totalorder %s9, 4
      %p47 = por %p45, %p46
      %p48 = scmp.ne.s32.totalorder %s40, %s43
      %p49 = scmp.eq.s32.totalorder %s9, 0
      %p50 = por %p48, %p49
      %p51 = scmp.ne.s32.totalorder %s40, %s43
      %p52 = scmp.eq.s32.totalorder %s14, 4
      %p53 = por %p51, %p52
      %p54 = scmp.ne.s32.totalorder %s43, %s44
      %p55 = scmp.eq.s32.totalorder %s14, 0
      %p56 = por %p54, %p55
      %p57 = scmp.ne.s32.totalorder %s43, %s44
      %p58 = scmp.eq.s32.totalorder %s15, 4
      %p59 = por %p57, %p58
      %p61 = scmp.ne.s32.totalorder %s44, %s60
      %p62 = scmp.eq.s32.totalorder %s15, 0
      %p63 = por %p61, %p62
      %s64 = ssub.s32 %s18, %s27
      %s65 = ssub.s32 %s17, %s31
      %s66 = sor.u32 %s64, %s65
      %p67 = scmp.eq.s32.totalorder %s66, 0
      %s69 = sadd.s32 %s68, 1
      %s70 = scalar_select %p67, %s68, %s69
      %p73 = pneg %p67
      %p74 = scmp.eq.s32.totalorder %s9, 4
      %p75 = por %p73, %p74
      %p76 = scmp.ne.s32.totalorder %s68, %s71
      %p77 = scmp.eq.s32.totalorder %s9, 0
      %p78 = por %p76, %p77
      %p79 = scmp.ne.s32.totalorder %s68, %s71
      %p80 = scmp.eq.s32.totalorder %s14, 4
      %p81 = por %p79, %p80
      %p82 = scmp.ne.s32.totalorder %s71, %s72
      %p83 = scmp.eq.s32.totalorder %s14, 0
      %p84 = por %p82, %p83
      %p85 = scmp.ne.s32.totalorder %s71, %s72
      %p86 = scmp.eq.s32.totalorder %s15, 4
      %p87 = por %p85, %p86
      %p89 = scmp.ne.s32.totalorder %s72, %s88
      %p90 = scmp.eq.s32.totalorder %s15, 0
      %p91 = por %p89, %p90
      %s92 = ssub.s32 %s17, %s31
      %p93 = scmp.eq.s32.totalorder %s92, 0
      %s95 = sadd.s32 %s94, 1
      %s96 = scalar_select %p93, %s94, %s95
      %p99 = pneg %p93
      %p100 = scmp.eq.s32.totalorder %s9, 4
      %p101 = por %p99, %p100
      %p102 = scmp.ne.s32.totalorder %s94, %s97
      %p103 = scmp.eq.s32.totalorder %s9, 0
      %p104 = por %p102, %p103
      %p105 = scmp.ne.s32.totalorder %s94, %s97
      %p106 = scmp.eq.s32.totalorder %s14, 4
      %p107 = por %p105, %p106
      %p108 = scmp.ne.s32.totalorder %s97, %s98
      %p109 = scmp.eq.s32.totalorder %s14, 0
      %p110 = por %p108, %p109
      %p111 = scmp.ne.s32.totalorder %s97, %s98
      %p112 = scmp.eq.s32.totalorder %s15, 4
      %p113 = por %p111, %p112
      %p115 = scmp.ne.s32.totalorder %s98, %s114
      %p116 = scmp.eq.s32.totalorder %s15, 0
      %p117 = por %p115, %p116
      %s118 = ssub.s32 %s16, %s35
      %s119 = ssub.s32 %s17, %s31
      %s120 = sor.u32 %s118, %s119
      %p121 = scmp.eq.s32.totalorder %s120, 0
      %s123 = sadd.s32 %s122, 1
      %s124 = scalar_select %p121, %s122, %s123
      %p127 = pneg %p121
      %p128 = scmp.eq.s32.totalorder %s9, 4
      %p129 = por %p127, %p128
      %p130 = scmp.ne.s32.totalorder %s122, %s125
      %p131 = scmp.eq.s32.totalorder %s9, 0
      %p132 = por %p130, %p131
      %p133 = scmp.ne.s32.totalorder %s122, %s125
      %p134 = scmp.eq.s32.totalorder %s14, 4
      %p135 = por %p133, %p134
      %p136 = scmp.ne.s32.totalorder %s125, %s126
      %p137 = scmp.eq.s32.totalorder %s14, 0
      %p138 = por %p136, %p137
      %p139 = scmp.ne.s32.totalorder %s125, %s126
      %p140 = scmp.eq.s32.totalorder %s15, 4
      %p141 = por %p139, %p140
      %p143 = scmp.ne.s32.totalorder %s126, %s142
      %p144 = scmp.eq.s32.totalorder %s15, 0
      %p145 = por %p143, %p144
      %p146 = scmp.le.s32.totalorder 1, %s9
      %p147 = scmp.lt.s32.totalorder %s9, 6
      %p148 = pnand %p146, %p147
      %p149 = pneg %p148
      // Predicated region
      $region9: #{resnet_forward.13} parent=5 // pred_check
        _
      $region10: #{resnet_forward.13} parent=5 // pred_check_branch
        %151 = sbr.rel (%p148) target = $region12
      $region11: #{resnet_forward.13} parent=5 // pred_region
        %s152 = ssub.s32 %s9, 1
        // Predicated region
        $region13: #{resnet_forward.13} parent=11 // pred_check
          %p153 = pneg %p110
        $region14: #{resnet_forward.13} parent=11 // pred_check_branch
          %155 = sbr.rel (%p153) target = $region16
        $region15: #{resnet_forward.13} parent=11 // pred_region
          %p156 = scmp.lt.s32.totalorder %s20, 0
          %s157 = scalar_select %p156, %s20, 0
          %s158 = scalar_lea.vmem %s2, %s157
        $region16: #{resnet_forward.13} parent=11 // pred_fallthru
          _
      $region12: #{resnet_forward.13} parent=5 // pred_fallthru
        _
      %p159 = scmp.lt.s32.totalorder %s9, 5
      // Predicated region
      $region17: #{resnet_forward.13} parent=5 // pred_check
        %p160 = pneg %p159
      $region18: #{resnet_forward.13} parent=5 // pred_check_branch
        %162 = sbr.rel (%p160) target = $region20
      $region19: #{resnet_forward.13} parent=5 // pred_region
        // Predicated region
        $region21: #{resnet_forward.13} parent=19 // pred_check
          %p163 = pneg %p50
        $region22: #{resnet_forward.13} parent=19 // pred_check_branch
          %165 = sbr.rel (%p163) target = $region24
        $region23: #{resnet_forward.13} parent=19 // pred_region
          %s166 = sand.u32 %s40, 1
          %s167 = sand.u32 %s40, 1
          %s168 = smul.addr %s167, 64
          %s169 = scalar_lea.vmem [#allocation3], %s168
          %s170 = smul.u32 16, %s16
          %s171 = smul.addr %s170, 5
          %s172 = sadd.s32 %s18, %s171
          %s173 = smul.addr %s172, 4
          %s174 = scalar_lea.vmem %s0, %s173
          // Predicated region
          $region25: #{resnet_forward.13} parent=23 // pred_check
            _
          $region26: #{resnet_forward.13} parent=23 // pred_check_branch
            %176 = sbr.rel (0) target = $region28
          $region27: #{resnet_forward.13} parent=23 // pred_region
            // Predicated region
            $region29: #{resnet_forward.13} parent=27 // pred_check
              _
            $region30: #{resnet_forward.13} parent=27 // pred_check_branch
              %178 = sbr.rel target = $region32
            $region31: #{resnet_forward.13} parent=27 // pred_region
              // Predicated region
              $region44: #{resnet_forward.13} parent=31 // pred_check
                _
              $region45: #{resnet_forward.13} parent=31 // pred_check_branch
                %224 = sbr.rel (0) target = $region47
              $region46: #{resnet_forward.13} parent=31 // pred_region
                loop: start=0, step=1, limit=1
                $region48: #{resnet_forward.13} parent=46 // loop_pre_header
                  _
                $region49: #{resnet_forward.13} parent=46 // loop_header
                  %s226 = sphi 0, %s230
                  %p227 = scmp.ge.s32.totalorder %s226, 1
                  %s231 = sphi %s174, %s174
                  %s232 = sphi %s169, %s169
                $region50: #{resnet_forward.13} parent=46 // loop_header_branch
                  %229 = sbr.rel (%p227) target = $region54
                $region51: #{resnet_forward.13} parent=46 // loop_body
                  _
                $region52: #{resnet_forward.13} parent=46 // loop_footer
                  %s230 = sadd.s32 1, %s226
                $region53: #{resnet_forward.13} parent=46 // loop_footer_branch
                  %225 = sbr.rel target = $region49
                $region54: #{resnet_forward.13} parent=46 // loop_exit
                  _
                %s234 = ssub.s32 16, 1
                loop: start=0, step=1, limit=1
                $region55: #{resnet_forward.13} parent=46 // loop_pre_header
                  _
                $region56: #{resnet_forward.13} parent=46 // loop_header
                  %s236 = sphi 0, %s240
                  %p237 = scmp.ge.s32.totalorder %s236, 1
                  %s241 = sphi %s174, %s174
                  %s242 = sphi %s169, %s169
                $region57: #{resnet_forward.13} parent=46 // loop_header_branch
                  %239 = sbr.rel (%p237) target = $region61
                $region58: #{resnet_forward.13} parent=46 // loop_body
                  %v243 = vld [vmem:[%s241] sm:%s234]
                  %244 = vst [vmem:[%s242] sm:%s234] %v243
                  %v245 = vld [vmem:[%s241 + $0x14] sm:%s234]
                  %246 = vst [vmem:[%s242 + $0x4] sm:%s234] %v245
                  %v247 = vld [vmem:[%s241 + $0x28] sm:%s234]
                  %248 = vst [vmem:[%s242 + $0x8] sm:%s234] %v247
                  %v249 = vld [vmem:[%s241 + $0x3c] sm:%s234]
                  %250 = vst [vmem:[%s242 + $0xc] sm:%s234] %v249
                  %v251 = vld [vmem:[%s241 + $0x50] sm:%s234]
                  %252 = vst [vmem:[%s242 + $0x10] sm:%s234] %v251
                  %v253 = vld [vmem:[%s241 + $0x64] sm:%s234]
                  %254 = vst [vmem:[%s242 + $0x14] sm:%s234] %v253
                  %v255 = vld [vmem:[%s241 + $0x78] sm:%s234]
                  %256 = vst [vmem:[%s242 + $0x18] sm:%s234] %v255
                  %v257 = vld [vmem:[%s241 + $0x8c] sm:%s234]
                  %258 = vst [vmem:[%s242 + $0x1c] sm:%s234] %v257
                  %v259 = vld [vmem:[%s241 + $0xa0] sm:%s234]
                  %260 = vst [vmem:[%s242 + $0x20] sm:%s234] %v259
                  %v261 = vld [vmem:[%s241 + $0xb4] sm:%s234]
                  %262 = vst [vmem:[%s242 + $0x24] sm:%s234] %v261
                  %v263 = vld [vmem:[%s241 + $0xc8] sm:%s234]
                  %264 = vst [vmem:[%s242 + $0x28] sm:%s234] %v263
                  %v265 = vld [vmem:[%s241 + $0xdc] sm:%s234]
                  %266 = vst [vmem:[%s242 + $0x2c] sm:%s234] %v265
                  %v267 = vld [vmem:[%s241 + $0xf0] sm:%s234]
                  %268 = vst [vmem:[%s242 + $0x30] sm:%s234] %v267
                  %v269 = vld [vmem:[%s241 + $0x104] sm:%s234]
                  %270 = vst [vmem:[%s242 + $0x34] sm:%s234] %v269
                  %v271 = vld [vmem:[%s241 + $0x118] sm:%s234]
                  %272 = vst [vmem:[%s242 + $0x38] sm:%s234] %v271
                  %v273 = vld [vmem:[%s241 + $0x12c] sm:%s234]
                  %274 = vst [vmem:[%s242 + $0x3c] sm:%s234] %v273
                $region59: #{resnet_forward.13} parent=46 // loop_footer
                  %s240 = sadd.s32 1, %s236
                $region60: #{resnet_forward.13} parent=46 // loop_footer_branch
                  %235 = sbr.rel target = $region56
                $region61: #{resnet_forward.13} parent=46 // loop_exit
                  _
              $region47: #{resnet_forward.13} parent=31 // pred_fallthru
                _
            $region32: #{resnet_forward.13} parent=27 // pred_fallthru
              _
            // Predicated region
            $region33: #{resnet_forward.13} parent=27 // pred_check
              _
            $region34: #{resnet_forward.13} parent=27 // pred_check_branch
              %180 = sbr.rel (0) target = $region36
            $region35: #{resnet_forward.13} parent=27 // pred_region
              %s182 = ssub.s32 16, 1
              loop: start=0, step=1, limit=1
              $region37: #{resnet_forward.13} parent=35 // loop_pre_header
                _
              $region38: #{resnet_forward.13} parent=35 // loop_header
                %s184 = sphi 0, %s188
                %p185 = scmp.ge.s32.totalorder %s184, 1
                %s189 = sphi %s174, %s174
                %s190 = sphi %s169, %s169
              $region39: #{resnet_forward.13} parent=35 // loop_header_branch
                %187 = sbr.rel (%p185) target = $region43
              $region40: #{resnet_forward.13} parent=35 // loop_body
                %v191 = vld [vmem:[%s189] sm:%s182]
                %192 = vst [vmem:[%s190] sm:%s182] %v191
                %v193 = vld [vmem:[%s189 + $0x14] sm:%s182]
                %194 = vst [vmem:[%s190 + $0x4] sm:%s182] %v193
                %v195 = vld [vmem:[%s189 + $0x28] sm:%s182]
                %196 = vst [vmem:[%s190 + $0x8] sm:%s182] %v195
                %v197 = vld [vmem:[%s189 + $0x3c] sm:%s182]
                %198 = vst [vmem:[%s190 + $0xc] sm:%s182] %v197
                %v199 = vld [vmem:[%s189 + $0x50] sm:%s182]
                %200 = vst [vmem:[%s190 + $0x10] sm:%s182] %v199
                %v201 = vld [vmem:[%s189 + $0x64] sm:%s182]
                %202 = vst [vmem:[%s190 + $0x14] sm:%s182] %v201
                %v203 = vld [vmem:[%s189 + $0x78] sm:%s182]
                %204 = vst [vmem:[%s190 + $0x18] sm:%s182] %v203
                %v205 = vld [vmem:[%s189 + $0x8c] sm:%s182]
                %206 = vst [vmem:[%s190 + $0x1c] sm:%s182] %v205
                %v207 = vld [vmem:[%s189 + $0xa0] sm:%s182]
                %208 = vst [vmem:[%s190 + $0x20] sm:%s182] %v207
                %v209 = vld [vmem:[%s189 + $0xb4] sm:%s182]
                %210 = vst [vmem:[%s190 + $0x24] sm:%s182] %v209
                %v211 = vld [vmem:[%s189 + $0xc8] sm:%s182]
                %212 = vst [vmem:[%s190 + $0x28] sm:%s182] %v211
                %v213 = vld [vmem:[%s189 + $0xdc] sm:%s182]
                %214 = vst [vmem:[%s190 + $0x2c] sm:%s182] %v213
                %v215 = vld [vmem:[%s189 + $0xf0] sm:%s182]
                %216 = vst [vmem:[%s190 + $0x30] sm:%s182] %v215
                %v217 = vld [vmem:[%s189 + $0x104] sm:%s182]
                %218 = vst [vmem:[%s190 + $0x34] sm:%s182] %v217
                %v219 = vld [vmem:[%s189 + $0x118] sm:%s182]
                %220 = vst [vmem:[%s190 + $0x38] sm:%s182] %v219
                %v221 = vld [vmem:[%s189 + $0x12c] sm:%s182]
                %222 = vst [vmem:[%s190 + $0x3c] sm:%s182] %v221
              $region41: #{resnet_forward.13} parent=35 // loop_footer
                %s188 = sadd.s32 1, %s184
              $region42: #{resnet_forward.13} parent=35 // loop_footer_branch
                %183 = sbr.rel target = $region38
              $region43: #{resnet_forward.13} parent=35 // loop_exit
                _
            $region36: #{resnet_forward.13} parent=27 // pred_fallthru
              _
          $region28: #{resnet_forward.13} parent=23 // pred_fallthru
            _
          %275 = vnop
        $region24: #{resnet_forward.13} parent=19 // pred_fallthru
          _
        // Predicated region
        $region62: #{resnet_forward.13} parent=19 // pred_check
          %p276 = pneg %p78
        $region63: #{resnet_forward.13} parent=19 // pred_check_branch
          %278 = sbr.rel (%p276) target = $region65
        $region64: #{resnet_forward.13} parent=19 // pred_region
          %s279 = smul.u32 16, %s18
          %p280 = scmp.lt.s32.totalorder %s279, 79
          %s281 = scalar_select %p280, %s279, 79
          %p282 = scmp.lt.s32.totalorder %s17, 0
          %s283 = scalar_select %p282, %s17, 0
          %s284 = sadd.s32 %s283, %s281
          %s285 = smul.addr %s284, 4
          %s286 = scalar_lea.vmem %s1, %s285
          %s287 = smul.u32 16, %s18
        $region65: #{resnet_forward.13} parent=19 // pred_fallthru
          _
      $region20: #{resnet_forward.13} parent=5 // pred_fallthru
        _
      %p288 = scmp.le.s32.totalorder 1, %s9
      %p289 = scmp.lt.s32.totalorder %s9, 6
      %p290 = pnand %p288, %p289
      %p291 = pneg %p290
      // Predicated region
      $region66: #{resnet_forward.13} parent=5 // pred_check
        _
      $region67: #{resnet_forward.13} parent=5 // pred_check_branch
        %293 = sbr.rel (%p290) target = $region69
      $region68: #{resnet_forward.13} parent=5 // pred_region
        %s294 = ssub.s32 %s9, 1
        %s295 = sand.u32 %s43, 1
        %s296 = sand.u32 %s43, 1
        %s297 = smul.addr %s296, 64
        %s298 = scalar_lea.vmem [#allocation3], %s297
        // Predicated region
        $region70: #{resnet_forward.13} parent=68 // pred_check
          %p299 = pneg %p56
        $region71: #{resnet_forward.13} parent=68 // pred_check_branch
          %301 = sbr.rel (%p299) target = $region73
        $region72: #{resnet_forward.13} parent=68 // pred_region
          _
        $region73: #{resnet_forward.13} parent=68 // pred_fallthru
          _
        %s302 = sand.u32 %s43, 1
        %s303 = sand.u32 %s43, 1
        %s304 = smul.addr %s303, 64
        %s305 = scalar_lea.vmem [#allocation3], %s304
        %p306 = pneg %p56
        %p307 = pneg %p53
        %s308 = smul.u32 16, %s21
        %p309 = scmp.lt.s32.totalorder %s308, 79
        %s310 = scalar_select %p309, %s308, 79
        %p311 = scmp.lt.s32.totalorder %s20, 0
        %s312 = scalar_select %p311, %s20, 0
        %s313 = sadd.s32 %s312, %s310
        %s314 = smul.addr %s313, 4
        %s315 = scalar_lea.vmem %s1, %s314
        %p316 = pneg %p84
        %p317 = pneg %p81
        %p318 = scmp.lt.s32.totalorder %s20, 0
        %s319 = scalar_select %p318, %s20, 0
        %s320 = scalar_lea.vmem %s2, %s319
        %p321 = pneg %p110
        %p322 = pneg %p107
        %p323 = pneg %p138
        %p324 = pneg %p135
        %s325 = smul.u32 16, %s19
        %p326 = scmp.lt.s32.totalorder %s325, 15
        %s327 = scalar_select %p326, %s325, 15
        %p328 = scmp.lt.s32.totalorder %s20, 0
        %s329 = scalar_select %p328, %s20, 0
        %s330 = sadd.s32 %s329, %s327
        %s331 = smul.addr %s330, 8
        %s332 = scalar_lea.vmem %s3, %s331
        %s333 = smul.u32 16, %s19
        %s334 = smul.u32 16, %s21
        %p335 = scmp.lt.s32.totalorder %s334, 79
        %s336 = scalar_select %p335, %s334, 79
        %p337 = scmp.lt.s32.totalorder %s20, 0
        %s338 = scalar_select %p337, %s20, 0
        %s339 = sadd.s32 %s338, %s336
        %s340 = smul.addr %s339, 4
        %s341 = scalar_lea.vmem %s1, %s340
        %s342 = smul.u32 16, %s21
        %p343 = scmp.lt.s32.totalorder %s20, 0
        %s344 = scalar_select %p343, %s20, 0
        %s345 = scalar_lea.vmem %s2, %s344
        %s346 = smul.u32 16, %s19
        %p347 = scmp.lt.s32.totalorder %s346, 15
        %s348 = scalar_select %p347, %s346, 15
        %p349 = scmp.lt.s32.totalorder %s20, 0
        %s350 = scalar_select %p349, %s20, 0
        %s351 = sadd.s32 %s350, %s348
        %s352 = smul.addr %s351, 8
        %s353 = scalar_lea.vmem %s3, %s352
        %s354 = smul.u32 16, %s19
        %p355 = scmp.eq.s32.totalorder %s21, 0
        // Predicated region
        $region74: #{resnet_forward.13} parent=68 // pred_check
          %p356 = pneg %p355
        $region75: #{resnet_forward.13} parent=68 // pred_check_branch
          %358 = sbr.rel (%p356) target = $region77
        $region76: #{resnet_forward.13} parent=68 // pred_region
          %359 = vst [vmem:[#allocation2] sm:$0xff] 0.0
          %360 = vst [vmem:[#allocation2 + $0x8] sm:$0xff] 0.0
          %361 = vst [vmem:[#allocation2 + $0x10] sm:$0xff] 0.0
          %362 = vst [vmem:[#allocation2 + $0x18] sm:$0xff] 0.0
          %363 = vst [vmem:[#allocation2 + $0x20] sm:$0xff] 0.0
          %364 = vst [vmem:[#allocation2 + $0x28] sm:$0xff] 0.0
          %365 = vst [vmem:[#allocation2 + $0x30] sm:$0xff] 0.0
          %366 = vst [vmem:[#allocation2 + $0x38] sm:$0xff] 0.0
          %367 = vst [vmem:[#allocation2 + $0x40] sm:$0xff] 0.0
          %368 = vst [vmem:[#allocation2 + $0x48] sm:$0xff] 0.0
          %369 = vst [vmem:[#allocation2 + $0x50] sm:$0xff] 0.0
          %370 = vst [vmem:[#allocation2 + $0x58] sm:$0xff] 0.0
          %371 = vst [vmem:[#allocation2 + $0x60] sm:$0xff] 0.0
          %372 = vst [vmem:[#allocation2 + $0x68] sm:$0xff] 0.0
          %373 = vst [vmem:[#allocation2 + $0x70] sm:$0xff] 0.0
          %374 = vst [vmem:[#allocation2 + $0x78] sm:$0xff] 0.0
        $region77: #{resnet_forward.13} parent=68 // pred_fallthru
          _
        %v375 = vld [vmem:[#allocation2] sm:$0xff]
        %v376 = vld [vmem:[#allocation2 + $0x8] sm:$0xff]
        %v377 = vld [vmem:[#allocation2 + $0x10] sm:$0xff]
        %v378 = vld [vmem:[#allocation2 + $0x18] sm:$0xff]
        %v379 = vld [vmem:[#allocation2 + $0x20] sm:$0xff]
        %v380 = vld [vmem:[#allocation2 + $0x28] sm:$0xff]
        %v381 = vld [vmem:[#allocation2 + $0x30] sm:$0xff]
        %v382 = vld [vmem:[#allocation2 + $0x38] sm:$0xff]
        %v383 = vld [vmem:[#allocation2 + $0x40] sm:$0xff]
        %v384 = vld [vmem:[#allocation2 + $0x48] sm:$0xff]
        %v385 = vld [vmem:[#allocation2 + $0x50] sm:$0xff]
        %v386 = vld [vmem:[#allocation2 + $0x58] sm:$0xff]
        %v387 = vld [vmem:[#allocation2 + $0x60] sm:$0xff]
        %v388 = vld [vmem:[#allocation2 + $0x68] sm:$0xff]
        %v389 = vld [vmem:[#allocation2 + $0x70] sm:$0xff]
        %v390 = vld [vmem:[#allocation2 + $0x78] sm:$0xff]
        %v391 = vld [vmem:[%s298] sm:$0xf]
        %v392 = vld [vmem:[%s298 + $0x4] sm:$0xf]
        %v393 = vld [vmem:[%s298 + $0x8] sm:$0xf]
        %v394 = vld [vmem:[%s298 + $0xc] sm:$0xf]
        %v395 = vld [vmem:[%s298 + $0x10] sm:$0xf]
        %v396 = vld [vmem:[%s298 + $0x14] sm:$0xf]
        %v397 = vld [vmem:[%s298 + $0x18] sm:$0xf]
        %v398 = vld [vmem:[%s298 + $0x1c] sm:$0xf]
        %v399 = vld [vmem:[%s298 + $0x20] sm:$0xf]
        %v400 = vld [vmem:[%s298 + $0x24] sm:$0xf]
        %v401 = vld [vmem:[%s298 + $0x28] sm:$0xf]
        %v402 = vld [vmem:[%s298 + $0x2c] sm:$0xf]
        %v403 = vld [vmem:[%s298 + $0x30] sm:$0xf]
        %v404 = vld [vmem:[%s298 + $0x34] sm:$0xf]
        %v405 = vld [vmem:[%s298 + $0x38] sm:$0xf]
        %v406 = vld [vmem:[%s298 + $0x3c] sm:$0xf]
        %v407 = vld [vmem:[%s341] sm:$0xf]
        %v408 = vld [vmem:[%s341 + $0x4] sm:$0xf]
        %v409 = vld [vmem:[%s341 + $0x8] sm:$0xf]
        %v410 = vld [vmem:[%s341 + $0xc] sm:$0xf]
        %v411 = vld [vmem:[%s341 + $0x10] sm:$0xf]
        %v412 = vld [vmem:[%s341 + $0x14] sm:$0xf]
        %v413 = vld [vmem:[%s341 + $0x18] sm:$0xf]
        %v414 = vld [vmem:[%s341 + $0x1c] sm:$0xf]
        %v415 = vld [vmem:[%s341 + $0x20] sm:$0xf]
        %v416 = vld [vmem:[%s341 + $0x24] sm:$0xf]
        %v417 = vld [vmem:[%s341 + $0x28] sm:$0xf]
        %v418 = vld [vmem:[%s341 + $0x2c] sm:$0xf]
        %v419 = vld [vmem:[%s341 + $0x30] sm:$0xf]
        %v420 = vld [vmem:[%s341 + $0x34] sm:$0xf]
        %v421 = vld [vmem:[%s341 + $0x38] sm:$0xf]
        %v422 = vld [vmem:[%s341 + $0x3c] sm:$0xf]
        %v439 = vunpack.c.l.b16 %v391
        %v440 = vunpack.c.l.b16 %v392
        %v441 = vunpack.c.l.b16 %v393
        %v442 = vunpack.c.l.b16 %v394
        %v443 = vunpack.c.l.b16 %v395
        %v444 = vunpack.c.l.b16 %v396
        %v445 = vunpack.c.l.b16 %v397
        %v446 = vunpack.c.l.b16 %v398
        %v447 = vunpack.c.l.b16 %v399
        %v448 = vunpack.c.l.b16 %v400
        %v449 = vunpack.c.l.b16 %v401
        %v450 = vunpack.c.l.b16 %v402
        %v451 = vunpack.c.l.b16 %v403
        %v452 = vunpack.c.l.b16 %v404
        %v453 = vunpack.c.l.b16 %v405
        %v454 = vunpack.c.l.b16 %v406
        %v455 = vpack.c.b16 %v440, %v439
        %v456 = vpack.c.b16 %v442, %v441
        %v457 = vpack.c.b16 %v444, %v443
        %v458 = vpack.c.b16 %v446, %v445
        %v459 = vpack.c.b16 %v448, %v447
        %v460 = vpack.c.b16 %v450, %v449
        %v461 = vpack.c.b16 %v452, %v451
        %v462 = vpack.c.b16 %v454, %v453
        %v487 = vunpack.c.l.b16 %v407
        %v488 = vunpack.c.l.b16 %v408
        %v489 = vunpack.c.l.b16 %v409
        %v490 = vunpack.c.l.b16 %v410
        %v491 = vunpack.c.l.b16 %v411
        %v492 = vunpack.c.l.b16 %v412
        %v493 = vunpack.c.l.b16 %v413
        %v494 = vunpack.c.l.b16 %v414
        %v495 = vunpack.c.l.b16 %v415
        %v496 = vunpack.c.l.b16 %v416
        %v497 = vunpack.c.l.b16 %v417
        %v498 = vunpack.c.l.b16 %v418
        %v499 = vunpack.c.l.b16 %v419
        %v500 = vunpack.c.l.b16 %v420
        %v501 = vunpack.c.l.b16 %v421
        %v502 = vunpack.c.l.b16 %v422
        %v503 = vpack.c.b16 %v488, %v487
        %v504 = vpack.c.b16 %v490, %v489
        %v505 = vpack.c.b16 %v492, %v491
        %v506 = vpack.c.b16 %v494, %v493
        %v507 = vpack.c.b16 %v496, %v495
        %v508 = vpack.c.b16 %v498, %v497
        %v509 = vpack.c.b16 %v500, %v499
        %v510 = vpack.c.b16 %v502, %v501
        %519 = vmatpush.bf16.msra.mxu0 %v510
        %520 = vmatpush.bf16.msra.mxu0 %v509
        %521 = vmatpush.bf16.msra.mxu0 %v508
        %522 = vmatpush.bf16.msra.mxu0 %v507
        %523 = vmatpush.bf16.msra.mxu0 %v506
        %524 = vmatpush.bf16.msra.mxu0 %v505
        %525 = vmatpush.bf16.msra.mxu0 %v504
        %526 = vmatpush.bf16.msra.mxu0 %v503
        %527 = vmatmul.bf16.gmra.mxu0 %v455
        %v528 = vpop.f32.mrf.mxu0
        %v529 = vadd.f32 0.0, %v528
        %v530 = vpop.f32.mrf.mxu0
        %v531 = vadd.f32 0.0, %v530
        %532 = vmatmul.bf16.gmra.mxu0 %v456
        %v533 = vpop.f32.mrf.mxu0
        %v534 = vadd.f32 0.0, %v533
        %v535 = vpop.f32.mrf.mxu0
        %v536 = vadd.f32 0.0, %v535
        %537 = vmatmul.bf16.gmra.mxu0 %v457
        %v538 = vpop.f32.mrf.mxu0
        %v539 = vadd.f32 0.0, %v538
        %v540 = vpop.f32.mrf.mxu0
        %v541 = vadd.f32 0.0, %v540
        %542 = vmatmul.bf16.gmra.mxu0 %v458
        %v543 = vpop.f32.mrf.mxu0
        %v544 = vadd.f32 0.0, %v543
        %v545 = vpop.f32.mrf.mxu0
        %v546 = vadd.f32 0.0, %v545
        %547 = vmatmul.bf16.gmra.mxu0 %v459
        %v548 = vpop.f32.mrf.mxu0
        %v549 = vadd.f32 0.0, %v548
        %v550 = vpop.f32.mrf.mxu0
        %v551 = vadd.f32 0.0, %v550
        %552 = vmatmul.bf16.gmra.mxu0 %v460
        %v553 = vpop.f32.mrf.mxu0
        %v554 = vadd.f32 0.0, %v553
        %v555 = vpop.f32.mrf.mxu0
        %v556 = vadd.f32 0.0, %v555
        %557 = vmatmul.bf16.gmra.mxu0 %v461
        %v558 = vpop.f32.mrf.mxu0
        %v559 = vadd.f32 0.0, %v558
        %v560 = vpop.f32.mrf.mxu0
        %v561 = vadd.f32 0.0, %v560
        %562 = vmatmul.bf16.gmra.mxu0 %v462
        %v563 = vpop.f32.mrf.mxu0
        %v564 = vadd.f32 0.0, %v563
        %v565 = vpop.f32.mrf.mxu0
        %v566 = vadd.f32 0.0, %v565
        %567 = vdwg.mxu0
        %v568 = vadd.f32 %v375, %v529
        %v569 = vadd.f32 %v376, %v531
        %v570 = vadd.f32 %v377, %v534
        %v571 = vadd.f32 %v378, %v536
        %v572 = vadd.f32 %v379, %v539
        %v573 = vadd.f32 %v380, %v541
        %v574 = vadd.f32 %v381, %v544
        %v575 = vadd.f32 %v382, %v546
        %v576 = vadd.f32 %v383, %v549
        %v577 = vadd.f32 %v384, %v551
        %v578 = vadd.f32 %v385, %v554
        %v579 = vadd.f32 %v386, %v556
        %v580 = vadd.f32 %v387, %v559
        %v581 = vadd.f32 %v388, %v561
        %v582 = vadd.f32 %v389, %v564
        %v583 = vadd.f32 %v390, %v566
        %584 = vst [vmem:[#allocation2] sm:$0xff] %v568
        %585 = vst [vmem:[#allocation2 + $0x8] sm:$0xff] %v569
        %586 = vst [vmem:[#allocation2 + $0x10] sm:$0xff] %v570
        %587 = vst [vmem:[#allocation2 + $0x18] sm:$0xff] %v571
        %588 = vst [vmem:[#allocation2 + $0x20] sm:$0xff] %v572
        %589 = vst [vmem:[#allocation2 + $0x28] sm:$0xff] %v573
        %590 = vst [vmem:[#allocation2 + $0x30] sm:$0xff] %v574
        %591 = vst [vmem:[#allocation2 + $0x38] sm:$0xff] %v575
        %592 = vst [vmem:[#allocation2 + $0x40] sm:$0xff] %v576
        %593 = vst [vmem:[#allocation2 + $0x48] sm:$0xff] %v577
        %594 = vst [vmem:[#allocation2 + $0x50] sm:$0xff] %v578
        %595 = vst [vmem:[#allocation2 + $0x58] sm:$0xff] %v579
        %596 = vst [vmem:[#allocation2 + $0x60] sm:$0xff] %v580
        %597 = vst [vmem:[#allocation2 + $0x68] sm:$0xff] %v581
        %598 = vst [vmem:[#allocation2 + $0x70] sm:$0xff] %v582
        %599 = vst [vmem:[#allocation2 + $0x78] sm:$0xff] %v583
        %p600 = scmp.eq.s32.totalorder %s21, 4
        // Predicated region
        $region78: #{resnet_forward.13} parent=68 // pred_check
          %p601 = pneg %p600
        $region79: #{resnet_forward.13} parent=68 // pred_check_branch
          %603 = sbr.rel (%p601) target = $region81
        $region80: #{resnet_forward.13} parent=68 // pred_region
          %v604 = vld [vmem:[#allocation2] sm:$0xff]
          %v605 = vld [vmem:[#allocation2 + $0x8] sm:$0xff]
          %v606 = vld [vmem:[#allocation2 + $0x10] sm:$0xff]
          %v607 = vld [vmem:[#allocation2 + $0x18] sm:$0xff]
          %v608 = vld [vmem:[#allocation2 + $0x20] sm:$0xff]
          %v609 = vld [vmem:[#allocation2 + $0x28] sm:$0xff]
          %v610 = vld [vmem:[#allocation2 + $0x30] sm:$0xff]
          %v611 = vld [vmem:[#allocation2 + $0x38] sm:$0xff]
          %v612 = vld [vmem:[#allocation2 + $0x40] sm:$0xff]
          %v613 = vld [vmem:[#allocation2 + $0x48] sm:$0xff]
          %v614 = vld [vmem:[#allocation2 + $0x50] sm:$0xff]
          %v615 = vld [vmem:[#allocation2 + $0x58] sm:$0xff]
          %v616 = vld [vmem:[#allocation2 + $0x60] sm:$0xff]
          %v617 = vld [vmem:[#allocation2 + $0x68] sm:$0xff]
          %v618 = vld [vmem:[#allocation2 + $0x70] sm:$0xff]
          %v619 = vld [vmem:[#allocation2 + $0x78] sm:$0xff]
          %v620 = vld [vmem:[%s345] sm:$0x1]
          %v622 = vperm.slane %v620, 0
          %v624 = vadd.f32 %v604, %v622
          %v625 = vadd.f32 %v605, %v622
          %v626 = vadd.f32 %v606, %v622
          %v627 = vadd.f32 %v607, %v622
          %v628 = vadd.f32 %v608, %v622
          %v629 = vadd.f32 %v609, %v622
          %v630 = vadd.f32 %v610, %v622
          %v631 = vadd.f32 %v611, %v622
          %v632 = vadd.f32 %v612, %v622
          %v633 = vadd.f32 %v613, %v622
          %v634 = vadd.f32 %v614, %v622
          %v635 = vadd.f32 %v615, %v622
          %v636 = vadd.f32 %v616, %v622
          %v637 = vadd.f32 %v617, %v622
          %v638 = vadd.f32 %v618, %v622
          %v639 = vadd.f32 %v619, %v622
          %v640 = vmax.f32 %v624, 0.0
          %v641 = vmax.f32 %v625, 0.0
          %v642 = vmax.f32 %v626, 0.0
          %v643 = vmax.f32 %v627, 0.0
          %v644 = vmax.f32 %v628, 0.0
          %v645 = vmax.f32 %v629, 0.0
          %v646 = vmax.f32 %v630, 0.0
          %v647 = vmax.f32 %v631, 0.0
          %v648 = vmax.f32 %v632, 0.0
          %v649 = vmax.f32 %v633, 0.0
          %v650 = vmax.f32 %v634, 0.0
          %v651 = vmax.f32 %v635, 0.0
          %v652 = vmax.f32 %v636, 0.0
          %v653 = vmax.f32 %v637, 0.0
          %v654 = vmax.f32 %v638, 0.0
          %v655 = vmax.f32 %v639, 0.0
          %656 = vst [vmem:[%s353] sm:$0xff] %v640
          %657 = vst [vmem:[%s353 + $0x8] sm:$0xff] %v641
          %658 = vst [vmem:[%s353 + $0x10] sm:$0xff] %v642
          %659 = vst [vmem:[%s353 + $0x18] sm:$0xff] %v643
          %660 = vst [vmem:[%s353 + $0x20] sm:$0xff] %v644
          %661 = vst [vmem:[%s353 + $0x28] sm:$0xff] %v645
          %662 = vst [vmem:[%s353 + $0x30] sm:$0xff] %v646
          %663 = vst [vmem:[%s353 + $0x38] sm:$0xff] %v647
          %664 = vst [vmem:[%s353 + $0x40] sm:$0xff] %v648
          %665 = vst [vmem:[%s353 + $0x48] sm:$0xff] %v649
          %666 = vst [vmem:[%s353 + $0x50] sm:$0xff] %v650
          %667 = vst [vmem:[%s353 + $0x58] sm:$0xff] %v651
          %668 = vst [vmem:[%s353 + $0x60] sm:$0xff] %v652
          %669 = vst [vmem:[%s353 + $0x68] sm:$0xff] %v653
          %670 = vst [vmem:[%s353 + $0x70] sm:$0xff] %v654
          %671 = vst [vmem:[%s353 + $0x78] sm:$0xff] %v655
        $region81: #{resnet_forward.13} parent=68 // pred_fallthru
          _
        %s672 = smul.u32 16, %s19
        %p673 = scmp.lt.s32.totalorder %s672, 15
        %s674 = scalar_select %p673, %s672, 15
        %p675 = scmp.lt.s32.totalorder %s20, 0
        %s676 = scalar_select %p675, %s20, 0
        %s677 = sadd.s32 %s676, %s674
        %s678 = smul.addr %s677, 8
        %s679 = scalar_lea.vmem %s3, %s678
        // Predicated region
        $region82: #{resnet_forward.13} parent=68 // pred_check
          %p680 = pneg %p135
        $region83: #{resnet_forward.13} parent=68 // pred_check_branch
          %682 = sbr.rel (%p680) target = $region85
        $region84: #{resnet_forward.13} parent=68 // pred_region
          %s683 = smul.u32 16, %s19
        $region85: #{resnet_forward.13} parent=68 // pred_fallthru
          _
        // Predicated region
        $region86: #{resnet_forward.13} parent=68 // pred_check
          %p684 = pneg %p135
        $region87: #{resnet_forward.13} parent=68 // pred_check_branch
          %686 = sbr.rel (%p684) target = $region89
        $region88: #{resnet_forward.13} parent=68 // pred_region
          %s687 = smul.u32 16, %s19
          %p688 = scmp.lt.s32.totalorder %s687, 15
          %s689 = scalar_select %p688, %s687, 15
          %p690 = scmp.lt.s32.totalorder %s20, 0
          %s691 = scalar_select %p690, %s20, 0
          %s692 = sadd.s32 %s691, %s689
          %s693 = smul.addr %s692, 8
          %s694 = scalar_lea.vmem %s3, %s693
        $region89: #{resnet_forward.13} parent=68 // pred_fallthru
          _
      $region69: #{resnet_forward.13} parent=5 // pred_fallthru
        _
      %p695 = scmp.le.s32.totalorder 2, %s9
      // Predicated region
      $region90: #{resnet_forward.13} parent=5 // pred_check
        %p696 = pneg %p695
      $region91: #{resnet_forward.13} parent=5 // pred_check_branch
        %698 = sbr.rel (%p696) target = $region93
      $region92: #{resnet_forward.13} parent=5 // pred_region
        %s699 = ssub.s32 %s9, 2
      $region93: #{resnet_forward.13} parent=5 // pred_fallthru
        _
    $region6: #{resnet_forward.13} parent=1 // loop_footer
      %s13 = sadd.s32 1, %s9
    $region7: #{resnet_forward.13} parent=1 // loop_footer_branch
      %8 = sbr.rel target = $region3
    $region8: #{resnet_forward.13} parent=1 // loop_exit
      _

// kernel: resnet_forward.14
$region0: #{resnet_forward.14}
  #allocation0 [shape = 'u32[]', space=smem, size = 0x4, offset = 0x4, fixed_abs, tag = 'smem constant byte address 0x4 - core index']
  #allocation1 [shape = 'u32[72,128]{1,0:T(1,128)}', space=vmem, size = 0x9000, scoped, tag = 'internal scratch']
  #allocation2 [shape = 'f32[128,128]{1,0:T(8,128)}', space=vmem, size = 0x10000, scoped, tag = 'scratch operand']
  %s0 = inlined_call_operand.vmem [shape: bf16[128,640], index: 0, kind: input, shape index: {}]
  %s1 = inlined_call_operand.vmem [shape: bf16[640,128], index: 1, kind: input, shape index: {}]
  %s2 = inlined_call_operand.vmem [shape: f32[1,128], index: 2, kind: input, shape index: {}]
  %s3 = inlined_call_operand.vmem [shape: f32[128,128], index: 3, kind: input, shape index: {}]
  %s4 = inlined_call_operand.vmem [shape: f32[128,128], index: 4, kind: output, shape index: {}]
  %s5 = sld [smem:[#allocation0]]
  $region98: #{resnet_forward.14} parent=0
    _
  %s7 = ssub.s32 1, %s5
  %s8 = scalar_select 0, %s7, %s5
  $region1: #{resnet_forward.14} parent=0
    #allocation3 [shape = 'u8[65536]{0}', space=vmem, size = 0x10000, scoped, tag = 'input window, operand 0']
    loop: start=0, step=1, limit=7
    $region2: #{resnet_forward.14} parent=1 // loop_pre_header
      _
    $region3: #{resnet_forward.14} parent=1 // loop_header
      %s10 = sphi 0, %s14
      %p11 = scmp.ge.s32.totalorder %s10, 7
      %s17 = sphi 0, %s36
      %s18 = sphi 0, %s32
      %s19 = sphi 0, %s28
      %s20 = sphi 0, %s17
      %s21 = sphi 0, %s18
      %s22 = sphi 0, %s19
      %s23 = sphi 0, %s20
      %s24 = sphi 0, %s21
      %s25 = sphi 0, %s22
      %s41 = sphi 0, %s43
      %s44 = sphi 0, %s41
      %s45 = sphi 0, %s44
      %s61 = sphi 0, %s45
      %s69 = sphi 0, %s71
      %s72 = sphi 0, %s69
      %s73 = sphi 0, %s72
      %s89 = sphi 0, %s73
      %s95 = sphi 0, %s97
      %s98 = sphi 0, %s95
      %s99 = sphi 0, %s98
      %s115 = sphi 0, %s99
      %s123 = sphi 0, %s125
      %s126 = sphi 0, %s123
      %s127 = sphi 0, %s126
      %s143 = sphi 0, %s127
      %s151 = sphi 0, %s153
      %s154 = sphi 0, %s151
      %s155 = sphi 0, %s154
      %s171 = sphi 0, %s155
    $region4: #{resnet_forward.14} parent=1 // loop_header_branch
      %13 = sbr.rel (%p11) target = $region8
    $region5: #{resnet_forward.14} parent=1 // loop_body
      %s15 = ssub.s32 %s10, 1
      %s16 = ssub.s32 %s10, 2
      %s26 = sadd.s32 1, %s19
      %p27 = scmp.ge.s32.totalorder %s26, 5
      %s28 = scalar_select %p27, 0, %s26
      %s29 = sadd.s32 1, %s18
      %s30 = scalar_select %p27, %s29, %s18
      %p31 = scmp.ge.s32.totalorder %s30, 1
      %s32 = scalar_select %p31, 0, %s30
      %s33 = sadd.s32 1, %s17
      %s34 = scalar_select %p31, %s33, %s17
      %p35 = scmp.ge.s32.totalorder %s34, 1
      %s36 = scalar_select %p35, 0, %s34
      %s37 = ssub.s32 %s17, %s36
      %s38 = ssub.s32 %s19, %s28
      %s39 = sor.u32 %s37, %s38
      %p40 = scmp.eq.s32.totalorder %s39, 0
      %s42 = sadd.s32 %s41, 1
      %s43 = scalar_select %p40, %s41, %s42
      %p46 = pneg %p40
      %p47 = scmp.eq.s32.totalorder %s10, 4
      %p48 = por %p46, %p47
      %p49 = scmp.ne.s32.totalorder %s41, %s44
      %p50 = scmp.eq.s32.totalorder %s10, 0
      %p51 = por %p49, %p50
      %p52 = scmp.ne.s32.totalorder %s41, %s44
      %p53 = scmp.eq.s32.totalorder %s15, 4
      %p54 = por %p52, %p53
      %p55 = scmp.ne.s32.totalorder %s44, %s45
      %p56 = scmp.eq.s32.totalorder %s15, 0
      %p57 = por %p55, %p56
      %p58 = scmp.ne.s32.totalorder %s44, %s45
      %p59 = scmp.eq.s32.totalorder %s16, 4
      %p60 = por %p58, %p59
      %p62 = scmp.ne.s32.totalorder %s45, %s61
      %p63 = scmp.eq.s32.totalorder %s16, 0
      %p64 = por %p62, %p63
      %s65 = ssub.s32 %s19, %s28
      %s66 = ssub.s32 %s18, %s32
      %s67 = sor.u32 %s65, %s66
      %p68 = scmp.eq.s32.totalorder %s67, 0
      %s70 = sadd.s32 %s69, 1
      %s71 = scalar_select %p68, %s69, %s70
      %p74 = pneg %p68
      %p75 = scmp.eq.s32.totalorder %s10, 4
      %p76 = por %p74, %p75
      %p77 = scmp.ne.s32.totalorder %s69, %s72
      %p78 = scmp.eq.s32.totalorder %s10, 0
      %p79 = por %p77, %p78
      %p80 = scmp.ne.s32.totalorder %s69, %s72
      %p81 = scmp.eq.s32.totalorder %s15, 4
      %p82 = por %p80, %p81
      %p83 = scmp.ne.s32.totalorder %s72, %s73
      %p84 = scmp.eq.s32.totalorder %s15, 0
      %p85 = por %p83, %p84
      %p86 = scmp.ne.s32.totalorder %s72, %s73
      %p87 = scmp.eq.s32.totalorder %s16, 4
      %p88 = por %p86, %p87
      %p90 = scmp.ne.s32.totalorder %s73, %s89
      %p91 = scmp.eq.s32.totalorder %s16, 0
      %p92 = por %p90, %p91
      %s93 = ssub.s32 %s18, %s32
      %p94 = scmp.eq.s32.totalorder %s93, 0
      %s96 = sadd.s32 %s95, 1
      %s97 = scalar_select %p94, %s95, %s96
      %p100 = pneg %p94
      %p101 = scmp.eq.s32.totalorder %s10, 4
      %p102 = por %p100, %p101
      %p103 = scmp.ne.s32.totalorder %s95, %s98
      %p104 = scmp.eq.s32.totalorder %s10, 0
      %p105 = por %p103, %p104
      %p106 = scmp.ne.s32.totalorder %s95, %s98
      %p107 = scmp.eq.s32.totalorder %s15, 4
      %p108 = por %p106, %p107
      %p109 = scmp.ne.s32.totalorder %s98, %s99
      %p110 = scmp.eq.s32.totalorder %s15, 0
      %p111 = por %p109, %p110
      %p112 = scmp.ne.s32.totalorder %s98, %s99
      %p113 = scmp.eq.s32.totalorder %s16, 4
      %p114 = por %p112, %p113
      %p116 = scmp.ne.s32.totalorder %s99, %s115
      %p117 = scmp.eq.s32.totalorder %s16, 0
      %p118 = por %p116, %p117
      %s119 = ssub.s32 %s17, %s36
      %s120 = ssub.s32 %s18, %s32
      %s121 = sor.u32 %s119, %s120
      %p122 = scmp.eq.s32.totalorder %s121, 0
      %s124 = sadd.s32 %s123, 1
      %s125 = scalar_select %p122, %s123, %s124
      %p128 = pneg %p122
      %p129 = scmp.eq.s32.totalorder %s10, 4
      %p130 = por %p128, %p129
      %p131 = scmp.ne.s32.totalorder %s123, %s126
      %p132 = scmp.eq.s32.totalorder %s10, 0
      %p133 = por %p131, %p132
      %p134 = scmp.ne.s32.totalorder %s123, %s126
      %p135 = scmp.eq.s32.totalorder %s15, 4
      %p136 = por %p134, %p135
      %p137 = scmp.ne.s32.totalorder %s126, %s127
      %p138 = scmp.eq.s32.totalorder %s15, 0
      %p139 = por %p137, %p138
      %p140 = scmp.ne.s32.totalorder %s126, %s127
      %p141 = scmp.eq.s32.totalorder %s16, 4
      %p142 = por %p140, %p141
      %p144 = scmp.ne.s32.totalorder %s127, %s143
      %p145 = scmp.eq.s32.totalorder %s16, 0
      %p146 = por %p144, %p145
      %s147 = ssub.s32 %s17, %s36
      %s148 = ssub.s32 %s18, %s32
      %s149 = sor.u32 %s147, %s148
      %p150 = scmp.eq.s32.totalorder %s149, 0
      %s152 = sadd.s32 %s151, 1
      %s153 = scalar_select %p150, %s151, %s152
      %p156 = pneg %p150
      %p157 = scmp.eq.s32.totalorder %s10, 4
      %p158 = por %p156, %p157
      %p159 = scmp.ne.s32.totalorder %s151, %s154
      %p160 = scmp.eq.s32.totalorder %s10, 0
      %p161 = por %p159, %p160
      %p162 = scmp.ne.s32.totalorder %s151, %s154
      %p163 = scmp.eq.s32.totalorder %s15, 4
      %p164 = por %p162, %p163
      %p165 = scmp.ne.s32.totalorder %s154, %s155
      %p166 = scmp.eq.s32.totalorder %s15, 0
      %p167 = por %p165, %p166
      %p168 = scmp.ne.s32.totalorder %s154, %s155
      %p169 = scmp.eq.s32.totalorder %s16, 4
      %p170 = por %p168, %p169
      %p172 = scmp.ne.s32.totalorder %s155, %s171
      %p173 = scmp.eq.s32.totalorder %s16, 0
      %p174 = por %p172, %p173
      %p175 = scmp.le.s32.totalorder 1, %s10
      %p176 = scmp.lt.s32.totalorder %s10, 6
      %p177 = pnand %p175, %p176
      %p178 = pneg %p177
      // Predicated region
      $region9: #{resnet_forward.14} parent=5 // pred_check
        _
      $region10: #{resnet_forward.14} parent=5 // pred_check_branch
        %180 = sbr.rel (%p177) target = $region12
      $region11: #{resnet_forward.14} parent=5 // pred_region
        %s181 = ssub.s32 %s10, 1
        // Predicated region
        $region13: #{resnet_forward.14} parent=11 // pred_check
          %p182 = pneg %p111
        $region14: #{resnet_forward.14} parent=11 // pred_check_branch
          %184 = sbr.rel (%p182) target = $region16
        $region15: #{resnet_forward.14} parent=11 // pred_region
          %p185 = scmp.lt.s32.totalorder %s21, 0
          %s186 = scalar_select %p185, %s21, 0
          %s187 = scalar_lea.vmem %s2, %s186
        $region16: #{resnet_forward.14} parent=11 // pred_fallthru
          _
        // Predicated region
        $region17: #{resnet_forward.14} parent=11 // pred_check
          %p188 = pneg %p139
        $region18: #{resnet_forward.14} parent=11 // pred_check_branch
          %190 = sbr.rel (%p188) target = $region20
        $region19: #{resnet_forward.14} parent=11 // pred_region
          %s191 = smul.u32 16, %s20
          %p192 = scmp.lt.s32.totalorder %s191, 15
          %s193 = scalar_select %p192, %s191, 15
          %p194 = scmp.lt.s32.totalorder %s21, 0
          %s195 = scalar_select %p194, %s21, 0
          %s196 = sadd.s32 %s195, %s193
          %s197 = smul.addr %s196, 8
          %s198 = scalar_lea.vmem %s3, %s197
          %s199 = smul.u32 16, %s20
        $region20: #{resnet_forward.14} parent=11 // pred_fallthru
          _
      $region12: #{resnet_forward.14} parent=5 // pred_fallthru
        _
      %p200 = scmp.lt.s32.totalorder %s10, 5
      // Predicated region
      $region21: #{resnet_forward.14} parent=5 // pred_check
        %p201 = pneg %p200
      $region22: #{resnet_forward.14} parent=5 // pred_check_branch
        %203 = sbr.rel (%p201) target = $region24
      $region23: #{resnet_forward.14} parent=5 // pred_region
        // Predicated region
        $region25: #{resnet_forward.14} parent=23 // pred_check
          %p204 = pneg %p51
        $region26: #{resnet_forward.14} parent=23 // pred_check_branch
          %206 = sbr.rel (%p204) target = $region28
        $region27: #{resnet_forward.14} parent=23 // pred_region
          %s207 = sand.u32 %s41, 1
          %s208 = sand.u32 %s41, 1
          %s209 = smul.addr %s208, 64
          %s210 = scalar_lea.vmem [#allocation3], %s209
          %s211 = smul.u32 16, %s17
          %s212 = smul.addr %s211, 5
          %s213 = sadd.s32 %s19, %s212
          %s214 = smul.addr %s213, 4
          %s215 = scalar_lea.vmem %s0, %s214
          // Predicated region
          $region29: #{resnet_forward.14} parent=27 // pred_check
            _
          $region30: #{resnet_forward.14} parent=27 // pred_check_branch
            %217 = sbr.rel (0) target = $region32
          $region31: #{resnet_forward.14} parent=27 // pred_region
            // Predicated region
            $region33: #{resnet_forward.14} parent=31 // pred_check
              _
            $region34: #{resnet_forward.14} parent=31 // pred_check_branch
              %219 = sbr.rel target = $region36
            $region35: #{resnet_forward.14} parent=31 // pred_region
              // Predicated region
              $region48: #{resnet_forward.14} parent=35 // pred_check
                _
              $region49: #{resnet_forward.14} parent=35 // pred_check_branch
                %265 = sbr.rel (0) target = $region51
              $region50: #{resnet_forward.14} parent=35 // pred_region
                loop: start=0, step=1, limit=1
                $region52: #{resnet_forward.14} parent=50 // loop_pre_header
                  _
                $region53: #{resnet_forward.14} parent=50 // loop_header
                  %s267 = sphi 0, %s271
                  %p268 = scmp.ge.s32.totalorder %s267, 1
                  %s272 = sphi %s215, %s215
                  %s273 = sphi %s210, %s210
                $region54: #{resnet_forward.14} parent=50 // loop_header_branch
                  %270 = sbr.rel (%p268) target = $region58
                $region55: #{resnet_forward.14} parent=50 // loop_body
                  _
                $region56: #{resnet_forward.14} parent=50 // loop_footer
                  %s271 = sadd.s32 1, %s267
                $region57: #{resnet_forward.14} parent=50 // loop_footer_branch
                  %266 = sbr.rel target = $region53
                $region58: #{resnet_forward.14} parent=50 // loop_exit
                  _
                %s275 = ssub.s32 16, 1
                loop: start=0, step=1, limit=1
                $region59: #{resnet_forward.14} parent=50 // loop_pre_header
                  _
                $region60: #{resnet_forward.14} parent=50 // loop_header
                  %s277 = sphi 0, %s281
                  %p278 = scmp.ge.s32.totalorder %s277, 1
                  %s282 = sphi %s215, %s215
                  %s283 = sphi %s210, %s210
                $region61: #{resnet_forward.14} parent=50 // loop_header_branch
                  %280 = sbr.rel (%p278) target = $region65
                $region62: #{resnet_forward.14} parent=50 // loop_body
                  %v284 = vld [vmem:[%s282] sm:%s275]
                  %285 = vst [vmem:[%s283] sm:%s275] %v284
                  %v286 = vld [vmem:[%s282 + $0x14] sm:%s275]
                  %287 = vst [vmem:[%s283 + $0x4] sm:%s275] %v286
                  %v288 = vld [vmem:[%s282 + $0x28] sm:%s275]
                  %289 = vst [vmem:[%s283 + $0x8] sm:%s275] %v288
                  %v290 = vld [vmem:[%s282 + $0x3c] sm:%s275]
                  %291 = vst [vmem:[%s283 + $0xc] sm:%s275] %v290
                  %v292 = vld [vmem:[%s282 + $0x50] sm:%s275]
                  %293 = vst [vmem:[%s283 + $0x10] sm:%s275] %v292
                  %v294 = vld [vmem:[%s282 + $0x64] sm:%s275]
                  %295 = vst [vmem:[%s283 + $0x14] sm:%s275] %v294
                  %v296 = vld [vmem:[%s282 + $0x78] sm:%s275]
                  %297 = vst [vmem:[%s283 + $0x18] sm:%s275] %v296
                  %v298 = vld [vmem:[%s282 + $0x8c] sm:%s275]
                  %299 = vst [vmem:[%s283 + $0x1c] sm:%s275] %v298
                  %v300 = vld [vmem:[%s282 + $0xa0] sm:%s275]
                  %301 = vst [vmem:[%s283 + $0x20] sm:%s275] %v300
                  %v302 = vld [vmem:[%s282 + $0xb4] sm:%s275]
                  %303 = vst [vmem:[%s283 + $0x24] sm:%s275] %v302
                  %v304 = vld [vmem:[%s282 + $0xc8] sm:%s275]
                  %305 = vst [vmem:[%s283 + $0x28] sm:%s275] %v304
                  %v306 = vld [vmem:[%s282 + $0xdc] sm:%s275]
                  %307 = vst [vmem:[%s283 + $0x2c] sm:%s275] %v306
                  %v308 = vld [vmem:[%s282 + $0xf0] sm:%s275]
                  %309 = vst [vmem:[%s283 + $0x30] sm:%s275] %v308
                  %v310 = vld [vmem:[%s282 + $0x104] sm:%s275]
                  %311 = vst [vmem:[%s283 + $0x34] sm:%s275] %v310
                  %v312 = vld [vmem:[%s282 + $0x118] sm:%s275]
                  %313 = vst [vmem:[%s283 + $0x38] sm:%s275] %v312
                  %v314 = vld [vmem:[%s282 + $0x12c] sm:%s275]
                  %315 = vst [vmem:[%s283 + $0x3c] sm:%s275] %v314
                $region63: #{resnet_forward.14} parent=50 // loop_footer
                  %s281 = sadd.s32 1, %s277
                $region64: #{resnet_forward.14} parent=50 // loop_footer_branch
                  %276 = sbr.rel target = $region60
                $region65: #{resnet_forward.14} parent=50 // loop_exit
                  _
              $region51: #{resnet_forward.14} parent=35 // pred_fallthru
                _
            $region36: #{resnet_forward.14} parent=31 // pred_fallthru
              _
            // Predicated region
            $region37: #{resnet_forward.14} parent=31 // pred_check
              _
            $region38: #{resnet_forward.14} parent=31 // pred_check_branch
              %221 = sbr.rel (0) target = $region40
            $region39: #{resnet_forward.14} parent=31 // pred_region
              %s223 = ssub.s32 16, 1
              loop: start=0, step=1, limit=1
              $region41: #{resnet_forward.14} parent=39 // loop_pre_header
                _
              $region42: #{resnet_forward.14} parent=39 // loop_header
                %s225 = sphi 0, %s229
                %p226 = scmp.ge.s32.totalorder %s225, 1
                %s230 = sphi %s215, %s215
                %s231 = sphi %s210, %s210
              $region43: #{resnet_forward.14} parent=39 // loop_header_branch
                %228 = sbr.rel (%p226) target = $region47
              $region44: #{resnet_forward.14} parent=39 // loop_body
                %v232 = vld [vmem:[%s230] sm:%s223]
                %233 = vst [vmem:[%s231] sm:%s223] %v232
                %v234 = vld [vmem:[%s230 + $0x14] sm:%s223]
                %235 = vst [vmem:[%s231 + $0x4] sm:%s223] %v234
                %v236 = vld [vmem:[%s230 + $0x28] sm:%s223]
                %237 = vst [vmem:[%s231 + $0x8] sm:%s223] %v236
                %v238 = vld [vmem:[%s230 + $0x3c] sm:%s223]
                %239 = vst [vmem:[%s231 + $0xc] sm:%s223] %v238
                %v240 = vld [vmem:[%s230 + $0x50] sm:%s223]
                %241 = vst [vmem:[%s231 + $0x10] sm:%s223] %v240
                %v242 = vld [vmem:[%s230 + $0x64] sm:%s223]
                %243 = vst [vmem:[%s231 + $0x14] sm:%s223] %v242
                %v244 = vld [vmem:[%s230 + $0x78] sm:%s223]
                %245 = vst [vmem:[%s231 + $0x18] sm:%s223] %v244
                %v246 = vld [vmem:[%s230 + $0x8c] sm:%s223]
                %247 = vst [vmem:[%s231 + $0x1c] sm:%s223] %v246
                %v248 = vld [vmem:[%s230 + $0xa0] sm:%s223]
                %249 = vst [vmem:[%s231 + $0x20] sm:%s223] %v248
                %v250 = vld [vmem:[%s230 + $0xb4] sm:%s223]
                %251 = vst [vmem:[%s231 + $0x24] sm:%s223] %v250
                %v252 = vld [vmem:[%s230 + $0xc8] sm:%s223]
                %253 = vst [vmem:[%s231 + $0x28] sm:%s223] %v252
                %v254 = vld [vmem:[%s230 + $0xdc] sm:%s223]
                %255 = vst [vmem:[%s231 + $0x2c] sm:%s223] %v254
                %v256 = vld [vmem:[%s230 + $0xf0] sm:%s223]
                %257 = vst [vmem:[%s231 + $0x30] sm:%s223] %v256
                %v258 = vld [vmem:[%s230 + $0x104] sm:%s223]
                %259 = vst [vmem:[%s231 + $0x34] sm:%s223] %v258
                %v260 = vld [vmem:[%s230 + $0x118] sm:%s223]
                %261 = vst [vmem:[%s231 + $0x38] sm:%s223] %v260
                %v262 = vld [vmem:[%s230 + $0x12c] sm:%s223]
                %263 = vst [vmem:[%s231 + $0x3c] sm:%s223] %v262
              $region45: #{resnet_forward.14} parent=39 // loop_footer
                %s229 = sadd.s32 1, %s225
              $region46: #{resnet_forward.14} parent=39 // loop_footer_branch
                %224 = sbr.rel target = $region42
              $region47: #{resnet_forward.14} parent=39 // loop_exit
                _
            $region40: #{resnet_forward.14} parent=31 // pred_fallthru
              _
          $region32: #{resnet_forward.14} parent=27 // pred_fallthru
            _
          %316 = vnop
        $region28: #{resnet_forward.14} parent=23 // pred_fallthru
          _
        // Predicated region
        $region66: #{resnet_forward.14} parent=23 // pred_check
          %p317 = pneg %p79
        $region67: #{resnet_forward.14} parent=23 // pred_check_branch
          %319 = sbr.rel (%p317) target = $region69
        $region68: #{resnet_forward.14} parent=23 // pred_region
          %s320 = smul.u32 16, %s19
          %p321 = scmp.lt.s32.totalorder %s320, 79
          %s322 = scalar_select %p321, %s320, 79
          %p323 = scmp.lt.s32.totalorder %s18, 0
          %s324 = scalar_select %p323, %s18, 0
          %s325 = sadd.s32 %s324, %s322
          %s326 = smul.addr %s325, 4
          %s327 = scalar_lea.vmem %s1, %s326
          %s328 = smul.u32 16, %s19
        $region69: #{resnet_forward.14} parent=23 // pred_fallthru
          _
      $region24: #{resnet_forward.14} parent=5 // pred_fallthru
        _
      %p329 = scmp.le.s32.totalorder 1, %s10
      %p330 = scmp.lt.s32.totalorder %s10, 6
      %p331 = pnand %p329, %p330
      %p332 = pneg %p331
      // Predicated region
      $region70: #{resnet_forward.14} parent=5 // pred_check
        _
      $region71: #{resnet_forward.14} parent=5 // pred_check_branch
        %334 = sbr.rel (%p331) target = $region73
      $region72: #{resnet_forward.14} parent=5 // pred_region
        %s335 = ssub.s32 %s10, 1
        %s336 = sand.u32 %s44, 1
        %s337 = sand.u32 %s44, 1
        %s338 = smul.addr %s337, 64
        %s339 = scalar_lea.vmem [#allocation3], %s338
        // Predicated region
        $region74: #{resnet_forward.14} parent=72 // pred_check
          %p340 = pneg %p57
        $region75: #{resnet_forward.14} parent=72 // pred_check_branch
          %342 = sbr.rel (%p340) target = $region77
        $region76: #{resnet_forward.14} parent=72 // pred_region
          _
        $region77: #{resnet_forward.14} parent=72 // pred_fallthru
          _
        %s343 = sand.u32 %s44, 1
        %s344 = sand.u32 %s44, 1
        %s345 = smul.addr %s344, 64
        %s346 = scalar_lea.vmem [#allocation3], %s345
        %p347 = pneg %p57
        %p348 = pneg %p54
        %s349 = smul.u32 16, %s22
        %p350 = scmp.lt.s32.totalorder %s349, 79
        %s351 = scalar_select %p350, %s349, 79
        %p352 = scmp.lt.s32.totalorder %s21, 0
        %s353 = scalar_select %p352, %s21, 0
        %s354 = sadd.s32 %s353, %s351
        %s355 = smul.addr %s354, 4
        %s356 = scalar_lea.vmem %s1, %s355
        %p357 = pneg %p85
        %p358 = pneg %p82
        %p359 = scmp.lt.s32.totalorder %s21, 0
        %s360 = scalar_select %p359, %s21, 0
        %s361 = scalar_lea.vmem %s2, %s360
        %p362 = pneg %p111
        %p363 = pneg %p108
        %s364 = smul.u32 16, %s20
        %p365 = scmp.lt.s32.totalorder %s364, 15
        %s366 = scalar_select %p365, %s364, 15
        %p367 = scmp.lt.s32.totalorder %s21, 0
        %s368 = scalar_select %p367, %s21, 0
        %s369 = sadd.s32 %s368, %s366
        %s370 = smul.addr %s369, 8
        %s371 = scalar_lea.vmem %s3, %s370
        %p372 = pneg %p139
        %p373 = pneg %p136
        %p374 = pneg %p167
        %p375 = pneg %p164
        %s376 = smul.u32 16, %s20
        %p377 = scmp.lt.s32.totalorder %s376, 15
        %s378 = scalar_select %p377, %s376, 15
        %p379 = scmp.lt.s32.totalorder %s21, 0
        %s380 = scalar_select %p379, %s21, 0
        %s381 = sadd.s32 %s380, %s378
        %s382 = smul.addr %s381, 8
        %s383 = scalar_lea.vmem %s4, %s382
        %s384 = smul.u32 16, %s20
        %s385 = smul.u32 16, %s22
        %p386 = scmp.lt.s32.totalorder %s385, 79
        %s387 = scalar_select %p386, %s385, 79
        %p388 = scmp.lt.s32.totalorder %s21, 0
        %s389 = scalar_select %p388, %s21, 0
        %s390 = sadd.s32 %s389, %s387
        %s391 = smul.addr %s390, 4
        %s392 = scalar_lea.vmem %s1, %s391
        %s393 = smul.u32 16, %s22
        %p394 = scmp.lt.s32.totalorder %s21, 0
        %s395 = scalar_select %p394, %s21, 0
        %s396 = scalar_lea.vmem %s2, %s395
        %s397 = smul.u32 16, %s20
        %p398 = scmp.lt.s32.totalorder %s397, 15
        %s399 = scalar_select %p398, %s397, 15
        %p400 = scmp.lt.s32.totalorder %s21, 0
        %s401 = scalar_select %p400, %s21, 0
        %s402 = sadd.s32 %s401, %s399
        %s403 = smul.addr %s402, 8
        %s404 = scalar_lea.vmem %s3, %s403
        %s405 = smul.u32 16, %s20
        %s406 = smul.u32 16, %s20
        %p407 = scmp.lt.s32.totalorder %s406, 15
        %s408 = scalar_select %p407, %s406, 15
        %p409 = scmp.lt.s32.totalorder %s21, 0
        %s410 = scalar_select %p409, %s21, 0
        %s411 = sadd.s32 %s410, %s408
        %s412 = smul.addr %s411, 8
        %s413 = scalar_lea.vmem %s4, %s412
        %s414 = smul.u32 16, %s20
        %p415 = scmp.eq.s32.totalorder %s22, 0
        // Predicated region
        $region78: #{resnet_forward.14} parent=72 // pred_check
          %p416 = pneg %p415
        $region79: #{resnet_forward.14} parent=72 // pred_check_branch
          %418 = sbr.rel (%p416) target = $region81
        $region80: #{resnet_forward.14} parent=72 // pred_region
          %419 = vst [vmem:[#allocation2] sm:$0xff] 0.0
          %420 = vst [vmem:[#allocation2 + $0x8] sm:$0xff] 0.0
          %421 = vst [vmem:[#allocation2 + $0x10] sm:$0xff] 0.0
          %422 = vst [vmem:[#allocation2 + $0x18] sm:$0xff] 0.0
          %423 = vst [vmem:[#allocation2 + $0x20] sm:$0xff] 0.0
          %424 = vst [vmem:[#allocation2 + $0x28] sm:$0xff] 0.0
          %425 = vst [vmem:[#allocation2 + $0x30] sm:$0xff] 0.0
          %426 = vst [vmem:[#allocation2 + $0x38] sm:$0xff] 0.0
          %427 = vst [vmem:[#allocation2 + $0x40] sm:$0xff] 0.0
          %428 = vst [vmem:[#allocation2 + $0x48] sm:$0xff] 0.0
          %429 = vst [vmem:[#allocation2 + $0x50] sm:$0xff] 0.0
          %430 = vst [vmem:[#allocation2 + $0x58] sm:$0xff] 0.0
          %431 = vst [vmem:[#allocation2 + $0x60] sm:$0xff] 0.0
          %432 = vst [vmem:[#allocation2 + $0x68] sm:$0xff] 0.0
          %433 = vst [vmem:[#allocation2 + $0x70] sm:$0xff] 0.0
          %434 = vst [vmem:[#allocation2 + $0x78] sm:$0xff] 0.0
        $region81: #{resnet_forward.14} parent=72 // pred_fallthru
          _
        %v435 = vld [vmem:[#allocation2] sm:$0xff]
        %v436 = vld [vmem:[#allocation2 + $0x8] sm:$0xff]
        %v437 = vld [vmem:[#allocation2 + $0x10] sm:$0xff]
        %v438 = vld [vmem:[#allocation2 + $0x18] sm:$0xff]
        %v439 = vld [vmem:[#allocation2 + $0x20] sm:$0xff]
        %v440 = vld [vmem:[#allocation2 + $0x28] sm:$0xff]
        %v441 = vld [vmem:[#allocation2 + $0x30] sm:$0xff]
        %v442 = vld [vmem:[#allocation2 + $0x38] sm:$0xff]
        %v443 = vld [vmem:[#allocation2 + $0x40] sm:$0xff]
        %v444 = vld [vmem:[#allocation2 + $0x48] sm:$0xff]
        %v445 = vld [vmem:[#allocation2 + $0x50] sm:$0xff]
        %v446 = vld [vmem:[#allocation2 + $0x58] sm:$0xff]
        %v447 = vld [vmem:[#allocation2 + $0x60] sm:$0xff]
        %v448 = vld [vmem:[#allocation2 + $0x68] sm:$0xff]
        %v449 = vld [vmem:[#allocation2 + $0x70] sm:$0xff]
        %v450 = vld [vmem:[#allocation2 + $0x78] sm:$0xff]
        %v451 = vld [vmem:[%s339] sm:$0xf]
        %v452 = vld [vmem:[%s339 + $0x4] sm:$0xf]
        %v453 = vld [vmem:[%s339 + $0x8] sm:$0xf]
        %v454 = vld [vmem:[%s339 + $0xc] sm:$0xf]
        %v455 = vld [vmem:[%s339 + $0x10] sm:$0xf]
        %v456 = vld [vmem:[%s339 + $0x14] sm:$0xf]
        %v457 = vld [vmem:[%s339 + $0x18] sm:$0xf]
        %v458 = vld [vmem:[%s339 + $0x1c] sm:$0xf]
        %v459 = vld [vmem:[%s339 + $0x20] sm:$0xf]
        %v460 = vld [vmem:[%s339 + $0x24] sm:$0xf]
        %v461 = vld [vmem:[%s339 + $0x28] sm:$0xf]
        %v462 = vld [vmem:[%s339 + $0x2c] sm:$0xf]
        %v463 = vld [vmem:[%s339 + $0x30] sm:$0xf]
        %v464 = vld [vmem:[%s339 + $0x34] sm:$0xf]
        %v465 = vld [vmem:[%s339 + $0x38] sm:$0xf]
        %v466 = vld [vmem:[%s339 + $0x3c] sm:$0xf]
        %v467 = vld [vmem:[%s392] sm:$0xf]
        %v468 = vld [vmem:[%s392 + $0x4] sm:$0xf]
        %v469 = vld [vmem:[%s392 + $0x8] sm:$0xf]
        %v470 = vld [vmem:[%s392 + $0xc] sm:$0xf]
        %v471 = vld [vmem:[%s392 + $0x10] sm:$0xf]
        %v472 = vld [vmem:[%s392 + $0x14] sm:$0xf]
        %v473 = vld [vmem:[%s392 + $0x18] sm:$0xf]
        %v474 = vld [vmem:[%s392 + $0x1c] sm:$0xf]
        %v475 = vld [vmem:[%s392 + $0x20] sm:$0xf]
        %v476 = vld [vmem:[%s392 + $0x24] sm:$0xf]
        %v477 = vld [vmem:[%s392 + $0x28] sm:$0xf]
        %v478 = vld [vmem:[%s392 + $0x2c] sm:$0xf]
        %v479 = vld [vmem:[%s392 + $0x30] sm:$0xf]
        %v480 = vld [vmem:[%s392 + $0x34] sm:$0xf]
        %v481 = vld [vmem:[%s392 + $0x38] sm:$0xf]
        %v482 = vld [vmem:[%s392 + $0x3c] sm:$0xf]
        %v499 = vunpack.c.l.b16 %v451
        %v500 = vunpack.c.l.b16 %v452
        %v501 = vunpack.c.l.b16 %v453
        %v502 = vunpack.c.l.b16 %v454
        %v503 = vunpack.c.l.b16 %v455
        %v504 = vunpack.c.l.b16 %v456
        %v505 = vunpack.c.l.b16 %v457
        %v506 = vunpack.c.l.b16 %v458
        %v507 = vunpack.c.l.b16 %v459
        %v508 = vunpack.c.l.b16 %v460
        %v509 = vunpack.c.l.b16 %v461
        %v510 = vunpack.c.l.b16 %v462
        %v511 = vunpack.c.l.b16 %v463
        %v512 = vunpack.c.l.b16 %v464
        %v513 = vunpack.c.l.b16 %v465
        %v514 = vunpack.c.l.b16 %v466
        %v515 = vpack.c.b16 %v500, %v499
        %v516 = vpack.c.b16 %v502, %v501
        %v517 = vpack.c.b16 %v504, %v503
        %v518 = vpack.c.b16 %v506, %v505
        %v519 = vpack.c.b16 %v508, %v507
        %v520 = vpack.c.b16 %v510, %v509
        %v521 = vpack.c.b16 %v512, %v511
        %v522 = vpack.c.b16 %v514, %v513
        %v547 = vunpack.c.l.b16 %v467
        %v548 = vunpack.c.l.b16 %v468
        %v549 = vunpack.c.l.b16 %v469
        %v550 = vunpack.c.l.b16 %v470
        %v551 = vunpack.c.l.b16 %v471
        %v552 = vunpack.c.l.b16 %v472
        %v553 = vunpack.c.l.b16 %v473
        %v554 = vunpack.c.l.b16 %v474
        %v555 = vunpack.c.l.b16 %v475
        %v556 = vunpack.c.l.b16 %v476
        %v557 = vunpack.c.l.b16 %v477
        %v558 = vunpack.c.l.b16 %v478
        %v559 = vunpack.c.l.b16 %v479
        %v560 = vunpack.c.l.b16 %v480
        %v561 = vunpack.c.l.b16 %v481
        %v562 = vunpack.c.l.b16 %v482
        %v563 = vpack.c.b16 %v548, %v547
        %v564 = vpack.c.b16 %v550, %v549
        %v565 = vpack.c.b16 %v552, %v551
        %v566 = vpack.c.b16 %v554, %v553
        %v567 = vpack.c.b16 %v556, %v555
        %v568 = vpack.c.b16 %v558, %v557
        %v569 = vpack.c.b16 %v560, %v559
        %v570 = vpack.c.b16 %v562, %v561
        %579 = vmatpush.bf16.msra.mxu0 %v570
        %580 = vmatpush.bf16.msra.mxu0 %v569
        %581 = vmatpush.bf16.msra.mxu0 %v568
        %582 = vmatpush.bf16.msra.mxu0 %v567
        %583 = vmatpush.bf16.msra.mxu0 %v566
        %584 = vmatpush.bf16.msra.mxu0 %v565
        %585 = vmatpush.bf16.msra.mxu0 %v564
        %586 = vmatpush.bf16.msra.mxu0 %v563
        %587 = vmatmul.bf16.gmra.mxu0 %v515
        %v588 = vpop.f32.mrf.mxu0
        %v589 = vadd.f32 0.0, %v588
        %v590 = vpop.f32.mrf.mxu0
        %v591 = vadd.f32 0.0, %v590
        %592 = vmatmul.bf16.gmra.mxu0 %v516
        %v593 = vpop.f32.mrf.mxu0
        %v594 = vadd.f32 0.0, %v593
        %v595 = vpop.f32.mrf.mxu0
        %v596 = vadd.f32 0.0, %v595
        %597 = vmatmul.bf16.gmra.mxu0 %v517
        %v598 = vpop.f32.mrf.mxu0
        %v599 = vadd.f32 0.0, %v598
        %v600 = vpop.f32.mrf.mxu0
        %v601 = vadd.f32 0.0, %v600
        %602 = vmatmul.bf16.gmra.mxu0 %v518
        %v603 = vpop.f32.mrf.mxu0
        %v604 = vadd.f32 0.0, %v603
        %v605 = vpop.f32.mrf.mxu0
        %v606 = vadd.f32 0.0, %v605
        %607 = vmatmul.bf16.gmra.mxu0 %v519
        %v608 = vpop.f32.mrf.mxu0
        %v609 = vadd.f32 0.0, %v608
        %v610 = vpop.f32.mrf.mxu0
        %v611 = vadd.f32 0.0, %v610
        %612 = vmatmul.bf16.gmra.mxu0 %v520
        %v613 = vpop.f32.mrf.mxu0
        %v614 = vadd.f32 0.0, %v613
        %v615 = vpop.f32.mrf.mxu0
        %v616 = vadd.f32 0.0, %v615
        %617 = vmatmul.bf16.gmra.mxu0 %v521
        %v618 = vpop.f32.mrf.mxu0
        %v619 = vadd.f32 0.0, %v618
        %v620 = vpop.f32.mrf.mxu0
        %v621 = vadd.f32 0.0, %v620
        %622 = vmatmul.bf16.gmra.mxu0 %v522
        %v623 = vpop.f32.mrf.mxu0
        %v624 = vadd.f32 0.0, %v623
        %v625 = vpop.f32.mrf.mxu0
        %v626 = vadd.f32 0.0, %v625
        %627 = vdwg.mxu0
        %v628 = vadd.f32 %v435, %v589
        %v629 = vadd.f32 %v436, %v591
        %v630 = vadd.f32 %v437, %v594
        %v631 = vadd.f32 %v438, %v596
        %v632 = vadd.f32 %v439, %v599
        %v633 = vadd.f32 %v440, %v601
        %v634 = vadd.f32 %v441, %v604
        %v635 = vadd.f32 %v442, %v606
        %v636 = vadd.f32 %v443, %v609
        %v637 = vadd.f32 %v444, %v611
        %v638 = vadd.f32 %v445, %v614
        %v639 = vadd.f32 %v446, %v616
        %v640 = vadd.f32 %v447, %v619
        %v641 = vadd.f32 %v448, %v621
        %v642 = vadd.f32 %v449, %v624
        %v643 = vadd.f32 %v450, %v626
        %644 = vst [vmem:[#allocation2] sm:$0xff] %v628
        %645 = vst [vmem:[#allocation2 + $0x8] sm:$0xff] %v629
        %646 = vst [vmem:[#allocation2 + $0x10] sm:$0xff] %v630
        %647 = vst [vmem:[#allocation2 + $0x18] sm:$0xff] %v631
        %648 = vst [vmem:[#allocation2 + $0x20] sm:$0xff] %v632
        %649 = vst [vmem:[#allocation2 + $0x28] sm:$0xff] %v633
        %650 = vst [vmem:[#allocation2 + $0x30] sm:$0xff] %v634
        %651 = vst [vmem:[#allocation2 + $0x38] sm:$0xff] %v635
        %652 = vst [vmem:[#allocation2 + $0x40] sm:$0xff] %v636
        %653 = vst [vmem:[#allocation2 + $0x48] sm:$0xff] %v637
        %654 = vst [vmem:[#allocation2 + $0x50] sm:$0xff] %v638
        %655 = vst [vmem:[#allocation2 + $0x58] sm:$0xff] %v639
        %656 = vst [vmem:[#allocation2 + $0x60] sm:$0xff] %v640
        %657 = vst [vmem:[#allocation2 + $0x68] sm:$0xff] %v641
        %658 = vst [vmem:[#allocation2 + $0x70] sm:$0xff] %v642
        %659 = vst [vmem:[#allocation2 + $0x78] sm:$0xff] %v643
        %p660 = scmp.eq.s32.totalorder %s22, 4
        // Predicated region
        $region82: #{resnet_forward.14} parent=72 // pred_check
          %p661 = pneg %p660
        $region83: #{resnet_forward.14} parent=72 // pred_check_branch
          %663 = sbr.rel (%p661) target = $region85
        $region84: #{resnet_forward.14} parent=72 // pred_region
          %v664 = vld [vmem:[#allocation2] sm:$0xff]
          %v665 = vld [vmem:[#allocation2 + $0x8] sm:$0xff]
          %v666 = vld [vmem:[#allocation2 + $0x10] sm:$0xff]
          %v667 = vld [vmem:[#allocation2 + $0x18] sm:$0xff]
          %v668 = vld [vmem:[#allocation2 + $0x20] sm:$0xff]
          %v669 = vld [vmem:[#allocation2 + $0x28] sm:$0xff]
          %v670 = vld [vmem:[#allocation2 + $0x30] sm:$0xff]
          %v671 = vld [vmem:[#allocation2 + $0x38] sm:$0xff]
          %v672 = vld [vmem:[#allocation2 + $0x40] sm:$0xff]
          %v673 = vld [vmem:[#allocation2 + $0x48] sm:$0xff]
          %v674 = vld [vmem:[#allocation2 + $0x50] sm:$0xff]
          %v675 = vld [vmem:[#allocation2 + $0x58] sm:$0xff]
          %v676 = vld [vmem:[#allocation2 + $0x60] sm:$0xff]
          %v677 = vld [vmem:[#allocation2 + $0x68] sm:$0xff]
          %v678 = vld [vmem:[#allocation2 + $0x70] sm:$0xff]
          %v679 = vld [vmem:[#allocation2 + $0x78] sm:$0xff]
          %v680 = vld [vmem:[%s396] sm:$0x1]
          %v682 = vperm.slane %v680, 0
          %v684 = vadd.f32 %v664, %v682
          %v685 = vadd.f32 %v665, %v682
          %v686 = vadd.f32 %v666, %v682
          %v687 = vadd.f32 %v667, %v682
          %v688 = vadd.f32 %v668, %v682
          %v689 = vadd.f32 %v669, %v682
          %v690 = vadd.f32 %v670, %v682
          %v691 = vadd.f32 %v671, %v682
          %v692 = vadd.f32 %v672, %v682
          %v693 = vadd.f32 %v673, %v682
          %v694 = vadd.f32 %v674, %v682
          %v695 = vadd.f32 %v675, %v682
          %v696 = vadd.f32 %v676, %v682
          %v697 = vadd.f32 %v677, %v682
          %v698 = vadd.f32 %v678, %v682
          %v699 = vadd.f32 %v679, %v682
          %v700 = vld [vmem:[%s404] sm:$0xff]
          %v701 = vld [vmem:[%s404 + $0x8] sm:$0xff]
          %v702 = vld [vmem:[%s404 + $0x10] sm:$0xff]
          %v703 = vld [vmem:[%s404 + $0x18] sm:$0xff]
          %v704 = vld [vmem:[%s404 + $0x20] sm:$0xff]
          %v705 = vld [vmem:[%s404 + $0x28] sm:$0xff]
          %v706 = vld [vmem:[%s404 + $0x30] sm:$0xff]
          %v707 = vld [vmem:[%s404 + $0x38] sm:$0xff]
          %v708 = vld [vmem:[%s404 + $0x40] sm:$0xff]
          %v709 = vld [vmem:[%s404 + $0x48] sm:$0xff]
          %v710 = vld [vmem:[%s404 + $0x50] sm:$0xff]
          %v711 = vld [vmem:[%s404 + $0x58] sm:$0xff]
          %v712 = vld [vmem:[%s404 + $0x60] sm:$0xff]
          %v713 = vld [vmem:[%s404 + $0x68] sm:$0xff]
          %v714 = vld [vmem:[%s404 + $0x70] sm:$0xff]
          %v715 = vld [vmem:[%s404 + $0x78] sm:$0xff]
          %v716 = vadd.f32 %v684, %v700
          %v717 = vadd.f32 %v685, %v701
          %v718 = vadd.f32 %v686, %v702
          %v719 = vadd.f32 %v687, %v703
          %v720 = vadd.f32 %v688, %v704
          %v721 = vadd.f32 %v689, %v705
          %v722 = vadd.f32 %v690, %v706
          %v723 = vadd.f32 %v691, %v707
          %v724 = vadd.f32 %v692, %v708
          %v725 = vadd.f32 %v693, %v709
          %v726 = vadd.f32 %v694, %v710
          %v727 = vadd.f32 %v695, %v711
          %v728 = vadd.f32 %v696, %v712
          %v729 = vadd.f32 %v697, %v713
          %v730 = vadd.f32 %v698, %v714
          %v731 = vadd.f32 %v699, %v715
          %v732 = vmax.f32 %v716, 0.0
          %v733 = vmax.f32 %v717, 0.0
          %v734 = vmax.f32 %v718, 0.0
          %v735 = vmax.f32 %v719, 0.0
          %v736 = vmax.f32 %v720, 0.0
          %v737 = vmax.f32 %v721, 0.0
          %v738 = vmax.f32 %v722, 0.0
          %v739 = vmax.f32 %v723, 0.0
          %v740 = vmax.f32 %v724, 0.0
          %v741 = vmax.f32 %v725, 0.0
          %v742 = vmax.f32 %v726, 0.0
          %v743 = vmax.f32 %v727, 0.0
          %v744 = vmax.f32 %v728, 0.0
          %v745 = vmax.f32 %v729, 0.0
          %v746 = vmax.f32 %v730, 0.0
          %v747 = vmax.f32 %v731, 0.0
          %748 = vst [vmem:[%s413] sm:$0xff] %v732
          %749 = vst [vmem:[%s413 + $0x8] sm:$0xff] %v733
          %750 = vst [vmem:[%s413 + $0x10] sm:$0xff] %v734
          %751 = vst [vmem:[%s413 + $0x18] sm:$0xff] %v735
          %752 = vst [vmem:[%s413 + $0x20] sm:$0xff] %v736
          %753 = vst [vmem:[%s413 + $0x28] sm:$0xff] %v737
          %754 = vst [vmem:[%s413 + $0x30] sm:$0xff] %v738
          %755 = vst [vmem:[%s413 + $0x38] sm:$0xff] %v739
          %756 = vst [vmem:[%s413 + $0x40] sm:$0xff] %v740
          %757 = vst [vmem:[%s413 + $0x48] sm:$0xff] %v741
          %758 = vst [vmem:[%s413 + $0x50] sm:$0xff] %v742
          %759 = vst [vmem:[%s413 + $0x58] sm:$0xff] %v743
          %760 = vst [vmem:[%s413 + $0x60] sm:$0xff] %v744
          %761 = vst [vmem:[%s413 + $0x68] sm:$0xff] %v745
          %762 = vst [vmem:[%s413 + $0x70] sm:$0xff] %v746
          %763 = vst [vmem:[%s413 + $0x78] sm:$0xff] %v747
        $region85: #{resnet_forward.14} parent=72 // pred_fallthru
          _
        %s764 = smul.u32 16, %s20
        %p765 = scmp.lt.s32.totalorder %s764, 15
        %s766 = scalar_select %p765, %s764, 15
        %p767 = scmp.lt.s32.totalorder %s21, 0
        %s768 = scalar_select %p767, %s21, 0
        %s769 = sadd.s32 %s768, %s766
        %s770 = smul.addr %s769, 8
        %s771 = scalar_lea.vmem %s4, %s770
        // Predicated region
        $region86: #{resnet_forward.14} parent=72 // pred_check
          %p772 = pneg %p164
        $region87: #{resnet_forward.14} parent=72 // pred_check_branch
          %774 = sbr.rel (%p772) target = $region89
        $region88: #{resnet_forward.14} parent=72 // pred_region
          %s775 = smul.u32 16, %s20
        $region89: #{resnet_forward.14} parent=72 // pred_fallthru
          _
        // Predicated region
        $region90: #{resnet_forward.14} parent=72 // pred_check
          %p776 = pneg %p164
        $region91: #{resnet_forward.14} parent=72 // pred_check_branch
          %778 = sbr.rel (%p776) target = $region93
        $region92: #{resnet_forward.14} parent=72 // pred_region
          %s779 = smul.u32 16, %s20
          %p780 = scmp.lt.s32.totalorder %s779, 15
          %s781 = scalar_select %p780, %s779, 15
          %p782 = scmp.lt.s32.totalorder %s21, 0
          %s783 = scalar_select %p782, %s21, 0
          %s784 = sadd.s32 %s783, %s781
          %s785 = smul.addr %s784, 8
          %s786 = scalar_lea.vmem %s4, %s785
        $region93: #{resnet_forward.14} parent=72 // pred_fallthru
          _
      $region73: #{resnet_forward.14} parent=5 // pred_fallthru
        _
      %p787 = scmp.le.s32.totalorder 2, %s10
      // Predicated region
      $region94: #{resnet_forward.14} parent=5 // pred_check
        %p788 = pneg %p787
      $region95: #{resnet_forward.14} parent=5 // pred_check_branch
        %790 = sbr.rel (%p788) target = $region97
      $region96: #{resnet_forward.14} parent=5 // pred_region
        %s791 = ssub.s32 %s10, 2
      $region97: #{resnet_forward.14} parent=5 // pred_fallthru
        _
    $region6: #{resnet_forward.14} parent=1 // loop_footer
      %s14 = sadd.s32 1, %s10
    $region7: #{resnet_forward.14} parent=1 // loop_footer_branch
      %9 = sbr.rel target = $region3
    $region8: #{resnet_forward.14} parent=1 // loop_exit
      _

// kernel: resnet_forward.16
$region0: #{resnet_forward.16}
  #allocation0 [shape = 'u32[]', space=smem, size = 0x4, offset = 0x4, fixed_abs, tag = 'smem constant byte address 0x4 - core index']
  #allocation1 [shape = 'u32[72,128]{1,0:T(1,128)}', space=vmem, size = 0x9000, scoped, tag = 'internal scratch']
  #allocation2 [shape = 'f32[32,128]{1,0:T(8,128)}', space=vmem, size = 0x4000, scoped, tag = 'scratch operand']
  %s0 = inlined_call_operand.vmem [shape: bf16[32,640], index: 0, kind: input, shape index: {}]
  %s1 = inlined_call_operand.vmem [shape: bf16[640,128], index: 1, kind: input, shape index: {}]
  %s2 = inlined_call_operand.vmem [shape: f32[1,128], index: 2, kind: input, shape index: {}]
  %s3 = inlined_call_operand.vmem [shape: f32[32,128], index: 3, kind: output, shape index: {}]
  %s4 = sld [smem:[#allocation0]]
  $region94: #{resnet_forward.16} parent=0
    _
  %s6 = ssub.s32 1, %s4
  %s7 = scalar_select 0, %s6, %s4
  $region1: #{resnet_forward.16} parent=0
    #allocation3 [shape = 'u8[16384]{0}', space=vmem, size = 0x4000, scoped, tag = 'input window, operand 0']
    loop: start=0, step=1, limit=7
    $region2: #{resnet_forward.16} parent=1 // loop_pre_header
      _
    $region3: #{resnet_forward.16} parent=1 // loop_header
      %s9 = sphi 0, %s13
      %p10 = scmp.ge.s32.totalorder %s9, 7
      %s16 = sphi 0, %s35
      %s17 = sphi 0, %s31
      %s18 = sphi 0, %s27
      %s19 = sphi 0, %s16
      %s20 = sphi 0, %s17
      %s21 = sphi 0, %s18
      %s22 = sphi 0, %s19
      %s23 = sphi 0, %s20
      %s24 = sphi 0, %s21
      %s40 = sphi 0, %s42
      %s43 = sphi 0, %s40
      %s44 = sphi 0, %s43
      %s60 = sphi 0, %s44
      %s68 = sphi 0, %s70
      %s71 = sphi 0, %s68
      %s72 = sphi 0, %s71
      %s88 = sphi 0, %s72
      %s94 = sphi 0, %s96
      %s97 = sphi 0, %s94
      %s98 = sphi 0, %s97
      %s114 = sphi 0, %s98
      %s122 = sphi 0, %s124
      %s125 = sphi 0, %s122
      %s126 = sphi 0, %s125
      %s142 = sphi 0, %s126
    $region4: #{resnet_forward.16} parent=1 // loop_header_branch
      %12 = sbr.rel (%p10) target = $region8
    $region5: #{resnet_forward.16} parent=1 // loop_body
      %s14 = ssub.s32 %s9, 1
      %s15 = ssub.s32 %s9, 2
      %s25 = sadd.s32 1, %s18
      %p26 = scmp.ge.s32.totalorder %s25, 5
      %s27 = scalar_select %p26, 0, %s25
      %s28 = sadd.s32 1, %s17
      %s29 = scalar_select %p26, %s28, %s17
      %p30 = scmp.ge.s32.totalorder %s29, 1
      %s31 = scalar_select %p30, 0, %s29
      %s32 = sadd.s32 1, %s16
      %s33 = scalar_select %p30, %s32, %s16
      %p34 = scmp.ge.s32.totalorder %s33, 1
      %s35 = scalar_select %p34, 0, %s33
      %s36 = ssub.s32 %s16, %s35
      %s37 = ssub.s32 %s18, %s27
      %s38 = sor.u32 %s36, %s37
      %p39 = scmp.eq.s32.totalorder %s38, 0
      %s41 = sadd.s32 %s40, 1
      %s42 = scalar_select %p39, %s40, %s41
      %p45 = pneg %p39
      %p46 = scmp.eq.s32.totalorder %s9, 4
      %p47 = por %p45, %p46
      %p48 = scmp.ne.s32.totalorder %s40, %s43
      %p49 = scmp.eq.s32.totalorder %s9, 0
      %p50 = por %p48, %p49
      %p51 = scmp.ne.s32.totalorder %s40, %s43
      %p52 = scmp.eq.s32.totalorder %s14, 4
      %p53 = por %p51, %p52
      %p54 = scmp.ne.s32.totalorder %s43, %s44
      %p55 = scmp.eq.s32.totalorder %s14, 0
      %p56 = por %p54, %p55
      %p57 = scmp.ne.s32.totalorder %s43, %s44
      %p58 = scmp.eq.s32.totalorder %s15, 4
      %p59 = por %p57, %p58
      %p61 = scmp.ne.s32.totalorder %s44, %s60
      %p62 = scmp.eq.s32.totalorder %s15, 0
      %p63 = por %p61, %p62
      %s64 = ssub.s32 %s18, %s27
      %s65 = ssub.s32 %s17, %s31
      %s66 = sor.u32 %s64, %s65
      %p67 = scmp.eq.s32.totalorder %s66, 0
      %s69 = sadd.s32 %s68, 1
      %s70 = scalar_select %p67, %s68, %s69
      %p73 = pneg %p67
      %p74 = scmp.eq.s32.totalorder %s9, 4
      %p75 = por %p73, %p74
      %p76 = scmp.ne.s32.totalorder %s68, %s71
      %p77 = scmp.eq.s32.totalorder %s9, 0
      %p78 = por %p76, %p77
      %p79 = scmp.ne.s32.totalorder %s68, %s71
      %p80 = scmp.eq.s32.totalorder %s14, 4
      %p81 = por %p79, %p80
      %p82 = scmp.ne.s32.totalorder %s71, %s72
      %p83 = scmp.eq.s32.totalorder %s14, 0
      %p84 = por %p82, %p83
      %p85 = scmp.ne.s32.totalorder %s71, %s72
      %p86 = scmp.eq.s32.totalorder %s15, 4
      %p87 = por %p85, %p86
      %p89 = scmp.ne.s32.totalorder %s72, %s88
      %p90 = scmp.eq.s32.totalorder %s15, 0
      %p91 = por %p89, %p90
      %s92 = ssub.s32 %s17, %s31
      %p93 = scmp.eq.s32.totalorder %s92, 0
      %s95 = sadd.s32 %s94, 1
      %s96 = scalar_select %p93, %s94, %s95
      %p99 = pneg %p93
      %p100 = scmp.eq.s32.totalorder %s9, 4
      %p101 = por %p99, %p100
      %p102 = scmp.ne.s32.totalorder %s94, %s97
      %p103 = scmp.eq.s32.totalorder %s9, 0
      %p104 = por %p102, %p103
      %p105 = scmp.ne.s32.totalorder %s94, %s97
      %p106 = scmp.eq.s32.totalorder %s14, 4
      %p107 = por %p105, %p106
      %p108 = scmp.ne.s32.totalorder %s97, %s98
      %p109 = scmp.eq.s32.totalorder %s14, 0
      %p110 = por %p108, %p109
      %p111 = scmp.ne.s32.totalorder %s97, %s98
      %p112 = scmp.eq.s32.totalorder %s15, 4
      %p113 = por %p111, %p112
      %p115 = scmp.ne.s32.totalorder %s98, %s114
      %p116 = scmp.eq.s32.totalorder %s15, 0
      %p117 = por %p115, %p116
      %s118 = ssub.s32 %s16, %s35
      %s119 = ssub.s32 %s17, %s31
      %s120 = sor.u32 %s118, %s119
      %p121 = scmp.eq.s32.totalorder %s120, 0
      %s123 = sadd.s32 %s122, 1
      %s124 = scalar_select %p121, %s122, %s123
      %p127 = pneg %p121
      %p128 = scmp.eq.s32.totalorder %s9, 4
      %p129 = por %p127, %p128
      %p130 = scmp.ne.s32.totalorder %s122, %s125
      %p131 = scmp.eq.s32.totalorder %s9, 0
      %p132 = por %p130, %p131
      %p133 = scmp.ne.s32.totalorder %s122, %s125
      %p134 = scmp.eq.s32.totalorder %s14, 4
      %p135 = por %p133, %p134
      %p136 = scmp.ne.s32.totalorder %s125, %s126
      %p137 = scmp.eq.s32.totalorder %s14, 0
      %p138 = por %p136, %p137
      %p139 = scmp.ne.s32.totalorder %s125, %s126
      %p140 = scmp.eq.s32.totalorder %s15, 4
      %p141 = por %p139, %p140
      %p143 = scmp.ne.s32.totalorder %s126, %s142
      %p144 = scmp.eq.s32.totalorder %s15, 0
      %p145 = por %p143, %p144
      %p146 = scmp.le.s32.totalorder 1, %s9
      %p147 = scmp.lt.s32.totalorder %s9, 6
      %p148 = pnand %p146, %p147
      %p149 = pneg %p148
      // Predicated region
      $region9: #{resnet_forward.16} parent=5 // pred_check
        _
      $region10: #{resnet_forward.16} parent=5 // pred_check_branch
        %151 = sbr.rel (%p148) target = $region12
      $region11: #{resnet_forward.16} parent=5 // pred_region
        %s152 = ssub.s32 %s9, 1
        // Predicated region
        $region13: #{resnet_forward.16} parent=11 // pred_check
          %p153 = pneg %p110
        $region14: #{resnet_forward.16} parent=11 // pred_check_branch
          %155 = sbr.rel (%p153) target = $region16
        $region15: #{resnet_forward.16} parent=11 // pred_region
          %p156 = scmp.lt.s32.totalorder %s20, 0
          %s157 = scalar_select %p156, %s20, 0
          %s158 = scalar_lea.vmem %s2, %s157
        $region16: #{resnet_forward.16} parent=11 // pred_fallthru
          _
      $region12: #{resnet_forward.16} parent=5 // pred_fallthru
        _
      %p159 = scmp.lt.s32.totalorder %s9, 5
      // Predicated region
      $region17: #{resnet_forward.16} parent=5 // pred_check
        %p160 = pneg %p159
      $region18: #{resnet_forward.16} parent=5 // pred_check_branch
        %162 = sbr.rel (%p160) target = $region20
      $region19: #{resnet_forward.16} parent=5 // pred_region
        // Predicated region
        $region21: #{resnet_forward.16} parent=19 // pred_check
          %p163 = pneg %p50
        $region22: #{resnet_forward.16} parent=19 // pred_check_branch
          %165 = sbr.rel (%p163) target = $region24
        $region23: #{resnet_forward.16} parent=19 // pred_region
          %s166 = sand.u32 %s40, 1
          %s167 = sand.u32 %s40, 1
          %s168 = smul.addr %s167, 16
          %s169 = scalar_lea.vmem [#allocation3], %s168
          %s170 = smul.u32 4, %s16
          %s171 = smul.addr %s170, 5
          %s172 = sadd.s32 %s18, %s171
          %s173 = smul.addr %s172, 4
          %s174 = scalar_lea.vmem %s0, %s173
          // Predicated region
          $region25: #{resnet_forward.16} parent=23 // pred_check
            _
          $region26: #{resnet_forward.16} parent=23 // pred_check_branch
            %176 = sbr.rel (0) target = $region28
          $region27: #{resnet_forward.16} parent=23 // pred_region
            // Predicated region
            $region29: #{resnet_forward.16} parent=27 // pred_check
              _
            $region30: #{resnet_forward.16} parent=27 // pred_check_branch
              %178 = sbr.rel target = $region32
            $region31: #{resnet_forward.16} parent=27 // pred_region
              // Predicated region
              $region44: #{resnet_forward.16} parent=31 // pred_check
                _
              $region45: #{resnet_forward.16} parent=31 // pred_check_branch
                %200 = sbr.rel (0) target = $region47
              $region46: #{resnet_forward.16} parent=31 // pred_region
                loop: start=0, step=1, limit=1
                $region48: #{resnet_forward.16} parent=46 // loop_pre_header
                  _
                $region49: #{resnet_forward.16} parent=46 // loop_header
                  %s202 = sphi 0, %s206
                  %p203 = scmp.ge.s32.totalorder %s202, 1
                  %s207 = sphi %s174, %s174
                  %s208 = sphi %s169, %s169
                $region50: #{resnet_forward.16} parent=46 // loop_header_branch
                  %205 = sbr.rel (%p203) target = $region54
                $region51: #{resnet_forward.16} parent=46 // loop_body
                  _
                $region52: #{resnet_forward.16} parent=46 // loop_footer
                  %s206 = sadd.s32 1, %s202
                $region53: #{resnet_forward.16} parent=46 // loop_footer_branch
                  %201 = sbr.rel target = $region49
                $region54: #{resnet_forward.16} parent=46 // loop_exit
                  _
                %s210 = ssub.s32 16, 1
                loop: start=0, step=1, limit=1
                $region55: #{resnet_forward.16} parent=46 // loop_pre_header
                  _
                $region56: #{resnet_forward.16} parent=46 // loop_header
                  %s212 = sphi 0, %s216
                  %p213 = scmp.ge.s32.totalorder %s212, 1
                  %s217 = sphi %s174, %s174
                  %s218 = sphi %s169, %s169
                $region57: #{resnet_forward.16} parent=46 // loop_header_branch
                  %215 = sbr.rel (%p213) target = $region61
                $region58: #{resnet_forward.16} parent=46 // loop_body
                  %v219 = vld [vmem:[%s217] sm:%s210]
                  %220 = vst [vmem:[%s218] sm:%s210] %v219
                  %v221 = vld [vmem:[%s217 + $0x14] sm:%s210]
                  %222 = vst [vmem:[%s218 + $0x4] sm:%s210] %v221
                  %v223 = vld [vmem:[%s217 + $0x28] sm:%s210]
                  %224 = vst [vmem:[%s218 + $0x8] sm:%s210] %v223
                  %v225 = vld [vmem:[%s217 + $0x3c] sm:%s210]
                  %226 = vst [vmem:[%s218 + $0xc] sm:%s210] %v225
                $region59: #{resnet_forward.16} parent=46 // loop_footer
                  %s216 = sadd.s32 1, %s212
                $region60: #{resnet_forward.16} parent=46 // loop_footer_branch
                  %211 = sbr.rel target = $region56
                $region61: #{resnet_forward.16} parent=46 // loop_exit
                  _
              $region47: #{resnet_forward.16} parent=31 // pred_fallthru
                _
            $region32: #{resnet_forward.16} parent=27 // pred_fallthru
              _
            // Predicated region
            $region33: #{resnet_forward.16} parent=27 // pred_check
              _
            $region34: #{resnet_forward.16} parent=27 // pred_check_branch
              %180 = sbr.rel (0) target = $region36
            $region35: #{resnet_forward.16} parent=27 // pred_region
              %s182 = ssub.s32 16, 1
              loop: start=0, step=1, limit=1
              $region37: #{resnet_forward.16} parent=35 // loop_pre_header
                _
              $region38: #{resnet_forward.16} parent=35 // loop_header
                %s184 = sphi 0, %s188
                %p185 = scmp.ge.s32.totalorder %s184, 1
                %s189 = sphi %s174, %s174
                %s190 = sphi %s169, %s169
              $region39: #{resnet_forward.16} parent=35 // loop_header_branch
                %187 = sbr.rel (%p185) target = $region43
              $region40: #{resnet_forward.16} parent=35 // loop_body
                %v191 = vld [vmem:[%s189] sm:%s182]
                %192 = vst [vmem:[%s190] sm:%s182] %v191
                %v193 = vld [vmem:[%s189 + $0x14] sm:%s182]
                %194 = vst [vmem:[%s190 + $0x4] sm:%s182] %v193
                %v195 = vld [vmem:[%s189 + $0x28] sm:%s182]
                %196 = vst [vmem:[%s190 + $0x8] sm:%s182] %v195
                %v197 = vld [vmem:[%s189 + $0x3c] sm:%s182]
                %198 = vst [vmem:[%s190 + $0xc] sm:%s182] %v197
              $region41: #{resnet_forward.16} parent=35 // loop_footer
                %s188 = sadd.s32 1, %s184
              $region42: #{resnet_forward.16} parent=35 // loop_footer_branch
                %183 = sbr.rel target = $region38
              $region43: #{resnet_forward.16} parent=35 // loop_exit
                _
            $region36: #{resnet_forward.16} parent=27 // pred_fallthru
              _
          $region28: #{resnet_forward.16} parent=23 // pred_fallthru
            _
          %227 = vnop
        $region24: #{resnet_forward.16} parent=19 // pred_fallthru
          _
        // Predicated region
        $region62: #{resnet_forward.16} parent=19 // pred_check
          %p228 = pneg %p78
        $region63: #{resnet_forward.16} parent=19 // pred_check_branch
          %230 = sbr.rel (%p228) target = $region65
        $region64: #{resnet_forward.16} parent=19 // pred_region
          %s231 = smul.u32 16, %s18
          %p232 = scmp.lt.s32.totalorder %s231, 79
          %s233 = scalar_select %p232, %s231, 79
          %p234 = scmp.lt.s32.totalorder %s17, 0
          %s235 = scalar_select %p234, %s17, 0
          %s236 = sadd.s32 %s235, %s233
          %s237 = smul.addr %s236, 4
          %s238 = scalar_lea.vmem %s1, %s237
          %s239 = smul.u32 16, %s18
        $region65: #{resnet_forward.16} parent=19 // pred_fallthru
          _
      $region20: #{resnet_forward.16} parent=5 // pred_fallthru
        _
      %p240 = scmp.le.s32.totalorder 1, %s9
      %p241 = scmp.lt.s32.totalorder %s9, 6
      %p242 = pnand %p240, %p241
      %p243 = pneg %p242
      // Predicated region
      $region66: #{resnet_forward.16} parent=5 // pred_check
        _
      $region67: #{resnet_forward.16} parent=5 // pred_check_branch
        %245 = sbr.rel (%p242) target = $region69
      $region68: #{resnet_forward.16} parent=5 // pred_region
        %s246 = ssub.s32 %s9, 1
        %s247 = sand.u32 %s43, 1
        %s248 = sand.u32 %s43, 1
        %s249 = smul.addr %s248, 16
        %s250 = scalar_lea.vmem [#allocation3], %s249
        // Predicated region
        $region70: #{resnet_forward.16} parent=68 // pred_check
          %p251 = pneg %p56
        $region71: #{resnet_forward.16} parent=68 // pred_check_branch
          %253 = sbr.rel (%p251) target = $region73
        $region72: #{resnet_forward.16} parent=68 // pred_region
          _
        $region73: #{resnet_forward.16} parent=68 // pred_fallthru
          _
        %s254 = sand.u32 %s43, 1
        %s255 = sand.u32 %s43, 1
        %s256 = smul.addr %s255, 16
        %s257 = scalar_lea.vmem [#allocation3], %s256
        %p258 = pneg %p56
        %p259 = pneg %p53
        %s260 = smul.u32 16, %s21
        %p261 = scmp.lt.s32.totalorder %s260, 79
        %s262 = scalar_select %p261, %s260, 79
        %p263 = scmp.lt.s32.totalorder %s20, 0
        %s264 = scalar_select %p263, %s20, 0
        %s265 = sadd.s32 %s264, %s262
        %s266 = smul.addr %s265, 4
        %s267 = scalar_lea.vmem %s1, %s266
        %p268 = pneg %p84
        %p269 = pneg %p81
        %p270 = scmp.lt.s32.totalorder %s20, 0
        %s271 = scalar_select %p270, %s20, 0
        %s272 = scalar_lea.vmem %s2, %s271
        %p273 = pneg %p110
        %p274 = pneg %p107
        %p275 = pneg %p138
        %p276 = pneg %p135
        %s277 = smul.u32 4, %s19
        %p278 = scmp.lt.s32.totalorder %s277, 3
        %s279 = scalar_select %p278, %s277, 3
        %p280 = scmp.lt.s32.totalorder %s20, 0
        %s281 = scalar_select %p280, %s20, 0
        %s282 = sadd.s32 %s281, %s279
        %s283 = smul.addr %s282, 8
        %s284 = scalar_lea.vmem %s3, %s283
        %s285 = smul.u32 4, %s19
        %s286 = smul.u32 16, %s21
        %p287 = scmp.lt.s32.totalorder %s286, 79
        %s288 = scalar_select %p287, %s286, 79
        %p289 = scmp.lt.s32.totalorder %s20, 0
        %s290 = scalar_select %p289, %s20, 0
        %s291 = sadd.s32 %s290, %s288
        %s292 = smul.addr %s291, 4
        %s293 = scalar_lea.vmem %s1, %s292
        %s294 = smul.u32 16, %s21
        %p295 = scmp.lt.s32.totalorder %s20, 0
        %s296 = scalar_select %p295, %s20, 0
        %s297 = scalar_lea.vmem %s2, %s296
        %s298 = smul.u32 4, %s19
        %p299 = scmp.lt.s32.totalorder %s298, 3
        %s300 = scalar_select %p299, %s298, 3
        %p301 = scmp.lt.s32.totalorder %s20, 0
        %s302 = scalar_select %p301, %s20, 0
        %s303 = sadd.s32 %s302, %s300
        %s304 = smul.addr %s303, 8
        %s305 = scalar_lea.vmem %s3, %s304
        %s306 = smul.u32 4, %s19
        %p307 = scmp.eq.s32.totalorder %s21, 0
        // Predicated region
        $region74: #{resnet_forward.16} parent=68 // pred_check
          %p308 = pneg %p307
        $region75: #{resnet_forward.16} parent=68 // pred_check_branch
          %310 = sbr.rel (%p308) target = $region77
        $region76: #{resnet_forward.16} parent=68 // pred_region
          %311 = vst [vmem:[#allocation2] sm:$0xff] 0.0
          %312 = vst [vmem:[#allocation2 + $0x8] sm:$0xff] 0.0
          %313 = vst [vmem:[#allocation2 + $0x10] sm:$0xff] 0.0
          %314 = vst [vmem:[#allocation2 + $0x18] sm:$0xff] 0.0
        $region77: #{resnet_forward.16} parent=68 // pred_fallthru
          _
        %v315 = vld [vmem:[#allocation2] sm:$0xff]
        %v316 = vld [vmem:[#allocation2 + $0x8] sm:$0xff]
        %v317 = vld [vmem:[#allocation2 + $0x10] sm:$0xff]
        %v318 = vld [vmem:[#allocation2 + $0x18] sm:$0xff]
        %v319 = vld [vmem:[%s250] sm:$0xf]
        %v320 = vld [vmem:[%s250 + $0x4] sm:$0xf]
        %v321 = vld [vmem:[%s250 + $0x8] sm:$0xf]
        %v322 = vld [vmem:[%s250 + $0xc] sm:$0xf]
        %v323 = vld [vmem:[%s293] sm:$0xf]
        %v324 = vld [vmem:[%s293 + $0x4] sm:$0xf]
        %v325 = vld [vmem:[%s293 + $0x8] sm:$0xf]
        %v326 = vld [vmem:[%s293 + $0xc] sm:$0xf]
        %v327 = vld [vmem:[%s293 + $0x10] sm:$0xf]
        %v328 = vld [vmem:[%s293 + $0x14] sm:$0xf]
        %v329 = vld [vmem:[%s293 + $0x18] sm:$0xf]
        %v330 = vld [vmem:[%s293 + $0x1c] sm:$0xf]
        %v331 = vld [vmem:[%s293 + $0x20] sm:$0xf]
        %v332 = vld [vmem:[%s293 + $0x24] sm:$0xf]
        %v333 = vld [vmem:[%s293 + $0x28] sm:$0xf]
        %v334 = vld [vmem:[%s293 + $0x2c] sm:$0xf]
        %v335 = vld [vmem:[%s293 + $0x30] sm:$0xf]
        %v336 = vld [vmem:[%s293 + $0x34] sm:$0xf]
        %v337 = vld [vmem:[%s293 + $0x38] sm:$0xf]
        %v338 = vld [vmem:[%s293 + $0x3c] sm:$0xf]
        %v343 = vunpack.c.l.b16 %v319
        %v344 = vunpack.c.l.b16 %v320
        %v345 = vunpack.c.l.b16 %v321
        %v346 = vunpack.c.l.b16 %v322
        %v347 = vpack.c.b16 %v344, %v343
        %v348 = vpack.c.b16 %v346, %v345
        %v367 = vunpack.c.l.b16 %v323
        %v368 = vunpack.c.l.b16 %v324
        %v369 = vunpack.c.l.b16 %v325
        %v370 = vunpack.c.l.b16 %v326
        %v371 = vunpack.c.l.b16 %v327
        %v372 = vunpack.c.l.b16 %v328
        %v373 = vunpack.c.l.b16 %v329
        %v374 = vunpack.c.l.b16 %v330
        %v375 = vunpack.c.l.b16 %v331
        %v376 = vunpack.c.l.b16 %v332
        %v377 = vunpack.c.l.b16 %v333
        %v378 = vunpack.c.l.b16 %v334
        %v379 = vunpack.c.l.b16 %v335
        %v380 = vunpack.c.l.b16 %v336
        %v381 = vunpack.c.l.b16 %v337
        %v382 = vunpack.c.l.b16 %v338
        %v383 = vpack.c.b16 %v368, %v367
        %v384 = vpack.c.b16 %v370, %v369
        %v385 = vpack.c.b16 %v372, %v371
        %v386 = vpack.c.b16 %v374, %v373
        %v387 = vpack.c.b16 %v376, %v375
        %v388 = vpack.c.b16 %v378, %v377
        %v389 = vpack.c.b16 %v380, %v379
        %v390 = vpack.c.b16 %v382, %v381
        %399 = vmatpush.bf16.msra.mxu0 %v390
        %400 = vmatpush.bf16.msra.mxu0 %v389
        %401 = vmatpush.bf16.msra.mxu0 %v388
        %402 = vmatpush.bf16.msra.mxu0 %v387
        %403 = vmatpush.bf16.msra.mxu0 %v386
        %404 = vmatpush.bf16.msra.mxu0 %v385
        %405 = vmatpush.bf16.msra.mxu0 %v384
        %406 = vmatpush.bf16.msra.mxu0 %v383
        %407 = vmatmul.bf16.gmra.mxu0 %v347
        %v408 = vpop.f32.mrf.mxu0
        %v409 = vadd.f32 0.0, %v408
        %v410 = vpop.f32.mrf.mxu0
        %v411 = vadd.f32 0.0, %v410
        %412 = vmatmul.bf16.gmra.mxu0 %v348
        %v413 = vpop.f32.mrf.mxu0
        %v414 = vadd.f32 0.0, %v413
        %v415 = vpop.f32.mrf.mxu0
        %v416 = vadd.f32 0.0, %v415
        %417 = vdwg.mxu0
        %v418 = vadd.f32 %v315, %v409
        %v419 = vadd.f32 %v316, %v411
        %v420 = vadd.f32 %v317, %v414
        %v421 = vadd.f32 %v318, %v416
        %422 = vst [vmem:[#allocation2] sm:$0xff] %v418
        %423 = vst [vmem:[#allocation2 + $0x8] sm:$0xff] %v419
        %424 = vst [vmem:[#allocation2 + $0x10] sm:$0xff] %v420
        %425 = vst [vmem:[#allocation2 + $0x18] sm:$0xff] %v421
        %p426 = scmp.eq.s32.totalorder %s21, 4
        // Predicated region
        $region78: #{resnet_forward.16} parent=68 // pred_check
          %p427 = pneg %p426
        $region79: #{resnet_forward.16} parent=68 // pred_check_branch
          %429 = sbr.rel (%p427) target = $region81
        $region80: #{resnet_forward.16} parent=68 // pred_region
          %v430 = vld [vmem:[#allocation2] sm:$0xff]
          %v431 = vld [vmem:[#allocation2 + $0x8] sm:$0xff]
          %v432 = vld [vmem:[#allocation2 + $0x10] sm:$0xff]
          %v433 = vld [vmem:[#allocation2 + $0x18] sm:$0xff]
          %v434 = vld [vmem:[%s297] sm:$0x1]
          %v436 = vperm.slane %v434, 0
          %v438 = vadd.f32 %v430, %v436
          %v439 = vadd.f32 %v431, %v436
          %v440 = vadd.f32 %v432, %v436
          %v441 = vadd.f32 %v433, %v436
          %v442 = vmax.f32 %v438, 0.0
          %v443 = vmax.f32 %v439, 0.0
          %v444 = vmax.f32 %v440, 0.0
          %v445 = vmax.f32 %v441, 0.0
          %446 = vst [vmem:[%s305] sm:$0xff] %v442
          %447 = vst [vmem:[%s305 + $0x8] sm:$0xff] %v443
          %448 = vst [vmem:[%s305 + $0x10] sm:$0xff] %v444
          %449 = vst [vmem:[%s305 + $0x18] sm:$0xff] %v445
        $region81: #{resnet_forward.16} parent=68 // pred_fallthru
          _
        %s450 = smul.u32 4, %s19
        %p451 = scmp.lt.s32.totalorder %s450, 3
        %s452 = scalar_select %p451, %s450, 3
        %p453 = scmp.lt.s32.totalorder %s20, 0
        %s454 = scalar_select %p453, %s20, 0
        %s455 = sadd.s32 %s454, %s452
        %s456 = smul.addr %s455, 8
        %s457 = scalar_lea.vmem %s3, %s456
        // Predicated region
        $region82: #{resnet_forward.16} parent=68 // pred_check
          %p458 = pneg %p135
        $region83: #{resnet_forward.16} parent=68 // pred_check_branch
          %460 = sbr.rel (%p458) target = $region85
        $region84: #{resnet_forward.16} parent=68 // pred_region
          %s461 = smul.u32 4, %s19
        $region85: #{resnet_forward.16} parent=68 // pred_fallthru
          _
        // Predicated region
        $region86: #{resnet_forward.16} parent=68 // pred_check
          %p462 = pneg %p135
        $region87: #{resnet_forward.16} parent=68 // pred_check_branch
          %464 = sbr.rel (%p462) target = $region89
        $region88: #{resnet_forward.16} parent=68 // pred_region
          %s465 = smul.u32 4, %s19
          %p466 = scmp.lt.s32.totalorder %s465, 3
          %s467 = scalar_select %p466, %s465, 3
          %p468 = scmp.lt.s32.totalorder %s20, 0
          %s469 = scalar_select %p468, %s20, 0
          %s470 = sadd.s32 %s469, %s467
          %s471 = smul.addr %s470, 8
          %s472 = scalar_lea.vmem %s3, %s471
        $region89: #{resnet_forward.16} parent=68 // pred_fallthru
          _
      $region69: #{resnet_forward.16} parent=5 // pred_fallthru
        _
      %p473 = scmp.le.s32.totalorder 2, %s9
      // Predicated region
      $region90: #{resnet_forward.16} parent=5 // pred_check
        %p474 = pneg %p473
      $region91: #{resnet_forward.16} parent=5 // pred_check_branch
        %476 = sbr.rel (%p474) target = $region93
      $region92: #{resnet_forward.16} parent=5 // pred_region
        %s477 = ssub.s32 %s9, 2
      $region93: #{resnet_forward.16} parent=5 // pred_fallthru
        _
    $region6: #{resnet_forward.16} parent=1 // loop_footer
      %s13 = sadd.s32 1, %s9
    $region7: #{resnet_forward.16} parent=1 // loop_footer_branch
      %8 = sbr.rel target = $region3
    $region8: #{resnet_forward.16} parent=1 // loop_exit
      _

// kernel: resnet_forward.17
$region0: #{resnet_forward.17}
  #allocation0 [shape = 'u32[]', space=smem, size = 0x4, offset = 0x4, fixed_abs, tag = 'smem constant byte address 0x4 - core index']
  #allocation1 [shape = 'u32[72,128]{1,0:T(1,128)}', space=vmem, size = 0x9000, scoped, tag = 'internal scratch']
  #allocation2 [shape = 'f32[32,128]{1,0:T(8,128)}', space=vmem, size = 0x4000, scoped, tag = 'scratch operand']
  %s0 = inlined_call_operand.vmem [shape: bf16[32,1152], index: 0, kind: input, shape index: {}]
  %s1 = inlined_call_operand.vmem [shape: bf16[1152,128], index: 1, kind: input, shape index: {}]
  %s2 = inlined_call_operand.vmem [shape: f32[1,128], index: 2, kind: input, shape index: {}]
  %s3 = inlined_call_operand.vmem [shape: f32[32,128], index: 3, kind: input, shape index: {}]
  %s4 = inlined_call_operand.vmem [shape: f32[32,128], index: 4, kind: output, shape index: {}]
  %s5 = sld [smem:[#allocation0]]
  $region98: #{resnet_forward.17} parent=0
    _
  %s7 = ssub.s32 1, %s5
  %s8 = scalar_select 0, %s7, %s5
  $region1: #{resnet_forward.17} parent=0
    #allocation3 [shape = 'u8[16384]{0}', space=vmem, size = 0x4000, scoped, tag = 'input window, operand 0']
    loop: start=0, step=1, limit=11
    $region2: #{resnet_forward.17} parent=1 // loop_pre_header
      _
    $region3: #{resnet_forward.17} parent=1 // loop_header
      %s10 = sphi 0, %s14
      %p11 = scmp.ge.s32.totalorder %s10, 11
      %s17 = sphi 0, %s36
      %s18 = sphi 0, %s32
      %s19 = sphi 0, %s28
      %s20 = sphi 0, %s17
      %s21 = sphi 0, %s18
      %s22 = sphi 0, %s19
      %s23 = sphi 0, %s20
      %s24 = sphi 0, %s21
      %s25 = sphi 0, %s22
      %s41 = sphi 0, %s43
      %s44 = sphi 0, %s41
      %s45 = sphi 0, %s44
      %s61 = sphi 0, %s45
      %s69 = sphi 0, %s71
      %s72 = sphi 0, %s69
      %s73 = sphi 0, %s72
      %s89 = sphi 0, %s73
      %s95 = sphi 0, %s97
      %s98 = sphi 0, %s95
      %s99 = sphi 0, %s98
      %s115 = sphi 0, %s99
      %s123 = sphi 0, %s125
      %s126 = sphi 0, %s123
      %s127 = sphi 0, %s126
      %s143 = sphi 0, %s127
      %s151 = sphi 0, %s153
      %s154 = sphi 0, %s151
      %s155 = sphi 0, %s154
      %s171 = sphi 0, %s155
    $region4: #{resnet_forward.17} parent=1 // loop_header_branch
      %13 = sbr.rel (%p11) target = $region8
    $region5: #{resnet_forward.17} parent=1 // loop_body
      %s15 = ssub.s32 %s10, 1
      %s16 = ssub.s32 %s10, 2
      %s26 = sadd.s32 1, %s19
      %p27 = scmp.ge.s32.totalorder %s26, 9
      %s28 = scalar_select %p27, 0, %s26
      %s29 = sadd.s32 1, %s18
      %s30 = scalar_select %p27, %s29, %s18
      %p31 = scmp.ge.s32.totalorder %s30, 1
      %s32 = scalar_select %p31, 0, %s30
      %s33 = sadd.s32 1, %s17
      %s34 = scalar_select %p31, %s33, %s17
      %p35 = scmp.ge.s32.totalorder %s34, 1
      %s36 = scalar_select %p35, 0, %s34
      %s37 = ssub.s32 %s17, %s36
      %s38 = ssub.s32 %s19, %s28
      %s39 = sor.u32 %s37, %s38
      %p40 = scmp.eq.s32.totalorder %s39, 0
      %s42 = sadd.s32 %s41, 1
      %s43 = scalar_select %p40, %s41, %s42
      %p46 = pneg %p40
      %p47 = scmp.eq.s32.totalorder %s10, 8
      %p48 = por %p46, %p47
      %p49 = scmp.ne.s32.totalorder %s41, %s44
      %p50 = scmp.eq.s32.totalorder %s10, 0
      %p51 = por %p49, %p50
      %p52 = scmp.ne.s32.totalorder %s41, %s44
      %p53 = scmp.eq.s32.totalorder %s15, 8
      %p54 = por %p52, %p53
      %p55 = scmp.ne.s32.totalorder %s44, %s45
      %p56 = scmp.eq.s32.totalorder %s15, 0
      %p57 = por %p55, %p56
      %p58 = scmp.ne.s32.totalorder %s44, %s45
      %p59 = scmp.eq.s32.totalorder %s16, 8
      %p60 = por %p58, %p59
      %p62 = scmp.ne.s32.totalorder %s45, %s61
      %p63 = scmp.eq.s32.totalorder %s16, 0
      %p64 = por %p62, %p63
      %s65 = ssub.s32 %s19, %s28
      %s66 = ssub.s32 %s18, %s32
      %s67 = sor.u32 %s65, %s66
      %p68 = scmp.eq.s32.totalorder %s67, 0
      %s70 = sadd.s32 %s69, 1
      %s71 = scalar_select %p68, %s69, %s70
      %p74 = pneg %p68
      %p75 = scmp.eq.s32.totalorder %s10, 8
      %p76 = por %p74, %p75
      %p77 = scmp.ne.s32.totalorder %s69, %s72
      %p78 = scmp.eq.s32.totalorder %s10, 0
      %p79 = por %p77, %p78
      %p80 = scmp.ne.s32.totalorder %s69, %s72
      %p81 = scmp.eq.s32.totalorder %s15, 8
      %p82 = por %p80, %p81
      %p83 = scmp.ne.s32.totalorder %s72, %s73
      %p84 = scmp.eq.s32.totalorder %s15, 0
      %p85 = por %p83, %p84
      %p86 = scmp.ne.s32.totalorder %s72, %s73
      %p87 = scmp.eq.s32.totalorder %s16, 8
      %p88 = por %p86, %p87
      %p90 = scmp.ne.s32.totalorder %s73, %s89
      %p91 = scmp.eq.s32.totalorder %s16, 0
      %p92 = por %p90, %p91
      %s93 = ssub.s32 %s18, %s32
      %p94 = scmp.eq.s32.totalorder %s93, 0
      %s96 = sadd.s32 %s95, 1
      %s97 = scalar_select %p94, %s95, %s96
      %p100 = pneg %p94
      %p101 = scmp.eq.s32.totalorder %s10, 8
      %p102 = por %p100, %p101
      %p103 = scmp.ne.s32.totalorder %s95, %s98
      %p104 = scmp.eq.s32.totalorder %s10, 0
      %p105 = por %p103, %p104
      %p106 = scmp.ne.s32.totalorder %s95, %s98
      %p107 = scmp.eq.s32.totalorder %s15, 8
      %p108 = por %p106, %p107
      %p109 = scmp.ne.s32.totalorder %s98, %s99
      %p110 = scmp.eq.s32.totalorder %s15, 0
      %p111 = por %p109, %p110
      %p112 = scmp.ne.s32.totalorder %s98, %s99
      %p113 = scmp.eq.s32.totalorder %s16, 8
      %p114 = por %p112, %p113
      %p116 = scmp.ne.s32.totalorder %s99, %s115
      %p117 = scmp.eq.s32.totalorder %s16, 0
      %p118 = por %p116, %p117
      %s119 = ssub.s32 %s17, %s36
      %s120 = ssub.s32 %s18, %s32
      %s121 = sor.u32 %s119, %s120
      %p122 = scmp.eq.s32.totalorder %s121, 0
      %s124 = sadd.s32 %s123, 1
      %s125 = scalar_select %p122, %s123, %s124
      %p128 = pneg %p122
      %p129 = scmp.eq.s32.totalorder %s10, 8
      %p130 = por %p128, %p129
      %p131 = scmp.ne.s32.totalorder %s123, %s126
      %p132 = scmp.eq.s32.totalorder %s10, 0
      %p133 = por %p131, %p132
      %p134 = scmp.ne.s32.totalorder %s123, %s126
      %p135 = scmp.eq.s32.totalorder %s15, 8
      %p136 = por %p134, %p135
      %p137 = scmp.ne.s32.totalorder %s126, %s127
      %p138 = scmp.eq.s32.totalorder %s15, 0
      %p139 = por %p137, %p138
      %p140 = scmp.ne.s32.totalorder %s126, %s127
      %p141 = scmp.eq.s32.totalorder %s16, 8
      %p142 = por %p140, %p141
      %p144 = scmp.ne.s32.totalorder %s127, %s143
      %p145 = scmp.eq.s32.totalorder %s16, 0
      %p146 = por %p144, %p145
      %s147 = ssub.s32 %s17, %s36
      %s148 = ssub.s32 %s18, %s32
      %s149 = sor.u32 %s147, %s148
      %p150 = scmp.eq.s32.totalorder %s149, 0
      %s152 = sadd.s32 %s151, 1
      %s153 = scalar_select %p150, %s151, %s152
      %p156 = pneg %p150
      %p157 = scmp.eq.s32.totalorder %s10, 8
      %p158 = por %p156, %p157
      %p159 = scmp.ne.s32.totalorder %s151, %s154
      %p160 = scmp.eq.s32.totalorder %s10, 0
      %p161 = por %p159, %p160
      %p162 = scmp.ne.s32.totalorder %s151, %s154
      %p163 = scmp.eq.s32.totalorder %s15, 8
      %p164 = por %p162, %p163
      %p165 = scmp.ne.s32.totalorder %s154, %s155
      %p166 = scmp.eq.s32.totalorder %s15, 0
      %p167 = por %p165, %p166
      %p168 = scmp.ne.s32.totalorder %s154, %s155
      %p169 = scmp.eq.s32.totalorder %s16, 8
      %p170 = por %p168, %p169
      %p172 = scmp.ne.s32.totalorder %s155, %s171
      %p173 = scmp.eq.s32.totalorder %s16, 0
      %p174 = por %p172, %p173
      %p175 = scmp.le.s32.totalorder 1, %s10
      %p176 = scmp.lt.s32.totalorder %s10, 10
      %p177 = pnand %p175, %p176
      %p178 = pneg %p177
      // Predicated region
      $region9: #{resnet_forward.17} parent=5 // pred_check
        _
      $region10: #{resnet_forward.17} parent=5 // pred_check_branch
        %180 = sbr.rel (%p177) target = $region12
      $region11: #{resnet_forward.17} parent=5 // pred_region
        %s181 = ssub.s32 %s10, 1
        // Predicated region
        $region13: #{resnet_forward.17} parent=11 // pred_check
          %p182 = pneg %p111
        $region14: #{resnet_forward.17} parent=11 // pred_check_branch
          %184 = sbr.rel (%p182) target = $region16
        $region15: #{resnet_forward.17} parent=11 // pred_region
          %p185 = scmp.lt.s32.totalorder %s21, 0
          %s186 = scalar_select %p185, %s21, 0
          %s187 = scalar_lea.vmem %s2, %s186
        $region16: #{resnet_forward.17} parent=11 // pred_fallthru
          _
        // Predicated region
        $region17: #{resnet_forward.17} parent=11 // pred_check
          %p188 = pneg %p139
        $region18: #{resnet_forward.17} parent=11 // pred_check_branch
          %190 = sbr.rel (%p188) target = $region20
        $region19: #{resnet_forward.17} parent=11 // pred_region
          %s191 = smul.u32 4, %s20
          %p192 = scmp.lt.s32.totalorder %s191, 3
          %s193 = scalar_select %p192, %s191, 3
          %p194 = scmp.lt.s32.totalorder %s21, 0
          %s195 = scalar_select %p194, %s21, 0
          %s196 = sadd.s32 %s195, %s193
          %s197 = smul.addr %s196, 8
          %s198 = scalar_lea.vmem %s3, %s197
          %s199 = smul.u32 4, %s20
        $region20: #{resnet_forward.17} parent=11 // pred_fallthru
          _
      $region12: #{resnet_forward.17} parent=5 // pred_fallthru
        _
      %p200 = scmp.lt.s32.totalorder %s10, 9
      // Predicated region
      $region21: #{resnet_forward.17} parent=5 // pred_check
        %p201 = pneg %p200
      $region22: #{resnet_forward.17} parent=5 // pred_check_branch
        %203 = sbr.rel (%p201) target = $region24
      $region23: #{resnet_forward.17} parent=5 // pred_region
        // Predicated region
        $region25: #{resnet_forward.17} parent=23 // pred_check
          %p204 = pneg %p51
        $region26: #{resnet_forward.17} parent=23 // pred_check_branch
          %206 = sbr.rel (%p204) target = $region28
        $region27: #{resnet_forward.17} parent=23 // pred_region
          %s207 = sand.u32 %s41, 1
          %s208 = sand.u32 %s41, 1
          %s209 = smul.addr %s208, 16
          %s210 = scalar_lea.vmem [#allocation3], %s209
          %s211 = smul.u32 4, %s17
          %s212 = smul.addr %s211, 9
          %s213 = sadd.s32 %s19, %s212
          %s214 = smul.addr %s213, 4
          %s215 = scalar_lea.vmem %s0, %s214
          // Predicated region
          $region29: #{resnet_forward.17} parent=27 // pred_check
            _
          $region30: #{resnet_forward.17} parent=27 // pred_check_branch
            %217 = sbr.rel (0) target = $region32
          $region31: #{resnet_forward.17} parent=27 // pred_region
            // Predicated region
            $region33: #{resnet_forward.17} parent=31 // pred_check
              _
            $region34: #{resnet_forward.17} parent=31 // pred_check_branch
              %219 = sbr.rel target = $region36
            $region35: #{resnet_forward.17} parent=31 // pred_region
              // Predicated region
              $region48: #{resnet_forward.17} parent=35 // pred_check
                _
              $region49: #{resnet_forward.17} parent=35 // pred_check_branch
                %241 = sbr.rel (0) target = $region51
              $region50: #{resnet_forward.17} parent=35 // pred_region
                loop: start=0, step=1, limit=1
                $region52: #{resnet_forward.17} parent=50 // loop_pre_header
                  _
                $region53: #{resnet_forward.17} parent=50 // loop_header
                  %s243 = sphi 0, %s247
                  %p244 = scmp.ge.s32.totalorder %s243, 1
                  %s248 = sphi %s215, %s215
                  %s249 = sphi %s210, %s210
                $region54: #{resnet_forward.17} parent=50 // loop_header_branch
                  %246 = sbr.rel (%p244) target = $region58
                $region55: #{resnet_forward.17} parent=50 // loop_body
                  _
                $region56: #{resnet_forward.17} parent=50 // loop_footer
                  %s247 = sadd.s32 1, %s243
                $region57: #{resnet_forward.17} parent=50 // loop_footer_branch
                  %242 = sbr.rel target = $region53
                $region58: #{resnet_forward.17} parent=50 // loop_exit
                  _
                %s251 = ssub.s32 16, 1
                loop: start=0, step=1, limit=1
                $region59: #{resnet_forward.17} parent=50 // loop_pre_header
                  _
                $region60: #{resnet_forward.17} parent=50 // loop_header
                  %s253 = sphi 0, %s257
                  %p254 = scmp.ge.s32.totalorder %s253, 1
                  %s258 = sphi %s215, %s215
                  %s259 = sphi %s210, %s210
                $region61: #{resnet_forward.17} parent=50 // loop_header_branch
                  %256 = sbr.rel (%p254) target = $region65
                $region62: #{resnet_forward.17} parent=50 // loop_body
                  %v260 = vld [vmem:[%s258] sm:%s251]
                  %261 = vst [vmem:[%s259] sm:%s251] %v260
                  %v262 = vld [vmem:[%s258 + $0x24] sm:%s251]
                  %263 = vst [vmem:[%s259 + $0x4] sm:%s251] %v262
                  %v264 = vld [vmem:[%s258 + $0x48] sm:%s251]
                  %265 = vst [vmem:[%s259 + $0x8] sm:%s251] %v264
                  %v266 = vld [vmem:[%s258 + $0x6c] sm:%s251]
                  %267 = vst [vmem:[%s259 + $0xc] sm:%s251] %v266
                $region63: #{resnet_forward.17} parent=50 // loop_footer
                  %s257 = sadd.s32 1, %s253
                $region64: #{resnet_forward.17} parent=50 // loop_footer_branch
                  %252 = sbr.rel target = $region60
                $region65: #{resnet_forward.17} parent=50 // loop_exit
                  _
              $region51: #{resnet_forward.17} parent=35 // pred_fallthru
                _
            $region36: #{resnet_forward.17} parent=31 // pred_fallthru
              _
            // Predicated region
            $region37: #{resnet_forward.17} parent=31 // pred_check
              _
            $region38: #{resnet_forward.17} parent=31 // pred_check_branch
              %221 = sbr.rel (0) target = $region40
            $region39: #{resnet_forward.17} parent=31 // pred_region
              %s223 = ssub.s32 16, 1
              loop: start=0, step=1, limit=1
              $region41: #{resnet_forward.17} parent=39 // loop_pre_header
                _
              $region42: #{resnet_forward.17} parent=39 // loop_header
                %s225 = sphi 0, %s229
                %p226 = scmp.ge.s32.totalorder %s225, 1
                %s230 = sphi %s215, %s215
                %s231 = sphi %s210, %s210
              $region43: #{resnet_forward.17} parent=39 // loop_header_branch
                %228 = sbr.rel (%p226) target = $region47
              $region44: #{resnet_forward.17} parent=39 // loop_body
                %v232 = vld [vmem:[%s230] sm:%s223]
                %233 = vst [vmem:[%s231] sm:%s223] %v232
                %v234 = vld [vmem:[%s230 + $0x24] sm:%s223]
                %235 = vst [vmem:[%s231 + $0x4] sm:%s223] %v234
                %v236 = vld [vmem:[%s230 + $0x48] sm:%s223]
                %237 = vst [vmem:[%s231 + $0x8] sm:%s223] %v236
                %v238 = vld [vmem:[%s230 + $0x6c] sm:%s223]
                %239 = vst [vmem:[%s231 + $0xc] sm:%s223] %v238
              $region45: #{resnet_forward.17} parent=39 // loop_footer
                %s229 = sadd.s32 1, %s225
              $region46: #{resnet_forward.17} parent=39 // loop_footer_branch
                %224 = sbr.rel target = $region42
              $region47: #{resnet_forward.17} parent=39 // loop_exit
                _
            $region40: #{resnet_forward.17} parent=31 // pred_fallthru
              _
          $region32: #{resnet_forward.17} parent=27 // pred_fallthru
            _
          %268 = vnop
        $region28: #{resnet_forward.17} parent=23 // pred_fallthru
          _
        // Predicated region
        $region66: #{resnet_forward.17} parent=23 // pred_check
          %p269 = pneg %p79
        $region67: #{resnet_forward.17} parent=23 // pred_check_branch
          %271 = sbr.rel (%p269) target = $region69
        $region68: #{resnet_forward.17} parent=23 // pred_region
          %s272 = smul.u32 16, %s19
          %p273 = scmp.lt.s32.totalorder %s272, 143
          %s274 = scalar_select %p273, %s272, 143
          %p275 = scmp.lt.s32.totalorder %s18, 0
          %s276 = scalar_select %p275, %s18, 0
          %s277 = sadd.s32 %s276, %s274
          %s278 = smul.addr %s277, 4
          %s279 = scalar_lea.vmem %s1, %s278
          %s280 = smul.u32 16, %s19
        $region69: #{resnet_forward.17} parent=23 // pred_fallthru
          _
      $region24: #{resnet_forward.17} parent=5 // pred_fallthru
        _
      %p281 = scmp.le.s32.totalorder 1, %s10
      %p282 = scmp.lt.s32.totalorder %s10, 10
      %p283 = pnand %p281, %p282
      %p284 = pneg %p283
      // Predicated region
      $region70: #{resnet_forward.17} parent=5 // pred_check
        _
      $region71: #{resnet_forward.17} parent=5 // pred_check_branch
        %286 = sbr.rel (%p283) target = $region73
      $region72: #{resnet_forward.17} parent=5 // pred_region
        %s287 = ssub.s32 %s10, 1
        %s288 = sand.u32 %s44, 1
        %s289 = sand.u32 %s44, 1
        %s290 = smul.addr %s289, 16
        %s291 = scalar_lea.vmem [#allocation3], %s290
        // Predicated region
        $region74: #{resnet_forward.17} parent=72 // pred_check
          %p292 = pneg %p57
        $region75: #{resnet_forward.17} parent=72 // pred_check_branch
          %294 = sbr.rel (%p292) target = $region77
        $region76: #{resnet_forward.17} parent=72 // pred_region
          _
        $region77: #{resnet_forward.17} parent=72 // pred_fallthru
          _
        %s295 = sand.u32 %s44, 1
        %s296 = sand.u32 %s44, 1
        %s297 = smul.addr %s296, 16
        %s298 = scalar_lea.vmem [#allocation3], %s297
        %p299 = pneg %p57
        %p300 = pneg %p54
        %s301 = smul.u32 16, %s22
        %p302 = scmp.lt.s32.totalorder %s301, 143
        %s303 = scalar_select %p302, %s301, 143
        %p304 = scmp.lt.s32.totalorder %s21, 0
        %s305 = scalar_select %p304, %s21, 0
        %s306 = sadd.s32 %s305, %s303
        %s307 = smul.addr %s306, 4
        %s308 = scalar_lea.vmem %s1, %s307
        %p309 = pneg %p85
        %p310 = pneg %p82
        %p311 = scmp.lt.s32.totalorder %s21, 0
        %s312 = scalar_select %p311, %s21, 0
        %s313 = scalar_lea.vmem %s2, %s312
        %p314 = pneg %p111
        %p315 = pneg %p108
        %s316 = smul.u32 4, %s20
        %p317 = scmp.lt.s32.totalorder %s316, 3
        %s318 = scalar_select %p317, %s316, 3
        %p319 = scmp.lt.s32.totalorder %s21, 0
        %s320 = scalar_select %p319, %s21, 0
        %s321 = sadd.s32 %s320, %s318
        %s322 = smul.addr %s321, 8
        %s323 = scalar_lea.vmem %s3, %s322
        %p324 = pneg %p139
        %p325 = pneg %p136
        %p326 = pneg %p167
        %p327 = pneg %p164
        %s328 = smul.u32 4, %s20
        %p329 = scmp.lt.s32.totalorder %s328, 3
        %s330 = scalar_select %p329, %s328, 3
        %p331 = scmp.lt.s32.totalorder %s21, 0
        %s332 = scalar_select %p331, %s21, 0
        %s333 = sadd.s32 %s332, %s330
        %s334 = smul.addr %s333, 8
        %s335 = scalar_lea.vmem %s4, %s334
        %s336 = smul.u32 4, %s20
        %s337 = smul.u32 16, %s22
        %p338 = scmp.lt.s32.totalorder %s337, 143
        %s339 = scalar_select %p338, %s337, 143
        %p340 = scmp.lt.s32.totalorder %s21, 0
        %s341 = scalar_select %p340, %s21, 0
        %s342 = sadd.s32 %s341, %s339
        %s343 = smul.addr %s342, 4
        %s344 = scalar_lea.vmem %s1, %s343
        %s345 = smul.u32 16, %s22
        %p346 = scmp.lt.s32.totalorder %s21, 0
        %s347 = scalar_select %p346, %s21, 0
        %s348 = scalar_lea.vmem %s2, %s347
        %s349 = smul.u32 4, %s20
        %p350 = scmp.lt.s32.totalorder %s349, 3
        %s351 = scalar_select %p350, %s349, 3
        %p352 = scmp.lt.s32.totalorder %s21, 0
        %s353 = scalar_select %p352, %s21, 0
        %s354 = sadd.s32 %s353, %s351
        %s355 = smul.addr %s354, 8
        %s356 = scalar_lea.vmem %s3, %s355
        %s357 = smul.u32 4, %s20
        %s358 = smul.u32 4, %s20
        %p359 = scmp.lt.s32.totalorder %s358, 3
        %s360 = scalar_select %p359, %s358, 3
        %p361 = scmp.lt.s32.totalorder %s21, 0
        %s362 = scalar_select %p361, %s21, 0
        %s363 = sadd.s32 %s362, %s360
        %s364 = smul.addr %s363, 8
        %s365 = scalar_lea.vmem %s4, %s364
        %s366 = smul.u32 4, %s20
        %p367 = scmp.eq.s32.totalorder %s22, 0
        // Predicated region
        $region78: #{resnet_forward.17} parent=72 // pred_check
          %p368 = pneg %p367
        $region79: #{resnet_forward.17} parent=72 // pred_check_branch
          %370 = sbr.rel (%p368) target = $region81
        $region80: #{resnet_forward.17} parent=72 // pred_region
          %371 = vst [vmem:[#allocation2] sm:$0xff] 0.0
          %372 = vst [vmem:[#allocation2 + $0x8] sm:$0xff] 0.0
          %373 = vst [vmem:[#allocation2 + $0x10] sm:$0xff] 0.0
          %374 = vst [vmem:[#allocation2 + $0x18] sm:$0xff] 0.0
        $region81: #{resnet_forward.17} parent=72 // pred_fallthru
          _
        %v375 = vld [vmem:[#allocation2] sm:$0xff]
        %v376 = vld [vmem:[#allocation2 + $0x8] sm:$0xff]
        %v377 = vld [vmem:[#allocation2 + $0x10] sm:$0xff]
        %v378 = vld [vmem:[#allocation2 + $0x18] sm:$0xff]
        %v379 = vld [vmem:[%s291] sm:$0xf]
        %v380 = vld [vmem:[%s291 + $0x4] sm:$0xf]
        %v381 = vld [vmem:[%s291 + $0x8] sm:$0xf]
        %v382 = vld [vmem:[%s291 + $0xc] sm:$0xf]
        %v383 = vld [vmem:[%s344] sm:$0xf]
        %v384 = vld [vmem:[%s344 + $0x4] sm:$0xf]
        %v385 = vld [vmem:[%s344 + $0x8] sm:$0xf]
        %v386 = vld [vmem:[%s344 + $0xc] sm:$0xf]
        %v387 = vld [vmem:[%s344 + $0x10] sm:$0xf]
        %v388 = vld [vmem:[%s344 + $0x14] sm:$0xf]
        %v389 = vld [vmem:[%s344 + $0x18] sm:$0xf]
        %v390 = vld [vmem:[%s344 + $0x1c] sm:$0xf]
        %v391 = vld [vmem:[%s344 + $0x20] sm:$0xf]
        %v392 = vld [vmem:[%s344 + $0x24] sm:$0xf]
        %v393 = vld [vmem:[%s344 + $0x28] sm:$0xf]
        %v394 = vld [vmem:[%s344 + $0x2c] sm:$0xf]
        %v395 = vld [vmem:[%s344 + $0x30] sm:$0xf]
        %v396 = vld [vmem:[%s344 + $0x34] sm:$0xf]
        %v397 = vld [vmem:[%s344 + $0x38] sm:$0xf]
        %v398 = vld [vmem:[%s344 + $0x3c] sm:$0xf]
        %v403 = vunpack.c.l.b16 %v379
        %v404 = vunpack.c.l.b16 %v380
        %v405 = vunpack.c.l.b16 %v381
        %v406 = vunpack.c.l.b16 %v382
        %v407 = vpack.c.b16 %v404, %v403
        %v408 = vpack.c.b16 %v406, %v405
        %v427 = vunpack.c.l.b16 %v383
        %v428 = vunpack.c.l.b16 %v384
        %v429 = vunpack.c.l.b16 %v385
        %v430 = vunpack.c.l.b16 %v386
        %v431 = vunpack.c.l.b16 %v387
        %v432 = vunpack.c.l.b16 %v388
        %v433 = vunpack.c.l.b16 %v389
        %v434 = vunpack.c.l.b16 %v390
        %v435 = vunpack.c.l.b16 %v391
        %v436 = vunpack.c.l.b16 %v392
        %v437 = vunpack.c.l.b16 %v393
        %v438 = vunpack.c.l.b16 %v394
        %v439 = vunpack.c.l.b16 %v395
        %v440 = vunpack.c.l.b16 %v396
        %v441 = vunpack.c.l.b16 %v397
        %v442 = vunpack.c.l.b16 %v398
        %v443 = vpack.c.b16 %v428, %v427
        %v444 = vpack.c.b16 %v430, %v429
        %v445 = vpack.c.b16 %v432, %v431
        %v446 = vpack.c.b16 %v434, %v433
        %v447 = vpack.c.b16 %v436, %v435
        %v448 = vpack.c.b16 %v438, %v437
        %v449 = vpack.c.b16 %v440, %v439
        %v450 = vpack.c.b16 %v442, %v441
        %459 = vmatpush.bf16.msra.mxu0 %v450
        %460 = vmatpush.bf16.msra.mxu0 %v449
        %461 = vmatpush.bf16.msra.mxu0 %v448
        %462 = vmatpush.bf16.msra.mxu0 %v447
        %463 = vmatpush.bf16.msra.mxu0 %v446
        %464 = vmatpush.bf16.msra.mxu0 %v445
        %465 = vmatpush.bf16.msra.mxu0 %v444
        %466 = vmatpush.bf16.msra.mxu0 %v443
        %467 = vmatmul.bf16.gmra.mxu0 %v407
        %v468 = vpop.f32.mrf.mxu0
        %v469 = vadd.f32 0.0, %v468
        %v470 = vpop.f32.mrf.mxu0
        %v471 = vadd.f32 0.0, %v470
        %472 = vmatmul.bf16.gmra.mxu0 %v408
        %v473 = vpop.f32.mrf.mxu0
        %v474 = vadd.f32 0.0, %v473
        %v475 = vpop.f32.mrf.mxu0
        %v476 = vadd.f32 0.0, %v475
        %477 = vdwg.mxu0
        %v478 = vadd.f32 %v375, %v469
        %v479 = vadd.f32 %v376, %v471
        %v480 = vadd.f32 %v377, %v474
        %v481 = vadd.f32 %v378, %v476
        %482 = vst [vmem:[#allocation2] sm:$0xff] %v478
        %483 = vst [vmem:[#allocation2 + $0x8] sm:$0xff] %v479
        %484 = vst [vmem:[#allocation2 + $0x10] sm:$0xff] %v480
        %485 = vst [vmem:[#allocation2 + $0x18] sm:$0xff] %v481
        %p486 = scmp.eq.s32.totalorder %s22, 8
        // Predicated region
        $region82: #{resnet_forward.17} parent=72 // pred_check
          %p487 = pneg %p486
        $region83: #{resnet_forward.17} parent=72 // pred_check_branch
          %489 = sbr.rel (%p487) target = $region85
        $region84: #{resnet_forward.17} parent=72 // pred_region
          %v490 = vld [vmem:[#allocation2] sm:$0xff]
          %v491 = vld [vmem:[#allocation2 + $0x8] sm:$0xff]
          %v492 = vld [vmem:[#allocation2 + $0x10] sm:$0xff]
          %v493 = vld [vmem:[#allocation2 + $0x18] sm:$0xff]
          %v494 = vld [vmem:[%s348] sm:$0x1]
          %v496 = vperm.slane %v494, 0
          %v498 = vadd.f32 %v490, %v496
          %v499 = vadd.f32 %v491, %v496
          %v500 = vadd.f32 %v492, %v496
          %v501 = vadd.f32 %v493, %v496
          %v502 = vld [vmem:[%s356] sm:$0xff]
          %v503 = vld [vmem:[%s356 + $0x8] sm:$0xff]
          %v504 = vld [vmem:[%s356 + $0x10] sm:$0xff]
          %v505 = vld [vmem:[%s356 + $0x18] sm:$0xff]
          %v506 = vadd.f32 %v498, %v502
          %v507 = vadd.f32 %v499, %v503
          %v508 = vadd.f32 %v500, %v504
          %v509 = vadd.f32 %v501, %v505
          %v510 = vmax.f32 %v506, 0.0
          %v511 = vmax.f32 %v507, 0.0
          %v512 = vmax.f32 %v508, 0.0
          %v513 = vmax.f32 %v509, 0.0
          %514 = vst [vmem:[%s365] sm:$0xff] %v510
          %515 = vst [vmem:[%s365 + $0x8] sm:$0xff] %v511
          %516 = vst [vmem:[%s365 + $0x10] sm:$0xff] %v512
          %517 = vst [vmem:[%s365 + $0x18] sm:$0xff] %v513
        $region85: #{resnet_forward.17} parent=72 // pred_fallthru
          _
        %s518 = smul.u32 4, %s20
        %p519 = scmp.lt.s32.totalorder %s518, 3
        %s520 = scalar_select %p519, %s518, 3
        %p521 = scmp.lt.s32.totalorder %s21, 0
        %s522 = scalar_select %p521, %s21, 0
        %s523 = sadd.s32 %s522, %s520
        %s524 = smul.addr %s523, 8
        %s525 = scalar_lea.vmem %s4, %s524
        // Predicated region
        $region86: #{resnet_forward.17} parent=72 // pred_check
          %p526 = pneg %p164
        $region87: #{resnet_forward.17} parent=72 // pred_check_branch
          %528 = sbr.rel (%p526) target = $region89
        $region88: #{resnet_forward.17} parent=72 // pred_region
          %s529 = smul.u32 4, %s20
        $region89: #{resnet_forward.17} parent=72 // pred_fallthru
          _
        // Predicated region
        $region90: #{resnet_forward.17} parent=72 // pred_check
          %p530 = pneg %p164
        $region91: #{resnet_forward.17} parent=72 // pred_check_branch
          %532 = sbr.rel (%p530) target = $region93
        $region92: #{resnet_forward.17} parent=72 // pred_region
          %s533 = smul.u32 4, %s20
          %p534 = scmp.lt.s32.totalorder %s533, 3
          %s535 = scalar_select %p534, %s533, 3
          %p536 = scmp.lt.s32.totalorder %s21, 0
          %s537 = scalar_select %p536, %s21, 0
          %s538 = sadd.s32 %s537, %s535
          %s539 = smul.addr %s538, 8
          %s540 = scalar_lea.vmem %s4, %s539
        $region93: #{resnet_forward.17} parent=72 // pred_fallthru
          _
      $region73: #{resnet_forward.17} parent=5 // pred_fallthru
        _
      %p541 = scmp.le.s32.totalorder 2, %s10
      // Predicated region
      $region94: #{resnet_forward.17} parent=5 // pred_check
        %p542 = pneg %p541
      $region95: #{resnet_forward.17} parent=5 // pred_check_branch
        %544 = sbr.rel (%p542) target = $region97
      $region96: #{resnet_forward.17} parent=5 // pred_region
        %s545 = ssub.s32 %s10, 2
      $region97: #{resnet_forward.17} parent=5 // pred_fallthru
        _
    $region6: #{resnet_forward.17} parent=1 // loop_footer
      %s14 = sadd.s32 1, %s10
    $region7: #{resnet_forward.17} parent=1 // loop_footer_branch
      %9 = sbr.rel target = $region3
    $region8: #{resnet_forward.17} parent=1 // loop_exit
      _

// kernel: resnet_forward.15
$region0: #{resnet_forward.15}
  #allocation0 [shape = 'u32[]', space=smem, size = 0x4, offset = 0x4, fixed_abs, tag = 'smem constant byte address 0x4 - core index']
  #allocation1 [shape = 'u32[72,128]{1,0:T(1,128)}', space=vmem, size = 0x9000, scoped, tag = 'internal scratch']
  #allocation2 [shape = 'f32[32,128]{1,0:T(8,128)}', space=vmem, size = 0x4000, scoped, tag = 'scratch operand']
  %s0 = inlined_call_operand.vmem [shape: bf16[32,128], index: 0, kind: input, shape index: {}]
  %s1 = inlined_call_operand.vmem [shape: bf16[128,128], index: 1, kind: input, shape index: {}]
  %s2 = inlined_call_operand.vmem [shape: f32[1,128], index: 2, kind: input, shape index: {}]
  %s3 = inlined_call_operand.vmem [shape: f32[32,128], index: 3, kind: output, shape index: {}]
  %s4 = sld [smem:[#allocation0]]
  $region30: #{resnet_forward.15} parent=0
    _
  %s6 = ssub.s32 1, %s4
  %s7 = scalar_select 0, %s6, %s4
  // Predicated region
  $region2: #{resnet_forward.15} parent=0 // pred_check
    _
  $region3: #{resnet_forward.15} parent=0 // pred_check_branch
    %9 = sbr.rel (0) target = $region5
  $region4: #{resnet_forward.15} parent=0 // pred_region
    _
  $region5: #{resnet_forward.15} parent=0 // pred_fallthru
    _
  // Predicated region
  $region6: #{resnet_forward.15} parent=0 // pred_check
    _
  $region7: #{resnet_forward.15} parent=0 // pred_check_branch
    %11 = sbr.rel (0) target = $region9
  $region8: #{resnet_forward.15} parent=0 // pred_region
    _
  $region9: #{resnet_forward.15} parent=0 // pred_fallthru
    _
  // Predicated region
  $region10: #{resnet_forward.15} parent=0 // pred_check
    _
  $region11: #{resnet_forward.15} parent=0 // pred_check_branch
    %13 = sbr.rel (0) target = $region13
  $region12: #{resnet_forward.15} parent=0 // pred_region
    _
  $region13: #{resnet_forward.15} parent=0 // pred_fallthru
    _
  %p14 = scmp.eq.s32.totalorder 0, 0
  // Predicated region
  $region14: #{resnet_forward.15} parent=0 // pred_check
    %p15 = pneg %p14
  $region15: #{resnet_forward.15} parent=0 // pred_check_branch
    %17 = sbr.rel (%p15) target = $region17
  $region16: #{resnet_forward.15} parent=0 // pred_region
    %18 = vst [vmem:[#allocation2] sm:$0xff] 0.0
    %19 = vst [vmem:[#allocation2 + $0x8] sm:$0xff] 0.0
    %20 = vst [vmem:[#allocation2 + $0x10] sm:$0xff] 0.0
    %21 = vst [vmem:[#allocation2 + $0x18] sm:$0xff] 0.0
  $region17: #{resnet_forward.15} parent=0 // pred_fallthru
    _
  %v22 = vld [vmem:[#allocation2] sm:$0xff]
  %v23 = vld [vmem:[#allocation2 + $0x8] sm:$0xff]
  %v24 = vld [vmem:[#allocation2 + $0x10] sm:$0xff]
  %v25 = vld [vmem:[#allocation2 + $0x18] sm:$0xff]
  %v26 = vld [vmem:[%s0] sm:$0xf]
  %v27 = vld [vmem:[%s0 + $0x4] sm:$0xf]
  %v28 = vld [vmem:[%s0 + $0x8] sm:$0xf]
  %v29 = vld [vmem:[%s0 + $0xc] sm:$0xf]
  %v30 = vld [vmem:[%s1] sm:$0xf]
  %v31 = vld [vmem:[%s1 + $0x4] sm:$0xf]
  %v32 = vld [vmem:[%s1 + $0x8] sm:$0xf]
  %v33 = vld [vmem:[%s1 + $0xc] sm:$0xf]
  %v34 = vld [vmem:[%s1 + $0x10] sm:$0xf]
  %v35 = vld [vmem:[%s1 + $0x14] sm:$0xf]
  %v36 = vld [vmem:[%s1 + $0x18] sm:$0xf]
  %v37 = vld [vmem:[%s1 + $0x1c] sm:$0xf]
  %v38 = vld [vmem:[%s1 + $0x20] sm:$0xf]
  %v39 = vld [vmem:[%s1 + $0x24] sm:$0xf]
  %v40 = vld [vmem:[%s1 + $0x28] sm:$0xf]
  %v41 = vld [vmem:[%s1 + $0x2c] sm:$0xf]
  %v42 = vld [vmem:[%s1 + $0x30] sm:$0xf]
  %v43 = vld [vmem:[%s1 + $0x34] sm:$0xf]
  %v44 = vld [vmem:[%s1 + $0x38] sm:$0xf]
  %v45 = vld [vmem:[%s1 + $0x3c] sm:$0xf]
  %v50 = vunpack.c.l.b16 %v26
  %v51 = vunpack.c.l.b16 %v27
  %v52 = vunpack.c.l.b16 %v28
  %v53 = vunpack.c.l.b16 %v29
  %v54 = vpack.c.b16 %v51, %v50
  %v55 = vpack.c.b16 %v53, %v52
  %v74 = vunpack.c.l.b16 %v30
  %v75 = vunpack.c.l.b16 %v31
  %v76 = vunpack.c.l.b16 %v32
  %v77 = vunpack.c.l.b16 %v33
  %v78 = vunpack.c.l.b16 %v34
  %v79 = vunpack.c.l.b16 %v35
  %v80 = vunpack.c.l.b16 %v36
  %v81 = vunpack.c.l.b16 %v37
  %v82 = vunpack.c.l.b16 %v38
  %v83 = vunpack.c.l.b16 %v39
  %v84 = vunpack.c.l.b16 %v40
  %v85 = vunpack.c.l.b16 %v41
  %v86 = vunpack.c.l.b16 %v42
  %v87 = vunpack.c.l.b16 %v43
  %v88 = vunpack.c.l.b16 %v44
  %v89 = vunpack.c.l.b16 %v45
  %v90 = vpack.c.b16 %v75, %v74
  %v91 = vpack.c.b16 %v77, %v76
  %v92 = vpack.c.b16 %v79, %v78
  %v93 = vpack.c.b16 %v81, %v80
  %v94 = vpack.c.b16 %v83, %v82
  %v95 = vpack.c.b16 %v85, %v84
  %v96 = vpack.c.b16 %v87, %v86
  %v97 = vpack.c.b16 %v89, %v88
  %106 = vmatpush.bf16.msra.mxu0 %v97
  %107 = vmatpush.bf16.msra.mxu0 %v96
  %108 = vmatpush.bf16.msra.mxu0 %v95
  %109 = vmatpush.bf16.msra.mxu0 %v94
  %110 = vmatpush.bf16.msra.mxu0 %v93
  %111 = vmatpush.bf16.msra.mxu0 %v92
  %112 = vmatpush.bf16.msra.mxu0 %v91
  %113 = vmatpush.bf16.msra.mxu0 %v90
  %114 = vmatmul.bf16.gmra.mxu0 %v54
  %v115 = vpop.f32.mrf.mxu0
  %v116 = vadd.f32 0.0, %v115
  %v117 = vpop.f32.mrf.mxu0
  %v118 = vadd.f32 0.0, %v117
  %119 = vmatmul.bf16.gmra.mxu0 %v55
  %v120 = vpop.f32.mrf.mxu0
  %v121 = vadd.f32 0.0, %v120
  %v122 = vpop.f32.mrf.mxu0
  %v123 = vadd.f32 0.0, %v122
  %124 = vdwg.mxu0
  %v125 = vadd.f32 %v22, %v116
  %v126 = vadd.f32 %v23, %v118
  %v127 = vadd.f32 %v24, %v121
  %v128 = vadd.f32 %v25, %v123
  %129 = vst [vmem:[#allocation2] sm:$0xff] %v125
  %130 = vst [vmem:[#allocation2 + $0x8] sm:$0xff] %v126
  %131 = vst [vmem:[#allocation2 + $0x10] sm:$0xff] %v127
  %132 = vst [vmem:[#allocation2 + $0x18] sm:$0xff] %v128
  // Predicated region
  $region18: #{resnet_forward.15} parent=0 // pred_check
    %p133 = pneg %p14
  $region19: #{resnet_forward.15} parent=0 // pred_check_branch
    %135 = sbr.rel (%p133) target = $region21
  $region20: #{resnet_forward.15} parent=0 // pred_region
    %v136 = vld [vmem:[#allocation2] sm:$0xff]
    %v137 = vld [vmem:[#allocation2 + $0x8] sm:$0xff]
    %v138 = vld [vmem:[#allocation2 + $0x10] sm:$0xff]
    %v139 = vld [vmem:[#allocation2 + $0x18] sm:$0xff]
    %v140 = vld [vmem:[%s2] sm:$0x1]
    %v142 = vperm.slane %v140, 0
    %v144 = vadd.f32 %v136, %v142
    %v145 = vadd.f32 %v137, %v142
    %v146 = vadd.f32 %v138, %v142
    %v147 = vadd.f32 %v139, %v142
    %148 = vst [vmem:[%s3] sm:$0xff] %v144
    %149 = vst [vmem:[%s3 + $0x8] sm:$0xff] %v145
    %150 = vst [vmem:[%s3 + $0x10] sm:$0xff] %v146
    %151 = vst [vmem:[%s3 + $0x18] sm:$0xff] %v147
  $region21: #{resnet_forward.15} parent=0 // pred_fallthru
    _
  // Predicated region
  $region22: #{resnet_forward.15} parent=0 // pred_check
    _
  $region23: #{resnet_forward.15} parent=0 // pred_check_branch
    %153 = sbr.rel (0) target = $region25
  $region24: #{resnet_forward.15} parent=0 // pred_region
    _
  $region25: #{resnet_forward.15} parent=0 // pred_fallthru
    _
  // Predicated region
  $region26: #{resnet_forward.15} parent=0 // pred_check
    _
  $region27: #{resnet_forward.15} parent=0 // pred_check_branch
    %155 = sbr.rel (0) target = $region29
  $region28: #{resnet_forward.15} parent=0 // pred_region
    _
  $region29: #{resnet_forward.15} parent=0 // pred_fallthru
    _

// kernel: resnet_forward.19
$region0: #{resnet_forward.19}
  #allocation0 [shape = 'u32[]', space=smem, size = 0x4, offset = 0x4, fixed_abs, tag = 'smem constant byte address 0x4 - core index']
  #allocation1 [shape = 'u32[72,128]{1,0:T(1,128)}', space=vmem, size = 0x9000, scoped, tag = 'internal scratch']
  #allocation2 [shape = 'f32[8,128]{1,0:T(8,128)}', space=vmem, size = 0x1000, scoped, tag = 'scratch operand']
  %s0 = inlined_call_operand.vmem [shape: bf16[8,1152], index: 0, kind: input, shape index: {}]
  %s1 = inlined_call_operand.vmem [shape: bf16[1152,256], index: 1, kind: input, shape index: {}]
  %s2 = inlined_call_operand.vmem [shape: f32[1,256], index: 2, kind: input, shape index: {}]
  %s3 = inlined_call_operand.vmem [shape: f32[8,256], index: 3, kind: output, shape index: {}]
  %s4 = sld [smem:[#allocation0]]
  $region94: #{resnet_forward.19} parent=0
    _
  %s6 = ssub.s32 1, %s4
  %s7 = scalar_select 0, %s6, %s4
  $region1: #{resnet_forward.19} parent=0
    #allocation3 [shape = 'u8[65536]{0}', space=vmem, size = 0x10000, scoped, tag = 'input window, operand 1']
    loop: start=0, step=1, limit=20
    $region2: #{resnet_forward.19} parent=1 // loop_pre_header
      _
    $region3: #{resnet_forward.19} parent=1 // loop_header
      %s9 = sphi 0, %s13
      %p10 = scmp.ge.s32.totalorder %s9, 20
      %s16 = sphi 0, %s35
      %s17 = sphi 0, %s31
      %s18 = sphi 0, %s27
      %s19 = sphi 0, %s16
      %s20 = sphi 0, %s17
      %s21 = sphi 0, %s18
      %s22 = sphi 0, %s19
      %s23 = sphi 0, %s20
      %s24 = sphi 0, %s21
      %s40 = sphi 0, %s42
      %s43 = sphi 0, %s40
      %s44 = sphi 0, %s43
      %s60 = sphi 0, %s44
      %s68 = sphi 0, %s70
      %s71 = sphi 0, %s68
      %s72 = sphi 0, %s71
      %s88 = sphi 0, %s72
      %s94 = sphi 0, %s96
      %s97 = sphi 0, %s94
      %s98 = sphi 0, %s97
      %s114 = sphi 0, %s98
      %s122 = sphi 0, %s124
      %s125 = sphi 0, %s122
      %s126 = sphi 0, %s125
      %s142 = sphi 0, %s126
    $region4: #{resnet_forward.19} parent=1 // loop_header_branch
      %12 = sbr.rel (%p10) target = $region8
    $region5: #{resnet_forward.19} parent=1 // loop_body
      %s14 = ssub.s32 %s9, 1
      %s15 = ssub.s32 %s9, 2
      %s25 = sadd.s32 1, %s18
      %p26 = scmp.ge.s32.totalorder %s25, 9
      %s27 = scalar_select %p26, 0, %s25
      %s28 = sadd.s32 1, %s17
      %s29 = scalar_select %p26, %s28, %s17
      %p30 = scmp.ge.s32.totalorder %s29, 2
      %s31 = scalar_select %p30, 0, %s29
      %s32 = sadd.s32 1, %s16
      %s33 = scalar_select %p30, %s32, %s16
      %p34 = scmp.ge.s32.totalorder %s33, 1
      %s35 = scalar_select %p34, 0, %s33
      %s36 = ssub.s32 %s16, %s35
      %s37 = ssub.s32 %s18, %s27
      %s38 = sor.u32 %s36, %s37
      %p39 = scmp.eq.s32.totalorder %s38, 0
      %s41 = sadd.s32 %s40, 1
      %s42 = scalar_select %p39, %s40, %s41
      %p45 = pneg %p39
      %p46 = scmp.eq.s32.totalorder %s9, 17
      %p47 = por %p45, %p46
      %p48 = scmp.ne.s32.totalorder %s40, %s43
      %p49 = scmp.eq.s32.totalorder %s9, 0
      %p50 = por %p48, %p49
      %p51 = scmp.ne.s32.totalorder %s40, %s43
      %p52 = scmp.eq.s32.totalorder %s14, 17
      %p53 = por %p51, %p52
      %p54 = scmp.ne.s32.totalorder %s43, %s44
      %p55 = scmp.eq.s32.totalorder %s14, 0
      %p56 = por %p54, %p55
      %p57 = scmp.ne.s32.totalorder %s43, %s44
      %p58 = scmp.eq.s32.totalorder %s15, 17
      %p59 = por %p57, %p58
      %p61 = scmp.ne.s32.totalorder %s44, %s60
      %p62 = scmp.eq.s32.totalorder %s15, 0
      %p63 = por %p61, %p62
      %s64 = ssub.s32 %s18, %s27
      %s65 = ssub.s32 %s17, %s31
      %s66 = sor.u32 %s64, %s65
      %p67 = scmp.eq.s32.totalorder %s66, 0
      %s69 = sadd.s32 %s68, 1
      %s70 = scalar_select %p67, %s68, %s69
      %p73 = pneg %p67
      %p74 = scmp.eq.s32.totalorder %s9, 17
      %p75 = por %p73, %p74
      %p76 = scmp.ne.s32.totalorder %s68, %s71
      %p77 = scmp.eq.s32.totalorder %s9, 0
      %p78 = por %p76, %p77
      %p79 = scmp.ne.s32.totalorder %s68, %s71
      %p80 = scmp.eq.s32.totalorder %s14, 17
      %p81 = por %p79, %p80
      %p82 = scmp.ne.s32.totalorder %s71, %s72
      %p83 = scmp.eq.s32.totalorder %s14, 0
      %p84 = por %p82, %p83
      %p85 = scmp.ne.s32.totalorder %s71, %s72
      %p86 = scmp.eq.s32.totalorder %s15, 17
      %p87 = por %p85, %p86
      %p89 = scmp.ne.s32.totalorder %s72, %s88
      %p90 = scmp.eq.s32.totalorder %s15, 0
      %p91 = por %p89, %p90
      %s92 = ssub.s32 %s17, %s31
      %p93 = scmp.eq.s32.totalorder %s92, 0
      %s95 = sadd.s32 %s94, 1
      %s96 = scalar_select %p93, %s94, %s95
      %p99 = pneg %p93
      %p100 = scmp.eq.s32.totalorder %s9, 17
      %p101 = por %p99, %p100
      %p102 = scmp.ne.s32.totalorder %s94, %s97
      %p103 = scmp.eq.s32.totalorder %s9, 0
      %p104 = por %p102, %p103
      %p105 = scmp.ne.s32.totalorder %s94, %s97
      %p106 = scmp.eq.s32.totalorder %s14, 17
      %p107 = por %p105, %p106
      %p108 = scmp.ne.s32.totalorder %s97, %s98
      %p109 = scmp.eq.s32.totalorder %s14, 0
      %p110 = por %p108, %p109
      %p111 = scmp.ne.s32.totalorder %s97, %s98
      %p112 = scmp.eq.s32.totalorder %s15, 17
      %p113 = por %p111, %p112
      %p115 = scmp.ne.s32.totalorder %s98, %s114
      %p116 = scmp.eq.s32.totalorder %s15, 0
      %p117 = por %p115, %p116
      %s118 = ssub.s32 %s16, %s35
      %s119 = ssub.s32 %s17, %s31
      %s120 = sor.u32 %s118, %s119
      %p121 = scmp.eq.s32.totalorder %s120, 0
      %s123 = sadd.s32 %s122, 1
      %s124 = scalar_select %p121, %s122, %s123
      %p127 = pneg %p121
      %p128 = scmp.eq.s32.totalorder %s9, 17
      %p129 = por %p127, %p128
      %p130 = scmp.ne.s32.totalorder %s122, %s125
      %p131 = scmp.eq.s32.totalorder %s9, 0
      %p132 = por %p130, %p131
      %p133 = scmp.ne.s32.totalorder %s122, %s125
      %p134 = scmp.eq.s32.totalorder %s14, 17
      %p135 = por %p133, %p134
      %p136 = scmp.ne.s32.totalorder %s125, %s126
      %p137 = scmp.eq.s32.totalorder %s14, 0
      %p138 = por %p136, %p137
      %p139 = scmp.ne.s32.totalorder %s125, %s126
      %p140 = scmp.eq.s32.totalorder %s15, 17
      %p141 = por %p139, %p140
      %p143 = scmp.ne.s32.totalorder %s126, %s142
      %p144 = scmp.eq.s32.totalorder %s15, 0
      %p145 = por %p143, %p144
      %p146 = scmp.le.s32.totalorder 1, %s9
      %p147 = scmp.lt.s32.totalorder %s9, 19
      %p148 = pnand %p146, %p147
      %p149 = pneg %p148
      // Predicated region
      $region9: #{resnet_forward.19} parent=5 // pred_check
        _
      $region10: #{resnet_forward.19} parent=5 // pred_check_branch
        %151 = sbr.rel (%p148) target = $region12
      $region11: #{resnet_forward.19} parent=5 // pred_region
        %s152 = ssub.s32 %s9, 1
      $region12: #{resnet_forward.19} parent=5 // pred_fallthru
        _
      %p153 = scmp.lt.s32.totalorder %s9, 18
      // Predicated region
      $region13: #{resnet_forward.19} parent=5 // pred_check
        %p154 = pneg %p153
      $region14: #{resnet_forward.19} parent=5 // pred_check_branch
        %156 = sbr.rel (%p154) target = $region16
      $region15: #{resnet_forward.19} parent=5 // pred_region
        // Predicated region
        $region17: #{resnet_forward.19} parent=15 // pred_check
          %p157 = pneg %p50
        $region18: #{resnet_forward.19} parent=15 // pred_check_branch
          %159 = sbr.rel (%p157) target = $region20
        $region19: #{resnet_forward.19} parent=15 // pred_region
          %p160 = scmp.lt.s32.totalorder %s16, 0
          %s161 = scalar_select %p160, %s16, 0
          %p162 = scmp.lt.s32.totalorder %s18, 8
          %s163 = scalar_select %p162, %s18, 8
          %s164 = smul.addr %s161, 9
          %s165 = sadd.s32 %s163, %s164
          %s166 = smul.addr %s165, 4
          %s167 = scalar_lea.vmem %s0, %s166
        $region20: #{resnet_forward.19} parent=15 // pred_fallthru
          _
        // Predicated region
        $region21: #{resnet_forward.19} parent=15 // pred_check
          %p168 = pneg %p78
        $region22: #{resnet_forward.19} parent=15 // pred_check_branch
          %170 = sbr.rel (%p168) target = $region24
        $region23: #{resnet_forward.19} parent=15 // pred_region
          %s171 = sand.u32 %s68, 1
          %s172 = sand.u32 %s68, 1
          %s173 = smul.addr %s172, 64
          %s174 = scalar_lea.vmem [#allocation3], %s173
          %s175 = smul.u32 16, %s18
          %s176 = smul.addr %s175, 2
          %s177 = sadd.s32 %s17, %s176
          %s178 = smul.addr %s177, 4
          %s179 = scalar_lea.vmem %s1, %s178
          // Predicated region
          $region25: #{resnet_forward.19} parent=23 // pred_check
            _
          $region26: #{resnet_forward.19} parent=23 // pred_check_branch
            %181 = sbr.rel (0) target = $region28
          $region27: #{resnet_forward.19} parent=23 // pred_region
            // Predicated region
            $region29: #{resnet_forward.19} parent=27 // pred_check
              _
            $region30: #{resnet_forward.19} parent=27 // pred_check_branch
              %183 = sbr.rel target = $region32
            $region31: #{resnet_forward.19} parent=27 // pred_region
              // Predicated region
              $region44: #{resnet_forward.19} parent=31 // pred_check
                _
              $region45: #{resnet_forward.19} parent=31 // pred_check_branch
                %229 = sbr.rel (0) target = $region47
              $region46: #{resnet_forward.19} parent=31 // pred_region
                loop: start=0, step=1, limit=1
                $region48: #{resnet_forward.19} parent=46 // loop_pre_header
                  _
                $region49: #{resnet_forward.19} parent=46 // loop_header
                  %s231 = sphi 0, %s235
                  %p232 = scmp.ge.s32.totalorder %s231, 1
                  %s236 = sphi %s179, %s179
                  %s237 = sphi %s174, %s174
                $region50: #{resnet_forward.19} parent=46 // loop_header_branch
                  %234 = sbr.rel (%p232) target = $region54
                $region51: #{resnet_forward.19} parent=46 // loop_body
                  _
                $region52: #{resnet_forward.19} parent=46 // loop_footer
                  %s235 = sadd.s32 1, %s231
                $region53: #{resnet_forward.19} parent=46 // loop_footer_branch
                  %230 = sbr.rel target = $region49
                $region54: #{resnet_forward.19} parent=46 // loop_exit
                  _
                %s239 = ssub.s32 16, 1
                loop: start=0, step=1, limit=1
                $region55: #{resnet_forward.19} parent=46 // loop_pre_header
                  _
                $region56: #{resnet_forward.19} parent=46 // loop_header
                  %s241 = sphi 0, %s245
                  %p242 = scmp.ge.s32.totalorder %s241, 1
                  %s246 = sphi %s179, %s179
                  %s247 = sphi %s174, %s174
                $region57: #{resnet_forward.19} parent=46 // loop_header_branch
                  %244 = sbr.rel (%p242) target = $region61
                $region58: #{resnet_forward.19} parent=46 // loop_body
                  %v248 = vld [vmem:[%s246] sm:%s239]
                  %249 = vst [vmem:[%s247] sm:%s239] %v248
                  %v250 = vld [vmem:[%s246 + $0x8] sm:%s239]
                  %251 = vst [vmem:[%s247 + $0x4] sm:%s239] %v250
                  %v252 = vld [vmem:[%s246 + $0x10] sm:%s239]
                  %253 = vst [vmem:[%s247 + $0x8] sm:%s239] %v252
                  %v254 = vld [vmem:[%s246 + $0x18] sm:%s239]
                  %255 = vst [vmem:[%s247 + $0xc] sm:%s239] %v254
                  %v256 = vld [vmem:[%s246 + $0x20] sm:%s239]
                  %257 = vst [vmem:[%s247 + $0x10] sm:%s239] %v256
                  %v258 = vld [vmem:[%s246 + $0x28] sm:%s239]
                  %259 = vst [vmem:[%s247 + $0x14] sm:%s239] %v258
                  %v260 = vld [vmem:[%s246 + $0x30] sm:%s239]
                  %261 = vst [vmem:[%s247 + $0x18] sm:%s239] %v260
                  %v262 = vld [vmem:[%s246 + $0x38] sm:%s239]
                  %263 = vst [vmem:[%s247 + $0x1c] sm:%s239] %v262
                  %v264 = vld [vmem:[%s246 + $0x40] sm:%s239]
                  %265 = vst [vmem:[%s247 + $0x20] sm:%s239] %v264
                  %v266 = vld [vmem:[%s246 + $0x48] sm:%s239]
                  %267 = vst [vmem:[%s247 + $0x24] sm:%s239] %v266
                  %v268 = vld [vmem:[%s246 + $0x50] sm:%s239]
                  %269 = vst [vmem:[%s247 + $0x28] sm:%s239] %v268
                  %v270 = vld [vmem:[%s246 + $0x58] sm:%s239]
                  %271 = vst [vmem:[%s247 + $0x2c] sm:%s239] %v270
                  %v272 = vld [vmem:[%s246 + $0x60] sm:%s239]
                  %273 = vst [vmem:[%s247 + $0x30] sm:%s239] %v272
                  %v274 = vld [vmem:[%s246 + $0x68] sm:%s239]
                  %275 = vst [vmem:[%s247 + $0x34] sm:%s239] %v274
                  %v276 = vld [vmem:[%s246 + $0x70] sm:%s239]
                  %277 = vst [vmem:[%s247 + $0x38] sm:%s239] %v276
                  %v278 = vld [vmem:[%s246 + $0x78] sm:%s239]
                  %279 = vst [vmem:[%s247 + $0x3c] sm:%s239] %v278
                $region59: #{resnet_forward.19} parent=46 // loop_footer
                  %s245 = sadd.s32 1, %s241
                $region60: #{resnet_forward.19} parent=46 // loop_footer_branch
                  %240 = sbr.rel target = $region56
                $region61: #{resnet_forward.19} parent=46 // loop_exit
                  _
              $region47: #{resnet_forward.19} parent=31 // pred_fallthru
                _
            $region32: #{resnet_forward.19} parent=27 // pred_fallthru
              _
            // Predicated region
            $region33: #{resnet_forward.19} parent=27 // pred_check
              _
            $region34: #{resnet_forward.19} parent=27 // pred_check_branch
              %185 = sbr.rel (0) target = $region36
            $region35: #{resnet_forward.19} parent=27 // pred_region
              %s187 = ssub.s32 16, 1
              loop: start=0, step=1, limit=1
              $region37: #{resnet_forward.19} parent=35 // loop_pre_header
                _
              $region38: #{resnet_forward.19} parent=35 // loop_header
                %s189 = sphi 0, %s193
                %p190 = scmp.ge.s32.totalorder %s189, 1
                %s194 = sphi %s179, %s179
                %s195 = sphi %s174, %s174
              $region39: #{resnet_forward.19} parent=35 // loop_header_branch
                %192 = sbr.rel (%p190) target = $region43
              $region40: #{resnet_forward.19} parent=35 // loop_body
                %v196 = vld [vmem:[%s194] sm:%s187]
                %197 = vst [vmem:[%s195] sm:%s187] %v196
                %v198 = vld [vmem:[%s194 + $0x8] sm:%s187]
                %199 = vst [vmem:[%s195 + $0x4] sm:%s187] %v198
                %v200 = vld [vmem:[%s194 + $0x10] sm:%s187]
                %201 = vst [vmem:[%s195 + $0x8] sm:%s187] %v200
                %v202 = vld [vmem:[%s194 + $0x18] sm:%s187]
                %203 = vst [vmem:[%s195 + $0xc] sm:%s187] %v202
                %v204 = vld [vmem:[%s194 + $0x20] sm:%s187]
                %205 = vst [vmem:[%s195 + $0x10] sm:%s187] %v204
                %v206 = vld [vmem:[%s194 + $0x28] sm:%s187]
                %207 = vst [vmem:[%s195 + $0x14] sm:%s187] %v206
                %v208 = vld [vmem:[%s194 + $0x30] sm:%s187]
                %209 = vst [vmem:[%s195 + $0x18] sm:%s187] %v208
                %v210 = vld [vmem:[%s194 + $0x38] sm:%s187]
                %211 = vst [vmem:[%s195 + $0x1c] sm:%s187] %v210
                %v212 = vld [vmem:[%s194 + $0x40] sm:%s187]
                %213 = vst [vmem:[%s195 + $0x20] sm:%s187] %v212
                %v214 = vld [vmem:[%s194 + $0x48] sm:%s187]
                %215 = vst [vmem:[%s195 + $0x24] sm:%s187] %v214
                %v216 = vld [vmem:[%s194 + $0x50] sm:%s187]
                %217 = vst [vmem:[%s195 + $0x28] sm:%s187] %v216
                %v218 = vld [vmem:[%s194 + $0x58] sm:%s187]
                %219 = vst [vmem:[%s195 + $0x2c] sm:%s187] %v218
                %v220 = vld [vmem:[%s194 + $0x60] sm:%s187]
                %221 = vst [vmem:[%s195 + $0x30] sm:%s187] %v220
                %v222 = vld [vmem:[%s194 + $0x68] sm:%s187]
                %223 = vst [vmem:[%s195 + $0x34] sm:%s187] %v222
                %v224 = vld [vmem:[%s194 + $0x70] sm:%s187]
                %225 = vst [vmem:[%s195 + $0x38] sm:%s187] %v224
                %v226 = vld [vmem:[%s194 + $0x78] sm:%s187]
                %227 = vst [vmem:[%s195 + $0x3c] sm:%s187] %v226
              $region41: #{resnet_forward.19} parent=35 // loop_footer
                %s193 = sadd.s32 1, %s189
              $region42: #{resnet_forward.19} parent=35 // loop_footer_branch
                %188 = sbr.rel target = $region38
              $region43: #{resnet_forward.19} parent=35 // loop_exit
                _
            $region36: #{resnet_forward.19} parent=27 // pred_fallthru
              _
          $region28: #{resnet_forward.19} parent=23 // pred_fallthru
            _
          %280 = vnop
        $region24: #{resnet_forward.19} parent=15 // pred_fallthru
          _
        // Predicated region
        $region62: #{resnet_forward.19} parent=15 // pred_check
          %p281 = pneg %p104
        $region63: #{resnet_forward.19} parent=15 // pred_check_branch
          %283 = sbr.rel (%p281) target = $region65
        $region64: #{resnet_forward.19} parent=15 // pred_region
          %p284 = scmp.lt.s32.totalorder %s17, 1
          %s285 = scalar_select %p284, %s17, 1
          %s286 = scalar_lea.vmem %s2, %s285
        $region65: #{resnet_forward.19} parent=15 // pred_fallthru
          _
      $region16: #{resnet_forward.19} parent=5 // pred_fallthru
        _
      %p287 = scmp.le.s32.totalorder 1, %s9
      %p288 = scmp.lt.s32.totalorder %s9, 19
      %p289 = pnand %p287, %p288
      %p290 = pneg %p289
      // Predicated region
      $region66: #{resnet_forward.19} parent=5 // pred_check
        _
      $region67: #{resnet_forward.19} parent=5 // pred_check_branch
        %292 = sbr.rel (%p289) target = $region69
      $region68: #{resnet_forward.19} parent=5 // pred_region
        %s293 = ssub.s32 %s9, 1
        %s294 = sand.u32 %s71, 1
        %s295 = sand.u32 %s71, 1
        %s296 = smul.addr %s295, 64
        %s297 = scalar_lea.vmem [#allocation3], %s296
        // Predicated region
        $region70: #{resnet_forward.19} parent=68 // pred_check
          %p298 = pneg %p84
        $region71: #{resnet_forward.19} parent=68 // pred_check_branch
          %300 = sbr.rel (%p298) target = $region73
        $region72: #{resnet_forward.19} parent=68 // pred_region
          _
        $region73: #{resnet_forward.19} parent=68 // pred_fallthru
          _
        %p301 = scmp.lt.s32.totalorder %s19, 0
        %s302 = scalar_select %p301, %s19, 0
        %p303 = scmp.lt.s32.totalorder %s21, 8
        %s304 = scalar_select %p303, %s21, 8
        %s305 = smul.addr %s302, 9
        %s306 = sadd.s32 %s304, %s305
        %s307 = smul.addr %s306, 4
        %s308 = scalar_lea.vmem %s0, %s307
        %p309 = pneg %p56
        %p310 = pneg %p53
        %s311 = sand.u32 %s71, 1
        %s312 = sand.u32 %s71, 1
        %s313 = smul.addr %s312, 64
        %s314 = scalar_lea.vmem [#allocation3], %s313
        %p315 = pneg %p84
        %p316 = pneg %p81
        %p317 = scmp.lt.s32.totalorder %s20, 1
        %s318 = scalar_select %p317, %s20, 1
        %s319 = scalar_lea.vmem %s2, %s318
        %p320 = pneg %p110
        %p321 = pneg %p107
        %p322 = pneg %p138
        %p323 = pneg %p135
        %p324 = scmp.lt.s32.totalorder %s19, 0
        %s325 = scalar_select %p324, %s19, 0
        %p326 = scmp.lt.s32.totalorder %s20, 1
        %s327 = scalar_select %p326, %s20, 1
        %s328 = smul.addr %s325, 2
        %s329 = sadd.s32 %s327, %s328
        %s330 = smul.addr %s329, 8
        %s331 = scalar_lea.vmem %s3, %s330
        %p332 = scmp.lt.s32.totalorder %s19, 0
        %s333 = scalar_select %p332, %s19, 0
        %p334 = scmp.lt.s32.totalorder %s21, 8
        %s335 = scalar_select %p334, %s21, 8
        %s336 = smul.addr %s333, 9
        %s337 = sadd.s32 %s335, %s336
        %s338 = smul.addr %s337, 4
        %s339 = scalar_lea.vmem %s0, %s338
        %s340 = smul.u32 16, %s21
        %p341 = scmp.lt.s32.totalorder %s20, 1
        %s342 = scalar_select %p341, %s20, 1
        %s343 = scalar_lea.vmem %s2, %s342
        %p344 = scmp.lt.s32.totalorder %s19, 0
        %s345 = scalar_select %p344, %s19, 0
        %p346 = scmp.lt.s32.totalorder %s20, 1
        %s347 = scalar_select %p346, %s20, 1
        %s348 = smul.addr %s345, 2
        %s349 = sadd.s32 %s347, %s348
        %s350 = smul.addr %s349, 8
        %s351 = scalar_lea.vmem %s3, %s350
        %p352 = scmp.eq.s32.totalorder %s21, 0
        // Predicated region
        $region74: #{resnet_forward.19} parent=68 // pred_check
          %p353 = pneg %p352
        $region75: #{resnet_forward.19} parent=68 // pred_check_branch
          %355 = sbr.rel (%p353) target = $region77
        $region76: #{resnet_forward.19} parent=68 // pred_region
          %356 = vst [vmem:[#allocation2] sm:$0xff] 0.0
        $region77: #{resnet_forward.19} parent=68 // pred_fallthru
          _
        %v357 = vld [vmem:[#allocation2] sm:$0xff]
        %v358 = vld [vmem:[%s339] sm:$0xf]
        %v359 = vld [vmem:[%s297] sm:$0xf]
        %v360 = vld [vmem:[%s297 + $0x4] sm:$0xf]
        %v361 = vld [vmem:[%s297 + $0x8] sm:$0xf]
        %v362 = vld [vmem:[%s297 + $0xc] sm:$0xf]
        %v363 = vld [vmem:[%s297 + $0x10] sm:$0xf]
        %v364 = vld [vmem:[%s297 + $0x14] sm:$0xf]
        %v365 = vld [vmem:[%s297 + $0x18] sm:$0xf]
        %v366 = vld [vmem:[%s297 + $0x1c] sm:$0xf]
        %v367 = vld [vmem:[%s297 + $0x20] sm:$0xf]
        %v368 = vld [vmem:[%s297 + $0x24] sm:$0xf]
        %v369 = vld [vmem:[%s297 + $0x28] sm:$0xf]
        %v370 = vld [vmem:[%s297 + $0x2c] sm:$0xf]
        %v371 = vld [vmem:[%s297 + $0x30] sm:$0xf]
        %v372 = vld [vmem:[%s297 + $0x34] sm:$0xf]
        %v373 = vld [vmem:[%s297 + $0x38] sm:$0xf]
        %v374 = vld [vmem:[%s297 + $0x3c] sm:$0xf]
        %v391 = vunpack.c.l.b16 %v359
        %v392 = vunpack.c.l.b16 %v360
        %v393 = vunpack.c.l.b16 %v361
        %v394 = vunpack.c.l.b16 %v362
        %v395 = vunpack.c.l.b16 %v363
        %v396 = vunpack.c.l.b16 %v364
        %v397 = vunpack.c.l.b16 %v365
        %v398 = vunpack.c.l.b16 %v366
        %v399 = vunpack.c.l.b16 %v367
        %v400 = vunpack.c.l.b16 %v368
        %v401 = vunpack.c.l.b16 %v369
        %v402 = vunpack.c.l.b16 %v370
        %v403 = vunpack.c.l.b16 %v371
        %v404 = vunpack.c.l.b16 %v372
        %v405 = vunpack.c.l.b16 %v373
        %v406 = vunpack.c.l.b16 %v374
        %v407 = vpack.c.b16 %v392, %v391
        %v408 = vpack.c.b16 %v394, %v393
        %v409 = vpack.c.b16 %v396, %v395
        %v410 = vpack.c.b16 %v398, %v397
        %v411 = vpack.c.b16 %v400, %v399
        %v412 = vpack.c.b16 %v402, %v401
        %v413 = vpack.c.b16 %v404, %v403
        %v414 = vpack.c.b16 %v406, %v405
        %423 = vmatpush.bf16.msra.mxu0 %v414
        %424 = vmatpush.bf16.msra.mxu0 %v413
        %425 = vmatpush.bf16.msra.mxu0 %v412
        %426 = vmatpush.bf16.msra.mxu0 %v411
        %427 = vmatpush.bf16.msra.mxu0 %v410
        %428 = vmatpush.bf16.msra.mxu0 %v409
        %429 = vmatpush.bf16.msra.mxu0 %v408
        %430 = vmatpush.bf16.msra.mxu0 %v407
        %431 = vmatmul.bf16.gmra.mxu0 %v358
        %v432 = vpop.f32.mrf.mxu0
        %v433 = vadd.f32 0.0, %v432
        %v434 = vpop.f32.mrf.mxu0
        %435 = vdwg.mxu0
        %v436 = vadd.f32 %v357, %v433
        %437 = vst [vmem:[#allocation2] sm:$0xff] %v436
        %p438 = scmp.eq.s32.totalorder %s21, 8
        // Predicated region
        $region78: #{resnet_forward.19} parent=68 // pred_check
          %p439 = pneg %p438
        $region79: #{resnet_forward.19} parent=68 // pred_check_branch
          %441 = sbr.rel (%p439) target = $region81
        $region80: #{resnet_forward.19} parent=68 // pred_region
          %v442 = vld [vmem:[#allocation2] sm:$0xff]
          %v443 = vld [vmem:[%s343] sm:$0x1]
          %v445 = vperm.slane %v443, 0
          %v447 = vadd.f32 %v442, %v445
          %v448 = vmax.f32 %v447, 0.0
          %449 = vst [vmem:[%s351] sm:$0xff] %v448
        $region81: #{resnet_forward.19} parent=68 // pred_fallthru
          _
        %p450 = scmp.lt.s32.totalorder %s19, 0
        %s451 = scalar_select %p450, %s19, 0
        %p452 = scmp.lt.s32.totalorder %s20, 1
        %s453 = scalar_select %p452, %s20, 1
        %s454 = smul.addr %s451, 2
        %s455 = sadd.s32 %s453, %s454
        %s456 = smul.addr %s455, 8
        %s457 = scalar_lea.vmem %s3, %s456
        // Predicated region
        $region82: #{resnet_forward.19} parent=68 // pred_check
          %p458 = pneg %p135
        $region83: #{resnet_forward.19} parent=68 // pred_check_branch
          %460 = sbr.rel (%p458) target = $region85
        $region84: #{resnet_forward.19} parent=68 // pred_region
          _
        $region85: #{resnet_forward.19} parent=68 // pred_fallthru
          _
      $region69: #{resnet_forward.19} parent=5 // pred_fallthru
        _
      %p461 = scmp.le.s32.totalorder 2, %s9
      // Predicated region
      $region86: #{resnet_forward.19} parent=5 // pred_check
        %p462 = pneg %p461
      $region87: #{resnet_forward.19} parent=5 // pred_check_branch
        %464 = sbr.rel (%p462) target = $region89
      $region88: #{resnet_forward.19} parent=5 // pred_region
        %s465 = ssub.s32 %s9, 2
        // Predicated region
        $region90: #{resnet_forward.19} parent=88 // pred_check
          %p466 = pneg %p141
        $region91: #{resnet_forward.19} parent=88 // pred_check_branch
          %468 = sbr.rel (%p466) target = $region93
        $region92: #{resnet_forward.19} parent=88 // pred_region
          %p469 = scmp.lt.s32.totalorder %s22, 0
          %s470 = scalar_select %p469, %s22, 0
          %p471 = scmp.lt.s32.totalorder %s23, 1
          %s472 = scalar_select %p471, %s23, 1
          %s473 = smul.addr %s470, 2
          %s474 = sadd.s32 %s472, %s473
          %s475 = smul.addr %s474, 8
          %s476 = scalar_lea.vmem %s3, %s475
        $region93: #{resnet_forward.19} parent=88 // pred_fallthru
          _
      $region89: #{resnet_forward.19} parent=5 // pred_fallthru
        _
    $region6: #{resnet_forward.19} parent=1 // loop_footer
      %s13 = sadd.s32 1, %s9
    $region7: #{resnet_forward.19} parent=1 // loop_footer_branch
      %8 = sbr.rel target = $region3
    $region8: #{resnet_forward.19} parent=1 // loop_exit
      _

// kernel: resnet_forward.18
$region0: #{resnet_forward.18}
  #allocation0 [shape = 'u32[]', space=smem, size = 0x4, offset = 0x4, fixed_abs, tag = 'smem constant byte address 0x4 - core index']
  #allocation1 [shape = 'u32[72,128]{1,0:T(1,128)}', space=vmem, size = 0x9000, scoped, tag = 'internal scratch']
  #allocation2 [shape = 'f32[8,128]{1,0:T(8,128)}', space=vmem, size = 0x1000, scoped, tag = 'scratch operand']
  %s0 = inlined_call_operand.vmem [shape: bf16[8,128], index: 0, kind: input, shape index: {}]
  %s1 = inlined_call_operand.vmem [shape: bf16[128,256], index: 1, kind: input, shape index: {}]
  %s2 = inlined_call_operand.vmem [shape: f32[1,256], index: 2, kind: input, shape index: {}]
  %s3 = inlined_call_operand.vmem [shape: f32[8,256], index: 3, kind: output, shape index: {}]
  %s4 = sld [smem:[#allocation0]]
  $region94: #{resnet_forward.18} parent=0
    _
  %s6 = ssub.s32 1, %s4
  %s7 = scalar_select 0, %s6, %s4
  $region1: #{resnet_forward.18} parent=0
    #allocation3 [shape = 'u8[65536]{0}', space=vmem, size = 0x10000, scoped, tag = 'input window, operand 1']
    loop: start=0, step=1, limit=4
    $region2: #{resnet_forward.18} parent=1 // loop_pre_header
      _
    $region3: #{resnet_forward.18} parent=1 // loop_header
      %s9 = sphi 0, %s13
      %p10 = scmp.ge.s32.totalorder %s9, 4
      %s16 = sphi 0, %s35
      %s17 = sphi 0, %s31
      %s18 = sphi 0, %s27
      %s19 = sphi 0, %s16
      %s20 = sphi 0, %s17
      %s21 = sphi 0, %s18
      %s22 = sphi 0, %s19
      %s23 = sphi 0, %s20
      %s24 = sphi 0, %s21
      %s40 = sphi 0, %s42
      %s43 = sphi 0, %s40
      %s44 = sphi 0, %s43
      %s60 = sphi 0, %s44
      %s68 = sphi 0, %s70
      %s71 = sphi 0, %s68
      %s72 = sphi 0, %s71
      %s88 = sphi 0, %s72
      %s94 = sphi 0, %s96
      %s97 = sphi 0, %s94
      %s98 = sphi 0, %s97
      %s114 = sphi 0, %s98
      %s122 = sphi 0, %s124
      %s125 = sphi 0, %s122
      %s126 = sphi 0, %s125
      %s142 = sphi 0, %s126
    $region4: #{resnet_forward.18} parent=1 // loop_header_branch
      %12 = sbr.rel (%p10) target = $region8
    $region5: #{resnet_forward.18} parent=1 // loop_body
      %s14 = ssub.s32 %s9, 1
      %s15 = ssub.s32 %s9, 2
      %s25 = sadd.s32 1, %s18
      %p26 = scmp.ge.s32.totalorder %s25, 1
      %s27 = scalar_select %p26, 0, %s25
      %s28 = sadd.s32 1, %s17
      %s29 = scalar_select %p26, %s28, %s17
      %p30 = scmp.ge.s32.totalorder %s29, 2
      %s31 = scalar_select %p30, 0, %s29
      %s32 = sadd.s32 1, %s16
      %s33 = scalar_select %p30, %s32, %s16
      %p34 = scmp.ge.s32.totalorder %s33, 1
      %s35 = scalar_select %p34, 0, %s33
      %s36 = ssub.s32 %s16, %s35
      %s37 = ssub.s32 %s18, %s27
      %s38 = sor.u32 %s36, %s37
      %p39 = scmp.eq.s32.totalorder %s38, 0
      %s41 = sadd.s32 %s40, 1
      %s42 = scalar_select %p39, %s40, %s41
      %p45 = pneg %p39
      %p46 = scmp.eq.s32.totalorder %s9, 1
      %p47 = por %p45, %p46
      %p48 = scmp.ne.s32.totalorder %s40, %s43
      %p49 = scmp.eq.s32.totalorder %s9, 0
      %p50 = por %p48, %p49
      %p51 = scmp.ne.s32.totalorder %s40, %s43
      %p52 = scmp.eq.s32.totalorder %s14, 1
      %p53 = por %p51, %p52
      %p54 = scmp.ne.s32.totalorder %s43, %s44
      %p55 = scmp.eq.s32.totalorder %s14, 0
      %p56 = por %p54, %p55
      %p57 = scmp.ne.s32.totalorder %s43, %s44
      %p58 = scmp.eq.s32.totalorder %s15, 1
      %p59 = por %p57, %p58
      %p61 = scmp.ne.s32.totalorder %s44, %s60
      %p62 = scmp.eq.s32.totalorder %s15, 0
      %p63 = por %p61, %p62
      %s64 = ssub.s32 %s18, %s27
      %s65 = ssub.s32 %s17, %s31
      %s66 = sor.u32 %s64, %s65
      %p67 = scmp.eq.s32.totalorder %s66, 0
      %s69 = sadd.s32 %s68, 1
      %s70 = scalar_select %p67, %s68, %s69
      %p73 = pneg %p67
      %p74 = scmp.eq.s32.totalorder %s9, 1
      %p75 = por %p73, %p74
      %p76 = scmp.ne.s32.totalorder %s68, %s71
      %p77 = scmp.eq.s32.totalorder %s9, 0
      %p78 = por %p76, %p77
      %p79 = scmp.ne.s32.totalorder %s68, %s71
      %p80 = scmp.eq.s32.totalorder %s14, 1
      %p81 = por %p79, %p80
      %p82 = scmp.ne.s32.totalorder %s71, %s72
      %p83 = scmp.eq.s32.totalorder %s14, 0
      %p84 = por %p82, %p83
      %p85 = scmp.ne.s32.totalorder %s71, %s72
      %p86 = scmp.eq.s32.totalorder %s15, 1
      %p87 = por %p85, %p86
      %p89 = scmp.ne.s32.totalorder %s72, %s88
      %p90 = scmp.eq.s32.totalorder %s15, 0
      %p91 = por %p89, %p90
      %s92 = ssub.s32 %s17, %s31
      %p93 = scmp.eq.s32.totalorder %s92, 0
      %s95 = sadd.s32 %s94, 1
      %s96 = scalar_select %p93, %s94, %s95
      %p99 = pneg %p93
      %p100 = scmp.eq.s32.totalorder %s9, 1
      %p101 = por %p99, %p100
      %p102 = scmp.ne.s32.totalorder %s94, %s97
      %p103 = scmp.eq.s32.totalorder %s9, 0
      %p104 = por %p102, %p103
      %p105 = scmp.ne.s32.totalorder %s94, %s97
      %p106 = scmp.eq.s32.totalorder %s14, 1
      %p107 = por %p105, %p106
      %p108 = scmp.ne.s32.totalorder %s97, %s98
      %p109 = scmp.eq.s32.totalorder %s14, 0
      %p110 = por %p108, %p109
      %p111 = scmp.ne.s32.totalorder %s97, %s98
      %p112 = scmp.eq.s32.totalorder %s15, 1
      %p113 = por %p111, %p112
      %p115 = scmp.ne.s32.totalorder %s98, %s114
      %p116 = scmp.eq.s32.totalorder %s15, 0
      %p117 = por %p115, %p116
      %s118 = ssub.s32 %s16, %s35
      %s119 = ssub.s32 %s17, %s31
      %s120 = sor.u32 %s118, %s119
      %p121 = scmp.eq.s32.totalorder %s120, 0
      %s123 = sadd.s32 %s122, 1
      %s124 = scalar_select %p121, %s122, %s123
      %p127 = pneg %p121
      %p128 = scmp.eq.s32.totalorder %s9, 1
      %p129 = por %p127, %p128
      %p130 = scmp.ne.s32.totalorder %s122, %s125
      %p131 = scmp.eq.s32.totalorder %s9, 0
      %p132 = por %p130, %p131
      %p133 = scmp.ne.s32.totalorder %s122, %s125
      %p134 = scmp.eq.s32.totalorder %s14, 1
      %p135 = por %p133, %p134
      %p136 = scmp.ne.s32.totalorder %s125, %s126
      %p137 = scmp.eq.s32.totalorder %s14, 0
      %p138 = por %p136, %p137
      %p139 = scmp.ne.s32.totalorder %s125, %s126
      %p140 = scmp.eq.s32.totalorder %s15, 1
      %p141 = por %p139, %p140
      %p143 = scmp.ne.s32.totalorder %s126, %s142
      %p144 = scmp.eq.s32.totalorder %s15, 0
      %p145 = por %p143, %p144
      %p146 = scmp.le.s32.totalorder 1, %s9
      %p147 = scmp.lt.s32.totalorder %s9, 3
      %p148 = pnand %p146, %p147
      %p149 = pneg %p148
      // Predicated region
      $region9: #{resnet_forward.18} parent=5 // pred_check
        _
      $region10: #{resnet_forward.18} parent=5 // pred_check_branch
        %151 = sbr.rel (%p148) target = $region12
      $region11: #{resnet_forward.18} parent=5 // pred_region
        %s152 = ssub.s32 %s9, 1
        // Predicated region
        $region13: #{resnet_forward.18} parent=11 // pred_check
          %p153 = pneg %p56
        $region14: #{resnet_forward.18} parent=11 // pred_check_branch
          %155 = sbr.rel (%p153) target = $region16
        $region15: #{resnet_forward.18} parent=11 // pred_region
          %p156 = scmp.lt.s32.totalorder %s19, 0
          %s157 = scalar_select %p156, %s19, 0
          %p158 = scmp.lt.s32.totalorder %s21, 0
          %s159 = scalar_select %p158, %s21, 0
          %s160 = sadd.s32 %s159, %s157
          %s161 = smul.addr %s160, 4
          %s162 = scalar_lea.vmem %s0, %s161
        $region16: #{resnet_forward.18} parent=11 // pred_fallthru
          _
      $region12: #{resnet_forward.18} parent=5 // pred_fallthru
        _
      %p163 = scmp.lt.s32.totalorder %s9, 2
      // Predicated region
      $region17: #{resnet_forward.18} parent=5 // pred_check
        %p164 = pneg %p163
      $region18: #{resnet_forward.18} parent=5 // pred_check_branch
        %166 = sbr.rel (%p164) target = $region20
      $region19: #{resnet_forward.18} parent=5 // pred_region
        // Predicated region
        $region21: #{resnet_forward.18} parent=19 // pred_check
          %p167 = pneg %p78
        $region22: #{resnet_forward.18} parent=19 // pred_check_branch
          %169 = sbr.rel (%p167) target = $region24
        $region23: #{resnet_forward.18} parent=19 // pred_region
          %s170 = sand.u32 %s68, 1
          %s171 = sand.u32 %s68, 1
          %s172 = smul.addr %s171, 64
          %s173 = scalar_lea.vmem [#allocation3], %s172
          %s174 = smul.u32 16, %s18
          %s175 = smul.addr %s174, 2
          %s176 = sadd.s32 %s17, %s175
          %s177 = smul.addr %s176, 4
          %s178 = scalar_lea.vmem %s1, %s177
          // Predicated region
          $region25: #{resnet_forward.18} parent=23 // pred_check
            _
          $region26: #{resnet_forward.18} parent=23 // pred_check_branch
            %180 = sbr.rel (0) target = $region28
          $region27: #{resnet_forward.18} parent=23 // pred_region
            // Predicated region
            $region29: #{resnet_forward.18} parent=27 // pred_check
              _
            $region30: #{resnet_forward.18} parent=27 // pred_check_branch
              %182 = sbr.rel target = $region32
            $region31: #{resnet_forward.18} parent=27 // pred_region
              // Predicated region
              $region44: #{resnet_forward.18} parent=31 // pred_check
                _
              $region45: #{resnet_forward.18} parent=31 // pred_check_branch
                %228 = sbr.rel (0) target = $region47
              $region46: #{resnet_forward.18} parent=31 // pred_region
                loop: start=0, step=1, limit=1
                $region48: #{resnet_forward.18} parent=46 // loop_pre_header
                  _
                $region49: #{resnet_forward.18} parent=46 // loop_header
                  %s230 = sphi 0, %s234
                  %p231 = scmp.ge.s32.totalorder %s230, 1
                  %s235 = sphi %s178, %s178
                  %s236 = sphi %s173, %s173
                $region50: #{resnet_forward.18} parent=46 // loop_header_branch
                  %233 = sbr.rel (%p231) target = $region54
                $region51: #{resnet_forward.18} parent=46 // loop_body
                  _
                $region52: #{resnet_forward.18} parent=46 // loop_footer
                  %s234 = sadd.s32 1, %s230
                $region53: #{resnet_forward.18} parent=46 // loop_footer_branch
                  %229 = sbr.rel target = $region49
                $region54: #{resnet_forward.18} parent=46 // loop_exit
                  _
                %s238 = ssub.s32 16, 1
                loop: start=0, step=1, limit=1
                $region55: #{resnet_forward.18} parent=46 // loop_pre_header
                  _
                $region56: #{resnet_forward.18} parent=46 // loop_header
                  %s240 = sphi 0, %s244
                  %p241 = scmp.ge.s32.totalorder %s240, 1
                  %s245 = sphi %s178, %s178
                  %s246 = sphi %s173, %s173
                $region57: #{resnet_forward.18} parent=46 // loop_header_branch
                  %243 = sbr.rel (%p241) target = $region61
                $region58: #{resnet_forward.18} parent=46 // loop_body
                  %v247 = vld [vmem:[%s245] sm:%s238]
                  %248 = vst [vmem:[%s246] sm:%s238] %v247
                  %v249 = vld [vmem:[%s245 + $0x8] sm:%s238]
                  %250 = vst [vmem:[%s246 + $0x4] sm:%s238] %v249
                  %v251 = vld [vmem:[%s245 + $0x10] sm:%s238]
                  %252 = vst [vmem:[%s246 + $0x8] sm:%s238] %v251
                  %v253 = vld [vmem:[%s245 + $0x18] sm:%s238]
                  %254 = vst [vmem:[%s246 + $0xc] sm:%s238] %v253
                  %v255 = vld [vmem:[%s245 + $0x20] sm:%s238]
                  %256 = vst [vmem:[%s246 + $0x10] sm:%s238] %v255
                  %v257 = vld [vmem:[%s245 + $0x28] sm:%s238]
                  %258 = vst [vmem:[%s246 + $0x14] sm:%s238] %v257
                  %v259 = vld [vmem:[%s245 + $0x30] sm:%s238]
                  %260 = vst [vmem:[%s246 + $0x18] sm:%s238] %v259
                  %v261 = vld [vmem:[%s245 + $0x38] sm:%s238]
                  %262 = vst [vmem:[%s246 + $0x1c] sm:%s238] %v261
                  %v263 = vld [vmem:[%s245 + $0x40] sm:%s238]
                  %264 = vst [vmem:[%s246 + $0x20] sm:%s238] %v263
                  %v265 = vld [vmem:[%s245 + $0x48] sm:%s238]
                  %266 = vst [vmem:[%s246 + $0x24] sm:%s238] %v265
                  %v267 = vld [vmem:[%s245 + $0x50] sm:%s238]
                  %268 = vst [vmem:[%s246 + $0x28] sm:%s238] %v267
                  %v269 = vld [vmem:[%s245 + $0x58] sm:%s238]
                  %270 = vst [vmem:[%s246 + $0x2c] sm:%s238] %v269
                  %v271 = vld [vmem:[%s245 + $0x60] sm:%s238]
                  %272 = vst [vmem:[%s246 + $0x30] sm:%s238] %v271
                  %v273 = vld [vmem:[%s245 + $0x68] sm:%s238]
                  %274 = vst [vmem:[%s246 + $0x34] sm:%s238] %v273
                  %v275 = vld [vmem:[%s245 + $0x70] sm:%s238]
                  %276 = vst [vmem:[%s246 + $0x38] sm:%s238] %v275
                  %v277 = vld [vmem:[%s245 + $0x78] sm:%s238]
                  %278 = vst [vmem:[%s246 + $0x3c] sm:%s238] %v277
                $region59: #{resnet_forward.18} parent=46 // loop_footer
                  %s244 = sadd.s32 1, %s240
                $region60: #{resnet_forward.18} parent=46 // loop_footer_branch
                  %239 = sbr.rel target = $region56
                $region61: #{resnet_forward.18} parent=46 // loop_exit
                  _
              $region47: #{resnet_forward.18} parent=31 // pred_fallthru
                _
            $region32: #{resnet_forward.18} parent=27 // pred_fallthru
              _
            // Predicated region
            $region33: #{resnet_forward.18} parent=27 // pred_check
              _
            $region34: #{resnet_forward.18} parent=27 // pred_check_branch
              %184 = sbr.rel (0) target = $region36
            $region35: #{resnet_forward.18} parent=27 // pred_region
              %s186 = ssub.s32 16, 1
              loop: start=0, step=1, limit=1
              $region37: #{resnet_forward.18} parent=35 // loop_pre_header
                _
              $region38: #{resnet_forward.18} parent=35 // loop_header
                %s188 = sphi 0, %s192
                %p189 = scmp.ge.s32.totalorder %s188, 1
                %s193 = sphi %s178, %s178
                %s194 = sphi %s173, %s173
              $region39: #{resnet_forward.18} parent=35 // loop_header_branch
                %191 = sbr.rel (%p189) target = $region43
              $region40: #{resnet_forward.18} parent=35 // loop_body
                %v195 = vld [vmem:[%s193] sm:%s186]
                %196 = vst [vmem:[%s194] sm:%s186] %v195
                %v197 = vld [vmem:[%s193 + $0x8] sm:%s186]
                %198 = vst [vmem:[%s194 + $0x4] sm:%s186] %v197
                %v199 = vld [vmem:[%s193 + $0x10] sm:%s186]
                %200 = vst [vmem:[%s194 + $0x8] sm:%s186] %v199
                %v201 = vld [vmem:[%s193 + $0x18] sm:%s186]
                %202 = vst [vmem:[%s194 + $0xc] sm:%s186] %v201
                %v203 = vld [vmem:[%s193 + $0x20] sm:%s186]
                %204 = vst [vmem:[%s194 + $0x10] sm:%s186] %v203
                %v205 = vld [vmem:[%s193 + $0x28] sm:%s186]
                %206 = vst [vmem:[%s194 + $0x14] sm:%s186] %v205
                %v207 = vld [vmem:[%s193 + $0x30] sm:%s186]
                %208 = vst [vmem:[%s194 + $0x18] sm:%s186] %v207
                %v209 = vld [vmem:[%s193 + $0x38] sm:%s186]
                %210 = vst [vmem:[%s194 + $0x1c] sm:%s186] %v209
                %v211 = vld [vmem:[%s193 + $0x40] sm:%s186]
                %212 = vst [vmem:[%s194 + $0x20] sm:%s186] %v211
                %v213 = vld [vmem:[%s193 + $0x48] sm:%s186]
                %214 = vst [vmem:[%s194 + $0x24] sm:%s186] %v213
                %v215 = vld [vmem:[%s193 + $0x50] sm:%s186]
                %216 = vst [vmem:[%s194 + $0x28] sm:%s186] %v215
                %v217 = vld [vmem:[%s193 + $0x58] sm:%s186]
                %218 = vst [vmem:[%s194 + $0x2c] sm:%s186] %v217
                %v219 = vld [vmem:[%s193 + $0x60] sm:%s186]
                %220 = vst [vmem:[%s194 + $0x30] sm:%s186] %v219
                %v221 = vld [vmem:[%s193 + $0x68] sm:%s186]
                %222 = vst [vmem:[%s194 + $0x34] sm:%s186] %v221
                %v223 = vld [vmem:[%s193 + $0x70] sm:%s186]
                %224 = vst [vmem:[%s194 + $0x38] sm:%s186] %v223
                %v225 = vld [vmem:[%s193 + $0x78] sm:%s186]
                %226 = vst [vmem:[%s194 + $0x3c] sm:%s186] %v225
              $region41: #{resnet_forward.18} parent=35 // loop_footer
                %s192 = sadd.s32 1, %s188
              $region42: #{resnet_forward.18} parent=35 // loop_footer_branch
                %187 = sbr.rel target = $region38
              $region43: #{resnet_forward.18} parent=35 // loop_exit
                _
            $region36: #{resnet_forward.18} parent=27 // pred_fallthru
              _
          $region28: #{resnet_forward.18} parent=23 // pred_fallthru
            _
          %279 = vnop
        $region24: #{resnet_forward.18} parent=19 // pred_fallthru
          _
        // Predicated region
        $region62: #{resnet_forward.18} parent=19 // pred_check
          %p280 = pneg %p104
        $region63: #{resnet_forward.18} parent=19 // pred_check_branch
          %282 = sbr.rel (%p280) target = $region65
        $region64: #{resnet_forward.18} parent=19 // pred_region
          %p283 = scmp.lt.s32.totalorder %s17, 1
          %s284 = scalar_select %p283, %s17, 1
          %s285 = scalar_lea.vmem %s2, %s284
        $region65: #{resnet_forward.18} parent=19 // pred_fallthru
          _
      $region20: #{resnet_forward.18} parent=5 // pred_fallthru
        _
      %p286 = scmp.le.s32.totalorder 1, %s9
      %p287 = scmp.lt.s32.totalorder %s9, 3
      %p288 = pnand %p286, %p287
      %p289 = pneg %p288
      // Predicated region
      $region66: #{resnet_forward.18} parent=5 // pred_check
        _
      $region67: #{resnet_forward.18} parent=5 // pred_check_branch
        %291 = sbr.rel (%p288) target = $region69
      $region68: #{resnet_forward.18} parent=5 // pred_region
        %s292 = ssub.s32 %s9, 1
        %s293 = sand.u32 %s71, 1
        %s294 = sand.u32 %s71, 1
        %s295 = smul.addr %s294, 64
        %s296 = scalar_lea.vmem [#allocation3], %s295
        // Predicated region
        $region70: #{resnet_forward.18} parent=68 // pred_check
          %p297 = pneg %p84
        $region71: #{resnet_forward.18} parent=68 // pred_check_branch
          %299 = sbr.rel (%p297) target = $region73
        $region72: #{resnet_forward.18} parent=68 // pred_region
          _
        $region73: #{resnet_forward.18} parent=68 // pred_fallthru
          _
        %p300 = scmp.lt.s32.totalorder %s19, 0
        %s301 = scalar_select %p300, %s19, 0
        %p302 = scmp.lt.s32.totalorder %s21, 0
        %s303 = scalar_select %p302, %s21, 0
        %s304 = sadd.s32 %s303, %s301
        %s305 = smul.addr %s304, 4
        %s306 = scalar_lea.vmem %s0, %s305
        %p307 = pneg %p56
        %p308 = pneg %p53
        %s309 = sand.u32 %s71, 1
        %s310 = sand.u32 %s71, 1
        %s311 = smul.addr %s310, 64
        %s312 = scalar_lea.vmem [#allocation3], %s311
        %p313 = pneg %p84
        %p314 = pneg %p81
        %p315 = scmp.lt.s32.totalorder %s20, 1
        %s316 = scalar_select %p315, %s20, 1
        %s317 = scalar_lea.vmem %s2, %s316
        %p318 = pneg %p110
        %p319 = pneg %p107
        %p320 = pneg %p138
        %p321 = pneg %p135
        %p322 = scmp.lt.s32.totalorder %s19, 0
        %s323 = scalar_select %p322, %s19, 0
        %p324 = scmp.lt.s32.totalorder %s20, 1
        %s325 = scalar_select %p324, %s20, 1
        %s326 = smul.addr %s323, 2
        %s327 = sadd.s32 %s325, %s326
        %s328 = smul.addr %s327, 8
        %s329 = scalar_lea.vmem %s3, %s328
        %p330 = scmp.lt.s32.totalorder %s19, 0
        %s331 = scalar_select %p330, %s19, 0
        %p332 = scmp.lt.s32.totalorder %s21, 0
        %s333 = scalar_select %p332, %s21, 0
        %s334 = sadd.s32 %s333, %s331
        %s335 = smul.addr %s334, 4
        %s336 = scalar_lea.vmem %s0, %s335
        %s337 = smul.u32 16, %s21
        %p338 = scmp.lt.s32.totalorder %s20, 1
        %s339 = scalar_select %p338, %s20, 1
        %s340 = scalar_lea.vmem %s2, %s339
        %p341 = scmp.lt.s32.totalorder %s19, 0
        %s342 = scalar_select %p341, %s19, 0
        %p343 = scmp.lt.s32.totalorder %s20, 1
        %s344 = scalar_select %p343, %s20, 1
        %s345 = smul.addr %s342, 2
        %s346 = sadd.s32 %s344, %s345
        %s347 = smul.addr %s346, 8
        %s348 = scalar_lea.vmem %s3, %s347
        %p349 = scmp.eq.s32.totalorder %s21, 0
        // Predicated region
        $region74: #{resnet_forward.18} parent=68 // pred_check
          %p350 = pneg %p349
        $region75: #{resnet_forward.18} parent=68 // pred_check_branch
          %352 = sbr.rel (%p350) target = $region77
        $region76: #{resnet_forward.18} parent=68 // pred_region
          %353 = vst [vmem:[#allocation2] sm:$0xff] 0.0
        $region77: #{resnet_forward.18} parent=68 // pred_fallthru
          _
        %v354 = vld [vmem:[#allocation2] sm:$0xff]
        %v355 = vld [vmem:[%s336] sm:$0xf]
        %v356 = vld [vmem:[%s296] sm:$0xf]
        %v357 = vld [vmem:[%s296 + $0x4] sm:$0xf]
        %v358 = vld [vmem:[%s296 + $0x8] sm:$0xf]
        %v359 = vld [vmem:[%s296 + $0xc] sm:$0xf]
        %v360 = vld [vmem:[%s296 + $0x10] sm:$0xf]
        %v361 = vld [vmem:[%s296 + $0x14] sm:$0xf]
        %v362 = vld [vmem:[%s296 + $0x18] sm:$0xf]
        %v363 = vld [vmem:[%s296 + $0x1c] sm:$0xf]
        %v364 = vld [vmem:[%s296 + $0x20] sm:$0xf]
        %v365 = vld [vmem:[%s296 + $0x24] sm:$0xf]
        %v366 = vld [vmem:[%s296 + $0x28] sm:$0xf]
        %v367 = vld [vmem:[%s296 + $0x2c] sm:$0xf]
        %v368 = vld [vmem:[%s296 + $0x30] sm:$0xf]
        %v369 = vld [vmem:[%s296 + $0x34] sm:$0xf]
        %v370 = vld [vmem:[%s296 + $0x38] sm:$0xf]
        %v371 = vld [vmem:[%s296 + $0x3c] sm:$0xf]
        %v388 = vunpack.c.l.b16 %v356
        %v389 = vunpack.c.l.b16 %v357
        %v390 = vunpack.c.l.b16 %v358
        %v391 = vunpack.c.l.b16 %v359
        %v392 = vunpack.c.l.b16 %v360
        %v393 = vunpack.c.l.b16 %v361
        %v394 = vunpack.c.l.b16 %v362
        %v395 = vunpack.c.l.b16 %v363
        %v396 = vunpack.c.l.b16 %v364
        %v397 = vunpack.c.l.b16 %v365
        %v398 = vunpack.c.l.b16 %v366
        %v399 = vunpack.c.l.b16 %v367
        %v400 = vunpack.c.l.b16 %v368
        %v401 = vunpack.c.l.b16 %v369
        %v402 = vunpack.c.l.b16 %v370
        %v403 = vunpack.c.l.b16 %v371
        %v404 = vpack.c.b16 %v389, %v388
        %v405 = vpack.c.b16 %v391, %v390
        %v406 = vpack.c.b16 %v393, %v392
        %v407 = vpack.c.b16 %v395, %v394
        %v408 = vpack.c.b16 %v397, %v396
        %v409 = vpack.c.b16 %v399, %v398
        %v410 = vpack.c.b16 %v401, %v400
        %v411 = vpack.c.b16 %v403, %v402
        %420 = vmatpush.bf16.msra.mxu0 %v411
        %421 = vmatpush.bf16.msra.mxu0 %v410
        %422 = vmatpush.bf16.msra.mxu0 %v409
        %423 = vmatpush.bf16.msra.mxu0 %v408
        %424 = vmatpush.bf16.msra.mxu0 %v407
        %425 = vmatpush.bf16.msra.mxu0 %v406
        %426 = vmatpush.bf16.msra.mxu0 %v405
        %427 = vmatpush.bf16.msra.mxu0 %v404
        %428 = vmatmul.bf16.gmra.mxu0 %v355
        %v429 = vpop.f32.mrf.mxu0
        %v430 = vadd.f32 0.0, %v429
        %v431 = vpop.f32.mrf.mxu0
        %432 = vdwg.mxu0
        %v433 = vadd.f32 %v354, %v430
        %434 = vst [vmem:[#allocation2] sm:$0xff] %v433
        // Predicated region
        $region78: #{resnet_forward.18} parent=68 // pred_check
          %p435 = pneg %p349
        $region79: #{resnet_forward.18} parent=68 // pred_check_branch
          %437 = sbr.rel (%p435) target = $region81
        $region80: #{resnet_forward.18} parent=68 // pred_region
          %v438 = vld [vmem:[#allocation2] sm:$0xff]
          %v439 = vld [vmem:[%s340] sm:$0x1]
          %v441 = vperm.slane %v439, 0
          %v443 = vadd.f32 %v438, %v441
          %444 = vst [vmem:[%s348] sm:$0xff] %v443
        $region81: #{resnet_forward.18} parent=68 // pred_fallthru
          _
        %p445 = scmp.lt.s32.totalorder %s19, 0
        %s446 = scalar_select %p445, %s19, 0
        %p447 = scmp.lt.s32.totalorder %s20, 1
        %s448 = scalar_select %p447, %s20, 1
        %s449 = smul.addr %s446, 2
        %s450 = sadd.s32 %s448, %s449
        %s451 = smul.addr %s450, 8
        %s452 = scalar_lea.vmem %s3, %s451
        // Predicated region
        $region82: #{resnet_forward.18} parent=68 // pred_check
          %p453 = pneg %p135
        $region83: #{resnet_forward.18} parent=68 // pred_check_branch
          %455 = sbr.rel (%p453) target = $region85
        $region84: #{resnet_forward.18} parent=68 // pred_region
          _
        $region85: #{resnet_forward.18} parent=68 // pred_fallthru
          _
      $region69: #{resnet_forward.18} parent=5 // pred_fallthru
        _
      %p456 = scmp.le.s32.totalorder 2, %s9
      // Predicated region
      $region86: #{resnet_forward.18} parent=5 // pred_check
        %p457 = pneg %p456
      $region87: #{resnet_forward.18} parent=5 // pred_check_branch
        %459 = sbr.rel (%p457) target = $region89
      $region88: #{resnet_forward.18} parent=5 // pred_region
        %s460 = ssub.s32 %s9, 2
        // Predicated region
        $region90: #{resnet_forward.18} parent=88 // pred_check
          %p461 = pneg %p141
        $region91: #{resnet_forward.18} parent=88 // pred_check_branch
          %463 = sbr.rel (%p461) target = $region93
        $region92: #{resnet_forward.18} parent=88 // pred_region
          %p464 = scmp.lt.s32.totalorder %s22, 0
          %s465 = scalar_select %p464, %s22, 0
          %p466 = scmp.lt.s32.totalorder %s23, 1
          %s467 = scalar_select %p466, %s23, 1
          %s468 = smul.addr %s465, 2
          %s469 = sadd.s32 %s467, %s468
          %s470 = smul.addr %s469, 8
          %s471 = scalar_lea.vmem %s3, %s470
        $region93: #{resnet_forward.18} parent=88 // pred_fallthru
          _
      $region89: #{resnet_forward.18} parent=5 // pred_fallthru
        _
    $region6: #{resnet_forward.18} parent=1 // loop_footer
      %s13 = sadd.s32 1, %s9
    $region7: #{resnet_forward.18} parent=1 // loop_footer_branch
      %8 = sbr.rel target = $region3
    $region8: #{resnet_forward.18} parent=1 // loop_exit
      _

// kernel: resnet_forward.20
$region0: #{resnet_forward.20}
  #allocation0 [shape = 'u32[]', space=smem, size = 0x4, offset = 0x4, fixed_abs, tag = 'smem constant byte address 0x4 - core index']
  #allocation1 [shape = 'u32[72,128]{1,0:T(1,128)}', space=vmem, size = 0x9000, scoped, tag = 'internal scratch']
  #allocation2 [shape = 'f32[8,128]{1,0:T(8,128)}', space=vmem, size = 0x1000, scoped, tag = 'scratch operand']
  %s0 = inlined_call_operand.vmem [shape: bf16[8,2304], index: 0, kind: input, shape index: {}]
  %s1 = inlined_call_operand.vmem [shape: bf16[2304,256], index: 1, kind: input, shape index: {}]
  %s2 = inlined_call_operand.vmem [shape: f32[1,256], index: 2, kind: input, shape index: {}]
  %s3 = inlined_call_operand.vmem [shape: f32[8,256], index: 3, kind: input, shape index: {}]
  %s4 = inlined_call_operand.vmem [shape: f32[8,256], index: 4, kind: output, shape index: {}]
  %s5 = sld [smem:[#allocation0]]
  $region98: #{resnet_forward.20} parent=0
    _
  %s7 = ssub.s32 1, %s5
  %s8 = scalar_select 0, %s7, %s5
  $region1: #{resnet_forward.20} parent=0
    #allocation3 [shape = 'u8[65536]{0}', space=vmem, size = 0x10000, scoped, tag = 'input window, operand 1']
    loop: start=0, step=1, limit=38
    $region2: #{resnet_forward.20} parent=1 // loop_pre_header
      _
    $region3: #{resnet_forward.20} parent=1 // loop_header
      %s10 = sphi 0, %s14
      %p11 = scmp.ge.s32.totalorder %s10, 38
      %s17 = sphi 0, %s36
      %s18 = sphi 0, %s32
      %s19 = sphi 0, %s28
      %s20 = sphi 0, %s17
      %s21 = sphi 0, %s18
      %s22 = sphi 0, %s19
      %s23 = sphi 0, %s20
      %s24 = sphi 0, %s21
      %s25 = sphi 0, %s22
      %s41 = sphi 0, %s43
      %s44 = sphi 0, %s41
      %s45 = sphi 0, %s44
      %s61 = sphi 0, %s45
      %s69 = sphi 0, %s71
      %s72 = sphi 0, %s69
      %s73 = sphi 0, %s72
      %s89 = sphi 0, %s73
      %s95 = sphi 0, %s97
      %s98 = sphi 0, %s95
      %s99 = sphi 0, %s98
      %s115 = sphi 0, %s99
      %s123 = sphi 0, %s125
      %s126 = sphi 0, %s123
      %s127 = sphi 0, %s126
      %s143 = sphi 0, %s127
      %s151 = sphi 0, %s153
      %s154 = sphi 0, %s151
      %s155 = sphi 0, %s154
      %s171 = sphi 0, %s155
    $region4: #{resnet_forward.20} parent=1 // loop_header_branch
      %13 = sbr.rel (%p11) target = $region8
    $region5: #{resnet_forward.20} parent=1 // loop_body
      %s15 = ssub.s32 %s10, 1
      %s16 = ssub.s32 %s10, 2
      %s26 = sadd.s32 1, %s19
      %p27 = scmp.ge.s32.totalorder %s26, 18
      %s28 = scalar_select %p27, 0, %s26
      %s29 = sadd.s32 1, %s18
      %s30 = scalar_select %p27, %s29, %s18
      %p31 = scmp.ge.s32.totalorder %s30, 2
      %s32 = scalar_select %p31, 0, %s30
      %s33 = sadd.s32 1, %s17
      %s34 = scalar_select %p31, %s33, %s17
      %p35 = scmp.ge.s32.totalorder %s34, 1
      %s36 = scalar_select %p35, 0, %s34
      %s37 = ssub.s32 %s17, %s36
      %s38 = ssub.s32 %s19, %s28
      %s39 = sor.u32 %s37, %s38
      %p40 = scmp.eq.s32.totalorder %s39, 0
      %s42 = sadd.s32 %s41, 1
      %s43 = scalar_select %p40, %s41, %s42
      %p46 = pneg %p40
      %p47 = scmp.eq.s32.totalorder %s10, 35
      %p48 = por %p46, %p47
      %p49 = scmp.ne.s32.totalorder %s41, %s44
      %p50 = scmp.eq.s32.totalorder %s10, 0
      %p51 = por %p49, %p50
      %p52 = scmp.ne.s32.totalorder %s41, %s44
      %p53 = scmp.eq.s32.totalorder %s15, 35
      %p54 = por %p52, %p53
      %p55 = scmp.ne.s32.totalorder %s44, %s45
      %p56 = scmp.eq.s32.totalorder %s15, 0
      %p57 = por %p55, %p56
      %p58 = scmp.ne.s32.totalorder %s44, %s45
      %p59 = scmp.eq.s32.totalorder %s16, 35
      %p60 = por %p58, %p59
      %p62 = scmp.ne.s32.totalorder %s45, %s61
      %p63 = scmp.eq.s32.totalorder %s16, 0
      %p64 = por %p62, %p63
      %s65 = ssub.s32 %s19, %s28
      %s66 = ssub.s32 %s18, %s32
      %s67 = sor.u32 %s65, %s66
      %p68 = scmp.eq.s32.totalorder %s67, 0
      %s70 = sadd.s32 %s69, 1
      %s71 = scalar_select %p68, %s69, %s70
      %p74 = pneg %p68
      %p75 = scmp.eq.s32.totalorder %s10, 35
      %p76 = por %p74, %p75
      %p77 = scmp.ne.s32.totalorder %s69, %s72
      %p78 = scmp.eq.s32.totalorder %s10, 0
      %p79 = por %p77, %p78
      %p80 = scmp.ne.s32.totalorder %s69, %s72
      %p81 = scmp.eq.s32.totalorder %s15, 35
      %p82 = por %p80, %p81
      %p83 = scmp.ne.s32.totalorder %s72, %s73
      %p84 = scmp.eq.s32.totalorder %s15, 0
      %p85 = por %p83, %p84
      %p86 = scmp.ne.s32.totalorder %s72, %s73
      %p87 = scmp.eq.s32.totalorder %s16, 35
      %p88 = por %p86, %p87
      %p90 = scmp.ne.s32.totalorder %s73, %s89
      %p91 = scmp.eq.s32.totalorder %s16, 0
      %p92 = por %p90, %p91
      %s93 = ssub.s32 %s18, %s32
      %p94 = scmp.eq.s32.totalorder %s93, 0
      %s96 = sadd.s32 %s95, 1
      %s97 = scalar_select %p94, %s95, %s96
      %p100 = pneg %p94
      %p101 = scmp.eq.s32.totalorder %s10, 35
      %p102 = por %p100, %p101
      %p103 = scmp.ne.s32.totalorder %s95, %s98
      %p104 = scmp.eq.s32.totalorder %s10, 0
      %p105 = por %p103, %p104
      %p106 = scmp.ne.s32.totalorder %s95, %s98
      %p107 = scmp.eq.s32.totalorder %s15, 35
      %p108 = por %p106, %p107
      %p109 = scmp.ne.s32.totalorder %s98, %s99
      %p110 = scmp.eq.s32.totalorder %s15, 0
      %p111 = por %p109, %p110
      %p112 = scmp.ne.s32.totalorder %s98, %s99
      %p113 = scmp.eq.s32.totalorder %s16, 35
      %p114 = por %p112, %p113
      %p116 = scmp.ne.s32.totalorder %s99, %s115
      %p117 = scmp.eq.s32.totalorder %s16, 0
      %p118 = por %p116, %p117
      %s119 = ssub.s32 %s17, %s36
      %s120 = ssub.s32 %s18, %s32
      %s121 = sor.u32 %s119, %s120
      %p122 = scmp.eq.s32.totalorder %s121, 0
      %s124 = sadd.s32 %s123, 1
      %s125 = scalar_select %p122, %s123, %s124
      %p128 = pneg %p122
      %p129 = scmp.eq.s32.totalorder %s10, 35
      %p130 = por %p128, %p129
      %p131 = scmp.ne.s32.totalorder %s123, %s126
      %p132 = scmp.eq.s32.totalorder %s10, 0
      %p133 = por %p131, %p132
      %p134 = scmp.ne.s32.totalorder %s123, %s126
      %p135 = scmp.eq.s32.totalorder %s15, 35
      %p136 = por %p134, %p135
      %p137 = scmp.ne.s32.totalorder %s126, %s127
      %p138 = scmp.eq.s32.totalorder %s15, 0
      %p139 = por %p137, %p138
      %p140 = scmp.ne.s32.totalorder %s126, %s127
      %p141 = scmp.eq.s32.totalorder %s16, 35
      %p142 = por %p140, %p141
      %p144 = scmp.ne.s32.totalorder %s127, %s143
      %p145 = scmp.eq.s32.totalorder %s16, 0
      %p146 = por %p144, %p145
      %s147 = ssub.s32 %s17, %s36
      %s148 = ssub.s32 %s18, %s32
      %s149 = sor.u32 %s147, %s148
      %p150 = scmp.eq.s32.totalorder %s149, 0
      %s152 = sadd.s32 %s151, 1
      %s153 = scalar_select %p150, %s151, %s152
      %p156 = pneg %p150
      %p157 = scmp.eq.s32.totalorder %s10, 35
      %p158 = por %p156, %p157
      %p159 = scmp.ne.s32.totalorder %s151, %s154
      %p160 = scmp.eq.s32.totalorder %s10, 0
      %p161 = por %p159, %p160
      %p162 = scmp.ne.s32.totalorder %s151, %s154
      %p163 = scmp.eq.s32.totalorder %s15, 35
      %p164 = por %p162, %p163
      %p165 = scmp.ne.s32.totalorder %s154, %s155
      %p166 = scmp.eq.s32.totalorder %s15, 0
      %p167 = por %p165, %p166
      %p168 = scmp.ne.s32.totalorder %s154, %s155
      %p169 = scmp.eq.s32.totalorder %s16, 35
      %p170 = por %p168, %p169
      %p172 = scmp.ne.s32.totalorder %s155, %s171
      %p173 = scmp.eq.s32.totalorder %s16, 0
      %p174 = por %p172, %p173
      %p175 = scmp.le.s32.totalorder 1, %s10
      %p176 = scmp.lt.s32.totalorder %s10, 37
      %p177 = pnand %p175, %p176
      %p178 = pneg %p177
      // Predicated region
      $region9: #{resnet_forward.20} parent=5 // pred_check
        _
      $region10: #{resnet_forward.20} parent=5 // pred_check_branch
        %180 = sbr.rel (%p177) target = $region12
      $region11: #{resnet_forward.20} parent=5 // pred_region
        %s181 = ssub.s32 %s10, 1
      $region12: #{resnet_forward.20} parent=5 // pred_fallthru
        _
      %p182 = scmp.lt.s32.totalorder %s10, 36
      // Predicated region
      $region13: #{resnet_forward.20} parent=5 // pred_check
        %p183 = pneg %p182
      $region14: #{resnet_forward.20} parent=5 // pred_check_branch
        %185 = sbr.rel (%p183) target = $region16
      $region15: #{resnet_forward.20} parent=5 // pred_region
        // Predicated region
        $region17: #{resnet_forward.20} parent=15 // pred_check
          %p186 = pneg %p51
        $region18: #{resnet_forward.20} parent=15 // pred_check_branch
          %188 = sbr.rel (%p186) target = $region20
        $region19: #{resnet_forward.20} parent=15 // pred_region
          %p189 = scmp.lt.s32.totalorder %s17, 0
          %s190 = scalar_select %p189, %s17, 0
          %p191 = scmp.lt.s32.totalorder %s19, 17
          %s192 = scalar_select %p191, %s19, 17
          %s193 = smul.addr %s190, 18
          %s194 = sadd.s32 %s192, %s193
          %s195 = smul.addr %s194, 4
          %s196 = scalar_lea.vmem %s0, %s195
        $region20: #{resnet_forward.20} parent=15 // pred_fallthru
          _
        // Predicated region
        $region21: #{resnet_forward.20} parent=15 // pred_check
          %p197 = pneg %p79
        $region22: #{resnet_forward.20} parent=15 // pred_check_branch
          %199 = sbr.rel (%p197) target = $region24
        $region23: #{resnet_forward.20} parent=15 // pred_region
          %s200 = sand.u32 %s69, 1
          %s201 = sand.u32 %s69, 1
          %s202 = smul.addr %s201, 64
          %s203 = scalar_lea.vmem [#allocation3], %s202
          %s204 = smul.u32 16, %s19
          %s205 = smul.addr %s204, 2
          %s206 = sadd.s32 %s18, %s205
          %s207 = smul.addr %s206, 4
          %s208 = scalar_lea.vmem %s1, %s207
          // Predicated region
          $region25: #{resnet_forward.20} parent=23 // pred_check
            _
          $region26: #{resnet_forward.20} parent=23 // pred_check_branch
            %210 = sbr.rel (0) target = $region28
          $region27: #{resnet_forward.20} parent=23 // pred_region
            // Predicated region
            $region29: #{resnet_forward.20} parent=27 // pred_check
              _
            $region30: #{resnet_forward.20} parent=27 // pred_check_branch
              %212 = sbr.rel target = $region32
            $region31: #{resnet_forward.20} parent=27 // pred_region
              // Predicated region
              $region44: #{resnet_forward.20} parent=31 // pred_check
                _
              $region45: #{resnet_forward.20} parent=31 // pred_check_branch
                %258 = sbr.rel (0) target = $region47
              $region46: #{resnet_forward.20} parent=31 // pred_region
                loop: start=0, step=1, limit=1
                $region48: #{resnet_forward.20} parent=46 // loop_pre_header
                  _
                $region49: #{resnet_forward.20} parent=46 // loop_header
                  %s260 = sphi 0, %s264
                  %p261 = scmp.ge.s32.totalorder %s260, 1
                  %s265 = sphi %s208, %s208
                  %s266 = sphi %s203, %s203
                $region50: #{resnet_forward.20} parent=46 // loop_header_branch
                  %263 = sbr.rel (%p261) target = $region54
                $region51: #{resnet_forward.20} parent=46 // loop_body
                  _
                $region52: #{resnet_forward.20} parent=46 // loop_footer
                  %s264 = sadd.s32 1, %s260
                $region53: #{resnet_forward.20} parent=46 // loop_footer_branch
                  %259 = sbr.rel target = $region49
                $region54: #{resnet_forward.20} parent=46 // loop_exit
                  _
                %s268 = ssub.s32 16, 1
                loop: start=0, step=1, limit=1
                $region55: #{resnet_forward.20} parent=46 // loop_pre_header
                  _
                $region56: #{resnet_forward.20} parent=46 // loop_header
                  %s270 = sphi 0, %s274
                  %p271 = scmp.ge.s32.totalorder %s270, 1
                  %s275 = sphi %s208, %s208
                  %s276 = sphi %s203, %s203
                $region57: #{resnet_forward.20} parent=46 // loop_header_branch
                  %273 = sbr.rel (%p271) target = $region61
                $region58: #{resnet_forward.20} parent=46 // loop_body
                  %v277 = vld [vmem:[%s275] sm:%s268]
                  %278 = vst [vmem:[%s276] sm:%s268] %v277
                  %v279 = vld [vmem:[%s275 + $0x8] sm:%s268]
                  %280 = vst [vmem:[%s276 + $0x4] sm:%s268] %v279
                  %v281 = vld [vmem:[%s275 + $0x10] sm:%s268]
                  %282 = vst [vmem:[%s276 + $0x8] sm:%s268] %v281
                  %v283 = vld [vmem:[%s275 + $0x18] sm:%s268]
                  %284 = vst [vmem:[%s276 + $0xc] sm:%s268] %v283
                  %v285 = vld [vmem:[%s275 + $0x20] sm:%s268]
                  %286 = vst [vmem:[%s276 + $0x10] sm:%s268] %v285
                  %v287 = vld [vmem:[%s275 + $0x28] sm:%s268]
                  %288 = vst [vmem:[%s276 + $0x14] sm:%s268] %v287
                  %v289 = vld [vmem:[%s275 + $0x30] sm:%s268]
                  %290 = vst [vmem:[%s276 + $0x18] sm:%s268] %v289
                  %v291 = vld [vmem:[%s275 + $0x38] sm:%s268]
                  %292 = vst [vmem:[%s276 + $0x1c] sm:%s268] %v291
                  %v293 = vld [vmem:[%s275 + $0x40] sm:%s268]
                  %294 = vst [vmem:[%s276 + $0x20] sm:%s268] %v293
                  %v295 = vld [vmem:[%s275 + $0x48] sm:%s268]
                  %296 = vst [vmem:[%s276 + $0x24] sm:%s268] %v295
                  %v297 = vld [vmem:[%s275 + $0x50] sm:%s268]
                  %298 = vst [vmem:[%s276 + $0x28] sm:%s268] %v297
                  %v299 = vld [vmem:[%s275 + $0x58] sm:%s268]
                  %300 = vst [vmem:[%s276 + $0x2c] sm:%s268] %v299
                  %v301 = vld [vmem:[%s275 + $0x60] sm:%s268]
                  %302 = vst [vmem:[%s276 + $0x30] sm:%s268] %v301
                  %v303 = vld [vmem:[%s275 + $0x68] sm:%s268]
                  %304 = vst [vmem:[%s276 + $0x34] sm:%s268] %v303
                  %v305 = vld [vmem:[%s275 + $0x70] sm:%s268]
                  %306 = vst [vmem:[%s276 + $0x38] sm:%s268] %v305
                  %v307 = vld [vmem:[%s275 + $0x78] sm:%s268]
                  %308 = vst [vmem:[%s276 + $0x3c] sm:%s268] %v307
                $region59: #{resnet_forward.20} parent=46 // loop_footer
                  %s274 = sadd.s32 1, %s270
                $region60: #{resnet_forward.20} parent=46 // loop_footer_branch
                  %269 = sbr.rel target = $region56
                $region61: #{resnet_forward.20} parent=46 // loop_exit
                  _
              $region47: #{resnet_forward.20} parent=31 // pred_fallthru
                _
            $region32: #{resnet_forward.20} parent=27 // pred_fallthru
              _
            // Predicated region
            $region33: #{resnet_forward.20} parent=27 // pred_check
              _
            $region34: #{resnet_forward.20} parent=27 // pred_check_branch
              %214 = sbr.rel (0) target = $region36
            $region35: #{resnet_forward.20} parent=27 // pred_region
              %s216 = ssub.s32 16, 1
              loop: start=0, step=1, limit=1
              $region37: #{resnet_forward.20} parent=35 // loop_pre_header
                _
              $region38: #{resnet_forward.20} parent=35 // loop_header
                %s218 = sphi 0, %s222
                %p219 = scmp.ge.s32.totalorder %s218, 1
                %s223 = sphi %s208, %s208
                %s224 = sphi %s203, %s203
              $region39: #{resnet_forward.20} parent=35 // loop_header_branch
                %221 = sbr.rel (%p219) target = $region43
              $region40: #{resnet_forward.20} parent=35 // loop_body
                %v225 = vld [vmem:[%s223] sm:%s216]
                %226 = vst [vmem:[%s224] sm:%s216] %v225
                %v227 = vld [vmem:[%s223 + $0x8] sm:%s216]
                %228 = vst [vmem:[%s224 + $0x4] sm:%s216] %v227
                %v229 = vld [vmem:[%s223 + $0x10] sm:%s216]
                %230 = vst [vmem:[%s224 + $0x8] sm:%s216] %v229
                %v231 = vld [vmem:[%s223 + $0x18] sm:%s216]
                %232 = vst [vmem:[%s224 + $0xc] sm:%s216] %v231
                %v233 = vld [vmem:[%s223 + $0x20] sm:%s216]
                %234 = vst [vmem:[%s224 + $0x10] sm:%s216] %v233
                %v235 = vld [vmem:[%s223 + $0x28] sm:%s216]
                %236 = vst [vmem:[%s224 + $0x14] sm:%s216] %v235
                %v237 = vld [vmem:[%s223 + $0x30] sm:%s216]
                %238 = vst [vmem:[%s224 + $0x18] sm:%s216] %v237
                %v239 = vld [vmem:[%s223 + $0x38] sm:%s216]
                %240 = vst [vmem:[%s224 + $0x1c] sm:%s216] %v239
                %v241 = vld [vmem:[%s223 + $0x40] sm:%s216]
                %242 = vst [vmem:[%s224 + $0x20] sm:%s216] %v241
                %v243 = vld [vmem:[%s223 + $0x48] sm:%s216]
                %244 = vst [vmem:[%s224 + $0x24] sm:%s216] %v243
                %v245 = vld [vmem:[%s223 + $0x50] sm:%s216]
                %246 = vst [vmem:[%s224 + $0x28] sm:%s216] %v245
                %v247 = vld [vmem:[%s223 + $0x58] sm:%s216]
                %248 = vst [vmem:[%s224 + $0x2c] sm:%s216] %v247
                %v249 = vld [vmem:[%s223 + $0x60] sm:%s216]
                %250 = vst [vmem:[%s224 + $0x30] sm:%s216] %v249
                %v251 = vld [vmem:[%s223 + $0x68] sm:%s216]
                %252 = vst [vmem:[%s224 + $0x34] sm:%s216] %v251
                %v253 = vld [vmem:[%s223 + $0x70] sm:%s216]
                %254 = vst [vmem:[%s224 + $0x38] sm:%s216] %v253
                %v255 = vld [vmem:[%s223 + $0x78] sm:%s216]
                %256 = vst [vmem:[%s224 + $0x3c] sm:%s216] %v255
              $region41: #{resnet_forward.20} parent=35 // loop_footer
                %s222 = sadd.s32 1, %s218
              $region42: #{resnet_forward.20} parent=35 // loop_footer_branch
                %217 = sbr.rel target = $region38
              $region43: #{resnet_forward.20} parent=35 // loop_exit
                _
            $region36: #{resnet_forward.20} parent=27 // pred_fallthru
              _
          $region28: #{resnet_forward.20} parent=23 // pred_fallthru
            _
          %309 = vnop
        $region24: #{resnet_forward.20} parent=15 // pred_fallthru
          _
        // Predicated region
        $region62: #{resnet_forward.20} parent=15 // pred_check
          %p310 = pneg %p105
        $region63: #{resnet_forward.20} parent=15 // pred_check_branch
          %312 = sbr.rel (%p310) target = $region65
        $region64: #{resnet_forward.20} parent=15 // pred_region
          %p313 = scmp.lt.s32.totalorder %s18, 1
          %s314 = scalar_select %p313, %s18, 1
          %s315 = scalar_lea.vmem %s2, %s314
        $region65: #{resnet_forward.20} parent=15 // pred_fallthru
          _
        // Predicated region
        $region66: #{resnet_forward.20} parent=15 // pred_check
          %p316 = pneg %p133
        $region67: #{resnet_forward.20} parent=15 // pred_check_branch
          %318 = sbr.rel (%p316) target = $region69
        $region68: #{resnet_forward.20} parent=15 // pred_region
          %p319 = scmp.lt.s32.totalorder %s17, 0
          %s320 = scalar_select %p319, %s17, 0
          %p321 = scmp.lt.s32.totalorder %s18, 1
          %s322 = scalar_select %p321, %s18, 1
          %s323 = smul.addr %s320, 2
          %s324 = sadd.s32 %s322, %s323
          %s325 = smul.addr %s324, 8
          %s326 = scalar_lea.vmem %s3, %s325
        $region69: #{resnet_forward.20} parent=15 // pred_fallthru
          _
      $region16: #{resnet_forward.20} parent=5 // pred_fallthru
        _
      %p327 = scmp.le.s32.totalorder 1, %s10
      %p328 = scmp.lt.s32.totalorder %s10, 37
      %p329 = pnand %p327, %p328
      %p330 = pneg %p329
      // Predicated region
      $region70: #{resnet_forward.20} parent=5 // pred_check
        _
      $region71: #{resnet_forward.20} parent=5 // pred_check_branch
        %332 = sbr.rel (%p329) target = $region73
      $region72: #{resnet_forward.20} parent=5 // pred_region
        %s333 = ssub.s32 %s10, 1
        %s334 = sand.u32 %s72, 1
        %s335 = sand.u32 %s72, 1
        %s336 = smul.addr %s335, 64
        %s337 = scalar_lea.vmem [#allocation3], %s336
        // Predicated region
        $region74: #{resnet_forward.20} parent=72 // pred_check
          %p338 = pneg %p85
        $region75: #{resnet_forward.20} parent=72 // pred_check_branch
          %340 = sbr.rel (%p338) target = $region77
        $region76: #{resnet_forward.20} parent=72 // pred_region
          _
        $region77: #{resnet_forward.20} parent=72 // pred_fallthru
          _
        %p341 = scmp.lt.s32.totalorder %s20, 0
        %s342 = scalar_select %p341, %s20, 0
        %p343 = scmp.lt.s32.totalorder %s22, 17
        %s344 = scalar_select %p343, %s22, 17
        %s345 = smul.addr %s342, 18
        %s346 = sadd.s32 %s344, %s345
        %s347 = smul.addr %s346, 4
        %s348 = scalar_lea.vmem %s0, %s347
        %p349 = pneg %p57
        %p350 = pneg %p54
        %s351 = sand.u32 %s72, 1
        %s352 = sand.u32 %s72, 1
        %s353 = smul.addr %s352, 64
        %s354 = scalar_lea.vmem [#allocation3], %s353
        %p355 = pneg %p85
        %p356 = pneg %p82
        %p357 = scmp.lt.s32.totalorder %s21, 1
        %s358 = scalar_select %p357, %s21, 1
        %s359 = scalar_lea.vmem %s2, %s358
        %p360 = pneg %p111
        %p361 = pneg %p108
        %p362 = scmp.lt.s32.totalorder %s20, 0
        %s363 = scalar_select %p362, %s20, 0
        %p364 = scmp.lt.s32.totalorder %s21, 1
        %s365 = scalar_select %p364, %s21, 1
        %s366 = smul.addr %s363, 2
        %s367 = sadd.s32 %s365, %s366
        %s368 = smul.addr %s367, 8
        %s369 = scalar_lea.vmem %s3, %s368
        %p370 = pneg %p139
        %p371 = pneg %p136
        %p372 = pneg %p167
        %p373 = pneg %p164
        %p374 = scmp.lt.s32.totalorder %s20, 0
        %s375 = scalar_select %p374, %s20, 0
        %p376 = scmp.lt.s32.totalorder %s21, 1
        %s377 = scalar_select %p376, %s21, 1
        %s378 = smul.addr %s375, 2
        %s379 = sadd.s32 %s377, %s378
        %s380 = smul.addr %s379, 8
        %s381 = scalar_lea.vmem %s4, %s380
        %p382 = scmp.lt.s32.totalorder %s20, 0
        %s383 = scalar_select %p382, %s20, 0
        %p384 = scmp.lt.s32.totalorder %s22, 17
        %s385 = scalar_select %p384, %s22, 17
        %s386 = smul.addr %s383, 18
        %s387 = sadd.s32 %s385, %s386
        %s388 = smul.addr %s387, 4
        %s389 = scalar_lea.vmem %s0, %s388
        %s390 = smul.u32 16, %s22
        %p391 = scmp.lt.s32.totalorder %s21, 1
        %s392 = scalar_select %p391, %s21, 1
        %s393 = scalar_lea.vmem %s2, %s392
        %p394 = scmp.lt.s32.totalorder %s20, 0
        %s395 = scalar_select %p394, %s20, 0
        %p396 = scmp.lt.s32.totalorder %s21, 1
        %s397 = scalar_select %p396, %s21, 1
        %s398 = smul.addr %s395, 2
        %s399 = sadd.s32 %s397, %s398
        %s400 = smul.addr %s399, 8
        %s401 = scalar_lea.vmem %s3, %s400
        %p402 = scmp.lt.s32.totalorder %s20, 0
        %s403 = scalar_select %p402, %s20, 0
        %p404 = scmp.lt.s32.totalorder %s21, 1
        %s405 = scalar_select %p404, %s21, 1
        %s406 = smul.addr %s403, 2
        %s407 = sadd.s32 %s405, %s406
        %s408 = smul.addr %s407, 8
        %s409 = scalar_lea.vmem %s4, %s408
        %p410 = scmp.eq.s32.totalorder %s22, 0
        // Predicated region
        $region78: #{resnet_forward.20} parent=72 // pred_check
          %p411 = pneg %p410
        $region79: #{resnet_forward.20} parent=72 // pred_check_branch
          %413 = sbr.rel (%p411) target = $region81
        $region80: #{resnet_forward.20} parent=72 // pred_region
          %414 = vst [vmem:[#allocation2] sm:$0xff] 0.0
        $region81: #{resnet_forward.20} parent=72 // pred_fallthru
          _
        %v415 = vld [vmem:[#allocation2] sm:$0xff]
        %v416 = vld [vmem:[%s389] sm:$0xf]
        %v417 = vld [vmem:[%s337] sm:$0xf]
        %v418 = vld [vmem:[%s337 + $0x4] sm:$0xf]
        %v419 = vld [vmem:[%s337 + $0x8] sm:$0xf]
        %v420 = vld [vmem:[%s337 + $0xc] sm:$0xf]
        %v421 = vld [vmem:[%s337 + $0x10] sm:$0xf]
        %v422 = vld [vmem:[%s337 + $0x14] sm:$0xf]
        %v423 = vld [vmem:[%s337 + $0x18] sm:$0xf]
        %v424 = vld [vmem:[%s337 + $0x1c] sm:$0xf]
        %v425 = vld [vmem:[%s337 + $0x20] sm:$0xf]
        %v426 = vld [vmem:[%s337 + $0x24] sm:$0xf]
        %v427 = vld [vmem:[%s337 + $0x28] sm:$0xf]
        %v428 = vld [vmem:[%s337 + $0x2c] sm:$0xf]
        %v429 = vld [vmem:[%s337 + $0x30] sm:$0xf]
        %v430 = vld [vmem:[%s337 + $0x34] sm:$0xf]
        %v431 = vld [vmem:[%s337 + $0x38] sm:$0xf]
        %v432 = vld [vmem:[%s337 + $0x3c] sm:$0xf]
        %v449 = vunpack.c.l.b16 %v417
        %v450 = vunpack.c.l.b16 %v418
        %v451 = vunpack.c.l.b16 %v419
        %v452 = vunpack.c.l.b16 %v420
        %v453 = vunpack.c.l.b16 %v421
        %v454 = vunpack.c.l.b16 %v422
        %v455 = vunpack.c.l.b16 %v423
        %v456 = vunpack.c.l.b16 %v424
        %v457 = vunpack.c.l.b16 %v425
        %v458 = vunpack.c.l.b16 %v426
        %v459 = vunpack.c.l.b16 %v427
        %v460 = vunpack.c.l.b16 %v428
        %v461 = vunpack.c.l.b16 %v429
        %v462 = vunpack.c.l.b16 %v430
        %v463 = vunpack.c.l.b16 %v431
        %v464 = vunpack.c.l.b16 %v432
        %v465 = vpack.c.b16 %v450, %v449
        %v466 = vpack.c.b16 %v452, %v451
        %v467 = vpack.c.b16 %v454, %v453
        %v468 = vpack.c.b16 %v456, %v455
        %v469 = vpack.c.b16 %v458, %v457
        %v470 = vpack.c.b16 %v460, %v459
        %v471 = vpack.c.b16 %v462, %v461
        %v472 = vpack.c.b16 %v464, %v463
        %481 = vmatpush.bf16.msra.mxu0 %v472
        %482 = vmatpush.bf16.msra.mxu0 %v471
        %483 = vmatpush.bf16.msra.mxu0 %v470
        %484 = vmatpush.bf16.msra.mxu0 %v469
        %485 = vmatpush.bf16.msra.mxu0 %v468
        %486 = vmatpush.bf16.msra.mxu0 %v467
        %487 = vmatpush.bf16.msra.mxu0 %v466
        %488 = vmatpush.bf16.msra.mxu0 %v465
        %489 = vmatmul.bf16.gmra.mxu0 %v416
        %v490 = vpop.f32.mrf.mxu0
        %v491 = vadd.f32 0.0, %v490
        %v492 = vpop.f32.mrf.mxu0
        %493 = vdwg.mxu0
        %v494 = vadd.f32 %v415, %v491
        %495 = vst [vmem:[#allocation2] sm:$0xff] %v494
        %p496 = scmp.eq.s32.totalorder %s22, 17
        // Predicated region
        $region82: #{resnet_forward.20} parent=72 // pred_check
          %p497 = pneg %p496
        $region83: #{resnet_forward.20} parent=72 // pred_check_branch
          %499 = sbr.rel (%p497) target = $region85
        $region84: #{resnet_forward.20} parent=72 // pred_region
          %v500 = vld [vmem:[#allocation2] sm:$0xff]
          %v501 = vld [vmem:[%s393] sm:$0x1]
          %v503 = vperm.slane %v501, 0
          %v505 = vadd.f32 %v500, %v503
          %v506 = vld [vmem:[%s401] sm:$0xff]
          %v507 = vadd.f32 %v505, %v506
          %v508 = vmax.f32 %v507, 0.0
          %509 = vst [vmem:[%s409] sm:$0xff] %v508
        $region85: #{resnet_forward.20} parent=72 // pred_fallthru
          _
        %p510 = scmp.lt.s32.totalorder %s20, 0
        %s511 = scalar_select %p510, %s20, 0
        %p512 = scmp.lt.s32.totalorder %s21, 1
        %s513 = scalar_select %p512, %s21, 1
        %s514 = smul.addr %s511, 2
        %s515 = sadd.s32 %s513, %s514
        %s516 = smul.addr %s515, 8
        %s517 = scalar_lea.vmem %s4, %s516
        // Predicated region
        $region86: #{resnet_forward.20} parent=72 // pred_check
          %p518 = pneg %p164
        $region87: #{resnet_forward.20} parent=72 // pred_check_branch
          %520 = sbr.rel (%p518) target = $region89
        $region88: #{resnet_forward.20} parent=72 // pred_region
          _
        $region89: #{resnet_forward.20} parent=72 // pred_fallthru
          _
      $region73: #{resnet_forward.20} parent=5 // pred_fallthru
        _
      %p521 = scmp.le.s32.totalorder 2, %s10
      // Predicated region
      $region90: #{resnet_forward.20} parent=5 // pred_check
        %p522 = pneg %p521
      $region91: #{resnet_forward.20} parent=5 // pred_check_branch
        %524 = sbr.rel (%p522) target = $region93
      $region92: #{resnet_forward.20} parent=5 // pred_region
        %s525 = ssub.s32 %s10, 2
        // Predicated region
        $region94: #{resnet_forward.20} parent=92 // pred_check
          %p526 = pneg %p170
        $region95: #{resnet_forward.20} parent=92 // pred_check_branch
          %528 = sbr.rel (%p526) target = $region97
        $region96: #{resnet_forward.20} parent=92 // pred_region
          %p529 = scmp.lt.s32.totalorder %s23, 0
          %s530 = scalar_select %p529, %s23, 0
          %p531 = scmp.lt.s32.totalorder %s24, 1
          %s532 = scalar_select %p531, %s24, 1
          %s533 = smul.addr %s530, 2
          %s534 = sadd.s32 %s532, %s533
          %s535 = smul.addr %s534, 8
          %s536 = scalar_lea.vmem %s4, %s535
        $region97: #{resnet_forward.20} parent=92 // pred_fallthru
          _
      $region93: #{resnet_forward.20} parent=5 // pred_fallthru
        _
    $region6: #{resnet_forward.20} parent=1 // loop_footer
      %s14 = sadd.s32 1, %s10
    $region7: #{resnet_forward.20} parent=1 // loop_footer_branch
      %9 = sbr.rel target = $region3
    $region8: #{resnet_forward.20} parent=1 // loop_exit
      _

// kernel: resnet_forward.22
$region0: #{resnet_forward.22}
  #allocation0 [shape = 'u32[]', space=smem, size = 0x4, offset = 0x4, fixed_abs, tag = 'smem constant byte address 0x4 - core index']
  #allocation1 [shape = 'u32[72,128]{1,0:T(1,128)}', space=vmem, size = 0x9000, scoped, tag = 'internal scratch']
  #allocation2 [shape = 'f32[8,128]{1,0:T(8,128)}', space=vmem, size = 0x1000, scoped, tag = 'scratch operand']
  %s0 = inlined_call_operand.vmem [shape: bf16[8,2304], index: 0, kind: input, shape index: {}]
  %s1 = inlined_call_operand.vmem [shape: bf16[2304,512], index: 1, kind: input, shape index: {}]
  %s2 = inlined_call_operand.vmem [shape: f32[1,512], index: 2, kind: input, shape index: {}]
  %s3 = inlined_call_operand.vmem [shape: f32[8,512], index: 3, kind: output, shape index: {}]
  %s4 = sld [smem:[#allocation0]]
  $region94: #{resnet_forward.22} parent=0
    _
  %s6 = ssub.s32 1, %s4
  %s7 = scalar_select 0, %s6, %s4
  $region1: #{resnet_forward.22} parent=0
    #allocation3 [shape = 'u8[65536]{0}', space=vmem, size = 0x10000, scoped, tag = 'input window, operand 1']
    loop: start=0, step=1, limit=74
    $region2: #{resnet_forward.22} parent=1 // loop_pre_header
      _
    $region3: #{resnet_forward.22} parent=1 // loop_header
      %s9 = sphi 0, %s13
      %p10 = scmp.ge.s32.totalorder %s9, 74
      %s16 = sphi 0, %s35
      %s17 = sphi 0, %s31
      %s18 = sphi 0, %s27
      %s19 = sphi 0, %s16
      %s20 = sphi 0, %s17
      %s21 = sphi 0, %s18
      %s22 = sphi 0, %s19
      %s23 = sphi 0, %s20
      %s24 = sphi 0, %s21
      %s40 = sphi 0, %s42
      %s43 = sphi 0, %s40
      %s44 = sphi 0, %s43
      %s60 = sphi 0, %s44
      %s68 = sphi 0, %s70
      %s71 = sphi 0, %s68
      %s72 = sphi 0, %s71
      %s88 = sphi 0, %s72
      %s94 = sphi 0, %s96
      %s97 = sphi 0, %s94
      %s98 = sphi 0, %s97
      %s114 = sphi 0, %s98
      %s122 = sphi 0, %s124
      %s125 = sphi 0, %s122
      %s126 = sphi 0, %s125
      %s142 = sphi 0, %s126
    $region4: #{resnet_forward.22} parent=1 // loop_header_branch
      %12 = sbr.rel (%p10) target = $region8
    $region5: #{resnet_forward.22} parent=1 // loop_body
      %s14 = ssub.s32 %s9, 1
      %s15 = ssub.s32 %s9, 2
      %s25 = sadd.s32 1, %s18
      %p26 = scmp.ge.s32.totalorder %s25, 18
      %s27 = scalar_select %p26, 0, %s25
      %s28 = sadd.s32 1, %s17
      %s29 = scalar_select %p26, %s28, %s17
      %p30 = scmp.ge.s32.totalorder %s29, 4
      %s31 = scalar_select %p30, 0, %s29
      %s32 = sadd.s32 1, %s16
      %s33 = scalar_select %p30, %s32, %s16
      %p34 = scmp.ge.s32.totalorder %s33, 1
      %s35 = scalar_select %p34, 0, %s33
      %s36 = ssub.s32 %s16, %s35
      %s37 = ssub.s32 %s18, %s27
      %s38 = sor.u32 %s36, %s37
      %p39 = scmp.eq.s32.totalorder %s38, 0
      %s41 = sadd.s32 %s40, 1
      %s42 = scalar_select %p39, %s40, %s41
      %p45 = pneg %p39
      %p46 = scmp.eq.s32.totalorder %s9, 71
      %p47 = por %p45, %p46
      %p48 = scmp.ne.s32.totalorder %s40, %s43
      %p49 = scmp.eq.s32.totalorder %s9, 0
      %p50 = por %p48, %p49
      %p51 = scmp.ne.s32.totalorder %s40, %s43
      %p52 = scmp.eq.s32.totalorder %s14, 71
      %p53 = por %p51, %p52
      %p54 = scmp.ne.s32.totalorder %s43, %s44
      %p55 = scmp.eq.s32.totalorder %s14, 0
      %p56 = por %p54, %p55
      %p57 = scmp.ne.s32.totalorder %s43, %s44
      %p58 = scmp.eq.s32.totalorder %s15, 71
      %p59 = por %p57, %p58
      %p61 = scmp.ne.s32.totalorder %s44, %s60
      %p62 = scmp.eq.s32.totalorder %s15, 0
      %p63 = por %p61, %p62
      %s64 = ssub.s32 %s18, %s27
      %s65 = ssub.s32 %s17, %s31
      %s66 = sor.u32 %s64, %s65
      %p67 = scmp.eq.s32.totalorder %s66, 0
      %s69 = sadd.s32 %s68, 1
      %s70 = scalar_select %p67, %s68, %s69
      %p73 = pneg %p67
      %p74 = scmp.eq.s32.totalorder %s9, 71
      %p75 = por %p73, %p74
      %p76 = scmp.ne.s32.totalorder %s68, %s71
      %p77 = scmp.eq.s32.totalorder %s9, 0
      %p78 = por %p76, %p77
      %p79 = scmp.ne.s32.totalorder %s68, %s71
      %p80 = scmp.eq.s32.totalorder %s14, 71
      %p81 = por %p79, %p80
      %p82 = scmp.ne.s32.totalorder %s71, %s72
      %p83 = scmp.eq.s32.totalorder %s14, 0
      %p84 = por %p82, %p83
      %p85 = scmp.ne.s32.totalorder %s71, %s72
      %p86 = scmp.eq.s32.totalorder %s15, 71
      %p87 = por %p85, %p86
      %p89 = scmp.ne.s32.totalorder %s72, %s88
      %p90 = scmp.eq.s32.totalorder %s15, 0
      %p91 = por %p89, %p90
      %s92 = ssub.s32 %s17, %s31
      %p93 = scmp.eq.s32.totalorder %s92, 0
      %s95 = sadd.s32 %s94, 1
      %s96 = scalar_select %p93, %s94, %s95
      %p99 = pneg %p93
      %p100 = scmp.eq.s32.totalorder %s9, 71
      %p101 = por %p99, %p100
      %p102 = scmp.ne.s32.totalorder %s94, %s97
      %p103 = scmp.eq.s32.totalorder %s9, 0
      %p104 = por %p102, %p103
      %p105 = scmp.ne.s32.totalorder %s94, %s97
      %p106 = scmp.eq.s32.totalorder %s14, 71
      %p107 = por %p105, %p106
      %p108 = scmp.ne.s32.totalorder %s97, %s98
      %p109 = scmp.eq.s32.totalorder %s14, 0
      %p110 = por %p108, %p109
      %p111 = scmp.ne.s32.totalorder %s97, %s98
      %p112 = scmp.eq.s32.totalorder %s15, 71
      %p113 = por %p111, %p112
      %p115 = scmp.ne.s32.totalorder %s98, %s114
      %p116 = scmp.eq.s32.totalorder %s15, 0
      %p117 = por %p115, %p116
      %s118 = ssub.s32 %s16, %s35
      %s119 = ssub.s32 %s17, %s31
      %s120 = sor.u32 %s118, %s119
      %p121 = scmp.eq.s32.totalorder %s120, 0
      %s123 = sadd.s32 %s122, 1
      %s124 = scalar_select %p121, %s122, %s123
      %p127 = pneg %p121
      %p128 = scmp.eq.s32.totalorder %s9, 71
      %p129 = por %p127, %p128
      %p130 = scmp.ne.s32.totalorder %s122, %s125
      %p131 = scmp.eq.s32.totalorder %s9, 0
      %p132 = por %p130, %p131
      %p133 = scmp.ne.s32.totalorder %s122, %s125
      %p134 = scmp.eq.s32.totalorder %s14, 71
      %p135 = por %p133, %p134
      %p136 = scmp.ne.s32.totalorder %s125, %s126
      %p137 = scmp.eq.s32.totalorder %s14, 0
      %p138 = por %p136, %p137
      %p139 = scmp.ne.s32.totalorder %s125, %s126
      %p140 = scmp.eq.s32.totalorder %s15, 71
      %p141 = por %p139, %p140
      %p143 = scmp.ne.s32.totalorder %s126, %s142
      %p144 = scmp.eq.s32.totalorder %s15, 0
      %p145 = por %p143, %p144
      %p146 = scmp.le.s32.totalorder 1, %s9
      %p147 = scmp.lt.s32.totalorder %s9, 73
      %p148 = pnand %p146, %p147
      %p149 = pneg %p148
      // Predicated region
      $region9: #{resnet_forward.22} parent=5 // pred_check
        _
      $region10: #{resnet_forward.22} parent=5 // pred_check_branch
        %151 = sbr.rel (%p148) target = $region12
      $region11: #{resnet_forward.22} parent=5 // pred_region
        %s152 = ssub.s32 %s9, 1
      $region12: #{resnet_forward.22} parent=5 // pred_fallthru
        _
      %p153 = scmp.lt.s32.totalorder %s9, 72
      // Predicated region
      $region13: #{resnet_forward.22} parent=5 // pred_check
        %p154 = pneg %p153
      $region14: #{resnet_forward.22} parent=5 // pred_check_branch
        %156 = sbr.rel (%p154) target = $region16
      $region15: #{resnet_forward.22} parent=5 // pred_region
        // Predicated region
        $region17: #{resnet_forward.22} parent=15 // pred_check
          %p157 = pneg %p50
        $region18: #{resnet_forward.22} parent=15 // pred_check_branch
          %159 = sbr.rel (%p157) target = $region20
        $region19: #{resnet_forward.22} parent=15 // pred_region
          %p160 = scmp.lt.s32.totalorder %s16, 0
          %s161 = scalar_select %p160, %s16, 0
          %p162 = scmp.lt.s32.totalorder %s18, 17
          %s163 = scalar_select %p162, %s18, 17
          %s164 = smul.addr %s161, 18
          %s165 = sadd.s32 %s163, %s164
          %s166 = smul.addr %s165, 4
          %s167 = scalar_lea.vmem %s0, %s166
        $region20: #{resnet_forward.22} parent=15 // pred_fallthru
          _
        // Predicated region
        $region21: #{resnet_forward.22} parent=15 // pred_check
          %p168 = pneg %p78
        $region22: #{resnet_forward.22} parent=15 // pred_check_branch
          %170 = sbr.rel (%p168) target = $region24
        $region23: #{resnet_forward.22} parent=15 // pred_region
          %s171 = sand.u32 %s68, 1
          %s172 = sand.u32 %s68, 1
          %s173 = smul.addr %s172, 64
          %s174 = scalar_lea.vmem [#allocation3], %s173
          %s175 = smul.u32 16, %s18
          %s176 = smul.addr %s175, 4
          %s177 = sadd.s32 %s17, %s176
          %s178 = smul.addr %s177, 4
          %s179 = scalar_lea.vmem %s1, %s178
          // Predicated region
          $region25: #{resnet_forward.22} parent=23 // pred_check
            _
          $region26: #{resnet_forward.22} parent=23 // pred_check_branch
            %181 = sbr.rel (0) target = $region28
          $region27: #{resnet_forward.22} parent=23 // pred_region
            // Predicated region
            $region29: #{resnet_forward.22} parent=27 // pred_check
              _
            $region30: #{resnet_forward.22} parent=27 // pred_check_branch
              %183 = sbr.rel target = $region32
            $region31: #{resnet_forward.22} parent=27 // pred_region
              // Predicated region
              $region44: #{resnet_forward.22} parent=31 // pred_check
                _
              $region45: #{resnet_forward.22} parent=31 // pred_check_branch
                %229 = sbr.rel (0) target = $region47
              $region46: #{resnet_forward.22} parent=31 // pred_region
                loop: start=0, step=1, limit=1
                $region48: #{resnet_forward.22} parent=46 // loop_pre_header
                  _
                $region49: #{resnet_forward.22} parent=46 // loop_header
                  %s231 = sphi 0, %s235
                  %p232 = scmp.ge.s32.totalorder %s231, 1
                  %s236 = sphi %s179, %s179
                  %s237 = sphi %s174, %s174
                $region50: #{resnet_forward.22} parent=46 // loop_header_branch
                  %234 = sbr.rel (%p232) target = $region54
                $region51: #{resnet_forward.22} parent=46 // loop_body
                  _
                $region52: #{resnet_forward.22} parent=46 // loop_footer
                  %s235 = sadd.s32 1, %s231
                $region53: #{resnet_forward.22} parent=46 // loop_footer_branch
                  %230 = sbr.rel target = $region49
                $region54: #{resnet_forward.22} parent=46 // loop_exit
                  _
                %s239 = ssub.s32 16, 1
                loop: start=0, step=1, limit=1
                $region55: #{resnet_forward.22} parent=46 // loop_pre_header
                  _
                $region56: #{resnet_forward.22} parent=46 // loop_header
                  %s241 = sphi 0, %s245
                  %p242 = scmp.ge.s32.totalorder %s241, 1
                  %s246 = sphi %s179, %s179
                  %s247 = sphi %s174, %s174
                $region57: #{resnet_forward.22} parent=46 // loop_header_branch
                  %244 = sbr.rel (%p242) target = $region61
                $region58: #{resnet_forward.22} parent=46 // loop_body
                  %v248 = vld [vmem:[%s246] sm:%s239]
                  %249 = vst [vmem:[%s247] sm:%s239] %v248
                  %v250 = vld [vmem:[%s246 + $0x10] sm:%s239]
                  %251 = vst [vmem:[%s247 + $0x4] sm:%s239] %v250
                  %v252 = vld [vmem:[%s246 + $0x20] sm:%s239]
                  %253 = vst [vmem:[%s247 + $0x8] sm:%s239] %v252
                  %v254 = vld [vmem:[%s246 + $0x30] sm:%s239]
                  %255 = vst [vmem:[%s247 + $0xc] sm:%s239] %v254
                  %v256 = vld [vmem:[%s246 + $0x40] sm:%s239]
                  %257 = vst [vmem:[%s247 + $0x10] sm:%s239] %v256
                  %v258 = vld [vmem:[%s246 + $0x50] sm:%s239]
                  %259 = vst [vmem:[%s247 + $0x14] sm:%s239] %v258
                  %v260 = vld [vmem:[%s246 + $0x60] sm:%s239]
                  %261 = vst [vmem:[%s247 + $0x18] sm:%s239] %v260
                  %v262 = vld [vmem:[%s246 + $0x70] sm:%s239]
                  %263 = vst [vmem:[%s247 + $0x1c] sm:%s239] %v262
                  %v264 = vld [vmem:[%s246 + $0x80] sm:%s239]
                  %265 = vst [vmem:[%s247 + $0x20] sm:%s239] %v264
                  %v266 = vld [vmem:[%s246 + $0x90] sm:%s239]
                  %267 = vst [vmem:[%s247 + $0x24] sm:%s239] %v266
                  %v268 = vld [vmem:[%s246 + $0xa0] sm:%s239]
                  %269 = vst [vmem:[%s247 + $0x28] sm:%s239] %v268
                  %v270 = vld [vmem:[%s246 + $0xb0] sm:%s239]
                  %271 = vst [vmem:[%s247 + $0x2c] sm:%s239] %v270
                  %v272 = vld [vmem:[%s246 + $0xc0] sm:%s239]
                  %273 = vst [vmem:[%s247 + $0x30] sm:%s239] %v272
                  %v274 = vld [vmem:[%s246 + $0xd0] sm:%s239]
                  %275 = vst [vmem:[%s247 + $0x34] sm:%s239] %v274
                  %v276 = vld [vmem:[%s246 + $0xe0] sm:%s239]
                  %277 = vst [vmem:[%s247 + $0x38] sm:%s239] %v276
                  %v278 = vld [vmem:[%s246 + $0xf0] sm:%s239]
                  %279 = vst [vmem:[%s247 + $0x3c] sm:%s239] %v278
                $region59: #{resnet_forward.22} parent=46 // loop_footer
                  %s245 = sadd.s32 1, %s241
                $region60: #{resnet_forward.22} parent=46 // loop_footer_branch
                  %240 = sbr.rel target = $region56
                $region61: #{resnet_forward.22} parent=46 // loop_exit
                  _
              $region47: #{resnet_forward.22} parent=31 // pred_fallthru
                _
            $region32: #{resnet_forward.22} parent=27 // pred_fallthru
              _
            // Predicated region
            $region33: #{resnet_forward.22} parent=27 // pred_check
              _
            $region34: #{resnet_forward.22} parent=27 // pred_check_branch
              %185 = sbr.rel (0) target = $region36
            $region35: #{resnet_forward.22} parent=27 // pred_region
              %s187 = ssub.s32 16, 1
              loop: start=0, step=1, limit=1
              $region37: #{resnet_forward.22} parent=35 // loop_pre_header
                _
              $region38: #{resnet_forward.22} parent=35 // loop_header
                %s189 = sphi 0, %s193
                %p190 = scmp.ge.s32.totalorder %s189, 1
                %s194 = sphi %s179, %s179
                %s195 = sphi %s174, %s174
              $region39: #{resnet_forward.22} parent=35 // loop_header_branch
                %192 = sbr.rel (%p190) target = $region43
              $region40: #{resnet_forward.22} parent=35 // loop_body
                %v196 = vld [vmem:[%s194] sm:%s187]
                %197 = vst [vmem:[%s195] sm:%s187] %v196
                %v198 = vld [vmem:[%s194 + $0x10] sm:%s187]
                %199 = vst [vmem:[%s195 + $0x4] sm:%s187] %v198
                %v200 = vld [vmem:[%s194 + $0x20] sm:%s187]
                %201 = vst [vmem:[%s195 + $0x8] sm:%s187] %v200
                %v202 = vld [vmem:[%s194 + $0x30] sm:%s187]
                %203 = vst [vmem:[%s195 + $0xc] sm:%s187] %v202
                %v204 = vld [vmem:[%s194 + $0x40] sm:%s187]
                %205 = vst [vmem:[%s195 + $0x10] sm:%s187] %v204
                %v206 = vld [vmem:[%s194 + $0x50] sm:%s187]
                %207 = vst [vmem:[%s195 + $0x14] sm:%s187] %v206
                %v208 = vld [vmem:[%s194 + $0x60] sm:%s187]
                %209 = vst [vmem:[%s195 + $0x18] sm:%s187] %v208
                %v210 = vld [vmem:[%s194 + $0x70] sm:%s187]
                %211 = vst [vmem:[%s195 + $0x1c] sm:%s187] %v210
                %v212 = vld [vmem:[%s194 + $0x80] sm:%s187]
                %213 = vst [vmem:[%s195 + $0x20] sm:%s187] %v212
                %v214 = vld [vmem:[%s194 + $0x90] sm:%s187]
                %215 = vst [vmem:[%s195 + $0x24] sm:%s187] %v214
                %v216 = vld [vmem:[%s194 + $0xa0] sm:%s187]
                %217 = vst [vmem:[%s195 + $0x28] sm:%s187] %v216
                %v218 = vld [vmem:[%s194 + $0xb0] sm:%s187]
                %219 = vst [vmem:[%s195 + $0x2c] sm:%s187] %v218
                %v220 = vld [vmem:[%s194 + $0xc0] sm:%s187]
                %221 = vst [vmem:[%s195 + $0x30] sm:%s187] %v220
                %v222 = vld [vmem:[%s194 + $0xd0] sm:%s187]
                %223 = vst [vmem:[%s195 + $0x34] sm:%s187] %v222
                %v224 = vld [vmem:[%s194 + $0xe0] sm:%s187]
                %225 = vst [vmem:[%s195 + $0x38] sm:%s187] %v224
                %v226 = vld [vmem:[%s194 + $0xf0] sm:%s187]
                %227 = vst [vmem:[%s195 + $0x3c] sm:%s187] %v226
              $region41: #{resnet_forward.22} parent=35 // loop_footer
                %s193 = sadd.s32 1, %s189
              $region42: #{resnet_forward.22} parent=35 // loop_footer_branch
                %188 = sbr.rel target = $region38
              $region43: #{resnet_forward.22} parent=35 // loop_exit
                _
            $region36: #{resnet_forward.22} parent=27 // pred_fallthru
              _
          $region28: #{resnet_forward.22} parent=23 // pred_fallthru
            _
          %280 = vnop
        $region24: #{resnet_forward.22} parent=15 // pred_fallthru
          _
        // Predicated region
        $region62: #{resnet_forward.22} parent=15 // pred_check
          %p281 = pneg %p104
        $region63: #{resnet_forward.22} parent=15 // pred_check_branch
          %283 = sbr.rel (%p281) target = $region65
        $region64: #{resnet_forward.22} parent=15 // pred_region
          %p284 = scmp.lt.s32.totalorder %s17, 3
          %s285 = scalar_select %p284, %s17, 3
          %s286 = scalar_lea.vmem %s2, %s285
        $region65: #{resnet_forward.22} parent=15 // pred_fallthru
          _
      $region16: #{resnet_forward.22} parent=5 // pred_fallthru
        _
      %p287 = scmp.le.s32.totalorder 1, %s9
      %p288 = scmp.lt.s32.totalorder %s9, 73
      %p289 = pnand %p287, %p288
      %p290 = pneg %p289
      // Predicated region
      $region66: #{resnet_forward.22} parent=5 // pred_check
        _
      $region67: #{resnet_forward.22} parent=5 // pred_check_branch
        %292 = sbr.rel (%p289) target = $region69
      $region68: #{resnet_forward.22} parent=5 // pred_region
        %s293 = ssub.s32 %s9, 1
        %s294 = sand.u32 %s71, 1
        %s295 = sand.u32 %s71, 1
        %s296 = smul.addr %s295, 64
        %s297 = scalar_lea.vmem [#allocation3], %s296
        // Predicated region
        $region70: #{resnet_forward.22} parent=68 // pred_check
          %p298 = pneg %p84
        $region71: #{resnet_forward.22} parent=68 // pred_check_branch
          %300 = sbr.rel (%p298) target = $region73
        $region72: #{resnet_forward.22} parent=68 // pred_region
          _
        $region73: #{resnet_forward.22} parent=68 // pred_fallthru
          _
        %p301 = scmp.lt.s32.totalorder %s19, 0
        %s302 = scalar_select %p301, %s19, 0
        %p303 = scmp.lt.s32.totalorder %s21, 17
        %s304 = scalar_select %p303, %s21, 17
        %s305 = smul.addr %s302, 18
        %s306 = sadd.s32 %s304, %s305
        %s307 = smul.addr %s306, 4
        %s308 = scalar_lea.vmem %s0, %s307
        %p309 = pneg %p56
        %p310 = pneg %p53
        %s311 = sand.u32 %s71, 1
        %s312 = sand.u32 %s71, 1
        %s313 = smul.addr %s312, 64
        %s314 = scalar_lea.vmem [#allocation3], %s313
        %p315 = pneg %p84
        %p316 = pneg %p81
        %p317 = scmp.lt.s32.totalorder %s20, 3
        %s318 = scalar_select %p317, %s20, 3
        %s319 = scalar_lea.vmem %s2, %s318
        %p320 = pneg %p110
        %p321 = pneg %p107
        %p322 = pneg %p138
        %p323 = pneg %p135
        %p324 = scmp.lt.s32.totalorder %s19, 0
        %s325 = scalar_select %p324, %s19, 0
        %p326 = scmp.lt.s32.totalorder %s20, 3
        %s327 = scalar_select %p326, %s20, 3
        %s328 = smul.addr %s325, 4
        %s329 = sadd.s32 %s327, %s328
        %s330 = smul.addr %s329, 8
        %s331 = scalar_lea.vmem %s3, %s330
        %p332 = scmp.lt.s32.totalorder %s19, 0
        %s333 = scalar_select %p332, %s19, 0
        %p334 = scmp.lt.s32.totalorder %s21, 17
        %s335 = scalar_select %p334, %s21, 17
        %s336 = smul.addr %s333, 18
        %s337 = sadd.s32 %s335, %s336
        %s338 = smul.addr %s337, 4
        %s339 = scalar_lea.vmem %s0, %s338
        %s340 = smul.u32 16, %s21
        %p341 = scmp.lt.s32.totalorder %s20, 3
        %s342 = scalar_select %p341, %s20, 3
        %s343 = scalar_lea.vmem %s2, %s342
        %p344 = scmp.lt.s32.totalorder %s19, 0
        %s345 = scalar_select %p344, %s19, 0
        %p346 = scmp.lt.s32.totalorder %s20, 3
        %s347 = scalar_select %p346, %s20, 3
        %s348 = smul.addr %s345, 4
        %s349 = sadd.s32 %s347, %s348
        %s350 = smul.addr %s349, 8
        %s351 = scalar_lea.vmem %s3, %s350
        %p352 = scmp.eq.s32.totalorder %s21, 0
        // Predicated region
        $region74: #{resnet_forward.22} parent=68 // pred_check
          %p353 = pneg %p352
        $region75: #{resnet_forward.22} parent=68 // pred_check_branch
          %355 = sbr.rel (%p353) target = $region77
        $region76: #{resnet_forward.22} parent=68 // pred_region
          %356 = vst [vmem:[#allocation2] sm:$0xff] 0.0
        $region77: #{resnet_forward.22} parent=68 // pred_fallthru
          _
        %v357 = vld [vmem:[#allocation2] sm:$0xff]
        %v358 = vld [vmem:[%s339] sm:$0xf]
        %v359 = vld [vmem:[%s297] sm:$0xf]
        %v360 = vld [vmem:[%s297 + $0x4] sm:$0xf]
        %v361 = vld [vmem:[%s297 + $0x8] sm:$0xf]
        %v362 = vld [vmem:[%s297 + $0xc] sm:$0xf]
        %v363 = vld [vmem:[%s297 + $0x10] sm:$0xf]
        %v364 = vld [vmem:[%s297 + $0x14] sm:$0xf]
        %v365 = vld [vmem:[%s297 + $0x18] sm:$0xf]
        %v366 = vld [vmem:[%s297 + $0x1c] sm:$0xf]
        %v367 = vld [vmem:[%s297 + $0x20] sm:$0xf]
        %v368 = vld [vmem:[%s297 + $0x24] sm:$0xf]
        %v369 = vld [vmem:[%s297 + $0x28] sm:$0xf]
        %v370 = vld [vmem:[%s297 + $0x2c] sm:$0xf]
        %v371 = vld [vmem:[%s297 + $0x30] sm:$0xf]
        %v372 = vld [vmem:[%s297 + $0x34] sm:$0xf]
        %v373 = vld [vmem:[%s297 + $0x38] sm:$0xf]
        %v374 = vld [vmem:[%s297 + $0x3c] sm:$0xf]
        %v391 = vunpack.c.l.b16 %v359
        %v392 = vunpack.c.l.b16 %v360
        %v393 = vunpack.c.l.b16 %v361
        %v394 = vunpack.c.l.b16 %v362
        %v395 = vunpack.c.l.b16 %v363
        %v396 = vunpack.c.l.b16 %v364
        %v397 = vunpack.c.l.b16 %v365
        %v398 = vunpack.c.l.b16 %v366
        %v399 = vunpack.c.l.b16 %v367
        %v400 = vunpack.c.l.b16 %v368
        %v401 = vunpack.c.l.b16 %v369
        %v402 = vunpack.c.l.b16 %v370
        %v403 = vunpack.c.l.b16 %v371
        %v404 = vunpack.c.l.b16 %v372
        %v405 = vunpack.c.l.b16 %v373
        %v406 = vunpack.c.l.b16 %v374
        %v407 = vpack.c.b16 %v392, %v391
        %v408 = vpack.c.b16 %v394, %v393
        %v409 = vpack.c.b16 %v396, %v395
        %v410 = vpack.c.b16 %v398, %v397
        %v411 = vpack.c.b16 %v400, %v399
        %v412 = vpack.c.b16 %v402, %v401
        %v413 = vpack.c.b16 %v404, %v403
        %v414 = vpack.c.b16 %v406, %v405
        %423 = vmatpush.bf16.msra.mxu0 %v414
        %424 = vmatpush.bf16.msra.mxu0 %v413
        %425 = vmatpush.bf16.msra.mxu0 %v412
        %426 = vmatpush.bf16.msra.mxu0 %v411
        %427 = vmatpush.bf16.msra.mxu0 %v410
        %428 = vmatpush.bf16.msra.mxu0 %v409
        %429 = vmatpush.bf16.msra.mxu0 %v408
        %430 = vmatpush.bf16.msra.mxu0 %v407
        %431 = vmatmul.bf16.gmra.mxu0 %v358
        %v432 = vpop.f32.mrf.mxu0
        %v433 = vadd.f32 0.0, %v432
        %v434 = vpop.f32.mrf.mxu0
        %435 = vdwg.mxu0
        %v436 = vadd.f32 %v357, %v433
        %437 = vst [vmem:[#allocation2] sm:$0xff] %v436
        %p438 = scmp.eq.s32.totalorder %s21, 17
        // Predicated region
        $region78: #{resnet_forward.22} parent=68 // pred_check
          %p439 = pneg %p438
        $region79: #{resnet_forward.22} parent=68 // pred_check_branch
          %441 = sbr.rel (%p439) target = $region81
        $region80: #{resnet_forward.22} parent=68 // pred_region
          %v442 = vld [vmem:[#allocation2] sm:$0xff]
          %v443 = vld [vmem:[%s343] sm:$0x1]
          %v445 = vperm.slane %v443, 0
          %v447 = vadd.f32 %v442, %v445
          %v448 = vmax.f32 %v447, 0.0
          %449 = vst [vmem:[%s351] sm:$0xff] %v448
        $region81: #{resnet_forward.22} parent=68 // pred_fallthru
          _
        %p450 = scmp.lt.s32.totalorder %s19, 0
        %s451 = scalar_select %p450, %s19, 0
        %p452 = scmp.lt.s32.totalorder %s20, 3
        %s453 = scalar_select %p452, %s20, 3
        %s454 = smul.addr %s451, 4
        %s455 = sadd.s32 %s453, %s454
        %s456 = smul.addr %s455, 8
        %s457 = scalar_lea.vmem %s3, %s456
        // Predicated region
        $region82: #{resnet_forward.22} parent=68 // pred_check
          %p458 = pneg %p135
        $region83: #{resnet_forward.22} parent=68 // pred_check_branch
          %460 = sbr.rel (%p458) target = $region85
        $region84: #{resnet_forward.22} parent=68 // pred_region
          _
        $region85: #{resnet_forward.22} parent=68 // pred_fallthru
          _
      $region69: #{resnet_forward.22} parent=5 // pred_fallthru
        _
      %p461 = scmp.le.s32.totalorder 2, %s9
      // Predicated region
      $region86: #{resnet_forward.22} parent=5 // pred_check
        %p462 = pneg %p461
      $region87: #{resnet_forward.22} parent=5 // pred_check_branch
        %464 = sbr.rel (%p462) target = $region89
      $region88: #{resnet_forward.22} parent=5 // pred_region
        %s465 = ssub.s32 %s9, 2
        // Predicated region
        $region90: #{resnet_forward.22} parent=88 // pred_check
          %p466 = pneg %p141
        $region91: #{resnet_forward.22} parent=88 // pred_check_branch
          %468 = sbr.rel (%p466) target = $region93
        $region92: #{resnet_forward.22} parent=88 // pred_region
          %p469 = scmp.lt.s32.totalorder %s22, 0
          %s470 = scalar_select %p469, %s22, 0
          %p471 = scmp.lt.s32.totalorder %s23, 3
          %s472 = scalar_select %p471, %s23, 3
          %s473 = smul.addr %s470, 4
          %s474 = sadd.s32 %s472, %s473
          %s475 = smul.addr %s474, 8
          %s476 = scalar_lea.vmem %s3, %s475
        $region93: #{resnet_forward.22} parent=88 // pred_fallthru
          _
      $region89: #{resnet_forward.22} parent=5 // pred_fallthru
        _
    $region6: #{resnet_forward.22} parent=1 // loop_footer
      %s13 = sadd.s32 1, %s9
    $region7: #{resnet_forward.22} parent=1 // loop_footer_branch
      %8 = sbr.rel target = $region3
    $region8: #{resnet_forward.22} parent=1 // loop_exit
      _

// kernel: resnet_forward.21
$region0: #{resnet_forward.21}
  #allocation0 [shape = 'u32[]', space=smem, size = 0x4, offset = 0x4, fixed_abs, tag = 'smem constant byte address 0x4 - core index']
  #allocation1 [shape = 'u32[72,128]{1,0:T(1,128)}', space=vmem, size = 0x9000, scoped, tag = 'internal scratch']
  #allocation2 [shape = 'f32[8,128]{1,0:T(8,128)}', space=vmem, size = 0x1000, scoped, tag = 'scratch operand']
  %s0 = inlined_call_operand.vmem [shape: bf16[8,256], index: 0, kind: input, shape index: {}]
  %s1 = inlined_call_operand.vmem [shape: bf16[256,512], index: 1, kind: input, shape index: {}]
  %s2 = inlined_call_operand.vmem [shape: f32[1,512], index: 2, kind: input, shape index: {}]
  %s3 = inlined_call_operand.vmem [shape: f32[8,512], index: 3, kind: output, shape index: {}]
  %s4 = sld [smem:[#allocation0]]
  $region94: #{resnet_forward.21} parent=0
    _
  %s6 = ssub.s32 1, %s4
  %s7 = scalar_select 0, %s6, %s4
  $region1: #{resnet_forward.21} parent=0
    #allocation3 [shape = 'u8[65536]{0}', space=vmem, size = 0x10000, scoped, tag = 'input window, operand 1']
    loop: start=0, step=1, limit=10
    $region2: #{resnet_forward.21} parent=1 // loop_pre_header
      _
    $region3: #{resnet_forward.21} parent=1 // loop_header
      %s9 = sphi 0, %s13
      %p10 = scmp.ge.s32.totalorder %s9, 10
      %s16 = sphi 0, %s35
      %s17 = sphi 0, %s31
      %s18 = sphi 0, %s27
      %s19 = sphi 0, %s16
      %s20 = sphi 0, %s17
      %s21 = sphi 0, %s18
      %s22 = sphi 0, %s19
      %s23 = sphi 0, %s20
      %s24 = sphi 0, %s21
      %s40 = sphi 0, %s42
      %s43 = sphi 0, %s40
      %s44 = sphi 0, %s43
      %s60 = sphi 0, %s44
      %s68 = sphi 0, %s70
      %s71 = sphi 0, %s68
      %s72 = sphi 0, %s71
      %s88 = sphi 0, %s72
      %s94 = sphi 0, %s96
      %s97 = sphi 0, %s94
      %s98 = sphi 0, %s97
      %s114 = sphi 0, %s98
      %s122 = sphi 0, %s124
      %s125 = sphi 0, %s122
      %s126 = sphi 0, %s125
      %s142 = sphi 0, %s126
    $region4: #{resnet_forward.21} parent=1 // loop_header_branch
      %12 = sbr.rel (%p10) target = $region8
    $region5: #{resnet_forward.21} parent=1 // loop_body
      %s14 = ssub.s32 %s9, 1
      %s15 = ssub.s32 %s9, 2
      %s25 = sadd.s32 1, %s18
      %p26 = scmp.ge.s32.totalorder %s25, 2
      %s27 = scalar_select %p26, 0, %s25
      %s28 = sadd.s32 1, %s17
      %s29 = scalar_select %p26, %s28, %s17
      %p30 = scmp.ge.s32.totalorder %s29, 4
      %s31 = scalar_select %p30, 0, %s29
      %s32 = sadd.s32 1, %s16
      %s33 = scalar_select %p30, %s32, %s16
      %p34 = scmp.ge.s32.totalorder %s33, 1
      %s35 = scalar_select %p34, 0, %s33
      %s36 = ssub.s32 %s16, %s35
      %s37 = ssub.s32 %s18, %s27
      %s38 = sor.u32 %s36, %s37
      %p39 = scmp.eq.s32.totalorder %s38, 0
      %s41 = sadd.s32 %s40, 1
      %s42 = scalar_select %p39, %s40, %s41
      %p45 = pneg %p39
      %p46 = scmp.eq.s32.totalorder %s9, 7
      %p47 = por %p45, %p46
      %p48 = scmp.ne.s32.totalorder %s40, %s43
      %p49 = scmp.eq.s32.totalorder %s9, 0
      %p50 = por %p48, %p49
      %p51 = scmp.ne.s32.totalorder %s40, %s43
      %p52 = scmp.eq.s32.totalorder %s14, 7
      %p53 = por %p51, %p52
      %p54 = scmp.ne.s32.totalorder %s43, %s44
      %p55 = scmp.eq.s32.totalorder %s14, 0
      %p56 = por %p54, %p55
      %p57 = scmp.ne.s32.totalorder %s43, %s44
      %p58 = scmp.eq.s32.totalorder %s15, 7
      %p59 = por %p57, %p58
      %p61 = scmp.ne.s32.totalorder %s44, %s60
      %p62 = scmp.eq.s32.totalorder %s15, 0
      %p63 = por %p61, %p62
      %s64 = ssub.s32 %s18, %s27
      %s65 = ssub.s32 %s17, %s31
      %s66 = sor.u32 %s64, %s65
      %p67 = scmp.eq.s32.totalorder %s66, 0
      %s69 = sadd.s32 %s68, 1
      %s70 = scalar_select %p67, %s68, %s69
      %p73 = pneg %p67
      %p74 = scmp.eq.s32.totalorder %s9, 7
      %p75 = por %p73, %p74
      %p76 = scmp.ne.s32.totalorder %s68, %s71
      %p77 = scmp.eq.s32.totalorder %s9, 0
      %p78 = por %p76, %p77
      %p79 = scmp.ne.s32.totalorder %s68, %s71
      %p80 = scmp.eq.s32.totalorder %s14, 7
      %p81 = por %p79, %p80
      %p82 = scmp.ne.s32.totalorder %s71, %s72
      %p83 = scmp.eq.s32.totalorder %s14, 0
      %p84 = por %p82, %p83
      %p85 = scmp.ne.s32.totalorder %s71, %s72
      %p86 = scmp.eq.s32.totalorder %s15, 7
      %p87 = por %p85, %p86
      %p89 = scmp.ne.s32.totalorder %s72, %s88
      %p90 = scmp.eq.s32.totalorder %s15, 0
      %p91 = por %p89, %p90
      %s92 = ssub.s32 %s17, %s31
      %p93 = scmp.eq.s32.totalorder %s92, 0
      %s95 = sadd.s32 %s94, 1
      %s96 = scalar_select %p93, %s94, %s95
      %p99 = pneg %p93
      %p100 = scmp.eq.s32.totalorder %s9, 7
      %p101 = por %p99, %p100
      %p102 = scmp.ne.s32.totalorder %s94, %s97
      %p103 = scmp.eq.s32.totalorder %s9, 0
      %p104 = por %p102, %p103
      %p105 = scmp.ne.s32.totalorder %s94, %s97
      %p106 = scmp.eq.s32.totalorder %s14, 7
      %p107 = por %p105, %p106
      %p108 = scmp.ne.s32.totalorder %s97, %s98
      %p109 = scmp.eq.s32.totalorder %s14, 0
      %p110 = por %p108, %p109
      %p111 = scmp.ne.s32.totalorder %s97, %s98
      %p112 = scmp.eq.s32.totalorder %s15, 7
      %p113 = por %p111, %p112
      %p115 = scmp.ne.s32.totalorder %s98, %s114
      %p116 = scmp.eq.s32.totalorder %s15, 0
      %p117 = por %p115, %p116
      %s118 = ssub.s32 %s16, %s35
      %s119 = ssub.s32 %s17, %s31
      %s120 = sor.u32 %s118, %s119
      %p121 = scmp.eq.s32.totalorder %s120, 0
      %s123 = sadd.s32 %s122, 1
      %s124 = scalar_select %p121, %s122, %s123
      %p127 = pneg %p121
      %p128 = scmp.eq.s32.totalorder %s9, 7
      %p129 = por %p127, %p128
      %p130 = scmp.ne.s32.totalorder %s122, %s125
      %p131 = scmp.eq.s32.totalorder %s9, 0
      %p132 = por %p130, %p131
      %p133 = scmp.ne.s32.totalorder %s122, %s125
      %p134 = scmp.eq.s32.totalorder %s14, 7
      %p135 = por %p133, %p134
      %p136 = scmp.ne.s32.totalorder %s125, %s126
      %p137 = scmp.eq.s32.totalorder %s14, 0
      %p138 = por %p136, %p137
      %p139 = scmp.ne.s32.totalorder %s125, %s126
      %p140 = scmp.eq.s32.totalorder %s15, 7
      %p141 = por %p139, %p140
      %p143 = scmp.ne.s32.totalorder %s126, %s142
      %p144 = scmp.eq.s32.totalorder %s15, 0
      %p145 = por %p143, %p144
      %p146 = scmp.le.s32.totalorder 1, %s9
      %p147 = scmp.lt.s32.totalorder %s9, 9
      %p148 = pnand %p146, %p147
      %p149 = pneg %p148
      // Predicated region
      $region9: #{resnet_forward.21} parent=5 // pred_check
        _
      $region10: #{resnet_forward.21} parent=5 // pred_check_branch
        %151 = sbr.rel (%p148) target = $region12
      $region11: #{resnet_forward.21} parent=5 // pred_region
        %s152 = ssub.s32 %s9, 1
      $region12: #{resnet_forward.21} parent=5 // pred_fallthru
        _
      %p153 = scmp.lt.s32.totalorder %s9, 8
      // Predicated region
      $region13: #{resnet_forward.21} parent=5 // pred_check
        %p154 = pneg %p153
      $region14: #{resnet_forward.21} parent=5 // pred_check_branch
        %156 = sbr.rel (%p154) target = $region16
      $region15: #{resnet_forward.21} parent=5 // pred_region
        // Predicated region
        $region17: #{resnet_forward.21} parent=15 // pred_check
          %p157 = pneg %p50
        $region18: #{resnet_forward.21} parent=15 // pred_check_branch
          %159 = sbr.rel (%p157) target = $region20
        $region19: #{resnet_forward.21} parent=15 // pred_region
          %p160 = scmp.lt.s32.totalorder %s16, 0
          %s161 = scalar_select %p160, %s16, 0
          %p162 = scmp.lt.s32.totalorder %s18, 1
          %s163 = scalar_select %p162, %s18, 1
          %s164 = smul.addr %s161, 2
          %s165 = sadd.s32 %s163, %s164
          %s166 = smul.addr %s165, 4
          %s167 = scalar_lea.vmem %s0, %s166
        $region20: #{resnet_forward.21} parent=15 // pred_fallthru
          _
        // Predicated region
        $region21: #{resnet_forward.21} parent=15 // pred_check
          %p168 = pneg %p78
        $region22: #{resnet_forward.21} parent=15 // pred_check_branch
          %170 = sbr.rel (%p168) target = $region24
        $region23: #{resnet_forward.21} parent=15 // pred_region
          %s171 = sand.u32 %s68, 1
          %s172 = sand.u32 %s68, 1
          %s173 = smul.addr %s172, 64
          %s174 = scalar_lea.vmem [#allocation3], %s173
          %s175 = smul.u32 16, %s18
          %s176 = smul.addr %s175, 4
          %s177 = sadd.s32 %s17, %s176
          %s178 = smul.addr %s177, 4
          %s179 = scalar_lea.vmem %s1, %s178
          // Predicated region
          $region25: #{resnet_forward.21} parent=23 // pred_check
            _
          $region26: #{resnet_forward.21} parent=23 // pred_check_branch
            %181 = sbr.rel (0) target = $region28
          $region27: #{resnet_forward.21} parent=23 // pred_region
            // Predicated region
            $region29: #{resnet_forward.21} parent=27 // pred_check
              _
            $region30: #{resnet_forward.21} parent=27 // pred_check_branch
              %183 = sbr.rel target = $region32
            $region31: #{resnet_forward.21} parent=27 // pred_region
              // Predicated region
              $region44: #{resnet_forward.21} parent=31 // pred_check
                _
              $region45: #{resnet_forward.21} parent=31 // pred_check_branch
                %229 = sbr.rel (0) target = $region47
              $region46: #{resnet_forward.21} parent=31 // pred_region
                loop: start=0, step=1, limit=1
                $region48: #{resnet_forward.21} parent=46 // loop_pre_header
                  _
                $region49: #{resnet_forward.21} parent=46 // loop_header
                  %s231 = sphi 0, %s235
                  %p232 = scmp.ge.s32.totalorder %s231, 1
                  %s236 = sphi %s179, %s179
                  %s237 = sphi %s174, %s174
                $region50: #{resnet_forward.21} parent=46 // loop_header_branch
                  %234 = sbr.rel (%p232) target = $region54
                $region51: #{resnet_forward.21} parent=46 // loop_body
                  _
                $region52: #{resnet_forward.21} parent=46 // loop_footer
                  %s235 = sadd.s32 1, %s231
                $region53: #{resnet_forward.21} parent=46 // loop_footer_branch
                  %230 = sbr.rel target = $region49
                $region54: #{resnet_forward.21} parent=46 // loop_exit
                  _
                %s239 = ssub.s32 16, 1
                loop: start=0, step=1, limit=1
                $region55: #{resnet_forward.21} parent=46 // loop_pre_header
                  _
                $region56: #{resnet_forward.21} parent=46 // loop_header
                  %s241 = sphi 0, %s245
                  %p242 = scmp.ge.s32.totalorder %s241, 1
                  %s246 = sphi %s179, %s179
                  %s247 = sphi %s174, %s174
                $region57: #{resnet_forward.21} parent=46 // loop_header_branch
                  %244 = sbr.rel (%p242) target = $region61
                $region58: #{resnet_forward.21} parent=46 // loop_body
                  %v248 = vld [vmem:[%s246] sm:%s239]
                  %249 = vst [vmem:[%s247] sm:%s239] %v248
                  %v250 = vld [vmem:[%s246 + $0x10] sm:%s239]
                  %251 = vst [vmem:[%s247 + $0x4] sm:%s239] %v250
                  %v252 = vld [vmem:[%s246 + $0x20] sm:%s239]
                  %253 = vst [vmem:[%s247 + $0x8] sm:%s239] %v252
                  %v254 = vld [vmem:[%s246 + $0x30] sm:%s239]
                  %255 = vst [vmem:[%s247 + $0xc] sm:%s239] %v254
                  %v256 = vld [vmem:[%s246 + $0x40] sm:%s239]
                  %257 = vst [vmem:[%s247 + $0x10] sm:%s239] %v256
                  %v258 = vld [vmem:[%s246 + $0x50] sm:%s239]
                  %259 = vst [vmem:[%s247 + $0x14] sm:%s239] %v258
                  %v260 = vld [vmem:[%s246 + $0x60] sm:%s239]
                  %261 = vst [vmem:[%s247 + $0x18] sm:%s239] %v260
                  %v262 = vld [vmem:[%s246 + $0x70] sm:%s239]
                  %263 = vst [vmem:[%s247 + $0x1c] sm:%s239] %v262
                  %v264 = vld [vmem:[%s246 + $0x80] sm:%s239]
                  %265 = vst [vmem:[%s247 + $0x20] sm:%s239] %v264
                  %v266 = vld [vmem:[%s246 + $0x90] sm:%s239]
                  %267 = vst [vmem:[%s247 + $0x24] sm:%s239] %v266
                  %v268 = vld [vmem:[%s246 + $0xa0] sm:%s239]
                  %269 = vst [vmem:[%s247 + $0x28] sm:%s239] %v268
                  %v270 = vld [vmem:[%s246 + $0xb0] sm:%s239]
                  %271 = vst [vmem:[%s247 + $0x2c] sm:%s239] %v270
                  %v272 = vld [vmem:[%s246 + $0xc0] sm:%s239]
                  %273 = vst [vmem:[%s247 + $0x30] sm:%s239] %v272
                  %v274 = vld [vmem:[%s246 + $0xd0] sm:%s239]
                  %275 = vst [vmem:[%s247 + $0x34] sm:%s239] %v274
                  %v276 = vld [vmem:[%s246 + $0xe0] sm:%s239]
                  %277 = vst [vmem:[%s247 + $0x38] sm:%s239] %v276
                  %v278 = vld [vmem:[%s246 + $0xf0] sm:%s239]
                  %279 = vst [vmem:[%s247 + $0x3c] sm:%s239] %v278
                $region59: #{resnet_forward.21} parent=46 // loop_footer
                  %s245 = sadd.s32 1, %s241
                $region60: #{resnet_forward.21} parent=46 // loop_footer_branch
                  %240 = sbr.rel target = $region56
                $region61: #{resnet_forward.21} parent=46 // loop_exit
                  _
              $region47: #{resnet_forward.21} parent=31 // pred_fallthru
                _
            $region32: #{resnet_forward.21} parent=27 // pred_fallthru
              _
            // Predicated region
            $region33: #{resnet_forward.21} parent=27 // pred_check
              _
            $region34: #{resnet_forward.21} parent=27 // pred_check_branch
              %185 = sbr.rel (0) target = $region36
            $region35: #{resnet_forward.21} parent=27 // pred_region
              %s187 = ssub.s32 16, 1
              loop: start=0, step=1, limit=1
              $region37: #{resnet_forward.21} parent=35 // loop_pre_header
                _
              $region38: #{resnet_forward.21} parent=35 // loop_header
                %s189 = sphi 0, %s193
                %p190 = scmp.ge.s32.totalorder %s189, 1
                %s194 = sphi %s179, %s179
                %s195 = sphi %s174, %s174
              $region39: #{resnet_forward.21} parent=35 // loop_header_branch
                %192 = sbr.rel (%p190) target = $region43
              $region40: #{resnet_forward.21} parent=35 // loop_body
                %v196 = vld [vmem:[%s194] sm:%s187]
                %197 = vst [vmem:[%s195] sm:%s187] %v196
                %v198 = vld [vmem:[%s194 + $0x10] sm:%s187]
                %199 = vst [vmem:[%s195 + $0x4] sm:%s187] %v198
                %v200 = vld [vmem:[%s194 + $0x20] sm:%s187]
                %201 = vst [vmem:[%s195 + $0x8] sm:%s187] %v200
                %v202 = vld [vmem:[%s194 + $0x30] sm:%s187]
                %203 = vst [vmem:[%s195 + $0xc] sm:%s187] %v202
                %v204 = vld [vmem:[%s194 + $0x40] sm:%s187]
                %205 = vst [vmem:[%s195 + $0x10] sm:%s187] %v204
                %v206 = vld [vmem:[%s194 + $0x50] sm:%s187]
                %207 = vst [vmem:[%s195 + $0x14] sm:%s187] %v206
                %v208 = vld [vmem:[%s194 + $0x60] sm:%s187]
                %209 = vst [vmem:[%s195 + $0x18] sm:%s187] %v208
                %v210 = vld [vmem:[%s194 + $0x70] sm:%s187]
                %211 = vst [vmem:[%s195 + $0x1c] sm:%s187] %v210
                %v212 = vld [vmem:[%s194 + $0x80] sm:%s187]
                %213 = vst [vmem:[%s195 + $0x20] sm:%s187] %v212
                %v214 = vld [vmem:[%s194 + $0x90] sm:%s187]
                %215 = vst [vmem:[%s195 + $0x24] sm:%s187] %v214
                %v216 = vld [vmem:[%s194 + $0xa0] sm:%s187]
                %217 = vst [vmem:[%s195 + $0x28] sm:%s187] %v216
                %v218 = vld [vmem:[%s194 + $0xb0] sm:%s187]
                %219 = vst [vmem:[%s195 + $0x2c] sm:%s187] %v218
                %v220 = vld [vmem:[%s194 + $0xc0] sm:%s187]
                %221 = vst [vmem:[%s195 + $0x30] sm:%s187] %v220
                %v222 = vld [vmem:[%s194 + $0xd0] sm:%s187]
                %223 = vst [vmem:[%s195 + $0x34] sm:%s187] %v222
                %v224 = vld [vmem:[%s194 + $0xe0] sm:%s187]
                %225 = vst [vmem:[%s195 + $0x38] sm:%s187] %v224
                %v226 = vld [vmem:[%s194 + $0xf0] sm:%s187]
                %227 = vst [vmem:[%s195 + $0x3c] sm:%s187] %v226
              $region41: #{resnet_forward.21} parent=35 // loop_footer
                %s193 = sadd.s32 1, %s189
              $region42: #{resnet_forward.21} parent=35 // loop_footer_branch
                %188 = sbr.rel target = $region38
              $region43: #{resnet_forward.21} parent=35 // loop_exit
                _
            $region36: #{resnet_forward.21} parent=27 // pred_fallthru
              _
          $region28: #{resnet_forward.21} parent=23 // pred_fallthru
            _
          %280 = vnop
        $region24: #{resnet_forward.21} parent=15 // pred_fallthru
          _
        // Predicated region
        $region62: #{resnet_forward.21} parent=15 // pred_check
          %p281 = pneg %p104
        $region63: #{resnet_forward.21} parent=15 // pred_check_branch
          %283 = sbr.rel (%p281) target = $region65
        $region64: #{resnet_forward.21} parent=15 // pred_region
          %p284 = scmp.lt.s32.totalorder %s17, 3
          %s285 = scalar_select %p284, %s17, 3
          %s286 = scalar_lea.vmem %s2, %s285
        $region65: #{resnet_forward.21} parent=15 // pred_fallthru
          _
      $region16: #{resnet_forward.21} parent=5 // pred_fallthru
        _
      %p287 = scmp.le.s32.totalorder 1, %s9
      %p288 = scmp.lt.s32.totalorder %s9, 9
      %p289 = pnand %p287, %p288
      %p290 = pneg %p289
      // Predicated region
      $region66: #{resnet_forward.21} parent=5 // pred_check
        _
      $region67: #{resnet_forward.21} parent=5 // pred_check_branch
        %292 = sbr.rel (%p289) target = $region69
      $region68: #{resnet_forward.21} parent=5 // pred_region
        %s293 = ssub.s32 %s9, 1
        %s294 = sand.u32 %s71, 1
        %s295 = sand.u32 %s71, 1
        %s296 = smul.addr %s295, 64
        %s297 = scalar_lea.vmem [#allocation3], %s296
        // Predicated region
        $region70: #{resnet_forward.21} parent=68 // pred_check
          %p298 = pneg %p84
        $region71: #{resnet_forward.21} parent=68 // pred_check_branch
          %300 = sbr.rel (%p298) target = $region73
        $region72: #{resnet_forward.21} parent=68 // pred_region
          _
        $region73: #{resnet_forward.21} parent=68 // pred_fallthru
          _
        %p301 = scmp.lt.s32.totalorder %s19, 0
        %s302 = scalar_select %p301, %s19, 0
        %p303 = scmp.lt.s32.totalorder %s21, 1
        %s304 = scalar_select %p303, %s21, 1
        %s305 = smul.addr %s302, 2
        %s306 = sadd.s32 %s304, %s305
        %s307 = smul.addr %s306, 4
        %s308 = scalar_lea.vmem %s0, %s307
        %p309 = pneg %p56
        %p310 = pneg %p53
        %s311 = sand.u32 %s71, 1
        %s312 = sand.u32 %s71, 1
        %s313 = smul.addr %s312, 64
        %s314 = scalar_lea.vmem [#allocation3], %s313
        %p315 = pneg %p84
        %p316 = pneg %p81
        %p317 = scmp.lt.s32.totalorder %s20, 3
        %s318 = scalar_select %p317, %s20, 3
        %s319 = scalar_lea.vmem %s2, %s318
        %p320 = pneg %p110
        %p321 = pneg %p107
        %p322 = pneg %p138
        %p323 = pneg %p135
        %p324 = scmp.lt.s32.totalorder %s19, 0
        %s325 = scalar_select %p324, %s19, 0
        %p326 = scmp.lt.s32.totalorder %s20, 3
        %s327 = scalar_select %p326, %s20, 3
        %s328 = smul.addr %s325, 4
        %s329 = sadd.s32 %s327, %s328
        %s330 = smul.addr %s329, 8
        %s331 = scalar_lea.vmem %s3, %s330
        %p332 = scmp.lt.s32.totalorder %s19, 0
        %s333 = scalar_select %p332, %s19, 0
        %p334 = scmp.lt.s32.totalorder %s21, 1
        %s335 = scalar_select %p334, %s21, 1
        %s336 = smul.addr %s333, 2
        %s337 = sadd.s32 %s335, %s336
        %s338 = smul.addr %s337, 4
        %s339 = scalar_lea.vmem %s0, %s338
        %s340 = smul.u32 16, %s21
        %p341 = scmp.lt.s32.totalorder %s20, 3
        %s342 = scalar_select %p341, %s20, 3
        %s343 = scalar_lea.vmem %s2, %s342
        %p344 = scmp.lt.s32.totalorder %s19, 0
        %s345 = scalar_select %p344, %s19, 0
        %p346 = scmp.lt.s32.totalorder %s20, 3
        %s347 = scalar_select %p346, %s20, 3
        %s348 = smul.addr %s345, 4
        %s349 = sadd.s32 %s347, %s348
        %s350 = smul.addr %s349, 8
        %s351 = scalar_lea.vmem %s3, %s350
        %p352 = scmp.eq.s32.totalorder %s21, 0
        // Predicated region
        $region74: #{resnet_forward.21} parent=68 // pred_check
          %p353 = pneg %p352
        $region75: #{resnet_forward.21} parent=68 // pred_check_branch
          %355 = sbr.rel (%p353) target = $region77
        $region76: #{resnet_forward.21} parent=68 // pred_region
          %356 = vst [vmem:[#allocation2] sm:$0xff] 0.0
        $region77: #{resnet_forward.21} parent=68 // pred_fallthru
          _
        %v357 = vld [vmem:[#allocation2] sm:$0xff]
        %v358 = vld [vmem:[%s339] sm:$0xf]
        %v359 = vld [vmem:[%s297] sm:$0xf]
        %v360 = vld [vmem:[%s297 + $0x4] sm:$0xf]
        %v361 = vld [vmem:[%s297 + $0x8] sm:$0xf]
        %v362 = vld [vmem:[%s297 + $0xc] sm:$0xf]
        %v363 = vld [vmem:[%s297 + $0x10] sm:$0xf]
        %v364 = vld [vmem:[%s297 + $0x14] sm:$0xf]
        %v365 = vld [vmem:[%s297 + $0x18] sm:$0xf]
        %v366 = vld [vmem:[%s297 + $0x1c] sm:$0xf]
        %v367 = vld [vmem:[%s297 + $0x20] sm:$0xf]
        %v368 = vld [vmem:[%s297 + $0x24] sm:$0xf]
        %v369 = vld [vmem:[%s297 + $0x28] sm:$0xf]
        %v370 = vld [vmem:[%s297 + $0x2c] sm:$0xf]
        %v371 = vld [vmem:[%s297 + $0x30] sm:$0xf]
        %v372 = vld [vmem:[%s297 + $0x34] sm:$0xf]
        %v373 = vld [vmem:[%s297 + $0x38] sm:$0xf]
        %v374 = vld [vmem:[%s297 + $0x3c] sm:$0xf]
        %v391 = vunpack.c.l.b16 %v359
        %v392 = vunpack.c.l.b16 %v360
        %v393 = vunpack.c.l.b16 %v361
        %v394 = vunpack.c.l.b16 %v362
        %v395 = vunpack.c.l.b16 %v363
        %v396 = vunpack.c.l.b16 %v364
        %v397 = vunpack.c.l.b16 %v365
        %v398 = vunpack.c.l.b16 %v366
        %v399 = vunpack.c.l.b16 %v367
        %v400 = vunpack.c.l.b16 %v368
        %v401 = vunpack.c.l.b16 %v369
        %v402 = vunpack.c.l.b16 %v370
        %v403 = vunpack.c.l.b16 %v371
        %v404 = vunpack.c.l.b16 %v372
        %v405 = vunpack.c.l.b16 %v373
        %v406 = vunpack.c.l.b16 %v374
        %v407 = vpack.c.b16 %v392, %v391
        %v408 = vpack.c.b16 %v394, %v393
        %v409 = vpack.c.b16 %v396, %v395
        %v410 = vpack.c.b16 %v398, %v397
        %v411 = vpack.c.b16 %v400, %v399
        %v412 = vpack.c.b16 %v402, %v401
        %v413 = vpack.c.b16 %v404, %v403
        %v414 = vpack.c.b16 %v406, %v405
        %423 = vmatpush.bf16.msra.mxu0 %v414
        %424 = vmatpush.bf16.msra.mxu0 %v413
        %425 = vmatpush.bf16.msra.mxu0 %v412
        %426 = vmatpush.bf16.msra.mxu0 %v411
        %427 = vmatpush.bf16.msra.mxu0 %v410
        %428 = vmatpush.bf16.msra.mxu0 %v409
        %429 = vmatpush.bf16.msra.mxu0 %v408
        %430 = vmatpush.bf16.msra.mxu0 %v407
        %431 = vmatmul.bf16.gmra.mxu0 %v358
        %v432 = vpop.f32.mrf.mxu0
        %v433 = vadd.f32 0.0, %v432
        %v434 = vpop.f32.mrf.mxu0
        %435 = vdwg.mxu0
        %v436 = vadd.f32 %v357, %v433
        %437 = vst [vmem:[#allocation2] sm:$0xff] %v436
        %p438 = scmp.eq.s32.totalorder %s21, 1
        // Predicated region
        $region78: #{resnet_forward.21} parent=68 // pred_check
          %p439 = pneg %p438
        $region79: #{resnet_forward.21} parent=68 // pred_check_branch
          %441 = sbr.rel (%p439) target = $region81
        $region80: #{resnet_forward.21} parent=68 // pred_region
          %v442 = vld [vmem:[#allocation2] sm:$0xff]
          %v443 = vld [vmem:[%s343] sm:$0x1]
          %v445 = vperm.slane %v443, 0
          %v447 = vadd.f32 %v442, %v445
          %448 = vst [vmem:[%s351] sm:$0xff] %v447
        $region81: #{resnet_forward.21} parent=68 // pred_fallthru
          _
        %p449 = scmp.lt.s32.totalorder %s19, 0
        %s450 = scalar_select %p449, %s19, 0
        %p451 = scmp.lt.s32.totalorder %s20, 3
        %s452 = scalar_select %p451, %s20, 3
        %s453 = smul.addr %s450, 4
        %s454 = sadd.s32 %s452, %s453
        %s455 = smul.addr %s454, 8
        %s456 = scalar_lea.vmem %s3, %s455
        // Predicated region
        $region82: #{resnet_forward.21} parent=68 // pred_check
          %p457 = pneg %p135
        $region83: #{resnet_forward.21} parent=68 // pred_check_branch
          %459 = sbr.rel (%p457) target = $region85
        $region84: #{resnet_forward.21} parent=68 // pred_region
          _
        $region85: #{resnet_forward.21} parent=68 // pred_fallthru
          _
      $region69: #{resnet_forward.21} parent=5 // pred_fallthru
        _
      %p460 = scmp.le.s32.totalorder 2, %s9
      // Predicated region
      $region86: #{resnet_forward.21} parent=5 // pred_check
        %p461 = pneg %p460
      $region87: #{resnet_forward.21} parent=5 // pred_check_branch
        %463 = sbr.rel (%p461) target = $region89
      $region88: #{resnet_forward.21} parent=5 // pred_region
        %s464 = ssub.s32 %s9, 2
        // Predicated region
        $region90: #{resnet_forward.21} parent=88 // pred_check
          %p465 = pneg %p141
        $region91: #{resnet_forward.21} parent=88 // pred_check_branch
          %467 = sbr.rel (%p465) target = $region93
        $region92: #{resnet_forward.21} parent=88 // pred_region
          %p468 = scmp.lt.s32.totalorder %s22, 0
          %s469 = scalar_select %p468, %s22, 0
          %p470 = scmp.lt.s32.totalorder %s23, 3
          %s471 = scalar_select %p470, %s23, 3
          %s472 = smul.addr %s469, 4
          %s473 = sadd.s32 %s471, %s472
          %s474 = smul.addr %s473, 8
          %s475 = scalar_lea.vmem %s3, %s474
        $region93: #{resnet_forward.21} parent=88 // pred_fallthru
          _
      $region89: #{resnet_forward.21} parent=5 // pred_fallthru
        _
    $region6: #{resnet_forward.21} parent=1 // loop_footer
      %s13 = sadd.s32 1, %s9
    $region7: #{resnet_forward.21} parent=1 // loop_footer_branch
      %8 = sbr.rel target = $region3
    $region8: #{resnet_forward.21} parent=1 // loop_exit
      _

// kernel: resnet_forward.23
$region0: #{resnet_forward.23}
  #allocation0 [shape = 'u32[]', space=smem, size = 0x4, offset = 0x4, fixed_abs, tag = 'smem constant byte address 0x4 - core index']
  #allocation1 [shape = 'u32[72,128]{1,0:T(1,128)}', space=vmem, size = 0x9000, scoped, tag = 'internal scratch']
  #allocation2 [shape = 'f32[8,128]{1,0:T(8,128)}', space=vmem, size = 0x1000, scoped, tag = 'scratch operand']
  %s0 = inlined_call_operand.vmem [shape: bf16[8,4608], index: 0, kind: input, shape index: {}]
  %s1 = inlined_call_operand.vmem [shape: bf16[4608,512], index: 1, kind: input, shape index: {}]
  %s2 = inlined_call_operand.vmem [shape: f32[1,512], index: 2, kind: input, shape index: {}]
  %s3 = inlined_call_operand.vmem [shape: f32[8,512], index: 3, kind: input, shape index: {}]
  %s4 = inlined_call_operand.vmem [shape: f32[8,512], index: 4, kind: output, shape index: {}]
  %s5 = sld [smem:[#allocation0]]
  $region98: #{resnet_forward.23} parent=0
    _
  %s7 = ssub.s32 1, %s5
  %s8 = scalar_select 0, %s7, %s5
  $region1: #{resnet_forward.23} parent=0
    #allocation3 [shape = 'u8[65536]{0}', space=vmem, size = 0x10000, scoped, tag = 'input window, operand 1']
    loop: start=0, step=1, limit=146
    $region2: #{resnet_forward.23} parent=1 // loop_pre_header
      _
    $region3: #{resnet_forward.23} parent=1 // loop_header
      %s10 = sphi 0, %s14
      %p11 = scmp.ge.s32.totalorder %s10, 146
      %s17 = sphi 0, %s36
      %s18 = sphi 0, %s32
      %s19 = sphi 0, %s28
      %s20 = sphi 0, %s17
      %s21 = sphi 0, %s18
      %s22 = sphi 0, %s19
      %s23 = sphi 0, %s20
      %s24 = sphi 0, %s21
      %s25 = sphi 0, %s22
      %s41 = sphi 0, %s43
      %s44 = sphi 0, %s41
      %s45 = sphi 0, %s44
      %s61 = sphi 0, %s45
      %s69 = sphi 0, %s71
      %s72 = sphi 0, %s69
      %s73 = sphi 0, %s72
      %s89 = sphi 0, %s73
      %s95 = sphi 0, %s97
      %s98 = sphi 0, %s95
      %s99 = sphi 0, %s98
      %s115 = sphi 0, %s99
      %s123 = sphi 0, %s125
      %s126 = sphi 0, %s123
      %s127 = sphi 0, %s126
      %s143 = sphi 0, %s127
      %s151 = sphi 0, %s153
      %s154 = sphi 0, %s151
      %s155 = sphi 0, %s154
      %s171 = sphi 0, %s155
    $region4: #{resnet_forward.23} parent=1 // loop_header_branch
      %13 = sbr.rel (%p11) target = $region8
    $region5: #{resnet_forward.23} parent=1 // loop_body
      %s15 = ssub.s32 %s10, 1
      %s16 = ssub.s32 %s10, 2
      %s26 = sadd.s32 1, %s19
      %p27 = scmp.ge.s32.totalorder %s26, 36
      %s28 = scalar_select %p27, 0, %s26
      %s29 = sadd.s32 1, %s18
      %s30 = scalar_select %p27, %s29, %s18
      %p31 = scmp.ge.s32.totalorder %s30, 4
      %s32 = scalar_select %p31, 0, %s30
      %s33 = sadd.s32 1, %s17
      %s34 = scalar_select %p31, %s33, %s17
      %p35 = scmp.ge.s32.totalorder %s34, 1
      %s36 = scalar_select %p35, 0, %s34
      %s37 = ssub.s32 %s17, %s36
      %s38 = ssub.s32 %s19, %s28
      %s39 = sor.u32 %s37, %s38
      %p40 = scmp.eq.s32.totalorder %s39, 0
      %s42 = sadd.s32 %s41, 1
      %s43 = scalar_select %p40, %s41, %s42
      %p46 = pneg %p40
      %p47 = scmp.eq.s32.totalorder %s10, 143
      %p48 = por %p46, %p47
      %p49 = scmp.ne.s32.totalorder %s41, %s44
      %p50 = scmp.eq.s32.totalorder %s10, 0
      %p51 = por %p49, %p50
      %p52 = scmp.ne.s32.totalorder %s41, %s44
      %p53 = scmp.eq.s32.totalorder %s15, 143
      %p54 = por %p52, %p53
      %p55 = scmp.ne.s32.totalorder %s44, %s45
      %p56 = scmp.eq.s32.totalorder %s15, 0
      %p57 = por %p55, %p56
      %p58 = scmp.ne.s32.totalorder %s44, %s45
      %p59 = scmp.eq.s32.totalorder %s16, 143
      %p60 = por %p58, %p59
      %p62 = scmp.ne.s32.totalorder %s45, %s61
      %p63 = scmp.eq.s32.totalorder %s16, 0
      %p64 = por %p62, %p63
      %s65 = ssub.s32 %s19, %s28
      %s66 = ssub.s32 %s18, %s32
      %s67 = sor.u32 %s65, %s66
      %p68 = scmp.eq.s32.totalorder %s67, 0
      %s70 = sadd.s32 %s69, 1
      %s71 = scalar_select %p68, %s69, %s70
      %p74 = pneg %p68
      %p75 = scmp.eq.s32.totalorder %s10, 143
      %p76 = por %p74, %p75
      %p77 = scmp.ne.s32.totalorder %s69, %s72
      %p78 = scmp.eq.s32.totalorder %s10, 0
      %p79 = por %p77, %p78
      %p80 = scmp.ne.s32.totalorder %s69, %s72
      %p81 = scmp.eq.s32.totalorder %s15, 143
      %p82 = por %p80, %p81
      %p83 = scmp.ne.s32.totalorder %s72, %s73
      %p84 = scmp.eq.s32.totalorder %s15, 0
      %p85 = por %p83, %p84
      %p86 = scmp.ne.s32.totalorder %s72, %s73
      %p87 = scmp.eq.s32.totalorder %s16, 143
      %p88 = por %p86, %p87
      %p90 = scmp.ne.s32.totalorder %s73, %s89
      %p91 = scmp.eq.s32.totalorder %s16, 0
      %p92 = por %p90, %p91
      %s93 = ssub.s32 %s18, %s32
      %p94 = scmp.eq.s32.totalorder %s93, 0
      %s96 = sadd.s32 %s95, 1
      %s97 = scalar_select %p94, %s95, %s96
      %p100 = pneg %p94
      %p101 = scmp.eq.s32.totalorder %s10, 143
      %p102 = por %p100, %p101
      %p103 = scmp.ne.s32.totalorder %s95, %s98
      %p104 = scmp.eq.s32.totalorder %s10, 0
      %p105 = por %p103, %p104
      %p106 = scmp.ne.s32.totalorder %s95, %s98
      %p107 = scmp.eq.s32.totalorder %s15, 143
      %p108 = por %p106, %p107
      %p109 = scmp.ne.s32.totalorder %s98, %s99
      %p110 = scmp.eq.s32.totalorder %s15, 0
      %p111 = por %p109, %p110
      %p112 = scmp.ne.s32.totalorder %s98, %s99
      %p113 = scmp.eq.s32.totalorder %s16, 143
      %p114 = por %p112, %p113
      %p116 = scmp.ne.s32.totalorder %s99, %s115
      %p117 = scmp.eq.s32.totalorder %s16, 0
      %p118 = por %p116, %p117
      %s119 = ssub.s32 %s17, %s36
      %s120 = ssub.s32 %s18, %s32
      %s121 = sor.u32 %s119, %s120
      %p122 = scmp.eq.s32.totalorder %s121, 0
      %s124 = sadd.s32 %s123, 1
      %s125 = scalar_select %p122, %s123, %s124
      %p128 = pneg %p122
      %p129 = scmp.eq.s32.totalorder %s10, 143
      %p130 = por %p128, %p129
      %p131 = scmp.ne.s32.totalorder %s123, %s126
      %p132 = scmp.eq.s32.totalorder %s10, 0
      %p133 = por %p131, %p132
      %p134 = scmp.ne.s32.totalorder %s123, %s126
      %p135 = scmp.eq.s32.totalorder %s15, 143
      %p136 = por %p134, %p135
      %p137 = scmp.ne.s32.totalorder %s126, %s127
      %p138 = scmp.eq.s32.totalorder %s15, 0
      %p139 = por %p137, %p138
      %p140 = scmp.ne.s32.totalorder %s126, %s127
      %p141 = scmp.eq.s32.totalorder %s16, 143
      %p142 = por %p140, %p141
      %p144 = scmp.ne.s32.totalorder %s127, %s143
      %p145 = scmp.eq.s32.totalorder %s16, 0
      %p146 = por %p144, %p145
      %s147 = ssub.s32 %s17, %s36
      %s148 = ssub.s32 %s18, %s32
      %s149 = sor.u32 %s147, %s148
      %p150 = scmp.eq.s32.totalorder %s149, 0
      %s152 = sadd.s32 %s151, 1
      %s153 = scalar_select %p150, %s151, %s152
      %p156 = pneg %p150
      %p157 = scmp.eq.s32.totalorder %s10, 143
      %p158 = por %p156, %p157
      %p159 = scmp.ne.s32.totalorder %s151, %s154
      %p160 = scmp.eq.s32.totalorder %s10, 0
      %p161 = por %p159, %p160
      %p162 = scmp.ne.s32.totalorder %s151, %s154
      %p163 = scmp.eq.s32.totalorder %s15, 143
      %p164 = por %p162, %p163
      %p165 = scmp.ne.s32.totalorder %s154, %s155
      %p166 = scmp.eq.s32.totalorder %s15, 0
      %p167 = por %p165, %p166
      %p168 = scmp.ne.s32.totalorder %s154, %s155
      %p169 = scmp.eq.s32.totalorder %s16, 143
      %p170 = por %p168, %p169
      %p172 = scmp.ne.s32.totalorder %s155, %s171
      %p173 = scmp.eq.s32.totalorder %s16, 0
      %p174 = por %p172, %p173
      %p175 = scmp.le.s32.totalorder 1, %s10
      %p176 = scmp.lt.s32.totalorder %s10, 145
      %p177 = pnand %p175, %p176
      %p178 = pneg %p177
      // Predicated region
      $region9: #{resnet_forward.23} parent=5 // pred_check
        _
      $region10: #{resnet_forward.23} parent=5 // pred_check_branch
        %180 = sbr.rel (%p177) target = $region12
      $region11: #{resnet_forward.23} parent=5 // pred_region
        %s181 = ssub.s32 %s10, 1
      $region12: #{resnet_forward.23} parent=5 // pred_fallthru
        _
      %p182 = scmp.lt.s32.totalorder %s10, 144
      // Predicated region
      $region13: #{resnet_forward.23} parent=5 // pred_check
        %p183 = pneg %p182
      $region14: #{resnet_forward.23} parent=5 // pred_check_branch
        %185 = sbr.rel (%p183) target = $region16
      $region15: #{resnet_forward.23} parent=5 // pred_region
        // Predicated region
        $region17: #{resnet_forward.23} parent=15 // pred_check
          %p186 = pneg %p51
        $region18: #{resnet_forward.23} parent=15 // pred_check_branch
          %188 = sbr.rel (%p186) target = $region20
        $region19: #{resnet_forward.23} parent=15 // pred_region
          %p189 = scmp.lt.s32.totalorder %s17, 0
          %s190 = scalar_select %p189, %s17, 0
          %p191 = scmp.lt.s32.totalorder %s19, 35
          %s192 = scalar_select %p191, %s19, 35
          %s193 = smul.addr %s190, 36
          %s194 = sadd.s32 %s192, %s193
          %s195 = smul.addr %s194, 4
          %s196 = scalar_lea.vmem %s0, %s195
        $region20: #{resnet_forward.23} parent=15 // pred_fallthru
          _
        // Predicated region
        $region21: #{resnet_forward.23} parent=15 // pred_check
          %p197 = pneg %p79
        $region22: #{resnet_forward.23} parent=15 // pred_check_branch
          %199 = sbr.rel (%p197) target = $region24
        $region23: #{resnet_forward.23} parent=15 // pred_region
          %s200 = sand.u32 %s69, 1
          %s201 = sand.u32 %s69, 1
          %s202 = smul.addr %s201, 64
          %s203 = scalar_lea.vmem [#allocation3], %s202
          %s204 = smul.u32 16, %s19
          %s205 = smul.addr %s204, 4
          %s206 = sadd.s32 %s18, %s205
          %s207 = smul.addr %s206, 4
          %s208 = scalar_lea.vmem %s1, %s207
          // Predicated region
          $region25: #{resnet_forward.23} parent=23 // pred_check
            _
          $region26: #{resnet_forward.23} parent=23 // pred_check_branch
            %210 = sbr.rel (0) target = $region28
          $region27: #{resnet_forward.23} parent=23 // pred_region
            // Predicated region
            $region29: #{resnet_forward.23} parent=27 // pred_check
              _
            $region30: #{resnet_forward.23} parent=27 // pred_check_branch
              %212 = sbr.rel target = $region32
            $region31: #{resnet_forward.23} parent=27 // pred_region
              // Predicated region
              $region44: #{resnet_forward.23} parent=31 // pred_check
                _
              $region45: #{resnet_forward.23} parent=31 // pred_check_branch
                %258 = sbr.rel (0) target = $region47
              $region46: #{resnet_forward.23} parent=31 // pred_region
                loop: start=0, step=1, limit=1
                $region48: #{resnet_forward.23} parent=46 // loop_pre_header
                  _
                $region49: #{resnet_forward.23} parent=46 // loop_header
                  %s260 = sphi 0, %s264
                  %p261 = scmp.ge.s32.totalorder %s260, 1
                  %s265 = sphi %s208, %s208
                  %s266 = sphi %s203, %s203
                $region50: #{resnet_forward.23} parent=46 // loop_header_branch
                  %263 = sbr.rel (%p261) target = $region54
                $region51: #{resnet_forward.23} parent=46 // loop_body
                  _
                $region52: #{resnet_forward.23} parent=46 // loop_footer
                  %s264 = sadd.s32 1, %s260
                $region53: #{resnet_forward.23} parent=46 // loop_footer_branch
                  %259 = sbr.rel target = $region49
                $region54: #{resnet_forward.23} parent=46 // loop_exit
                  _
                %s268 = ssub.s32 16, 1
                loop: start=0, step=1, limit=1
                $region55: #{resnet_forward.23} parent=46 // loop_pre_header
                  _
                $region56: #{resnet_forward.23} parent=46 // loop_header
                  %s270 = sphi 0, %s274
                  %p271 = scmp.ge.s32.totalorder %s270, 1
                  %s275 = sphi %s208, %s208
                  %s276 = sphi %s203, %s203
                $region57: #{resnet_forward.23} parent=46 // loop_header_branch
                  %273 = sbr.rel (%p271) target = $region61
                $region58: #{resnet_forward.23} parent=46 // loop_body
                  %v277 = vld [vmem:[%s275] sm:%s268]
                  %278 = vst [vmem:[%s276] sm:%s268] %v277
                  %v279 = vld [vmem:[%s275 + $0x10] sm:%s268]
                  %280 = vst [vmem:[%s276 + $0x4] sm:%s268] %v279
                  %v281 = vld [vmem:[%s275 + $0x20] sm:%s268]
                  %282 = vst [vmem:[%s276 + $0x8] sm:%s268] %v281
                  %v283 = vld [vmem:[%s275 + $0x30] sm:%s268]
                  %284 = vst [vmem:[%s276 + $0xc] sm:%s268] %v283
                  %v285 = vld [vmem:[%s275 + $0x40] sm:%s268]
                  %286 = vst [vmem:[%s276 + $0x10] sm:%s268] %v285
                  %v287 = vld [vmem:[%s275 + $0x50] sm:%s268]
                  %288 = vst [vmem:[%s276 + $0x14] sm:%s268] %v287
                  %v289 = vld [vmem:[%s275 + $0x60] sm:%s268]
                  %290 = vst [vmem:[%s276 + $0x18] sm:%s268] %v289
                  %v291 = vld [vmem:[%s275 + $0x70] sm:%s268]
                  %292 = vst [vmem:[%s276 + $0x1c] sm:%s268] %v291
                  %v293 = vld [vmem:[%s275 + $0x80] sm:%s268]
                  %294 = vst [vmem:[%s276 + $0x20] sm:%s268] %v293
                  %v295 = vld [vmem:[%s275 + $0x90] sm:%s268]
                  %296 = vst [vmem:[%s276 + $0x24] sm:%s268] %v295
                  %v297 = vld [vmem:[%s275 + $0xa0] sm:%s268]
                  %298 = vst [vmem:[%s276 + $0x28] sm:%s268] %v297
                  %v299 = vld [vmem:[%s275 + $0xb0] sm:%s268]
                  %300 = vst [vmem:[%s276 + $0x2c] sm:%s268] %v299
                  %v301 = vld [vmem:[%s275 + $0xc0] sm:%s268]
                  %302 = vst [vmem:[%s276 + $0x30] sm:%s268] %v301
                  %v303 = vld [vmem:[%s275 + $0xd0] sm:%s268]
                  %304 = vst [vmem:[%s276 + $0x34] sm:%s268] %v303
                  %v305 = vld [vmem:[%s275 + $0xe0] sm:%s268]
                  %306 = vst [vmem:[%s276 + $0x38] sm:%s268] %v305
                  %v307 = vld [vmem:[%s275 + $0xf0] sm:%s268]
                  %308 = vst [vmem:[%s276 + $0x3c] sm:%s268] %v307
                $region59: #{resnet_forward.23} parent=46 // loop_footer
                  %s274 = sadd.s32 1, %s270
                $region60: #{resnet_forward.23} parent=46 // loop_footer_branch
                  %269 = sbr.rel target = $region56
                $region61: #{resnet_forward.23} parent=46 // loop_exit
                  _
              $region47: #{resnet_forward.23} parent=31 // pred_fallthru
                _
            $region32: #{resnet_forward.23} parent=27 // pred_fallthru
              _
            // Predicated region
            $region33: #{resnet_forward.23} parent=27 // pred_check
              _
            $region34: #{resnet_forward.23} parent=27 // pred_check_branch
              %214 = sbr.rel (0) target = $region36
            $region35: #{resnet_forward.23} parent=27 // pred_region
              %s216 = ssub.s32 16, 1
              loop: start=0, step=1, limit=1
              $region37: #{resnet_forward.23} parent=35 // loop_pre_header
                _
              $region38: #{resnet_forward.23} parent=35 // loop_header
                %s218 = sphi 0, %s222
                %p219 = scmp.ge.s32.totalorder %s218, 1
                %s223 = sphi %s208, %s208
                %s224 = sphi %s203, %s203
              $region39: #{resnet_forward.23} parent=35 // loop_header_branch
                %221 = sbr.rel (%p219) target = $region43
              $region40: #{resnet_forward.23} parent=35 // loop_body
                %v225 = vld [vmem:[%s223] sm:%s216]
                %226 = vst [vmem:[%s224] sm:%s216] %v225
                %v227 = vld [vmem:[%s223 + $0x10] sm:%s216]
                %228 = vst [vmem:[%s224 + $0x4] sm:%s216] %v227
                %v229 = vld [vmem:[%s223 + $0x20] sm:%s216]
                %230 = vst [vmem:[%s224 + $0x8] sm:%s216] %v229
                %v231 = vld [vmem:[%s223 + $0x30] sm:%s216]
                %232 = vst [vmem:[%s224 + $0xc] sm:%s216] %v231
                %v233 = vld [vmem:[%s223 + $0x40] sm:%s216]
                %234 = vst [vmem:[%s224 + $0x10] sm:%s216] %v233
                %v235 = vld [vmem:[%s223 + $0x50] sm:%s216]
                %236 = vst [vmem:[%s224 + $0x14] sm:%s216] %v235
                %v237 = vld [vmem:[%s223 + $0x60] sm:%s216]
                %238 = vst [vmem:[%s224 + $0x18] sm:%s216] %v237
                %v239 = vld [vmem:[%s223 + $0x70] sm:%s216]
                %240 = vst [vmem:[%s224 + $0x1c] sm:%s216] %v239
                %v241 = vld [vmem:[%s223 + $0x80] sm:%s216]
                %242 = vst [vmem:[%s224 + $0x20] sm:%s216] %v241
                %v243 = vld [vmem:[%s223 + $0x90] sm:%s216]
                %244 = vst [vmem:[%s224 + $0x24] sm:%s216] %v243
                %v245 = vld [vmem:[%s223 + $0xa0] sm:%s216]
                %246 = vst [vmem:[%s224 + $0x28] sm:%s216] %v245
                %v247 = vld [vmem:[%s223 + $0xb0] sm:%s216]
                %248 = vst [vmem:[%s224 + $0x2c] sm:%s216] %v247
                %v249 = vld [vmem:[%s223 + $0xc0] sm:%s216]
                %250 = vst [vmem:[%s224 + $0x30] sm:%s216] %v249
                %v251 = vld [vmem:[%s223 + $0xd0] sm:%s216]
                %252 = vst [vmem:[%s224 + $0x34] sm:%s216] %v251
                %v253 = vld [vmem:[%s223 + $0xe0] sm:%s216]
                %254 = vst [vmem:[%s224 + $0x38] sm:%s216] %v253
                %v255 = vld [vmem:[%s223 + $0xf0] sm:%s216]
                %256 = vst [vmem:[%s224 + $0x3c] sm:%s216] %v255
              $region41: #{resnet_forward.23} parent=35 // loop_footer
                %s222 = sadd.s32 1, %s218
              $region42: #{resnet_forward.23} parent=35 // loop_footer_branch
                %217 = sbr.rel target = $region38
              $region43: #{resnet_forward.23} parent=35 // loop_exit
                _
            $region36: #{resnet_forward.23} parent=27 // pred_fallthru
              _
          $region28: #{resnet_forward.23} parent=23 // pred_fallthru
            _
          %309 = vnop
        $region24: #{resnet_forward.23} parent=15 // pred_fallthru
          _
        // Predicated region
        $region62: #{resnet_forward.23} parent=15 // pred_check
          %p310 = pneg %p105
        $region63: #{resnet_forward.23} parent=15 // pred_check_branch
          %312 = sbr.rel (%p310) target = $region65
        $region64: #{resnet_forward.23} parent=15 // pred_region
          %p313 = scmp.lt.s32.totalorder %s18, 3
          %s314 = scalar_select %p313, %s18, 3
          %s315 = scalar_lea.vmem %s2, %s314
        $region65: #{resnet_forward.23} parent=15 // pred_fallthru
          _
        // Predicated region
        $region66: #{resnet_forward.23} parent=15 // pred_check
          %p316 = pneg %p133
        $region67: #{resnet_forward.23} parent=15 // pred_check_branch
          %318 = sbr.rel (%p316) target = $region69
        $region68: #{resnet_forward.23} parent=15 // pred_region
          %p319 = scmp.lt.s32.totalorder %s17, 0
          %s320 = scalar_select %p319, %s17, 0
          %p321 = scmp.lt.s32.totalorder %s18, 3
          %s322 = scalar_select %p321, %s18, 3
          %s323 = smul.addr %s320, 4
          %s324 = sadd.s32 %s322, %s323
          %s325 = smul.addr %s324, 8
          %s326 = scalar_lea.vmem %s3, %s325
        $region69: #{resnet_forward.23} parent=15 // pred_fallthru
          _
      $region16: #{resnet_forward.23} parent=5 // pred_fallthru
        _
      %p327 = scmp.le.s32.totalorder 1, %s10
      %p328 = scmp.lt.s32.totalorder %s10, 145
      %p329 = pnand %p327, %p328
      %p330 = pneg %p329
      // Predicated region
      $region70: #{resnet_forward.23} parent=5 // pred_check
        _
      $region71: #{resnet_forward.23} parent=5 // pred_check_branch
        %332 = sbr.rel (%p329) target = $region73
      $region72: #{resnet_forward.23} parent=5 // pred_region
        %s333 = ssub.s32 %s10, 1
        %s334 = sand.u32 %s72, 1
        %s335 = sand.u32 %s72, 1
        %s336 = smul.addr %s335, 64
        %s337 = scalar_lea.vmem [#allocation3], %s336
        // Predicated region
        $region74: #{resnet_forward.23} parent=72 // pred_check
          %p338 = pneg %p85
        $region75: #{resnet_forward.23} parent=72 // pred_check_branch
          %340 = sbr.rel (%p338) target = $region77
        $region76: #{resnet_forward.23} parent=72 // pred_region
          _
        $region77: #{resnet_forward.23} parent=72 // pred_fallthru
          _
        %p341 = scmp.lt.s32.totalorder %s20, 0
        %s342 = scalar_select %p341, %s20, 0
        %p343 = scmp.lt.s32.totalorder %s22, 35
        %s344 = scalar_select %p343, %s22, 35
        %s345 = smul.addr %s342, 36
        %s346 = sadd.s32 %s344, %s345
        %s347 = smul.addr %s346, 4
        %s348 = scalar_lea.vmem %s0, %s347
        %p349 = pneg %p57
        %p350 = pneg %p54
        %s351 = sand.u32 %s72, 1
        %s352 = sand.u32 %s72, 1
        %s353 = smul.addr %s352, 64
        %s354 = scalar_lea.vmem [#allocation3], %s353
        %p355 = pneg %p85
        %p356 = pneg %p82
        %p357 = scmp.lt.s32.totalorder %s21, 3
        %s358 = scalar_select %p357, %s21, 3
        %s359 = scalar_lea.vmem %s2, %s358
        %p360 = pneg %p111
        %p361 = pneg %p108
        %p362 = scmp.lt.s32.totalorder %s20, 0
        %s363 = scalar_select %p362, %s20, 0
        %p364 = scmp.lt.s32.totalorder %s21, 3
        %s365 = scalar_select %p364, %s21, 3
        %s366 = smul.addr %s363, 4
        %s367 = sadd.s32 %s365, %s366
        %s368 = smul.addr %s367, 8
        %s369 = scalar_lea.vmem %s3, %s368
        %p370 = pneg %p139
        %p371 = pneg %p136
        %p372 = pneg %p167
        %p373 = pneg %p164
        %p374 = scmp.lt.s32.totalorder %s20, 0
        %s375 = scalar_select %p374, %s20, 0
        %p376 = scmp.lt.s32.totalorder %s21, 3
        %s377 = scalar_select %p376, %s21, 3
        %s378 = smul.addr %s375, 4
        %s379 = sadd.s32 %s377, %s378
        %s380 = smul.addr %s379, 8
        %s381 = scalar_lea.vmem %s4, %s380
        %p382 = scmp.lt.s32.totalorder %s20, 0
        %s383 = scalar_select %p382, %s20, 0
        %p384 = scmp.lt.s32.totalorder %s22, 35
        %s385 = scalar_select %p384, %s22, 35
        %s386 = smul.addr %s383, 36
        %s387 = sadd.s32 %s385, %s386
        %s388 = smul.addr %s387, 4
        %s389 = scalar_lea.vmem %s0, %s388
        %s390 = smul.u32 16, %s22
        %p391 = scmp.lt.s32.totalorder %s21, 3
        %s392 = scalar_select %p391, %s21, 3
        %s393 = scalar_lea.vmem %s2, %s392
        %p394 = scmp.lt.s32.totalorder %s20, 0
        %s395 = scalar_select %p394, %s20, 0
        %p396 = scmp.lt.s32.totalorder %s21, 3
        %s397 = scalar_select %p396, %s21, 3
        %s398 = smul.addr %s395, 4
        %s399 = sadd.s32 %s397, %s398
        %s400 = smul.addr %s399, 8
        %s401 = scalar_lea.vmem %s3, %s400
        %p402 = scmp.lt.s32.totalorder %s20, 0
        %s403 = scalar_select %p402, %s20, 0
        %p404 = scmp.lt.s32.totalorder %s21, 3
        %s405 = scalar_select %p404, %s21, 3
        %s406 = smul.addr %s403, 4
        %s407 = sadd.s32 %s405, %s406
        %s408 = smul.addr %s407, 8
        %s409 = scalar_lea.vmem %s4, %s408
        %p410 = scmp.eq.s32.totalorder %s22, 0
        // Predicated region
        $region78: #{resnet_forward.23} parent=72 // pred_check
          %p411 = pneg %p410
        $region79: #{resnet_forward.23} parent=72 // pred_check_branch
          %413 = sbr.rel (%p411) target = $region81
        $region80: #{resnet_forward.23} parent=72 // pred_region
          %414 = vst [vmem:[#allocation2] sm:$0xff] 0.0
        $region81: #{resnet_forward.23} parent=72 // pred_fallthru
          _
        %v415 = vld [vmem:[#allocation2] sm:$0xff]
        %v416 = vld [vmem:[%s389] sm:$0xf]
        %v417 = vld [vmem:[%s337] sm:$0xf]
        %v418 = vld [vmem:[%s337 + $0x4] sm:$0xf]
        %v419 = vld [vmem:[%s337 + $0x8] sm:$0xf]
        %v420 = vld [vmem:[%s337 + $0xc] sm:$0xf]
        %v421 = vld [vmem:[%s337 + $0x10] sm:$0xf]
        %v422 = vld [vmem:[%s337 + $0x14] sm:$0xf]
        %v423 = vld [vmem:[%s337 + $0x18] sm:$0xf]
        %v424 = vld [vmem:[%s337 + $0x1c] sm:$0xf]
        %v425 = vld [vmem:[%s337 + $0x20] sm:$0xf]
        %v426 = vld [vmem:[%s337 + $0x24] sm:$0xf]
        %v427 = vld [vmem:[%s337 + $0x28] sm:$0xf]
        %v428 = vld [vmem:[%s337 + $0x2c] sm:$0xf]
        %v429 = vld [vmem:[%s337 + $0x30] sm:$0xf]
        %v430 = vld [vmem:[%s337 + $0x34] sm:$0xf]
        %v431 = vld [vmem:[%s337 + $0x38] sm:$0xf]
        %v432 = vld [vmem:[%s337 + $0x3c] sm:$0xf]
        %v449 = vunpack.c.l.b16 %v417
        %v450 = vunpack.c.l.b16 %v418
        %v451 = vunpack.c.l.b16 %v419
        %v452 = vunpack.c.l.b16 %v420
        %v453 = vunpack.c.l.b16 %v421
        %v454 = vunpack.c.l.b16 %v422
        %v455 = vunpack.c.l.b16 %v423
        %v456 = vunpack.c.l.b16 %v424
        %v457 = vunpack.c.l.b16 %v425
        %v458 = vunpack.c.l.b16 %v426
        %v459 = vunpack.c.l.b16 %v427
        %v460 = vunpack.c.l.b16 %v428
        %v461 = vunpack.c.l.b16 %v429
        %v462 = vunpack.c.l.b16 %v430
        %v463 = vunpack.c.l.b16 %v431
        %v464 = vunpack.c.l.b16 %v432
        %v465 = vpack.c.b16 %v450, %v449
        %v466 = vpack.c.b16 %v452, %v451
        %v467 = vpack.c.b16 %v454, %v453
        %v468 = vpack.c.b16 %v456, %v455
        %v469 = vpack.c.b16 %v458, %v457
        %v470 = vpack.c.b16 %v460, %v459
        %v471 = vpack.c.b16 %v462, %v461
        %v472 = vpack.c.b16 %v464, %v463
        %481 = vmatpush.bf16.msra.mxu0 %v472
        %482 = vmatpush.bf16.msra.mxu0 %v471
        %483 = vmatpush.bf16.msra.mxu0 %v470
        %484 = vmatpush.bf16.msra.mxu0 %v469
        %485 = vmatpush.bf16.msra.mxu0 %v468
        %486 = vmatpush.bf16.msra.mxu0 %v467
        %487 = vmatpush.bf16.msra.mxu0 %v466
        %488 = vmatpush.bf16.msra.mxu0 %v465
        %489 = vmatmul.bf16.gmra.mxu0 %v416
        %v490 = vpop.f32.mrf.mxu0
        %v491 = vadd.f32 0.0, %v490
        %v492 = vpop.f32.mrf.mxu0
        %493 = vdwg.mxu0
        %v494 = vadd.f32 %v415, %v491
        %495 = vst [vmem:[#allocation2] sm:$0xff] %v494
        %p496 = scmp.eq.s32.totalorder %s22, 35
        // Predicated region
        $region82: #{resnet_forward.23} parent=72 // pred_check
          %p497 = pneg %p496
        $region83: #{resnet_forward.23} parent=72 // pred_check_branch
          %499 = sbr.rel (%p497) target = $region85
        $region84: #{resnet_forward.23} parent=72 // pred_region
          %v500 = vld [vmem:[#allocation2] sm:$0xff]
          %v501 = vld [vmem:[%s393] sm:$0x1]
          %v503 = vperm.slane %v501, 0
          %v505 = vadd.f32 %v500, %v503
          %v506 = vld [vmem:[%s401] sm:$0xff]
          %v507 = vadd.f32 %v505, %v506
          %v508 = vmax.f32 %v507, 0.0
          %509 = vst [vmem:[%s409] sm:$0xff] %v508
        $region85: #{resnet_forward.23} parent=72 // pred_fallthru
          _
        %p510 = scmp.lt.s32.totalorder %s20, 0
        %s511 = scalar_select %p510, %s20, 0
        %p512 = scmp.lt.s32.totalorder %s21, 3
        %s513 = scalar_select %p512, %s21, 3
        %s514 = smul.addr %s511, 4
        %s515 = sadd.s32 %s513, %s514
        %s516 = smul.addr %s515, 8
        %s517 = scalar_lea.vmem %s4, %s516
        // Predicated region
        $region86: #{resnet_forward.23} parent=72 // pred_check
          %p518 = pneg %p164
        $region87: #{resnet_forward.23} parent=72 // pred_check_branch
          %520 = sbr.rel (%p518) target = $region89
        $region88: #{resnet_forward.23} parent=72 // pred_region
          _
        $region89: #{resnet_forward.23} parent=72 // pred_fallthru
          _
      $region73: #{resnet_forward.23} parent=5 // pred_fallthru
        _
      %p521 = scmp.le.s32.totalorder 2, %s10
      // Predicated region
      $region90: #{resnet_forward.23} parent=5 // pred_check
        %p522 = pneg %p521
      $region91: #{resnet_forward.23} parent=5 // pred_check_branch
        %524 = sbr.rel (%p522) target = $region93
      $region92: #{resnet_forward.23} parent=5 // pred_region
        %s525 = ssub.s32 %s10, 2
        // Predicated region
        $region94: #{resnet_forward.23} parent=92 // pred_check
          %p526 = pneg %p170
        $region95: #{resnet_forward.23} parent=92 // pred_check_branch
          %528 = sbr.rel (%p526) target = $region97
        $region96: #{resnet_forward.23} parent=92 // pred_region
          %p529 = scmp.lt.s32.totalorder %s23, 0
          %s530 = scalar_select %p529, %s23, 0
          %p531 = scmp.lt.s32.totalorder %s24, 3
          %s532 = scalar_select %p531, %s24, 3
          %s533 = smul.addr %s530, 4
          %s534 = sadd.s32 %s532, %s533
          %s535 = smul.addr %s534, 8
          %s536 = scalar_lea.vmem %s4, %s535
        $region97: #{resnet_forward.23} parent=92 // pred_fallthru
          _
      $region93: #{resnet_forward.23} parent=5 // pred_fallthru
        _
    $region6: #{resnet_forward.23} parent=1 // loop_footer
      %s14 = sadd.s32 1, %s10
    $region7: #{resnet_forward.23} parent=1 // loop_footer_branch
      %9 = sbr.rel target = $region3
    $region8: #{resnet_forward.23} parent=1 // loop_exit
      _

</llo_original>
